<compile_context>
chip_gen: v6e
topology: v6e:2x2x1
jax: 0.10.0
libtpu: 0.0.40
codegen_flags: <defaults>
</compile_context>

<pallas_src>
import functools

import jax
import jax.numpy as jnp
from jax.experimental import pallas as pl
from jax.experimental.pallas import tpu as pltpu


# ------------------------------ in-kernel layer -------------------------------

def _gat_layer(x_b, w_ref, bias_ref, mask, acc_ref, *, heads, out_ch, concat,
               apply_elu, d_skip):
    """One GATConv + Linear skip (+ optional ELU). Everything stays in VMEM.

    w_ref column layout: [ W_gat (H*C) | W_skip (d_skip) | A_src (H) | A_dst (H) ]
    where A_src[:, h] = W_gat[:, h*C:(h+1)*C] @ att_src[h]  (same for A_dst).
    """
    hc = heads * out_ch

    # Single fused bf16 MXU pass: projection + skip + attention logit vectors.
    xw = jnp.dot(x_b, w_ref[...], preferred_element_type=jnp.float32)
    skip = xw[:, hc:hc + d_skip]                               # [N, d_skip]
    a_src = xw[:, hc + d_skip:hc + d_skip + heads]             # [N, H]
    a_dst = xw[:, hc + d_skip + heads:hc + d_skip + 2 * heads] # [N, H]

    mean_acc = None
    for h in range(heads):                                     # static unroll
        xhead = xw[:, h * out_ch:(h + 1) * out_ch]             # [N, C]

        # logits[i, j] = leaky_relu(a_dst[i] + a_src[j], 0.2), masked by adj
        logits = a_dst[:, h:h + 1] + jnp.transpose(a_src[:, h:h + 1])  # [N, N]
        logits = jnp.where(logits > 0, logits, 0.2 * logits)
        logits = jnp.where(mask, logits, jnp.float32(-1e30))

        m = jnp.max(logits, axis=-1, keepdims=True)
        p = jnp.where(mask, jnp.exp(logits - m), 0.0)
        inv = pl.reciprocal(jnp.sum(p, axis=-1, keepdims=True), approx=True)
        out_h = jnp.dot(p * inv, xhead, preferred_element_type=jnp.float32)

        if concat:
            # write the head's output straight into its output column slice
            acc_ref[:, h * out_ch:(h + 1) * out_ch] = out_h
        else:
            mean_acc = out_h if mean_acc is None else mean_acc + out_h

    body = acc_ref[...] if concat else mean_acc * jnp.float32(1.0 / heads)
    y = body + bias_ref[...] + skip                            # fused bias + skip
    if apply_elu:
        y = jnp.where(y > 0, y, jnp.exp(y) - 1.0)
    return y


def _encoder_kernel(out_dim,
                    x_ref, adj_ref, w1_ref, b1_ref, w2_ref, b2_ref,
                    w3_ref, b3_ref, o_ref, acc_ref):
    mask = adj_ref[...] > 0.0        # computed once, reused by all layers/heads

    x1 = _gat_layer(x_ref[...], w1_ref, b1_ref, mask, acc_ref,
                    heads=4, out_ch=256, concat=True, apply_elu=True,
                    d_skip=1024)
    x2 = _gat_layer(x1.astype(jnp.bfloat16), w2_ref, b2_ref, mask, acc_ref,
                    heads=4, out_ch=256, concat=True, apply_elu=True,
                    d_skip=1024)
    x3 = _gat_layer(x2.astype(jnp.bfloat16), w3_ref, b3_ref, mask, None,
                    heads=6, out_ch=out_dim, concat=False, apply_elu=False,
                    d_skip=out_dim)
    o_ref[...] = x3


# ------------------------------- forward pass ---------------------------------

def gat_encoder_forward(fused, x, adj, out_dim):
    n = x.shape[0]
    w1, b1 = fused["l1"]["w"], fused["l1"]["bias"]
    w2, b2 = fused["l2"]["w"], fused["l2"]["bias"]
    w3, b3 = fused["l3"]["w"], fused["l3"]["bias"]

    def full(shape):
        return pl.BlockSpec(tuple(shape), lambda i: (0,) * len(shape))

    kernel = functools.partial(_encoder_kernel, out_dim)
    return pl.pallas_call(
        kernel,
        out_shape=jax.ShapeDtypeStruct((n, out_dim), jnp.float32),
        grid=(1,),
        in_specs=[
            full(x.shape), full(adj.shape),
            full(w1.shape), full(b1.shape),
            full(w2.shape), full(b2.shape),
            full(w3.shape), full(b3.shape),
        ],
        out_specs=full((n, out_dim)),
        scratch_shapes=[pltpu.VMEM((n, 4 * 256), jnp.float32)],  # head-concat acc
        compiler_params=pltpu.CompilerParams(
            dimension_semantics=("arbitrary",),
            vmem_limit_bytes=40 * 1024 * 1024,
        ),
    )(x.astype(jnp.bfloat16), adj, w1, b1, w2, b2, w3, b3)


# -------------------------- parameters & param fusion --------------------------

def init_gat_conv(key, in_dim, out_ch, heads, concat):
    k1, k2, k3, k4 = jax.random.split(key, 4)
    bias_dim = heads * out_ch if concat else out_ch
    return dict(
        w_lin=jax.random.normal(k1, (in_dim, heads * out_ch), jnp.float32)
        / jnp.sqrt(jnp.float32(in_dim)),
        att_src=jax.random.normal(k2, (heads, out_ch), jnp.float32)
        / jnp.sqrt(jnp.float32(out_ch)),
        att_dst=jax.random.normal(k3, (heads, out_ch), jnp.float32)
        / jnp.sqrt(jnp.float32(out_ch)),
        bias=0.01 * jax.random.normal(k4, (bias_dim,), jnp.float32),
    )


def init_linear(key, in_dim, out_dim):
    k1, k2 = jax.random.split(key)
    return dict(
        w=jax.random.normal(k1, (in_dim, out_dim), jnp.float32)
        / jnp.sqrt(jnp.float32(in_dim)),
        b=0.01 * jax.random.normal(k2, (out_dim,), jnp.float32),
    )


def fuse_layer_params(conv, skip, heads, out_ch):
    """[W_gat | W_skip | W_h@att_src_h | W_h@att_dst_h] in bf16, folded biases."""
    din = conv["w_lin"].shape[0]
    w_gat = conv["w_lin"]                                      # [din, H*C]
    w_h = w_gat.reshape(din, heads, out_ch)
    a_src_cols = jnp.einsum("dhc,hc->dh", w_h, conv["att_src"])  # [din, H]
    a_dst_cols = jnp.einsum("dhc,hc->dh", w_h, conv["att_dst"])  # [din, H]
    w = jnp.concatenate([w_gat, skip["w"], a_src_cols, a_dst_cols],
                        axis=1).astype(jnp.bfloat16)
    bias = (conv["bias"] + skip["b"]).reshape(1, -1).astype(jnp.float32)
    return dict(w=w, bias=bias)


def build_adjacency(edge_index, n):
    src, dst = edge_index[0], edge_index[1]
    adj = jnp.zeros((n, n), jnp.float32).at[dst, src].set(1.0)
    # GATConv default add_self_loops=True (also keeps every softmax row valid)
    adj = jnp.maximum(adj, jnp.eye(n, dtype=jnp.float32))
    return adj


# ------------------------------ pure-JAX reference -----------------------------

def _ref_layer(raw_conv, fused_layer, x, adj, heads, out_ch, concat, apply_elu):
    n = x.shape[0]
    hc = heads * out_ch
    d_skip = hc if concat else out_ch
    xw = jnp.dot(x.astype(jnp.bfloat16), fused_layer["w"][:, :hc + d_skip],
                 preferred_element_type=jnp.float32)
    xh = xw[:, :hc].reshape(n, heads, out_ch)
    skip = xw[:, hc:hc + d_skip]
    a_src = jnp.einsum("nhc,hc->nh", xh, raw_conv["att_src"])
    a_dst = jnp.einsum("nhc,hc->nh", xh, raw_conv["att_dst"])
    logits = a_dst[:, None, :] + a_src[None, :, :]             # [N_dst, N_src, H]
    logits = jnp.where(logits > 0, logits, 0.2 * logits)
    mask = (adj > 0)[:, :, None]
    logits = jnp.where(mask, logits, -1e30)
    logits = logits - jnp.max(logits, axis=1, keepdims=True)
    p = jnp.where(mask, jnp.exp(logits), 0.0)
    attn = p / jnp.sum(p, axis=1, keepdims=True)
    out = jnp.einsum("ijh,jhc->ihc", attn, xh)
    out = out.reshape(n, hc) if concat else out.mean(axis=1)
    y = out + fused_layer["bias"] + skip
    if apply_elu:
        y = jnp.where(y > 0, y, jnp.exp(y) - 1.0)
    return y


def _ref_forward(raw, fused, x, adj, out_dim):
    x = _ref_layer(raw["conv1"], fused["l1"], x, adj, 4, 256, True, True)
    x = _ref_layer(raw["conv2"], fused["l2"], x, adj, 4, 256, True, True)
    x = _ref_layer(raw["conv3"], fused["l3"], x, adj, 6, out_dim, False, False)
    return x


# ----------------------------------- main --------------------------------------

if __name__ == "__main__":
    IN_DIM, OUT_DIM, N = 16, 64, 8

    key = jax.random.PRNGKey(0)
    kx, k1, k2, k3, k4, k5, k6 = jax.random.split(key, 7)

    x = jax.random.normal(kx, (N, IN_DIM), jnp.float32)
    # deterministic duplicate-free edge list (ring + a few chords), src->dst
    edge_index = jnp.array(
        [[0, 1, 2, 3, 4, 5, 6, 7, 0, 2, 4, 6],
         [1, 2, 3, 4, 5, 6, 7, 0, 4, 6, 0, 2]], dtype=jnp.int32)
    adj = build_adjacency(edge_index, N)

    raw = dict(
        conv1=init_gat_conv(k1, IN_DIM, 256, heads=4, concat=True),
        skip1=init_linear(k2, IN_DIM, 4 * 256),
        conv2=init_gat_conv(k3, 4 * 256, 256, heads=4, concat=True),
        skip2=init_linear(k4, 4 * 256, 4 * 256),
        conv3=init_gat_conv(k5, 4 * 256, OUT_DIM, heads=6, concat=False),
        skip3=init_linear(k6, 4 * 256, OUT_DIM),
    )
    fused = dict(
        l1=fuse_layer_params(raw["conv1"], raw["skip1"], 4, 256),
        l2=fuse_layer_params(raw["conv2"], raw["skip2"], 4, 256),
        l3=fuse_layer_params(raw["conv3"], raw["skip3"], 6, OUT_DIM),
    )

    out = jax.block_until_ready(gat_encoder_forward(fused, x, adj, OUT_DIM))
    assert out.shape == (N, OUT_DIM) and out.dtype == jnp.float32

    ref = jax.block_until_ready(_ref_forward(raw, fused, x, adj, OUT_DIM))
    rel_err = float(jnp.max(jnp.abs(out - ref)) / (jnp.max(jnp.abs(ref)) + 1e-6))
    assert rel_err < 2e-2, f"mismatch vs reference, rel_err={rel_err}"

    print("KERNEL_OK")
</pallas_src>

<mosaic_0001>
module attributes {stable_mosaic.version = 11 : i64} {
  func.func @_encoder_kernel(%arg0: i32, %arg1: memref<8x16xbf16, #tpu.memory_space<vmem>>, %arg2: memref<8x8xf32, #tpu.memory_space<vmem>>, %arg3: memref<16x2056xbf16, #tpu.memory_space<vmem>>, %arg4: memref<1x1024xf32, #tpu.memory_space<vmem>>, %arg5: memref<1024x2056xbf16, #tpu.memory_space<vmem>>, %arg6: memref<1x1024xf32, #tpu.memory_space<vmem>>, %arg7: memref<1024x460xbf16, #tpu.memory_space<vmem>>, %arg8: memref<1x64xf32, #tpu.memory_space<vmem>>, %arg9: memref<8x64xf32, #tpu.memory_space<vmem>>, %arg10: memref<8x1024xf32, #tpu.memory_space<vmem>>) attributes {dimension_semantics = [#tpu.dimension_semantics<arbitrary>], iteration_bounds = array<i64: 1>, scalar_prefetch = 0 : i64, scratch_operands = 1 : i64, tpu.core_type = #tpu.core_type<tc>, window_params = [{pipeline_mode = #tpu.pipeline_mode<synchronous>, transform_indices = @transform_0, window_bounds = array<i64: 8, 16>}, {pipeline_mode = #tpu.pipeline_mode<synchronous>, transform_indices = @transform_1, window_bounds = array<i64: 8, 8>}, {pipeline_mode = #tpu.pipeline_mode<synchronous>, transform_indices = @transform_2, window_bounds = array<i64: 16, 2056>}, {pipeline_mode = #tpu.pipeline_mode<synchronous>, transform_indices = @transform_3, window_bounds = array<i64: 1, 1024>}, {pipeline_mode = #tpu.pipeline_mode<synchronous>, transform_indices = @transform_4, window_bounds = array<i64: 1024, 2056>}, {pipeline_mode = #tpu.pipeline_mode<synchronous>, transform_indices = @transform_5, window_bounds = array<i64: 1, 1024>}, {pipeline_mode = #tpu.pipeline_mode<synchronous>, transform_indices = @transform_6, window_bounds = array<i64: 1024, 460>}, {pipeline_mode = #tpu.pipeline_mode<synchronous>, transform_indices = @transform_7, window_bounds = array<i64: 1, 64>}, {pipeline_mode = #tpu.pipeline_mode<synchronous>, transform_indices = @transform_8, window_bounds = array<i64: 8, 64>}]} {
    %c0 = arith.constant 0 : index
    %c0_0 = arith.constant 0 : index
    %0 = vector.load %arg2[%c0, %c0_0] : memref<8x8xf32, #tpu.memory_space<vmem>>, vector<8x8xf32>
    %cst = arith.constant 0.000000e+00 : f32
    %1 = vector.broadcast %cst : f32 to vector<8x8xf32>
    %2 = arith.cmpf ogt, %0, %1 : vector<8x8xf32>
    %c0_1 = arith.constant 0 : index
    %c0_2 = arith.constant 0 : index
    %3 = vector.load %arg1[%c0_1, %c0_2] : memref<8x16xbf16, #tpu.memory_space<vmem>>, vector<8x16xbf16>
    %c0_3 = arith.constant 0 : index
    %c0_4 = arith.constant 0 : index
    %4 = vector.load %arg3[%c0_3, %c0_4] : memref<16x2056xbf16, #tpu.memory_space<vmem>>, vector<16x2056xbf16>
    %cst_5 = arith.constant dense<0.000000e+00> : vector<8x2056xf32>
    %5 = tpu.matmul %3, %4, %cst_5 {dimension_numbers = #tpu.dot_dimension_numbers<[1], [0], [0], [1], [0, 0, 1, 1], [], []>} : vector<8x16xbf16>, vector<16x2056xbf16>, vector<8x2056xf32> -> vector<8x2056xf32>
    %6 = vector.extract_strided_slice %5 {offsets = [0, 1024], sizes = [8, 1024], strides = [1, 1]} : vector<8x2056xf32> to vector<8x1024xf32>
    %7 = vector.extract_strided_slice %5 {offsets = [0, 2048], sizes = [8, 4], strides = [1, 1]} : vector<8x2056xf32> to vector<8x4xf32>
    %8 = vector.extract_strided_slice %5 {offsets = [0, 2052], sizes = [8, 4], strides = [1, 1]} : vector<8x2056xf32> to vector<8x4xf32>
    %9 = vector.extract_strided_slice %5 {offsets = [0, 0], sizes = [8, 256], strides = [1, 1]} : vector<8x2056xf32> to vector<8x256xf32>
    %10 = vector.extract_strided_slice %8 {offsets = [0, 0], sizes = [8, 1], strides = [1, 1]} : vector<8x4xf32> to vector<8x1xf32>
    %11 = vector.extract_strided_slice %7 {offsets = [0, 0], sizes = [8, 1], strides = [1, 1]} : vector<8x4xf32> to vector<8x1xf32>
    %12 = tpu.transpose %11, [1, 0] : vector<8x1xf32> -> vector<1x8xf32>
    %13 = vector.broadcast %10 : vector<8x1xf32> to vector<8x8xf32>
    %14 = vector.broadcast %12 : vector<1x8xf32> to vector<8x8xf32>
    %15 = arith.addf %13, %14 : vector<8x8xf32>
    %cst_6 = arith.constant 0.000000e+00 : f32
    %16 = vector.broadcast %cst_6 : f32 to vector<8x8xf32>
    %17 = arith.cmpf ogt, %15, %16 : vector<8x8xf32>
    %cst_7 = arith.constant 2.000000e-01 : f32
    %18 = vector.broadcast %cst_7 : f32 to vector<8x8xf32>
    %19 = arith.mulf %18, %15 : vector<8x8xf32>
    %20 = arith.select %17, %15, %19 : vector<8x8xi1>, vector<8x8xf32>
    %cst_8 = arith.constant -1.000000e+30 : f32
    %21 = vector.broadcast %cst_8 : f32 to vector<8x8xf32>
    %22 = arith.select %2, %20, %21 : vector<8x8xi1>, vector<8x8xf32>
    %cst_9 = arith.constant dense<0xFF800000> : vector<8xf32>
    %23 = vector.multi_reduction <maximumf>, %22, %cst_9 [1] : vector<8x8xf32> to vector<8xf32>
    %24 = vector.shape_cast %23 : vector<8xf32> to vector<8x1xf32>
    %25 = vector.broadcast %24 : vector<8x1xf32> to vector<8x8xf32>
    %26 = arith.subf %22, %25 : vector<8x8xf32>
    %27 = math.exp %26 : vector<8x8xf32>
    %cst_10 = arith.constant 0.000000e+00 : f32
    %28 = vector.broadcast %cst_10 : f32 to vector<8x8xf32>
    %29 = arith.select %2, %27, %28 : vector<8x8xi1>, vector<8x8xf32>
    %cst_11 = arith.constant dense<0.000000e+00> : vector<8xf32>
    %30 = vector.multi_reduction <add>, %29, %cst_11 [1] : vector<8x8xf32> to vector<8xf32>
    %31 = vector.shape_cast %30 : vector<8xf32> to vector<8x1xf32>
    %32 = tpu.reciprocal %31 {approx = true} : vector<8x1xf32> -> vector<8x1xf32>
    %33 = vector.broadcast %32 : vector<8x1xf32> to vector<8x8xf32>
    %34 = arith.mulf %29, %33 : vector<8x8xf32>
    %cst_12 = arith.constant dense<0.000000e+00> : vector<8x256xf32>
    %35 = tpu.matmul %34, %9, %cst_12 {dimension_numbers = #tpu.dot_dimension_numbers<[1], [0], [0], [1], [0, 0, 1, 1], [], []>} : vector<8x8xf32>, vector<8x256xf32>, vector<8x256xf32> -> vector<8x256xf32>
    %c0_13 = arith.constant 0 : index
    %c0_14 = arith.constant 0 : index
    %36 = vector.load %arg10[%c0_13, %c0_14] : memref<8x1024xf32, #tpu.memory_space<vmem>>, vector<8x256xf32>
    tpu.vector_store %arg10[%c0_13, %c0_14], %35 {strides = array<i32>} : memref<8x1024xf32, #tpu.memory_space<vmem>>, vector<8x256xf32>,
    %37 = vector.extract_strided_slice %5 {offsets = [0, 256], sizes = [8, 256], strides = [1, 1]} : vector<8x2056xf32> to vector<8x256xf32>
    %38 = vector.extract_strided_slice %8 {offsets = [0, 1], sizes = [8, 1], strides = [1, 1]} : vector<8x4xf32> to vector<8x1xf32>
    %39 = vector.extract_strided_slice %7 {offsets = [0, 1], sizes = [8, 1], strides = [1, 1]} : vector<8x4xf32> to vector<8x1xf32>
    %40 = tpu.transpose %39, [1, 0] : vector<8x1xf32> -> vector<1x8xf32>
    %41 = vector.broadcast %38 : vector<8x1xf32> to vector<8x8xf32>
    %42 = vector.broadcast %40 : vector<1x8xf32> to vector<8x8xf32>
    %43 = arith.addf %41, %42 : vector<8x8xf32>
    %cst_15 = arith.constant 0.000000e+00 : f32
    %44 = vector.broadcast %cst_15 : f32 to vector<8x8xf32>
    %45 = arith.cmpf ogt, %43, %44 : vector<8x8xf32>
    %cst_16 = arith.constant 2.000000e-01 : f32
    %46 = vector.broadcast %cst_16 : f32 to vector<8x8xf32>
    %47 = arith.mulf %46, %43 : vector<8x8xf32>
    %48 = arith.select %45, %43, %47 : vector<8x8xi1>, vector<8x8xf32>
    %cst_17 = arith.constant -1.000000e+30 : f32
    %49 = vector.broadcast %cst_17 : f32 to vector<8x8xf32>
    %50 = arith.select %2, %48, %49 : vector<8x8xi1>, vector<8x8xf32>
    %cst_18 = arith.constant dense<0xFF800000> : vector<8xf32>
    %51 = vector.multi_reduction <maximumf>, %50, %cst_18 [1] : vector<8x8xf32> to vector<8xf32>
    %52 = vector.shape_cast %51 : vector<8xf32> to vector<8x1xf32>
    %53 = vector.broadcast %52 : vector<8x1xf32> to vector<8x8xf32>
    %54 = arith.subf %50, %53 : vector<8x8xf32>
    %55 = math.exp %54 : vector<8x8xf32>
    %cst_19 = arith.constant 0.000000e+00 : f32
    %56 = vector.broadcast %cst_19 : f32 to vector<8x8xf32>
    %57 = arith.select %2, %55, %56 : vector<8x8xi1>, vector<8x8xf32>
    %cst_20 = arith.constant dense<0.000000e+00> : vector<8xf32>
    %58 = vector.multi_reduction <add>, %57, %cst_20 [1] : vector<8x8xf32> to vector<8xf32>
    %59 = vector.shape_cast %58 : vector<8xf32> to vector<8x1xf32>
    %60 = tpu.reciprocal %59 {approx = true} : vector<8x1xf32> -> vector<8x1xf32>
    %61 = vector.broadcast %60 : vector<8x1xf32> to vector<8x8xf32>
    %62 = arith.mulf %57, %61 : vector<8x8xf32>
    %cst_21 = arith.constant dense<0.000000e+00> : vector<8x256xf32>
    %63 = tpu.matmul %62, %37, %cst_21 {dimension_numbers = #tpu.dot_dimension_numbers<[1], [0], [0], [1], [0, 0, 1, 1], [], []>} : vector<8x8xf32>, vector<8x256xf32>, vector<8x256xf32> -> vector<8x256xf32>
    %c0_22 = arith.constant 0 : index
    %c256 = arith.constant 256 : index
    %64 = vector.load %arg10[%c0_22, %c256] : memref<8x1024xf32, #tpu.memory_space<vmem>>, vector<8x256xf32>
    tpu.vector_store %arg10[%c0_22, %c256], %63 {strides = array<i32>} : memref<8x1024xf32, #tpu.memory_space<vmem>>, vector<8x256xf32>,
    %65 = vector.extract_strided_slice %5 {offsets = [0, 512], sizes = [8, 256], strides = [1, 1]} : vector<8x2056xf32> to vector<8x256xf32>
    %66 = vector.extract_strided_slice %8 {offsets = [0, 2], sizes = [8, 1], strides = [1, 1]} : vector<8x4xf32> to vector<8x1xf32>
    %67 = vector.extract_strided_slice %7 {offsets = [0, 2], sizes = [8, 1], strides = [1, 1]} : vector<8x4xf32> to vector<8x1xf32>
    %68 = tpu.transpose %67, [1, 0] : vector<8x1xf32> -> vector<1x8xf32>
    %69 = vector.broadcast %66 : vector<8x1xf32> to vector<8x8xf32>
    %70 = vector.broadcast %68 : vector<1x8xf32> to vector<8x8xf32>
    %71 = arith.addf %69, %70 : vector<8x8xf32>
    %cst_23 = arith.constant 0.000000e+00 : f32
    %72 = vector.broadcast %cst_23 : f32 to vector<8x8xf32>
    %73 = arith.cmpf ogt, %71, %72 : vector<8x8xf32>
    %cst_24 = arith.constant 2.000000e-01 : f32
    %74 = vector.broadcast %cst_24 : f32 to vector<8x8xf32>
    %75 = arith.mulf %74, %71 : vector<8x8xf32>
    %76 = arith.select %73, %71, %75 : vector<8x8xi1>, vector<8x8xf32>
    %cst_25 = arith.constant -1.000000e+30 : f32
    %77 = vector.broadcast %cst_25 : f32 to vector<8x8xf32>
    %78 = arith.select %2, %76, %77 : vector<8x8xi1>, vector<8x8xf32>
    %cst_26 = arith.constant dense<0xFF800000> : vector<8xf32>
    %79 = vector.multi_reduction <maximumf>, %78, %cst_26 [1] : vector<8x8xf32> to vector<8xf32>
    %80 = vector.shape_cast %79 : vector<8xf32> to vector<8x1xf32>
    %81 = vector.broadcast %80 : vector<8x1xf32> to vector<8x8xf32>
    %82 = arith.subf %78, %81 : vector<8x8xf32>
    %83 = math.exp %82 : vector<8x8xf32>
    %cst_27 = arith.constant 0.000000e+00 : f32
    %84 = vector.broadcast %cst_27 : f32 to vector<8x8xf32>
    %85 = arith.select %2, %83, %84 : vector<8x8xi1>, vector<8x8xf32>
    %cst_28 = arith.constant dense<0.000000e+00> : vector<8xf32>
    %86 = vector.multi_reduction <add>, %85, %cst_28 [1] : vector<8x8xf32> to vector<8xf32>
    %87 = vector.shape_cast %86 : vector<8xf32> to vector<8x1xf32>
    %88 = tpu.reciprocal %87 {approx = true} : vector<8x1xf32> -> vector<8x1xf32>
    %89 = vector.broadcast %88 : vector<8x1xf32> to vector<8x8xf32>
    %90 = arith.mulf %85, %89 : vector<8x8xf32>
    %cst_29 = arith.constant dense<0.000000e+00> : vector<8x256xf32>
    %91 = tpu.matmul %90, %65, %cst_29 {dimension_numbers = #tpu.dot_dimension_numbers<[1], [0], [0], [1], [0, 0, 1, 1], [], []>} : vector<8x8xf32>, vector<8x256xf32>, vector<8x256xf32> -> vector<8x256xf32>
    %c0_30 = arith.constant 0 : index
    %c512 = arith.constant 512 : index
    %92 = vector.load %arg10[%c0_30, %c512] : memref<8x1024xf32, #tpu.memory_space<vmem>>, vector<8x256xf32>
    tpu.vector_store %arg10[%c0_30, %c512], %91 {strides = array<i32>} : memref<8x1024xf32, #tpu.memory_space<vmem>>, vector<8x256xf32>,
    %93 = vector.extract_strided_slice %5 {offsets = [0, 768], sizes = [8, 256], strides = [1, 1]} : vector<8x2056xf32> to vector<8x256xf32>
    %94 = vector.extract_strided_slice %8 {offsets = [0, 3], sizes = [8, 1], strides = [1, 1]} : vector<8x4xf32> to vector<8x1xf32>
    %95 = vector.extract_strided_slice %7 {offsets = [0, 3], sizes = [8, 1], strides = [1, 1]} : vector<8x4xf32> to vector<8x1xf32>
    %96 = tpu.transpose %95, [1, 0] : vector<8x1xf32> -> vector<1x8xf32>
    %97 = vector.broadcast %94 : vector<8x1xf32> to vector<8x8xf32>
    %98 = vector.broadcast %96 : vector<1x8xf32> to vector<8x8xf32>
    %99 = arith.addf %97, %98 : vector<8x8xf32>
    %cst_31 = arith.constant 0.000000e+00 : f32
    %100 = vector.broadcast %cst_31 : f32 to vector<8x8xf32>
    %101 = arith.cmpf ogt, %99, %100 : vector<8x8xf32>
    %cst_32 = arith.constant 2.000000e-01 : f32
    %102 = vector.broadcast %cst_32 : f32 to vector<8x8xf32>
    %103 = arith.mulf %102, %99 : vector<8x8xf32>
    %104 = arith.select %101, %99, %103 : vector<8x8xi1>, vector<8x8xf32>
    %cst_33 = arith.constant -1.000000e+30 : f32
    %105 = vector.broadcast %cst_33 : f32 to vector<8x8xf32>
    %106 = arith.select %2, %104, %105 : vector<8x8xi1>, vector<8x8xf32>
    %cst_34 = arith.constant dense<0xFF800000> : vector<8xf32>
    %107 = vector.multi_reduction <maximumf>, %106, %cst_34 [1] : vector<8x8xf32> to vector<8xf32>
    %108 = vector.shape_cast %107 : vector<8xf32> to vector<8x1xf32>
    %109 = vector.broadcast %108 : vector<8x1xf32> to vector<8x8xf32>
    %110 = arith.subf %106, %109 : vector<8x8xf32>
    %111 = math.exp %110 : vector<8x8xf32>
    %cst_35 = arith.constant 0.000000e+00 : f32
    %112 = vector.broadcast %cst_35 : f32 to vector<8x8xf32>
    %113 = arith.select %2, %111, %112 : vector<8x8xi1>, vector<8x8xf32>
    %cst_36 = arith.constant dense<0.000000e+00> : vector<8xf32>
    %114 = vector.multi_reduction <add>, %113, %cst_36 [1] : vector<8x8xf32> to vector<8xf32>
    %115 = vector.shape_cast %114 : vector<8xf32> to vector<8x1xf32>
    %116 = tpu.reciprocal %115 {approx = true} : vector<8x1xf32> -> vector<8x1xf32>
    %117 = vector.broadcast %116 : vector<8x1xf32> to vector<8x8xf32>
    %118 = arith.mulf %113, %117 : vector<8x8xf32>
    %cst_37 = arith.constant dense<0.000000e+00> : vector<8x256xf32>
    %119 = tpu.matmul %118, %93, %cst_37 {dimension_numbers = #tpu.dot_dimension_numbers<[1], [0], [0], [1], [0, 0, 1, 1], [], []>} : vector<8x8xf32>, vector<8x256xf32>, vector<8x256xf32> -> vector<8x256xf32>
    %c0_38 = arith.constant 0 : index
    %c768 = arith.constant 768 : index
    %120 = vector.load %arg10[%c0_38, %c768] : memref<8x1024xf32, #tpu.memory_space<vmem>>, vector<8x256xf32>
    tpu.vector_store %arg10[%c0_38, %c768], %119 {strides = array<i32>} : memref<8x1024xf32, #tpu.memory_space<vmem>>, vector<8x256xf32>,
    %c0_39 = arith.constant 0 : index
    %c0_40 = arith.constant 0 : index
    %121 = vector.load %arg10[%c0_39, %c0_40] : memref<8x1024xf32, #tpu.memory_space<vmem>>, vector<8x1024xf32>
    %c0_41 = arith.constant 0 : index
    %c0_42 = arith.constant 0 : index
    %122 = vector.load %arg4[%c0_41, %c0_42] : memref<1x1024xf32, #tpu.memory_space<vmem>>, vector<1x1024xf32>
    %123 = vector.broadcast %122 : vector<1x1024xf32> to vector<8x1024xf32>
    %124 = arith.addf %121, %123 : vector<8x1024xf32>
    %125 = arith.addf %124, %6 : vector<8x1024xf32>
    %cst_43 = arith.constant 0.000000e+00 : f32
    %126 = vector.broadcast %cst_43 : f32 to vector<8x1024xf32>
    %127 = arith.cmpf ogt, %125, %126 : vector<8x1024xf32>
    %128 = math.exp %125 : vector<8x1024xf32>
    %cst_44 = arith.constant 1.000000e+00 : f32
    %129 = vector.broadcast %cst_44 : f32 to vector<8x1024xf32>
    %130 = arith.subf %128, %129 : vector<8x1024xf32>
    %131 = arith.select %127, %125, %130 : vector<8x1024xi1>, vector<8x1024xf32>
    %132 = arith.truncf %131 : vector<8x1024xf32> to vector<8x1024xbf16>
    %c0_45 = arith.constant 0 : index
    %c0_46 = arith.constant 0 : index
    %133 = vector.load %arg5[%c0_45, %c0_46] : memref<1024x2056xbf16, #tpu.memory_space<vmem>>, vector<1024x2056xbf16>
    %cst_47 = arith.constant dense<0.000000e+00> : vector<8x2056xf32>
    %134 = tpu.matmul %132, %133, %cst_47 {dimension_numbers = #tpu.dot_dimension_numbers<[1], [0], [0], [1], [0, 0, 1, 1], [], []>} : vector<8x1024xbf16>, vector<1024x2056xbf16>, vector<8x2056xf32> -> vector<8x2056xf32>
    %135 = vector.extract_strided_slice %134 {offsets = [0, 1024], sizes = [8, 1024], strides = [1, 1]} : vector<8x2056xf32> to vector<8x1024xf32>
    %136 = vector.extract_strided_slice %134 {offsets = [0, 2048], sizes = [8, 4], strides = [1, 1]} : vector<8x2056xf32> to vector<8x4xf32>
    %137 = vector.extract_strided_slice %134 {offsets = [0, 2052], sizes = [8, 4], strides = [1, 1]} : vector<8x2056xf32> to vector<8x4xf32>
    %138 = vector.extract_strided_slice %134 {offsets = [0, 0], sizes = [8, 256], strides = [1, 1]} : vector<8x2056xf32> to vector<8x256xf32>
    %139 = vector.extract_strided_slice %137 {offsets = [0, 0], sizes = [8, 1], strides = [1, 1]} : vector<8x4xf32> to vector<8x1xf32>
    %140 = vector.extract_strided_slice %136 {offsets = [0, 0], sizes = [8, 1], strides = [1, 1]} : vector<8x4xf32> to vector<8x1xf32>
    %141 = tpu.transpose %140, [1, 0] : vector<8x1xf32> -> vector<1x8xf32>
    %142 = vector.broadcast %139 : vector<8x1xf32> to vector<8x8xf32>
    %143 = vector.broadcast %141 : vector<1x8xf32> to vector<8x8xf32>
    %144 = arith.addf %142, %143 : vector<8x8xf32>
    %cst_48 = arith.constant 0.000000e+00 : f32
    %145 = vector.broadcast %cst_48 : f32 to vector<8x8xf32>
    %146 = arith.cmpf ogt, %144, %145 : vector<8x8xf32>
    %cst_49 = arith.constant 2.000000e-01 : f32
    %147 = vector.broadcast %cst_49 : f32 to vector<8x8xf32>
    %148 = arith.mulf %147, %144 : vector<8x8xf32>
    %149 = arith.select %146, %144, %148 : vector<8x8xi1>, vector<8x8xf32>
    %cst_50 = arith.constant -1.000000e+30 : f32
    %150 = vector.broadcast %cst_50 : f32 to vector<8x8xf32>
    %151 = arith.select %2, %149, %150 : vector<8x8xi1>, vector<8x8xf32>
    %cst_51 = arith.constant dense<0xFF800000> : vector<8xf32>
    %152 = vector.multi_reduction <maximumf>, %151, %cst_51 [1] : vector<8x8xf32> to vector<8xf32>
    %153 = vector.shape_cast %152 : vector<8xf32> to vector<8x1xf32>
    %154 = vector.broadcast %153 : vector<8x1xf32> to vector<8x8xf32>
    %155 = arith.subf %151, %154 : vector<8x8xf32>
    %156 = math.exp %155 : vector<8x8xf32>
    %cst_52 = arith.constant 0.000000e+00 : f32
    %157 = vector.broadcast %cst_52 : f32 to vector<8x8xf32>
    %158 = arith.select %2, %156, %157 : vector<8x8xi1>, vector<8x8xf32>
    %cst_53 = arith.constant dense<0.000000e+00> : vector<8xf32>
    %159 = vector.multi_reduction <add>, %158, %cst_53 [1] : vector<8x8xf32> to vector<8xf32>
    %160 = vector.shape_cast %159 : vector<8xf32> to vector<8x1xf32>
    %161 = tpu.reciprocal %160 {approx = true} : vector<8x1xf32> -> vector<8x1xf32>
    %162 = vector.broadcast %161 : vector<8x1xf32> to vector<8x8xf32>
    %163 = arith.mulf %158, %162 : vector<8x8xf32>
    %cst_54 = arith.constant dense<0.000000e+00> : vector<8x256xf32>
    %164 = tpu.matmul %163, %138, %cst_54 {dimension_numbers = #tpu.dot_dimension_numbers<[1], [0], [0], [1], [0, 0, 1, 1], [], []>} : vector<8x8xf32>, vector<8x256xf32>, vector<8x256xf32> -> vector<8x256xf32>
    %c0_55 = arith.constant 0 : index
    %c0_56 = arith.constant 0 : index
    %165 = vector.load %arg10[%c0_55, %c0_56] : memref<8x1024xf32, #tpu.memory_space<vmem>>, vector<8x256xf32>
    tpu.vector_store %arg10[%c0_55, %c0_56], %164 {strides = array<i32>} : memref<8x1024xf32, #tpu.memory_space<vmem>>, vector<8x256xf32>,
    %166 = vector.extract_strided_slice %134 {offsets = [0, 256], sizes = [8, 256], strides = [1, 1]} : vector<8x2056xf32> to vector<8x256xf32>
    %167 = vector.extract_strided_slice %137 {offsets = [0, 1], sizes = [8, 1], strides = [1, 1]} : vector<8x4xf32> to vector<8x1xf32>
    %168 = vector.extract_strided_slice %136 {offsets = [0, 1], sizes = [8, 1], strides = [1, 1]} : vector<8x4xf32> to vector<8x1xf32>
    %169 = tpu.transpose %168, [1, 0] : vector<8x1xf32> -> vector<1x8xf32>
    %170 = vector.broadcast %167 : vector<8x1xf32> to vector<8x8xf32>
    %171 = vector.broadcast %169 : vector<1x8xf32> to vector<8x8xf32>
    %172 = arith.addf %170, %171 : vector<8x8xf32>
    %cst_57 = arith.constant 0.000000e+00 : f32
    %173 = vector.broadcast %cst_57 : f32 to vector<8x8xf32>
    %174 = arith.cmpf ogt, %172, %173 : vector<8x8xf32>
    %cst_58 = arith.constant 2.000000e-01 : f32
    %175 = vector.broadcast %cst_58 : f32 to vector<8x8xf32>
    %176 = arith.mulf %175, %172 : vector<8x8xf32>
    %177 = arith.select %174, %172, %176 : vector<8x8xi1>, vector<8x8xf32>
    %cst_59 = arith.constant -1.000000e+30 : f32
    %178 = vector.broadcast %cst_59 : f32 to vector<8x8xf32>
    %179 = arith.select %2, %177, %178 : vector<8x8xi1>, vector<8x8xf32>
    %cst_60 = arith.constant dense<0xFF800000> : vector<8xf32>
    %180 = vector.multi_reduction <maximumf>, %179, %cst_60 [1] : vector<8x8xf32> to vector<8xf32>
    %181 = vector.shape_cast %180 : vector<8xf32> to vector<8x1xf32>
    %182 = vector.broadcast %181 : vector<8x1xf32> to vector<8x8xf32>
    %183 = arith.subf %179, %182 : vector<8x8xf32>
    %184 = math.exp %183 : vector<8x8xf32>
    %cst_61 = arith.constant 0.000000e+00 : f32
    %185 = vector.broadcast %cst_61 : f32 to vector<8x8xf32>
    %186 = arith.select %2, %184, %185 : vector<8x8xi1>, vector<8x8xf32>
    %cst_62 = arith.constant dense<0.000000e+00> : vector<8xf32>
    %187 = vector.multi_reduction <add>, %186, %cst_62 [1] : vector<8x8xf32> to vector<8xf32>
    %188 = vector.shape_cast %187 : vector<8xf32> to vector<8x1xf32>
    %189 = tpu.reciprocal %188 {approx = true} : vector<8x1xf32> -> vector<8x1xf32>
    %190 = vector.broadcast %189 : vector<8x1xf32> to vector<8x8xf32>
    %191 = arith.mulf %186, %190 : vector<8x8xf32>
    %cst_63 = arith.constant dense<0.000000e+00> : vector<8x256xf32>
    %192 = tpu.matmul %191, %166, %cst_63 {dimension_numbers = #tpu.dot_dimension_numbers<[1], [0], [0], [1], [0, 0, 1, 1], [], []>} : vector<8x8xf32>, vector<8x256xf32>, vector<8x256xf32> -> vector<8x256xf32>
    %c0_64 = arith.constant 0 : index
    %c256_65 = arith.constant 256 : index
    %193 = vector.load %arg10[%c0_64, %c256_65] : memref<8x1024xf32, #tpu.memory_space<vmem>>, vector<8x256xf32>
    tpu.vector_store %arg10[%c0_64, %c256_65], %192 {strides = array<i32>} : memref<8x1024xf32, #tpu.memory_space<vmem>>, vector<8x256xf32>,
    %194 = vector.extract_strided_slice %134 {offsets = [0, 512], sizes = [8, 256], strides = [1, 1]} : vector<8x2056xf32> to vector<8x256xf32>
    %195 = vector.extract_strided_slice %137 {offsets = [0, 2], sizes = [8, 1], strides = [1, 1]} : vector<8x4xf32> to vector<8x1xf32>
    %196 = vector.extract_strided_slice %136 {offsets = [0, 2], sizes = [8, 1], strides = [1, 1]} : vector<8x4xf32> to vector<8x1xf32>
    %197 = tpu.transpose %196, [1, 0] : vector<8x1xf32> -> vector<1x8xf32>
    %198 = vector.broadcast %195 : vector<8x1xf32> to vector<8x8xf32>
    %199 = vector.broadcast %197 : vector<1x8xf32> to vector<8x8xf32>
    %200 = arith.addf %198, %199 : vector<8x8xf32>
    %cst_66 = arith.constant 0.000000e+00 : f32
    %201 = vector.broadcast %cst_66 : f32 to vector<8x8xf32>
    %202 = arith.cmpf ogt, %200, %201 : vector<8x8xf32>
    %cst_67 = arith.constant 2.000000e-01 : f32
    %203 = vector.broadcast %cst_67 : f32 to vector<8x8xf32>
    %204 = arith.mulf %203, %200 : vector<8x8xf32>
    %205 = arith.select %202, %200, %204 : vector<8x8xi1>, vector<8x8xf32>
    %cst_68 = arith.constant -1.000000e+30 : f32
    %206 = vector.broadcast %cst_68 : f32 to vector<8x8xf32>
    %207 = arith.select %2, %205, %206 : vector<8x8xi1>, vector<8x8xf32>
    %cst_69 = arith.constant dense<0xFF800000> : vector<8xf32>
    %208 = vector.multi_reduction <maximumf>, %207, %cst_69 [1] : vector<8x8xf32> to vector<8xf32>
    %209 = vector.shape_cast %208 : vector<8xf32> to vector<8x1xf32>
    %210 = vector.broadcast %209 : vector<8x1xf32> to vector<8x8xf32>
    %211 = arith.subf %207, %210 : vector<8x8xf32>
    %212 = math.exp %211 : vector<8x8xf32>
    %cst_70 = arith.constant 0.000000e+00 : f32
    %213 = vector.broadcast %cst_70 : f32 to vector<8x8xf32>
    %214 = arith.select %2, %212, %213 : vector<8x8xi1>, vector<8x8xf32>
    %cst_71 = arith.constant dense<0.000000e+00> : vector<8xf32>
    %215 = vector.multi_reduction <add>, %214, %cst_71 [1] : vector<8x8xf32> to vector<8xf32>
    %216 = vector.shape_cast %215 : vector<8xf32> to vector<8x1xf32>
    %217 = tpu.reciprocal %216 {approx = true} : vector<8x1xf32> -> vector<8x1xf32>
    %218 = vector.broadcast %217 : vector<8x1xf32> to vector<8x8xf32>
    %219 = arith.mulf %214, %218 : vector<8x8xf32>
    %cst_72 = arith.constant dense<0.000000e+00> : vector<8x256xf32>
    %220 = tpu.matmul %219, %194, %cst_72 {dimension_numbers = #tpu.dot_dimension_numbers<[1], [0], [0], [1], [0, 0, 1, 1], [], []>} : vector<8x8xf32>, vector<8x256xf32>, vector<8x256xf32> -> vector<8x256xf32>
    %c0_73 = arith.constant 0 : index
    %c512_74 = arith.constant 512 : index
    %221 = vector.load %arg10[%c0_73, %c512_74] : memref<8x1024xf32, #tpu.memory_space<vmem>>, vector<8x256xf32>
    tpu.vector_store %arg10[%c0_73, %c512_74], %220 {strides = array<i32>} : memref<8x1024xf32, #tpu.memory_space<vmem>>, vector<8x256xf32>,
    %222 = vector.extract_strided_slice %134 {offsets = [0, 768], sizes = [8, 256], strides = [1, 1]} : vector<8x2056xf32> to vector<8x256xf32>
    %223 = vector.extract_strided_slice %137 {offsets = [0, 3], sizes = [8, 1], strides = [1, 1]} : vector<8x4xf32> to vector<8x1xf32>
    %224 = vector.extract_strided_slice %136 {offsets = [0, 3], sizes = [8, 1], strides = [1, 1]} : vector<8x4xf32> to vector<8x1xf32>
    %225 = tpu.transpose %224, [1, 0] : vector<8x1xf32> -> vector<1x8xf32>
    %226 = vector.broadcast %223 : vector<8x1xf32> to vector<8x8xf32>
    %227 = vector.broadcast %225 : vector<1x8xf32> to vector<8x8xf32>
    %228 = arith.addf %226, %227 : vector<8x8xf32>
    %cst_75 = arith.constant 0.000000e+00 : f32
    %229 = vector.broadcast %cst_75 : f32 to vector<8x8xf32>
    %230 = arith.cmpf ogt, %228, %229 : vector<8x8xf32>
    %cst_76 = arith.constant 2.000000e-01 : f32
    %231 = vector.broadcast %cst_76 : f32 to vector<8x8xf32>
    %232 = arith.mulf %231, %228 : vector<8x8xf32>
    %233 = arith.select %230, %228, %232 : vector<8x8xi1>, vector<8x8xf32>
    %cst_77 = arith.constant -1.000000e+30 : f32
    %234 = vector.broadcast %cst_77 : f32 to vector<8x8xf32>
    %235 = arith.select %2, %233, %234 : vector<8x8xi1>, vector<8x8xf32>
    %cst_78 = arith.constant dense<0xFF800000> : vector<8xf32>
    %236 = vector.multi_reduction <maximumf>, %235, %cst_78 [1] : vector<8x8xf32> to vector<8xf32>
    %237 = vector.shape_cast %236 : vector<8xf32> to vector<8x1xf32>
    %238 = vector.broadcast %237 : vector<8x1xf32> to vector<8x8xf32>
    %239 = arith.subf %235, %238 : vector<8x8xf32>
    %240 = math.exp %239 : vector<8x8xf32>
    %cst_79 = arith.constant 0.000000e+00 : f32
    %241 = vector.broadcast %cst_79 : f32 to vector<8x8xf32>
    %242 = arith.select %2, %240, %241 : vector<8x8xi1>, vector<8x8xf32>
    %cst_80 = arith.constant dense<0.000000e+00> : vector<8xf32>
    %243 = vector.multi_reduction <add>, %242, %cst_80 [1] : vector<8x8xf32> to vector<8xf32>
    %244 = vector.shape_cast %243 : vector<8xf32> to vector<8x1xf32>
    %245 = tpu.reciprocal %244 {approx = true} : vector<8x1xf32> -> vector<8x1xf32>
    %246 = vector.broadcast %245 : vector<8x1xf32> to vector<8x8xf32>
    %247 = arith.mulf %242, %246 : vector<8x8xf32>
    %cst_81 = arith.constant dense<0.000000e+00> : vector<8x256xf32>
    %248 = tpu.matmul %247, %222, %cst_81 {dimension_numbers = #tpu.dot_dimension_numbers<[1], [0], [0], [1], [0, 0, 1, 1], [], []>} : vector<8x8xf32>, vector<8x256xf32>, vector<8x256xf32> -> vector<8x256xf32>
    %c0_82 = arith.constant 0 : index
    %c768_83 = arith.constant 768 : index
    %249 = vector.load %arg10[%c0_82, %c768_83] : memref<8x1024xf32, #tpu.memory_space<vmem>>, vector<8x256xf32>
    tpu.vector_store %arg10[%c0_82, %c768_83], %248 {strides = array<i32>} : memref<8x1024xf32, #tpu.memory_space<vmem>>, vector<8x256xf32>,
    %c0_84 = arith.constant 0 : index
    %c0_85 = arith.constant 0 : index
    %250 = vector.load %arg10[%c0_84, %c0_85] : memref<8x1024xf32, #tpu.memory_space<vmem>>, vector<8x1024xf32>
    %c0_86 = arith.constant 0 : index
    %c0_87 = arith.constant 0 : index
    %251 = vector.load %arg6[%c0_86, %c0_87] : memref<1x1024xf32, #tpu.memory_space<vmem>>, vector<1x1024xf32>
    %252 = vector.broadcast %251 : vector<1x1024xf32> to vector<8x1024xf32>
    %253 = arith.addf %250, %252 : vector<8x1024xf32>
    %254 = arith.addf %253, %135 : vector<8x1024xf32>
    %cst_88 = arith.constant 0.000000e+00 : f32
    %255 = vector.broadcast %cst_88 : f32 to vector<8x1024xf32>
    %256 = arith.cmpf ogt, %254, %255 : vector<8x1024xf32>
    %257 = math.exp %254 : vector<8x1024xf32>
    %cst_89 = arith.constant 1.000000e+00 : f32
    %258 = vector.broadcast %cst_89 : f32 to vector<8x1024xf32>
    %259 = arith.subf %257, %258 : vector<8x1024xf32>
    %260 = arith.select %256, %254, %259 : vector<8x1024xi1>, vector<8x1024xf32>
    %261 = arith.truncf %260 : vector<8x1024xf32> to vector<8x1024xbf16>
    %c0_90 = arith.constant 0 : index
    %c0_91 = arith.constant 0 : index
    %262 = vector.load %arg7[%c0_90, %c0_91] : memref<1024x460xbf16, #tpu.memory_space<vmem>>, vector<1024x460xbf16>
    %cst_92 = arith.constant dense<0.000000e+00> : vector<8x460xf32>
    %263 = tpu.matmul %261, %262, %cst_92 {dimension_numbers = #tpu.dot_dimension_numbers<[1], [0], [0], [1], [0, 0, 1, 1], [], []>} : vector<8x1024xbf16>, vector<1024x460xbf16>, vector<8x460xf32> -> vector<8x460xf32>
    %264 = vector.extract_strided_slice %263 {offsets = [0, 384], sizes = [8, 64], strides = [1, 1]} : vector<8x460xf32> to vector<8x64xf32>
    %265 = vector.extract_strided_slice %263 {offsets = [0, 448], sizes = [8, 6], strides = [1, 1]} : vector<8x460xf32> to vector<8x6xf32>
    %266 = vector.extract_strided_slice %263 {offsets = [0, 454], sizes = [8, 6], strides = [1, 1]} : vector<8x460xf32> to vector<8x6xf32>
    %267 = vector.extract_strided_slice %263 {offsets = [0, 0], sizes = [8, 64], strides = [1, 1]} : vector<8x460xf32> to vector<8x64xf32>
    %268 = vector.extract_strided_slice %266 {offsets = [0, 0], sizes = [8, 1], strides = [1, 1]} : vector<8x6xf32> to vector<8x1xf32>
    %269 = vector.extract_strided_slice %265 {offsets = [0, 0], sizes = [8, 1], strides = [1, 1]} : vector<8x6xf32> to vector<8x1xf32>
    %270 = tpu.transpose %269, [1, 0] : vector<8x1xf32> -> vector<1x8xf32>
    %271 = vector.broadcast %268 : vector<8x1xf32> to vector<8x8xf32>
    %272 = vector.broadcast %270 : vector<1x8xf32> to vector<8x8xf32>
    %273 = arith.addf %271, %272 : vector<8x8xf32>
    %cst_93 = arith.constant 0.000000e+00 : f32
    %274 = vector.broadcast %cst_93 : f32 to vector<8x8xf32>
    %275 = arith.cmpf ogt, %273, %274 : vector<8x8xf32>
    %cst_94 = arith.constant 2.000000e-01 : f32
    %276 = vector.broadcast %cst_94 : f32 to vector<8x8xf32>
    %277 = arith.mulf %276, %273 : vector<8x8xf32>
    %278 = arith.select %275, %273, %277 : vector<8x8xi1>, vector<8x8xf32>
    %cst_95 = arith.constant -1.000000e+30 : f32
    %279 = vector.broadcast %cst_95 : f32 to vector<8x8xf32>
    %280 = arith.select %2, %278, %279 : vector<8x8xi1>, vector<8x8xf32>
    %cst_96 = arith.constant dense<0xFF800000> : vector<8xf32>
    %281 = vector.multi_reduction <maximumf>, %280, %cst_96 [1] : vector<8x8xf32> to vector<8xf32>
    %282 = vector.shape_cast %281 : vector<8xf32> to vector<8x1xf32>
    %283 = vector.broadcast %282 : vector<8x1xf32> to vector<8x8xf32>
    %284 = arith.subf %280, %283 : vector<8x8xf32>
    %285 = math.exp %284 : vector<8x8xf32>
    %cst_97 = arith.constant 0.000000e+00 : f32
    %286 = vector.broadcast %cst_97 : f32 to vector<8x8xf32>
    %287 = arith.select %2, %285, %286 : vector<8x8xi1>, vector<8x8xf32>
    %cst_98 = arith.constant dense<0.000000e+00> : vector<8xf32>
    %288 = vector.multi_reduction <add>, %287, %cst_98 [1] : vector<8x8xf32> to vector<8xf32>
    %289 = vector.shape_cast %288 : vector<8xf32> to vector<8x1xf32>
    %290 = tpu.reciprocal %289 {approx = true} : vector<8x1xf32> -> vector<8x1xf32>
    %291 = vector.broadcast %290 : vector<8x1xf32> to vector<8x8xf32>
    %292 = arith.mulf %287, %291 : vector<8x8xf32>
    %cst_99 = arith.constant dense<0.000000e+00> : vector<8x64xf32>
    %293 = tpu.matmul %292, %267, %cst_99 {dimension_numbers = #tpu.dot_dimension_numbers<[1], [0], [0], [1], [0, 0, 1, 1], [], []>} : vector<8x8xf32>, vector<8x64xf32>, vector<8x64xf32> -> vector<8x64xf32>
    %294 = vector.extract_strided_slice %263 {offsets = [0, 64], sizes = [8, 64], strides = [1, 1]} : vector<8x460xf32> to vector<8x64xf32>
    %295 = vector.extract_strided_slice %266 {offsets = [0, 1], sizes = [8, 1], strides = [1, 1]} : vector<8x6xf32> to vector<8x1xf32>
    %296 = vector.extract_strided_slice %265 {offsets = [0, 1], sizes = [8, 1], strides = [1, 1]} : vector<8x6xf32> to vector<8x1xf32>
    %297 = tpu.transpose %296, [1, 0] : vector<8x1xf32> -> vector<1x8xf32>
    %298 = vector.broadcast %295 : vector<8x1xf32> to vector<8x8xf32>
    %299 = vector.broadcast %297 : vector<1x8xf32> to vector<8x8xf32>
    %300 = arith.addf %298, %299 : vector<8x8xf32>
    %cst_100 = arith.constant 0.000000e+00 : f32
    %301 = vector.broadcast %cst_100 : f32 to vector<8x8xf32>
    %302 = arith.cmpf ogt, %300, %301 : vector<8x8xf32>
    %cst_101 = arith.constant 2.000000e-01 : f32
    %303 = vector.broadcast %cst_101 : f32 to vector<8x8xf32>
    %304 = arith.mulf %303, %300 : vector<8x8xf32>
    %305 = arith.select %302, %300, %304 : vector<8x8xi1>, vector<8x8xf32>
    %cst_102 = arith.constant -1.000000e+30 : f32
    %306 = vector.broadcast %cst_102 : f32 to vector<8x8xf32>
    %307 = arith.select %2, %305, %306 : vector<8x8xi1>, vector<8x8xf32>
    %cst_103 = arith.constant dense<0xFF800000> : vector<8xf32>
    %308 = vector.multi_reduction <maximumf>, %307, %cst_103 [1] : vector<8x8xf32> to vector<8xf32>
    %309 = vector.shape_cast %308 : vector<8xf32> to vector<8x1xf32>
    %310 = vector.broadcast %309 : vector<8x1xf32> to vector<8x8xf32>
    %311 = arith.subf %307, %310 : vector<8x8xf32>
    %312 = math.exp %311 : vector<8x8xf32>
    %cst_104 = arith.constant 0.000000e+00 : f32
    %313 = vector.broadcast %cst_104 : f32 to vector<8x8xf32>
    %314 = arith.select %2, %312, %313 : vector<8x8xi1>, vector<8x8xf32>
    %cst_105 = arith.constant dense<0.000000e+00> : vector<8xf32>
    %315 = vector.multi_reduction <add>, %314, %cst_105 [1] : vector<8x8xf32> to vector<8xf32>
    %316 = vector.shape_cast %315 : vector<8xf32> to vector<8x1xf32>
    %317 = tpu.reciprocal %316 {approx = true} : vector<8x1xf32> -> vector<8x1xf32>
    %318 = vector.broadcast %317 : vector<8x1xf32> to vector<8x8xf32>
    %319 = arith.mulf %314, %318 : vector<8x8xf32>
    %cst_106 = arith.constant dense<0.000000e+00> : vector<8x64xf32>
    %320 = tpu.matmul %319, %294, %cst_106 {dimension_numbers = #tpu.dot_dimension_numbers<[1], [0], [0], [1], [0, 0, 1, 1], [], []>} : vector<8x8xf32>, vector<8x64xf32>, vector<8x64xf32> -> vector<8x64xf32>
    %321 = arith.addf %293, %320 : vector<8x64xf32>
    %322 = vector.extract_strided_slice %263 {offsets = [0, 128], sizes = [8, 64], strides = [1, 1]} : vector<8x460xf32> to vector<8x64xf32>
    %323 = vector.extract_strided_slice %266 {offsets = [0, 2], sizes = [8, 1], strides = [1, 1]} : vector<8x6xf32> to vector<8x1xf32>
    %324 = vector.extract_strided_slice %265 {offsets = [0, 2], sizes = [8, 1], strides = [1, 1]} : vector<8x6xf32> to vector<8x1xf32>
    %325 = tpu.transpose %324, [1, 0] : vector<8x1xf32> -> vector<1x8xf32>
    %326 = vector.broadcast %323 : vector<8x1xf32> to vector<8x8xf32>
    %327 = vector.broadcast %325 : vector<1x8xf32> to vector<8x8xf32>
    %328 = arith.addf %326, %327 : vector<8x8xf32>
    %cst_107 = arith.constant 0.000000e+00 : f32
    %329 = vector.broadcast %cst_107 : f32 to vector<8x8xf32>
    %330 = arith.cmpf ogt, %328, %329 : vector<8x8xf32>
    %cst_108 = arith.constant 2.000000e-01 : f32
    %331 = vector.broadcast %cst_108 : f32 to vector<8x8xf32>
    %332 = arith.mulf %331, %328 : vector<8x8xf32>
    %333 = arith.select %330, %328, %332 : vector<8x8xi1>, vector<8x8xf32>
    %cst_109 = arith.constant -1.000000e+30 : f32
    %334 = vector.broadcast %cst_109 : f32 to vector<8x8xf32>
    %335 = arith.select %2, %333, %334 : vector<8x8xi1>, vector<8x8xf32>
    %cst_110 = arith.constant dense<0xFF800000> : vector<8xf32>
    %336 = vector.multi_reduction <maximumf>, %335, %cst_110 [1] : vector<8x8xf32> to vector<8xf32>
    %337 = vector.shape_cast %336 : vector<8xf32> to vector<8x1xf32>
    %338 = vector.broadcast %337 : vector<8x1xf32> to vector<8x8xf32>
    %339 = arith.subf %335, %338 : vector<8x8xf32>
    %340 = math.exp %339 : vector<8x8xf32>
    %cst_111 = arith.constant 0.000000e+00 : f32
    %341 = vector.broadcast %cst_111 : f32 to vector<8x8xf32>
    %342 = arith.select %2, %340, %341 : vector<8x8xi1>, vector<8x8xf32>
    %cst_112 = arith.constant dense<0.000000e+00> : vector<8xf32>
    %343 = vector.multi_reduction <add>, %342, %cst_112 [1] : vector<8x8xf32> to vector<8xf32>
    %344 = vector.shape_cast %343 : vector<8xf32> to vector<8x1xf32>
    %345 = tpu.reciprocal %344 {approx = true} : vector<8x1xf32> -> vector<8x1xf32>
    %346 = vector.broadcast %345 : vector<8x1xf32> to vector<8x8xf32>
    %347 = arith.mulf %342, %346 : vector<8x8xf32>
    %cst_113 = arith.constant dense<0.000000e+00> : vector<8x64xf32>
    %348 = tpu.matmul %347, %322, %cst_113 {dimension_numbers = #tpu.dot_dimension_numbers<[1], [0], [0], [1], [0, 0, 1, 1], [], []>} : vector<8x8xf32>, vector<8x64xf32>, vector<8x64xf32> -> vector<8x64xf32>
    %349 = arith.addf %321, %348 : vector<8x64xf32>
    %350 = vector.extract_strided_slice %263 {offsets = [0, 192], sizes = [8, 64], strides = [1, 1]} : vector<8x460xf32> to vector<8x64xf32>
    %351 = vector.extract_strided_slice %266 {offsets = [0, 3], sizes = [8, 1], strides = [1, 1]} : vector<8x6xf32> to vector<8x1xf32>
    %352 = vector.extract_strided_slice %265 {offsets = [0, 3], sizes = [8, 1], strides = [1, 1]} : vector<8x6xf32> to vector<8x1xf32>
    %353 = tpu.transpose %352, [1, 0] : vector<8x1xf32> -> vector<1x8xf32>
    %354 = vector.broadcast %351 : vector<8x1xf32> to vector<8x8xf32>
    %355 = vector.broadcast %353 : vector<1x8xf32> to vector<8x8xf32>
    %356 = arith.addf %354, %355 : vector<8x8xf32>
    %cst_114 = arith.constant 0.000000e+00 : f32
    %357 = vector.broadcast %cst_114 : f32 to vector<8x8xf32>
    %358 = arith.cmpf ogt, %356, %357 : vector<8x8xf32>
    %cst_115 = arith.constant 2.000000e-01 : f32
    %359 = vector.broadcast %cst_115 : f32 to vector<8x8xf32>
    %360 = arith.mulf %359, %356 : vector<8x8xf32>
    %361 = arith.select %358, %356, %360 : vector<8x8xi1>, vector<8x8xf32>
    %cst_116 = arith.constant -1.000000e+30 : f32
    %362 = vector.broadcast %cst_116 : f32 to vector<8x8xf32>
    %363 = arith.select %2, %361, %362 : vector<8x8xi1>, vector<8x8xf32>
    %cst_117 = arith.constant dense<0xFF800000> : vector<8xf32>
    %364 = vector.multi_reduction <maximumf>, %363, %cst_117 [1] : vector<8x8xf32> to vector<8xf32>
    %365 = vector.shape_cast %364 : vector<8xf32> to vector<8x1xf32>
    %366 = vector.broadcast %365 : vector<8x1xf32> to vector<8x8xf32>
    %367 = arith.subf %363, %366 : vector<8x8xf32>
    %368 = math.exp %367 : vector<8x8xf32>
    %cst_118 = arith.constant 0.000000e+00 : f32
    %369 = vector.broadcast %cst_118 : f32 to vector<8x8xf32>
    %370 = arith.select %2, %368, %369 : vector<8x8xi1>, vector<8x8xf32>
    %cst_119 = arith.constant dense<0.000000e+00> : vector<8xf32>
    %371 = vector.multi_reduction <add>, %370, %cst_119 [1] : vector<8x8xf32> to vector<8xf32>
    %372 = vector.shape_cast %371 : vector<8xf32> to vector<8x1xf32>
    %373 = tpu.reciprocal %372 {approx = true} : vector<8x1xf32> -> vector<8x1xf32>
    %374 = vector.broadcast %373 : vector<8x1xf32> to vector<8x8xf32>
    %375 = arith.mulf %370, %374 : vector<8x8xf32>
    %cst_120 = arith.constant dense<0.000000e+00> : vector<8x64xf32>
    %376 = tpu.matmul %375, %350, %cst_120 {dimension_numbers = #tpu.dot_dimension_numbers<[1], [0], [0], [1], [0, 0, 1, 1], [], []>} : vector<8x8xf32>, vector<8x64xf32>, vector<8x64xf32> -> vector<8x64xf32>
    %377 = arith.addf %349, %376 : vector<8x64xf32>
    %378 = vector.extract_strided_slice %263 {offsets = [0, 256], sizes = [8, 64], strides = [1, 1]} : vector<8x460xf32> to vector<8x64xf32>
    %379 = vector.extract_strided_slice %266 {offsets = [0, 4], sizes = [8, 1], strides = [1, 1]} : vector<8x6xf32> to vector<8x1xf32>
    %380 = vector.extract_strided_slice %265 {offsets = [0, 4], sizes = [8, 1], strides = [1, 1]} : vector<8x6xf32> to vector<8x1xf32>
    %381 = tpu.transpose %380, [1, 0] : vector<8x1xf32> -> vector<1x8xf32>
    %382 = vector.broadcast %379 : vector<8x1xf32> to vector<8x8xf32>
    %383 = vector.broadcast %381 : vector<1x8xf32> to vector<8x8xf32>
    %384 = arith.addf %382, %383 : vector<8x8xf32>
    %cst_121 = arith.constant 0.000000e+00 : f32
    %385 = vector.broadcast %cst_121 : f32 to vector<8x8xf32>
    %386 = arith.cmpf ogt, %384, %385 : vector<8x8xf32>
    %cst_122 = arith.constant 2.000000e-01 : f32
    %387 = vector.broadcast %cst_122 : f32 to vector<8x8xf32>
    %388 = arith.mulf %387, %384 : vector<8x8xf32>
    %389 = arith.select %386, %384, %388 : vector<8x8xi1>, vector<8x8xf32>
    %cst_123 = arith.constant -1.000000e+30 : f32
    %390 = vector.broadcast %cst_123 : f32 to vector<8x8xf32>
    %391 = arith.select %2, %389, %390 : vector<8x8xi1>, vector<8x8xf32>
    %cst_124 = arith.constant dense<0xFF800000> : vector<8xf32>
    %392 = vector.multi_reduction <maximumf>, %391, %cst_124 [1] : vector<8x8xf32> to vector<8xf32>
    %393 = vector.shape_cast %392 : vector<8xf32> to vector<8x1xf32>
    %394 = vector.broadcast %393 : vector<8x1xf32> to vector<8x8xf32>
    %395 = arith.subf %391, %394 : vector<8x8xf32>
    %396 = math.exp %395 : vector<8x8xf32>
    %cst_125 = arith.constant 0.000000e+00 : f32
    %397 = vector.broadcast %cst_125 : f32 to vector<8x8xf32>
    %398 = arith.select %2, %396, %397 : vector<8x8xi1>, vector<8x8xf32>
    %cst_126 = arith.constant dense<0.000000e+00> : vector<8xf32>
    %399 = vector.multi_reduction <add>, %398, %cst_126 [1] : vector<8x8xf32> to vector<8xf32>
    %400 = vector.shape_cast %399 : vector<8xf32> to vector<8x1xf32>
    %401 = tpu.reciprocal %400 {approx = true} : vector<8x1xf32> -> vector<8x1xf32>
    %402 = vector.broadcast %401 : vector<8x1xf32> to vector<8x8xf32>
    %403 = arith.mulf %398, %402 : vector<8x8xf32>
    %cst_127 = arith.constant dense<0.000000e+00> : vector<8x64xf32>
    %404 = tpu.matmul %403, %378, %cst_127 {dimension_numbers = #tpu.dot_dimension_numbers<[1], [0], [0], [1], [0, 0, 1, 1], [], []>} : vector<8x8xf32>, vector<8x64xf32>, vector<8x64xf32> -> vector<8x64xf32>
    %405 = arith.addf %377, %404 : vector<8x64xf32>
    %406 = vector.extract_strided_slice %263 {offsets = [0, 320], sizes = [8, 64], strides = [1, 1]} : vector<8x460xf32> to vector<8x64xf32>
    %407 = vector.extract_strided_slice %266 {offsets = [0, 5], sizes = [8, 1], strides = [1, 1]} : vector<8x6xf32> to vector<8x1xf32>
    %408 = vector.extract_strided_slice %265 {offsets = [0, 5], sizes = [8, 1], strides = [1, 1]} : vector<8x6xf32> to vector<8x1xf32>
    %409 = tpu.transpose %408, [1, 0] : vector<8x1xf32> -> vector<1x8xf32>
    %410 = vector.broadcast %407 : vector<8x1xf32> to vector<8x8xf32>
    %411 = vector.broadcast %409 : vector<1x8xf32> to vector<8x8xf32>
    %412 = arith.addf %410, %411 : vector<8x8xf32>
    %cst_128 = arith.constant 0.000000e+00 : f32
    %413 = vector.broadcast %cst_128 : f32 to vector<8x8xf32>
    %414 = arith.cmpf ogt, %412, %413 : vector<8x8xf32>
    %cst_129 = arith.constant 2.000000e-01 : f32
    %415 = vector.broadcast %cst_129 : f32 to vector<8x8xf32>
    %416 = arith.mulf %415, %412 : vector<8x8xf32>
    %417 = arith.select %414, %412, %416 : vector<8x8xi1>, vector<8x8xf32>
    %cst_130 = arith.constant -1.000000e+30 : f32
    %418 = vector.broadcast %cst_130 : f32 to vector<8x8xf32>
    %419 = arith.select %2, %417, %418 : vector<8x8xi1>, vector<8x8xf32>
    %cst_131 = arith.constant dense<0xFF800000> : vector<8xf32>
    %420 = vector.multi_reduction <maximumf>, %419, %cst_131 [1] : vector<8x8xf32> to vector<8xf32>
    %421 = vector.shape_cast %420 : vector<8xf32> to vector<8x1xf32>
    %422 = vector.broadcast %421 : vector<8x1xf32> to vector<8x8xf32>
    %423 = arith.subf %419, %422 : vector<8x8xf32>
    %424 = math.exp %423 : vector<8x8xf32>
    %cst_132 = arith.constant 0.000000e+00 : f32
    %425 = vector.broadcast %cst_132 : f32 to vector<8x8xf32>
    %426 = arith.select %2, %424, %425 : vector<8x8xi1>, vector<8x8xf32>
    %cst_133 = arith.constant dense<0.000000e+00> : vector<8xf32>
    %427 = vector.multi_reduction <add>, %426, %cst_133 [1] : vector<8x8xf32> to vector<8xf32>
    %428 = vector.shape_cast %427 : vector<8xf32> to vector<8x1xf32>
    %429 = tpu.reciprocal %428 {approx = true} : vector<8x1xf32> -> vector<8x1xf32>
    %430 = vector.broadcast %429 : vector<8x1xf32> to vector<8x8xf32>
    %431 = arith.mulf %426, %430 : vector<8x8xf32>
    %cst_134 = arith.constant dense<0.000000e+00> : vector<8x64xf32>
    %432 = tpu.matmul %431, %406, %cst_134 {dimension_numbers = #tpu.dot_dimension_numbers<[1], [0], [0], [1], [0, 0, 1, 1], [], []>} : vector<8x8xf32>, vector<8x64xf32>, vector<8x64xf32> -> vector<8x64xf32>
    %433 = arith.addf %405, %432 : vector<8x64xf32>
    %cst_135 = arith.constant 0.166666672 : f32
    %434 = vector.broadcast %cst_135 : f32 to vector<8x64xf32>
    %435 = arith.mulf %433, %434 : vector<8x64xf32>
    %c0_136 = arith.constant 0 : index
    %c0_137 = arith.constant 0 : index
    %436 = vector.load %arg8[%c0_136, %c0_137] : memref<1x64xf32, #tpu.memory_space<vmem>>, vector<1x64xf32>
    %437 = vector.broadcast %436 : vector<1x64xf32> to vector<8x64xf32>
    %438 = arith.addf %435, %437 : vector<8x64xf32>
    %439 = arith.addf %438, %264 : vector<8x64xf32>
    %c0_138 = arith.constant 0 : index
    %c0_139 = arith.constant 0 : index
    %440 = vector.load %arg9[%c0_138, %c0_139] : memref<8x64xf32, #tpu.memory_space<vmem>>, vector<8x64xf32>
    tpu.vector_store %arg9[%c0_138, %c0_139], %439 {strides = array<i32>} : memref<8x64xf32, #tpu.memory_space<vmem>>, vector<8x64xf32>,
    return
  }
  func.func @transform_0(%arg0: i32) -> (i32, i32) {
    %c0_i32 = arith.constant 0 : i32
    %c0_i32_0 = arith.constant 0 : i32
    %c0_i32_1 = arith.constant 0 : i32
    return %c0_i32, %c0_i32_0 : i32, i32
  }
  func.func @transform_1(%arg0: i32) -> (i32, i32) {
    %c0_i32 = arith.constant 0 : i32
    %c0_i32_0 = arith.constant 0 : i32
    %c0_i32_1 = arith.constant 0 : i32
    return %c0_i32, %c0_i32_0 : i32, i32
  }
  func.func @transform_2(%arg0: i32) -> (i32, i32) {
    %c0_i32 = arith.constant 0 : i32
    %c0_i32_0 = arith.constant 0 : i32
    %c0_i32_1 = arith.constant 0 : i32
    return %c0_i32, %c0_i32_0 : i32, i32
  }
  func.func @transform_3(%arg0: i32) -> (i32, i32) {
    %c0_i32 = arith.constant 0 : i32
    %c0_i32_0 = arith.constant 0 : i32
    %c0_i32_1 = arith.constant 0 : i32
    return %c0_i32, %c0_i32_0 : i32, i32
  }
  func.func @transform_4(%arg0: i32) -> (i32, i32) {
    %c0_i32 = arith.constant 0 : i32
    %c0_i32_0 = arith.constant 0 : i32
    %c0_i32_1 = arith.constant 0 : i32
    return %c0_i32, %c0_i32_0 : i32, i32
  }
  func.func @transform_5(%arg0: i32) -> (i32, i32) {
    %c0_i32 = arith.constant 0 : i32
    %c0_i32_0 = arith.constant 0 : i32
    %c0_i32_1 = arith.constant 0 : i32
    return %c0_i32, %c0_i32_0 : i32, i32
  }
  func.func @transform_6(%arg0: i32) -> (i32, i32) {
    %c0_i32 = arith.constant 0 : i32
    %c0_i32_0 = arith.constant 0 : i32
    %c0_i32_1 = arith.constant 0 : i32
    return %c0_i32, %c0_i32_0 : i32, i32
  }
  func.func @transform_7(%arg0: i32) -> (i32, i32) {
    %c0_i32 = arith.constant 0 : i32
    %c0_i32_0 = arith.constant 0 : i32
    %c0_i32_1 = arith.constant 0 : i32
    return %c0_i32, %c0_i32_0 : i32, i32
  }
  func.func @transform_8(%arg0: i32) -> (i32, i32) {
    %c0_i32 = arith.constant 0 : i32
    %c0_i32_0 = arith.constant 0 : i32
    %c0_i32_1 = arith.constant 0 : i32
    return %c0_i32, %c0_i32_0 : i32, i32
  }
}

</mosaic_0001>

<llo_original>
// kernel: tpu_custom_call.1
$region0: #{tpu_custom_call.1}
  #allocation0 [shape = 'u32[]', space=smem, size = 0x4, offset = 0x4, fixed_abs, tag = 'smem constant byte address 0x4 - core index']
  #allocation1 [shape = 'u32[144,128]{1,0:T(1,128)}', space=vmem, size = 0x12000, scoped, tag = 'internal scratch']
  #allocation2 [shape = 'f32[8,1024]{1,0:T(8,128)}', space=vmem, size = 0x8000, scoped, tag = 'scratch operand']
  %s0 = inlined_call_operand.vmem [shape: bf16[8,16], index: 0, kind: input, shape index: {}]
  %s1 = inlined_call_operand.vmem [shape: f32[8,8], index: 1, kind: input, shape index: {}]
  %s2 = inlined_call_operand.vmem [shape: bf16[16,2056], index: 2, kind: input, shape index: {}]
  %s3 = inlined_call_operand.vmem [shape: f32[1,1024], index: 3, kind: input, shape index: {}]
  %s4 = inlined_call_operand.vmem [shape: bf16[1024,2056], index: 4, kind: input, shape index: {}]
  %s5 = inlined_call_operand.vmem [shape: f32[1,1024], index: 5, kind: input, shape index: {}]
  %s6 = inlined_call_operand.vmem [shape: bf16[1024,460], index: 6, kind: input, shape index: {}]
  %s7 = inlined_call_operand.vmem [shape: f32[1,64], index: 7, kind: input, shape index: {}]
  %s8 = inlined_call_operand.hbm [shape: f32[8,64], index: 8, kind: output, shape index: {}]
  %s9 = sld [smem:[#allocation0]]
  $region42: #{tpu_custom_call.1} parent=0
    _
  %s11 = ssub.s32 1, %s9
  %s12 = scalar_select 0, %s11, %s9
  $region1: #{tpu_custom_call.1} parent=0
    #allocation3 [shape = 'u8[4096]{0}', space=vmem, size = 0x1000, scoped, tag = 'output window, operand 0, single buffered']
    #allocation4 [shape = 's32[1]{0}', space=sflag, size = 0x4, scoped, tag = 'scoped memory for tpu_custom_call.1']
    %13 = vsyncpa [#allocation4], 0
    // Predicated region
    $region2: #{tpu_custom_call.1} parent=1 // pred_check
      _
    $region3: #{tpu_custom_call.1} parent=1 // pred_check_branch
      %15 = sbr.rel (0) target = $region5
    $region4: #{tpu_custom_call.1} parent=1 // pred_region
      _
    $region5: #{tpu_custom_call.1} parent=1 // pred_fallthru
      _
    // Predicated region
    $region6: #{tpu_custom_call.1} parent=1 // pred_check
      _
    $region7: #{tpu_custom_call.1} parent=1 // pred_check_branch
      %17 = sbr.rel (0) target = $region9
    $region8: #{tpu_custom_call.1} parent=1 // pred_region
      _
    $region9: #{tpu_custom_call.1} parent=1 // pred_fallthru
      _
    // Predicated region
    $region10: #{tpu_custom_call.1} parent=1 // pred_check
      _
    $region11: #{tpu_custom_call.1} parent=1 // pred_check_branch
      %19 = sbr.rel (0) target = $region13
    $region12: #{tpu_custom_call.1} parent=1 // pred_region
      _
    $region13: #{tpu_custom_call.1} parent=1 // pred_fallthru
      _
    // Predicated region
    $region14: #{tpu_custom_call.1} parent=1 // pred_check
      _
    $region15: #{tpu_custom_call.1} parent=1 // pred_check_branch
      %21 = sbr.rel (0) target = $region17
    $region16: #{tpu_custom_call.1} parent=1 // pred_region
      _
    $region17: #{tpu_custom_call.1} parent=1 // pred_fallthru
      _
    // Predicated region
    $region18: #{tpu_custom_call.1} parent=1 // pred_check
      _
    $region19: #{tpu_custom_call.1} parent=1 // pred_check_branch
      %23 = sbr.rel (0) target = $region21
    $region20: #{tpu_custom_call.1} parent=1 // pred_region
      _
    $region21: #{tpu_custom_call.1} parent=1 // pred_fallthru
      _
    // Predicated region
    $region22: #{tpu_custom_call.1} parent=1 // pred_check
      _
    $region23: #{tpu_custom_call.1} parent=1 // pred_check_branch
      %25 = sbr.rel (0) target = $region25
    $region24: #{tpu_custom_call.1} parent=1 // pred_region
      _
    $region25: #{tpu_custom_call.1} parent=1 // pred_fallthru
      _
    // Predicated region
    $region26: #{tpu_custom_call.1} parent=1 // pred_check
      _
    $region27: #{tpu_custom_call.1} parent=1 // pred_check_branch
      %27 = sbr.rel (0) target = $region29
    $region28: #{tpu_custom_call.1} parent=1 // pred_region
      _
    $region29: #{tpu_custom_call.1} parent=1 // pred_fallthru
      _
    // Predicated region
    $region30: #{tpu_custom_call.1} parent=1 // pred_check
      _
    $region31: #{tpu_custom_call.1} parent=1 // pred_check_branch
      %29 = sbr.rel (0) target = $region33
    $region32: #{tpu_custom_call.1} parent=1 // pred_region
      _
    $region33: #{tpu_custom_call.1} parent=1 // pred_fallthru
      _
    %v31 = vld [vmem:[%s1] sm:$0xff]
    %vm32 = vcmp.gt.f32.partialorder %v31, 0.0
    %v33 = vld [vmem:[%s0] sm:$0xf]
    %v34 = vld [vmem:[%s2] sm:$0xff]
    %v35 = vld [vmem:[%s2 + $0x8] sm:$0xff]
    %v36 = vld [vmem:[%s2 + $0x10] sm:$0xff]
    %v37 = vld [vmem:[%s2 + $0x18] sm:$0xff]
    %v38 = vld [vmem:[%s2 + $0x20] sm:$0xff]
    %v39 = vld [vmem:[%s2 + $0x28] sm:$0xff]
    %v40 = vld [vmem:[%s2 + $0x30] sm:$0xff]
    %v41 = vld [vmem:[%s2 + $0x38] sm:$0xff]
    %v42 = vld [vmem:[%s2 + $0x40] sm:$0xf]
    %v43 = vld [vmem:[%s2 + $0x44] sm:$0xff]
    %v44 = vld [vmem:[%s2 + $0x4c] sm:$0xff]
    %v45 = vld [vmem:[%s2 + $0x54] sm:$0xff]
    %v46 = vld [vmem:[%s2 + $0x5c] sm:$0xff]
    %v47 = vld [vmem:[%s2 + $0x64] sm:$0xff]
    %v48 = vld [vmem:[%s2 + $0x6c] sm:$0xff]
    %v49 = vld [vmem:[%s2 + $0x74] sm:$0xff]
    %v50 = vld [vmem:[%s2 + $0x7c] sm:$0xff]
    %v51 = vld [vmem:[%s2 + $0x84] sm:$0xf]
    %v70 = vunpack.c.l.b16 %v34
    %v71 = vunpack.c.h.b16 %v34
    %v72 = vunpack.c.l.b16 %v35
    %v73 = vunpack.c.h.b16 %v35
    %v74 = vunpack.c.l.b16 %v36
    %v75 = vunpack.c.h.b16 %v36
    %v76 = vunpack.c.l.b16 %v37
    %v77 = vunpack.c.h.b16 %v37
    %v78 = vunpack.c.l.b16 %v38
    %v79 = vunpack.c.h.b16 %v38
    %v80 = vunpack.c.l.b16 %v39
    %v81 = vunpack.c.h.b16 %v39
    %v82 = vunpack.c.l.b16 %v40
    %v83 = vunpack.c.h.b16 %v40
    %v84 = vunpack.c.l.b16 %v41
    %v85 = vunpack.c.h.b16 %v41
    %v86 = vunpack.c.l.b16 %v42
    %v87 = vunpack.c.l.b16 %v43
    %v88 = vunpack.c.h.b16 %v43
    %v89 = vunpack.c.l.b16 %v44
    %v90 = vunpack.c.h.b16 %v44
    %v91 = vunpack.c.l.b16 %v45
    %v92 = vunpack.c.h.b16 %v45
    %v93 = vunpack.c.l.b16 %v46
    %v94 = vunpack.c.h.b16 %v46
    %v95 = vunpack.c.l.b16 %v47
    %v96 = vunpack.c.h.b16 %v47
    %v97 = vunpack.c.l.b16 %v48
    %v98 = vunpack.c.h.b16 %v48
    %v99 = vunpack.c.l.b16 %v49
    %v100 = vunpack.c.h.b16 %v49
    %v101 = vunpack.c.l.b16 %v50
    %v102 = vunpack.c.h.b16 %v50
    %v103 = vunpack.c.l.b16 %v51
    %v104 = vpack.c.b16 %v87, %v70
    %v105 = vpack.c.b16 %v88, %v71
    %v106 = vpack.c.b16 %v89, %v72
    %v107 = vpack.c.b16 %v90, %v73
    %v108 = vpack.c.b16 %v91, %v74
    %v109 = vpack.c.b16 %v92, %v75
    %v110 = vpack.c.b16 %v93, %v76
    %v111 = vpack.c.b16 %v94, %v77
    %v112 = vpack.c.b16 %v95, %v78
    %v113 = vpack.c.b16 %v96, %v79
    %v114 = vpack.c.b16 %v97, %v80
    %v115 = vpack.c.b16 %v98, %v81
    %v116 = vpack.c.b16 %v99, %v82
    %v117 = vpack.c.b16 %v100, %v83
    %v118 = vpack.c.b16 %v101, %v84
    %v119 = vpack.c.b16 %v102, %v85
    %v120 = vpack.c.b16 %v103, %v86
    %vm138 = vcmask 130048
    %v140 = vsel %vm138, %v33, 0
    %142 = vmatprep.subr.bf16.mxu0 0
    %143 = vmatpush1.bf16.msra.mxu0 0
    %144 = vmatprep.subr.bf16.mxu0 0
    %145 = vmatpush1.bf16.msra.mxu0 0
    %146 = vmatprep.subr.bf16.mxu0 0
    %147 = vmatpush1.bf16.msra.mxu0 0
    %148 = vmatprep.subr.bf16.mxu0 0
    %149 = vmatpush1.bf16.msra.mxu0 0
    %150 = vmatprep.subr.bf16.mxu0 0
    %151 = vmatpush1.bf16.msra.mxu0 0
    %152 = vmatprep.subr.bf16.mxu0 0
    %153 = vmatpush1.bf16.msra.mxu0 0
    %154 = vmatprep.subr.bf16.mxu0 0
    %155 = vmatpush1.bf16.msra.mxu0 0
    %156 = vmatprep.subr.bf16.mxu0 %v105
    %157 = vmatpush1.bf16.msra.mxu0 %v104
    %158 = vmatprep.subr.bf16.mxu0 0
    %159 = vmatpush2.bf16.msra.mxu0 0
    %160 = vmatprep.subr.bf16.mxu0 0
    %161 = vmatpush2.bf16.msra.mxu0 0
    %162 = vmatprep.subr.bf16.mxu0 0
    %163 = vmatpush2.bf16.msra.mxu0 0
    %164 = vmatprep.subr.bf16.mxu0 0
    %165 = vmatpush2.bf16.msra.mxu0 0
    %166 = vmatprep.subr.bf16.mxu0 0
    %167 = vmatpush2.bf16.msra.mxu0 0
    %168 = vmatprep.subr.bf16.mxu0 0
    %169 = vmatpush2.bf16.msra.mxu0 0
    %170 = vmatprep.subr.bf16.mxu0 0
    %171 = vmatpush2.bf16.msra.mxu0 0
    %172 = vmatprep.subr.bf16.mxu0 0
    %173 = vmatpush2.bf16.msra.mxu0 0
    %174 = vmatprep.mubr.bf16.mxu0 0
    %175 = vmatmul.mubr.bf16.gmra.mxu0 %v140
    %v176 = vpop.f32.mrf.mxu0
    %v177 = vadd.f32 0.0, %v176
    %v178 = vpop.f32.mrf.mxu0
    %v179 = vadd.f32 0.0, %v178
    %v180 = vpop.f32.mrf.mxu0
    %v181 = vpop.f32.mrf.mxu0
    %182 = vdwg.mxu0
    %183 = vmatprep.subr.bf16.mxu0 0
    %184 = vmatpush1.bf16.msra.mxu0 0
    %185 = vmatprep.subr.bf16.mxu0 0
    %186 = vmatpush1.bf16.msra.mxu0 0
    %187 = vmatprep.subr.bf16.mxu0 0
    %188 = vmatpush1.bf16.msra.mxu0 0
    %189 = vmatprep.subr.bf16.mxu0 0
    %190 = vmatpush1.bf16.msra.mxu0 0
    %191 = vmatprep.subr.bf16.mxu0 0
    %192 = vmatpush1.bf16.msra.mxu0 0
    %193 = vmatprep.subr.bf16.mxu0 0
    %194 = vmatpush1.bf16.msra.mxu0 0
    %195 = vmatprep.subr.bf16.mxu0 0
    %196 = vmatpush1.bf16.msra.mxu0 0
    %197 = vmatprep.subr.bf16.mxu0 %v107
    %198 = vmatpush1.bf16.msra.mxu0 %v106
    %199 = vmatprep.subr.bf16.mxu0 0
    %200 = vmatpush2.bf16.msra.mxu0 0
    %201 = vmatprep.subr.bf16.mxu0 0
    %202 = vmatpush2.bf16.msra.mxu0 0
    %203 = vmatprep.subr.bf16.mxu0 0
    %204 = vmatpush2.bf16.msra.mxu0 0
    %205 = vmatprep.subr.bf16.mxu0 0
    %206 = vmatpush2.bf16.msra.mxu0 0
    %207 = vmatprep.subr.bf16.mxu0 0
    %208 = vmatpush2.bf16.msra.mxu0 0
    %209 = vmatprep.subr.bf16.mxu0 0
    %210 = vmatpush2.bf16.msra.mxu0 0
    %211 = vmatprep.subr.bf16.mxu0 0
    %212 = vmatpush2.bf16.msra.mxu0 0
    %213 = vmatprep.subr.bf16.mxu0 0
    %214 = vmatpush2.bf16.msra.mxu0 0
    %215 = vmatprep.mubr.bf16.mxu0 0
    %216 = vmatmul.mubr.bf16.gmra.mxu0 %v140
    %v217 = vpop.f32.mrf.mxu0
    %v218 = vadd.f32 0.0, %v217
    %v219 = vpop.f32.mrf.mxu0
    %v220 = vadd.f32 0.0, %v219
    %v221 = vpop.f32.mrf.mxu0
    %v222 = vpop.f32.mrf.mxu0
    %223 = vdwg.mxu0
    %224 = vmatprep.subr.bf16.mxu0 0
    %225 = vmatpush1.bf16.msra.mxu0 0
    %226 = vmatprep.subr.bf16.mxu0 0
    %227 = vmatpush1.bf16.msra.mxu0 0
    %228 = vmatprep.subr.bf16.mxu0 0
    %229 = vmatpush1.bf16.msra.mxu0 0
    %230 = vmatprep.subr.bf16.mxu0 0
    %231 = vmatpush1.bf16.msra.mxu0 0
    %232 = vmatprep.subr.bf16.mxu0 0
    %233 = vmatpush1.bf16.msra.mxu0 0
    %234 = vmatprep.subr.bf16.mxu0 0
    %235 = vmatpush1.bf16.msra.mxu0 0
    %236 = vmatprep.subr.bf16.mxu0 0
    %237 = vmatpush1.bf16.msra.mxu0 0
    %238 = vmatprep.subr.bf16.mxu0 %v109
    %239 = vmatpush1.bf16.msra.mxu0 %v108
    %240 = vmatprep.subr.bf16.mxu0 0
    %241 = vmatpush2.bf16.msra.mxu0 0
    %242 = vmatprep.subr.bf16.mxu0 0
    %243 = vmatpush2.bf16.msra.mxu0 0
    %244 = vmatprep.subr.bf16.mxu0 0
    %245 = vmatpush2.bf16.msra.mxu0 0
    %246 = vmatprep.subr.bf16.mxu0 0
    %247 = vmatpush2.bf16.msra.mxu0 0
    %248 = vmatprep.subr.bf16.mxu0 0
    %249 = vmatpush2.bf16.msra.mxu0 0
    %250 = vmatprep.subr.bf16.mxu0 0
    %251 = vmatpush2.bf16.msra.mxu0 0
    %252 = vmatprep.subr.bf16.mxu0 0
    %253 = vmatpush2.bf16.msra.mxu0 0
    %254 = vmatprep.subr.bf16.mxu0 0
    %255 = vmatpush2.bf16.msra.mxu0 0
    %256 = vmatprep.mubr.bf16.mxu0 0
    %257 = vmatmul.mubr.bf16.gmra.mxu0 %v140
    %v258 = vpop.f32.mrf.mxu0
    %v259 = vadd.f32 0.0, %v258
    %v260 = vpop.f32.mrf.mxu0
    %v261 = vadd.f32 0.0, %v260
    %v262 = vpop.f32.mrf.mxu0
    %v263 = vpop.f32.mrf.mxu0
    %264 = vdwg.mxu0
    %265 = vmatprep.subr.bf16.mxu0 0
    %266 = vmatpush1.bf16.msra.mxu0 0
    %267 = vmatprep.subr.bf16.mxu0 0
    %268 = vmatpush1.bf16.msra.mxu0 0
    %269 = vmatprep.subr.bf16.mxu0 0
    %270 = vmatpush1.bf16.msra.mxu0 0
    %271 = vmatprep.subr.bf16.mxu0 0
    %272 = vmatpush1.bf16.msra.mxu0 0
    %273 = vmatprep.subr.bf16.mxu0 0
    %274 = vmatpush1.bf16.msra.mxu0 0
    %275 = vmatprep.subr.bf16.mxu0 0
    %276 = vmatpush1.bf16.msra.mxu0 0
    %277 = vmatprep.subr.bf16.mxu0 0
    %278 = vmatpush1.bf16.msra.mxu0 0
    %279 = vmatprep.subr.bf16.mxu0 %v111
    %280 = vmatpush1.bf16.msra.mxu0 %v110
    %281 = vmatprep.subr.bf16.mxu0 0
    %282 = vmatpush2.bf16.msra.mxu0 0
    %283 = vmatprep.subr.bf16.mxu0 0
    %284 = vmatpush2.bf16.msra.mxu0 0
    %285 = vmatprep.subr.bf16.mxu0 0
    %286 = vmatpush2.bf16.msra.mxu0 0
    %287 = vmatprep.subr.bf16.mxu0 0
    %288 = vmatpush2.bf16.msra.mxu0 0
    %289 = vmatprep.subr.bf16.mxu0 0
    %290 = vmatpush2.bf16.msra.mxu0 0
    %291 = vmatprep.subr.bf16.mxu0 0
    %292 = vmatpush2.bf16.msra.mxu0 0
    %293 = vmatprep.subr.bf16.mxu0 0
    %294 = vmatpush2.bf16.msra.mxu0 0
    %295 = vmatprep.subr.bf16.mxu0 0
    %296 = vmatpush2.bf16.msra.mxu0 0
    %297 = vmatprep.mubr.bf16.mxu0 0
    %298 = vmatmul.mubr.bf16.gmra.mxu0 %v140
    %v299 = vpop.f32.mrf.mxu0
    %v300 = vadd.f32 0.0, %v299
    %v301 = vpop.f32.mrf.mxu0
    %v302 = vadd.f32 0.0, %v301
    %v303 = vpop.f32.mrf.mxu0
    %v304 = vpop.f32.mrf.mxu0
    %305 = vdwg.mxu0
    %306 = vmatprep.subr.bf16.mxu0 0
    %307 = vmatpush1.bf16.msra.mxu0 0
    %308 = vmatprep.subr.bf16.mxu0 0
    %309 = vmatpush1.bf16.msra.mxu0 0
    %310 = vmatprep.subr.bf16.mxu0 0
    %311 = vmatpush1.bf16.msra.mxu0 0
    %312 = vmatprep.subr.bf16.mxu0 0
    %313 = vmatpush1.bf16.msra.mxu0 0
    %314 = vmatprep.subr.bf16.mxu0 0
    %315 = vmatpush1.bf16.msra.mxu0 0
    %316 = vmatprep.subr.bf16.mxu0 0
    %317 = vmatpush1.bf16.msra.mxu0 0
    %318 = vmatprep.subr.bf16.mxu0 0
    %319 = vmatpush1.bf16.msra.mxu0 0
    %320 = vmatprep.subr.bf16.mxu0 %v113
    %321 = vmatpush1.bf16.msra.mxu0 %v112
    %322 = vmatprep.subr.bf16.mxu0 0
    %323 = vmatpush2.bf16.msra.mxu0 0
    %324 = vmatprep.subr.bf16.mxu0 0
    %325 = vmatpush2.bf16.msra.mxu0 0
    %326 = vmatprep.subr.bf16.mxu0 0
    %327 = vmatpush2.bf16.msra.mxu0 0
    %328 = vmatprep.subr.bf16.mxu0 0
    %329 = vmatpush2.bf16.msra.mxu0 0
    %330 = vmatprep.subr.bf16.mxu0 0
    %331 = vmatpush2.bf16.msra.mxu0 0
    %332 = vmatprep.subr.bf16.mxu0 0
    %333 = vmatpush2.bf16.msra.mxu0 0
    %334 = vmatprep.subr.bf16.mxu0 0
    %335 = vmatpush2.bf16.msra.mxu0 0
    %336 = vmatprep.subr.bf16.mxu0 0
    %337 = vmatpush2.bf16.msra.mxu0 0
    %338 = vmatprep.mubr.bf16.mxu0 0
    %339 = vmatmul.mubr.bf16.gmra.mxu0 %v140
    %v340 = vpop.f32.mrf.mxu0
    %v341 = vadd.f32 0.0, %v340
    %v342 = vpop.f32.mrf.mxu0
    %v343 = vadd.f32 0.0, %v342
    %v344 = vpop.f32.mrf.mxu0
    %v345 = vpop.f32.mrf.mxu0
    %346 = vdwg.mxu0
    %347 = vmatprep.subr.bf16.mxu0 0
    %348 = vmatpush1.bf16.msra.mxu0 0
    %349 = vmatprep.subr.bf16.mxu0 0
    %350 = vmatpush1.bf16.msra.mxu0 0
    %351 = vmatprep.subr.bf16.mxu0 0
    %352 = vmatpush1.bf16.msra.mxu0 0
    %353 = vmatprep.subr.bf16.mxu0 0
    %354 = vmatpush1.bf16.msra.mxu0 0
    %355 = vmatprep.subr.bf16.mxu0 0
    %356 = vmatpush1.bf16.msra.mxu0 0
    %357 = vmatprep.subr.bf16.mxu0 0
    %358 = vmatpush1.bf16.msra.mxu0 0
    %359 = vmatprep.subr.bf16.mxu0 0
    %360 = vmatpush1.bf16.msra.mxu0 0
    %361 = vmatprep.subr.bf16.mxu0 %v115
    %362 = vmatpush1.bf16.msra.mxu0 %v114
    %363 = vmatprep.subr.bf16.mxu0 0
    %364 = vmatpush2.bf16.msra.mxu0 0
    %365 = vmatprep.subr.bf16.mxu0 0
    %366 = vmatpush2.bf16.msra.mxu0 0
    %367 = vmatprep.subr.bf16.mxu0 0
    %368 = vmatpush2.bf16.msra.mxu0 0
    %369 = vmatprep.subr.bf16.mxu0 0
    %370 = vmatpush2.bf16.msra.mxu0 0
    %371 = vmatprep.subr.bf16.mxu0 0
    %372 = vmatpush2.bf16.msra.mxu0 0
    %373 = vmatprep.subr.bf16.mxu0 0
    %374 = vmatpush2.bf16.msra.mxu0 0
    %375 = vmatprep.subr.bf16.mxu0 0
    %376 = vmatpush2.bf16.msra.mxu0 0
    %377 = vmatprep.subr.bf16.mxu0 0
    %378 = vmatpush2.bf16.msra.mxu0 0
    %379 = vmatprep.mubr.bf16.mxu0 0
    %380 = vmatmul.mubr.bf16.gmra.mxu0 %v140
    %v381 = vpop.f32.mrf.mxu0
    %v382 = vadd.f32 0.0, %v381
    %v383 = vpop.f32.mrf.mxu0
    %v384 = vadd.f32 0.0, %v383
    %v385 = vpop.f32.mrf.mxu0
    %v386 = vpop.f32.mrf.mxu0
    %387 = vdwg.mxu0
    %388 = vmatprep.subr.bf16.mxu0 0
    %389 = vmatpush1.bf16.msra.mxu0 0
    %390 = vmatprep.subr.bf16.mxu0 0
    %391 = vmatpush1.bf16.msra.mxu0 0
    %392 = vmatprep.subr.bf16.mxu0 0
    %393 = vmatpush1.bf16.msra.mxu0 0
    %394 = vmatprep.subr.bf16.mxu0 0
    %395 = vmatpush1.bf16.msra.mxu0 0
    %396 = vmatprep.subr.bf16.mxu0 0
    %397 = vmatpush1.bf16.msra.mxu0 0
    %398 = vmatprep.subr.bf16.mxu0 0
    %399 = vmatpush1.bf16.msra.mxu0 0
    %400 = vmatprep.subr.bf16.mxu0 0
    %401 = vmatpush1.bf16.msra.mxu0 0
    %402 = vmatprep.subr.bf16.mxu0 %v117
    %403 = vmatpush1.bf16.msra.mxu0 %v116
    %404 = vmatprep.subr.bf16.mxu0 0
    %405 = vmatpush2.bf16.msra.mxu0 0
    %406 = vmatprep.subr.bf16.mxu0 0
    %407 = vmatpush2.bf16.msra.mxu0 0
    %408 = vmatprep.subr.bf16.mxu0 0
    %409 = vmatpush2.bf16.msra.mxu0 0
    %410 = vmatprep.subr.bf16.mxu0 0
    %411 = vmatpush2.bf16.msra.mxu0 0
    %412 = vmatprep.subr.bf16.mxu0 0
    %413 = vmatpush2.bf16.msra.mxu0 0
    %414 = vmatprep.subr.bf16.mxu0 0
    %415 = vmatpush2.bf16.msra.mxu0 0
    %416 = vmatprep.subr.bf16.mxu0 0
    %417 = vmatpush2.bf16.msra.mxu0 0
    %418 = vmatprep.subr.bf16.mxu0 0
    %419 = vmatpush2.bf16.msra.mxu0 0
    %420 = vmatprep.mubr.bf16.mxu0 0
    %421 = vmatmul.mubr.bf16.gmra.mxu0 %v140
    %v422 = vpop.f32.mrf.mxu0
    %v423 = vadd.f32 0.0, %v422
    %v424 = vpop.f32.mrf.mxu0
    %v425 = vadd.f32 0.0, %v424
    %v426 = vpop.f32.mrf.mxu0
    %v427 = vpop.f32.mrf.mxu0
    %428 = vdwg.mxu0
    %429 = vmatprep.subr.bf16.mxu0 0
    %430 = vmatpush1.bf16.msra.mxu0 0
    %431 = vmatprep.subr.bf16.mxu0 0
    %432 = vmatpush1.bf16.msra.mxu0 0
    %433 = vmatprep.subr.bf16.mxu0 0
    %434 = vmatpush1.bf16.msra.mxu0 0
    %435 = vmatprep.subr.bf16.mxu0 0
    %436 = vmatpush1.bf16.msra.mxu0 0
    %437 = vmatprep.subr.bf16.mxu0 0
    %438 = vmatpush1.bf16.msra.mxu0 0
    %439 = vmatprep.subr.bf16.mxu0 0
    %440 = vmatpush1.bf16.msra.mxu0 0
    %441 = vmatprep.subr.bf16.mxu0 0
    %442 = vmatpush1.bf16.msra.mxu0 0
    %443 = vmatprep.subr.bf16.mxu0 %v119
    %444 = vmatpush1.bf16.msra.mxu0 %v118
    %445 = vmatprep.subr.bf16.mxu0 0
    %446 = vmatpush2.bf16.msra.mxu0 0
    %447 = vmatprep.subr.bf16.mxu0 0
    %448 = vmatpush2.bf16.msra.mxu0 0
    %449 = vmatprep.subr.bf16.mxu0 0
    %450 = vmatpush2.bf16.msra.mxu0 0
    %451 = vmatprep.subr.bf16.mxu0 0
    %452 = vmatpush2.bf16.msra.mxu0 0
    %453 = vmatprep.subr.bf16.mxu0 0
    %454 = vmatpush2.bf16.msra.mxu0 0
    %455 = vmatprep.subr.bf16.mxu0 0
    %456 = vmatpush2.bf16.msra.mxu0 0
    %457 = vmatprep.subr.bf16.mxu0 0
    %458 = vmatpush2.bf16.msra.mxu0 0
    %459 = vmatprep.subr.bf16.mxu0 0
    %460 = vmatpush2.bf16.msra.mxu0 0
    %461 = vmatprep.mubr.bf16.mxu0 0
    %462 = vmatmul.mubr.bf16.gmra.mxu0 %v140
    %v463 = vpop.f32.mrf.mxu0
    %v464 = vadd.f32 0.0, %v463
    %v465 = vpop.f32.mrf.mxu0
    %v466 = vadd.f32 0.0, %v465
    %v467 = vpop.f32.mrf.mxu0
    %v468 = vpop.f32.mrf.mxu0
    %469 = vdwg.mxu0
    %470 = vmatprep.subr.bf16.mxu0 0
    %471 = vmatpush1.bf16.msra.mxu0 0
    %472 = vmatprep.subr.bf16.mxu0 0
    %473 = vmatpush1.bf16.msra.mxu0 0
    %474 = vmatprep.subr.bf16.mxu0 0
    %475 = vmatpush1.bf16.msra.mxu0 0
    %476 = vmatprep.subr.bf16.mxu0 0
    %477 = vmatpush1.bf16.msra.mxu0 0
    %478 = vmatprep.subr.bf16.mxu0 0
    %479 = vmatpush1.bf16.msra.mxu0 0
    %480 = vmatprep.subr.bf16.mxu0 0
    %481 = vmatpush1.bf16.msra.mxu0 0
    %482 = vmatprep.subr.bf16.mxu0 0
    %483 = vmatpush1.bf16.msra.mxu0 0
    %484 = vmatprep.subr.bf16.mxu0 0
    %485 = vmatpush1.bf16.msra.mxu0 %v120
    %486 = vmatprep.subr.bf16.mxu0 0
    %487 = vmatpush2.bf16.msra.mxu0 0
    %488 = vmatprep.subr.bf16.mxu0 0
    %489 = vmatpush2.bf16.msra.mxu0 0
    %490 = vmatprep.subr.bf16.mxu0 0
    %491 = vmatpush2.bf16.msra.mxu0 0
    %492 = vmatprep.subr.bf16.mxu0 0
    %493 = vmatpush2.bf16.msra.mxu0 0
    %494 = vmatprep.subr.bf16.mxu0 0
    %495 = vmatpush2.bf16.msra.mxu0 0
    %496 = vmatprep.subr.bf16.mxu0 0
    %497 = vmatpush2.bf16.msra.mxu0 0
    %498 = vmatprep.subr.bf16.mxu0 0
    %499 = vmatpush2.bf16.msra.mxu0 0
    %500 = vmatprep.subr.bf16.mxu0 0
    %501 = vmatpush2.bf16.msra.mxu0 0
    %502 = vmatprep.mubr.bf16.mxu0 0
    %503 = vmatmul.mubr.bf16.gmra.mxu0 %v140
    %v504 = vpop.f32.mrf.mxu0
    %v505 = vadd.f32 0.0, %v504
    %v506 = vpop.f32.mrf.mxu0
    %v507 = vpop.f32.mrf.mxu0
    %v508 = vpop.f32.mrf.mxu0
    %509 = vdwg.mxu0
    %510 = vxpose.xlu0.b32.start [1/16] %v505, 128
    %511 = vxpose.xlu0.b32.cont [2/16] 0.0, 128
    %512 = vxpose.xlu0.b32.cont [3/16] 0.0, 128
    %513 = vxpose.xlu0.b32.cont [4/16] 0.0, 128
    %514 = vxpose.xlu0.b32.cont [5/16] 0.0, 128
    %515 = vxpose.xlu0.b32.cont [6/16] 0.0, 128
    %516 = vxpose.xlu0.b32.cont [7/16] 0.0, 128
    %517 = vxpose.xlu0.b32.cont [8/16] 0.0, 128
    %518 = vxpose.xlu0.b32.cont [9/16] 0.0, 128
    %519 = vxpose.xlu0.b32.cont [10/16] 0.0, 128
    %520 = vxpose.xlu0.b32.cont [11/16] 0.0, 128
    %521 = vxpose.xlu0.b32.cont [12/16] 0.0, 128
    %522 = vxpose.xlu0.b32.cont [13/16] 0.0, 128
    %523 = vxpose.xlu0.b32.cont [14/16] 0.0, 128
    %524 = vxpose.xlu0.b32.cont [15/16] 0.0, 128
    %525 = vxpose.xlu0.b32.end [16/16] 0.0, 128
    %v526 = vpop.trf.xlu0
    %v527 = vpop.trf.xlu0
    %v528 = vpop.trf.xlu0
    %v529 = vpop.trf.xlu0
    %v530 = vpop.trf.xlu0
    %v531 = vpop.trf.xlu0
    %v532 = vpop.trf.xlu0
    %v533 = vpop.trf.xlu0
    %v534 = vpop.trf.xlu0
    %v535 = vpop.trf.xlu0
    %v536 = vpop.trf.xlu0
    %v537 = vpop.trf.xlu0
    %v538 = vpop.trf.xlu0
    %v539 = vpop.trf.xlu0
    %v540 = vpop.trf.xlu0
    %v541 = vpop.trf.xlu0
    %543 = vset.pattern.permute.xlu0 4
    %544 = vperm.xlu0 %543, %v505
    %v545 = vpop.permute.xlu0 %544
    %v547 = vlaneseq
    %v548 = vshrl.u32 %v547, 7
    %v549 = vsub.s32 0, %v548
    %v550 = vrot.slane %v526, %v549
    %v551 = vadd.f32 %v545, %v550
    %vm552 = vcmp.gt.f32.partialorder %v551, 0.0
    %v553 = vmul.f32 %v551, 0.2
    %v554 = vsel %vm552, %v551, %v553
    %v555 = vsel %vm32, %v554, -1e+30
    %vm556 = vcmask 64512
    %v557 = vsel %vm556, %v555, -inf
    %558 = vmax.xlane.f32.xlu0 %v557
    %v559 = vpop.xlane.xlu0 %558
    %v560 = vsub.f32 %v555, %v559
    %v561 = vmul.f32 %v560, 1.442695
    %v562 = vpow.pop %v561
    %v563 = vsel %vm32, %v562, 0.0
    %v564 = vsel %vm556, %v563, 0.0
    %565 = vadd.xlane.f32.xlu0 %v564
    %v566 = vpop.xlane.xlu0 %565
    %v567 = vrcp.pop %v566
    %v568 = vmul.f32 %v563, %v567
    %v570 = vsel %vm556, %v568, 0
    %572 = vmatprep.subr.mxu0 0.0
    %573 = vmatpush1.msra.mxu0 0.0
    %574 = vmatprep.subr.mxu0 0.0
    %575 = vmatpush1.msra.mxu0 0.0
    %576 = vmatprep.subr.mxu0 0.0
    %577 = vmatpush1.msra.mxu0 0.0
    %578 = vmatprep.subr.mxu0 0.0
    %579 = vmatpush1.msra.mxu0 0.0
    %580 = vmatprep.subr.mxu0 0.0
    %581 = vmatpush1.msra.mxu0 0.0
    %582 = vmatprep.subr.mxu0 0.0
    %583 = vmatpush1.msra.mxu0 0.0
    %584 = vmatprep.subr.mxu0 0.0
    %585 = vmatpush1.msra.mxu0 0.0
    %586 = vmatprep.subr.mxu0 0.0
    %587 = vmatpush1.msra.mxu0 0.0
    %588 = vmatprep.subr.mxu0 0.0
    %589 = vmatpush1.msra.mxu0 0.0
    %590 = vmatprep.subr.mxu0 0.0
    %591 = vmatpush1.msra.mxu0 0.0
    %592 = vmatprep.subr.mxu0 0.0
    %593 = vmatpush1.msra.mxu0 0.0
    %594 = vmatprep.subr.mxu0 0.0
    %595 = vmatpush1.msra.mxu0 0.0
    %596 = vmatprep.subr.mxu0 0.0
    %597 = vmatpush1.msra.mxu0 0.0
    %598 = vmatprep.subr.mxu0 0.0
    %599 = vmatpush1.msra.mxu0 0.0
    %600 = vmatprep.subr.mxu0 0.0
    %601 = vmatpush1.msra.mxu0 0.0
    %602 = vmatprep.subr.mxu0 %v179
    %603 = vmatpush1.msra.mxu0 %v177
    %604 = vmatprep.subr.mxu0 0.0
    %605 = vmatpush2.msra.mxu0 0.0
    %606 = vmatprep.subr.mxu0 0.0
    %607 = vmatpush2.msra.mxu0 0.0
    %608 = vmatprep.subr.mxu0 0.0
    %609 = vmatpush2.msra.mxu0 0.0
    %610 = vmatprep.subr.mxu0 0.0
    %611 = vmatpush2.msra.mxu0 0.0
    %612 = vmatprep.subr.mxu0 0.0
    %613 = vmatpush2.msra.mxu0 0.0
    %614 = vmatprep.subr.mxu0 0.0
    %615 = vmatpush2.msra.mxu0 0.0
    %616 = vmatprep.subr.mxu0 0.0
    %617 = vmatpush2.msra.mxu0 0.0
    %618 = vmatprep.subr.mxu0 0.0
    %619 = vmatpush2.msra.mxu0 0.0
    %620 = vmatprep.subr.mxu0 0.0
    %621 = vmatpush2.msra.mxu0 0.0
    %622 = vmatprep.subr.mxu0 0.0
    %623 = vmatpush2.msra.mxu0 0.0
    %624 = vmatprep.subr.mxu0 0.0
    %625 = vmatpush2.msra.mxu0 0.0
    %626 = vmatprep.subr.mxu0 0.0
    %627 = vmatpush2.msra.mxu0 0.0
    %628 = vmatprep.subr.mxu0 0.0
    %629 = vmatpush2.msra.mxu0 0.0
    %630 = vmatprep.subr.mxu0 0.0
    %631 = vmatpush2.msra.mxu0 0.0
    %632 = vmatprep.subr.mxu0 0.0
    %633 = vmatpush2.msra.mxu0 0.0
    %634 = vmatprep.subr.mxu0 0.0
    %635 = vmatpush2.msra.mxu0 0.0
    %636 = vmatprep.mubr.f32.mxu0 0.0
    %637 = vmatmul.mubr.f32.gmra.mxu0 %v570
    %v638 = vpop.f32.mrf.mxu0
    %v639 = vadd.f32 0.0, %v638
    %v640 = vpop.f32.mrf.mxu0
    %v641 = vadd.f32 0.0, %v640
    %642 = vdwg.mxu0
    %643 = vst [vmem:[#allocation2] sm:$0xff] %v639
    %644 = vst [vmem:[#allocation2 + $0x8] sm:$0xff] %v641
    %645 = vrot.lane.b32.xlu0 %v505, 127
    %v646 = vpop.permute.xlu0 %645
    %648 = vxpose.xlu0.b32.start [1/16] %v646, 128
    %649 = vxpose.xlu0.b32.cont [2/16] 0.0, 128
    %650 = vxpose.xlu0.b32.cont [3/16] 0.0, 128
    %651 = vxpose.xlu0.b32.cont [4/16] 0.0, 128
    %652 = vxpose.xlu0.b32.cont [5/16] 0.0, 128
    %653 = vxpose.xlu0.b32.cont [6/16] 0.0, 128
    %654 = vxpose.xlu0.b32.cont [7/16] 0.0, 128
    %655 = vxpose.xlu0.b32.cont [8/16] 0.0, 128
    %656 = vxpose.xlu0.b32.cont [9/16] 0.0, 128
    %657 = vxpose.xlu0.b32.cont [10/16] 0.0, 128
    %658 = vxpose.xlu0.b32.cont [11/16] 0.0, 128
    %659 = vxpose.xlu0.b32.cont [12/16] 0.0, 128
    %660 = vxpose.xlu0.b32.cont [13/16] 0.0, 128
    %661 = vxpose.xlu0.b32.cont [14/16] 0.0, 128
    %662 = vxpose.xlu0.b32.cont [15/16] 0.0, 128
    %663 = vxpose.xlu0.b32.end [16/16] 0.0, 128
    %v664 = vpop.trf.xlu0
    %v665 = vpop.trf.xlu0
    %v666 = vpop.trf.xlu0
    %v667 = vpop.trf.xlu0
    %v668 = vpop.trf.xlu0
    %v669 = vpop.trf.xlu0
    %v670 = vpop.trf.xlu0
    %v671 = vpop.trf.xlu0
    %v672 = vpop.trf.xlu0
    %v673 = vpop.trf.xlu0
    %v674 = vpop.trf.xlu0
    %v675 = vpop.trf.xlu0
    %v676 = vpop.trf.xlu0
    %v677 = vpop.trf.xlu0
    %v678 = vpop.trf.xlu0
    %v679 = vpop.trf.xlu0
    %680 = vset.pattern.permute.xlu0 5
    %681 = vperm.xlu0 %680, %v505
    %v682 = vpop.permute.xlu0 %681
    %v684 = vlaneseq
    %v685 = vshrl.u32 %v684, 7
    %v686 = vsub.s32 0, %v685
    %v687 = vrot.slane %v664, %v686
    %v688 = vadd.f32 %v682, %v687
    %vm689 = vcmp.gt.f32.partialorder %v688, 0.0
    %v690 = vmul.f32 %v688, 0.2
    %v691 = vsel %vm689, %v688, %v690
    %v692 = vsel %vm32, %v691, -1e+30
    %v693 = vsel %vm556, %v692, -inf
    %694 = vmax.xlane.f32.xlu0 %v693
    %v695 = vpop.xlane.xlu0 %694
    %v696 = vsub.f32 %v692, %v695
    %v697 = vmul.f32 %v696, 1.442695
    %v698 = vpow.pop %v697
    %v699 = vsel %vm32, %v698, 0.0
    %v700 = vsel %vm556, %v699, 0.0
    %701 = vadd.xlane.f32.xlu0 %v700
    %v702 = vpop.xlane.xlu0 %701
    %v703 = vrcp.pop %v702
    %v704 = vmul.f32 %v699, %v703
    %v706 = vsel %vm556, %v704, 0
    %708 = vmatprep.subr.mxu0 0.0
    %709 = vmatpush1.msra.mxu0 0.0
    %710 = vmatprep.subr.mxu0 0.0
    %711 = vmatpush1.msra.mxu0 0.0
    %712 = vmatprep.subr.mxu0 0.0
    %713 = vmatpush1.msra.mxu0 0.0
    %714 = vmatprep.subr.mxu0 0.0
    %715 = vmatpush1.msra.mxu0 0.0
    %716 = vmatprep.subr.mxu0 0.0
    %717 = vmatpush1.msra.mxu0 0.0
    %718 = vmatprep.subr.mxu0 0.0
    %719 = vmatpush1.msra.mxu0 0.0
    %720 = vmatprep.subr.mxu0 0.0
    %721 = vmatpush1.msra.mxu0 0.0
    %722 = vmatprep.subr.mxu0 0.0
    %723 = vmatpush1.msra.mxu0 0.0
    %724 = vmatprep.subr.mxu0 0.0
    %725 = vmatpush1.msra.mxu0 0.0
    %726 = vmatprep.subr.mxu0 0.0
    %727 = vmatpush1.msra.mxu0 0.0
    %728 = vmatprep.subr.mxu0 0.0
    %729 = vmatpush1.msra.mxu0 0.0
    %730 = vmatprep.subr.mxu0 0.0
    %731 = vmatpush1.msra.mxu0 0.0
    %732 = vmatprep.subr.mxu0 0.0
    %733 = vmatpush1.msra.mxu0 0.0
    %734 = vmatprep.subr.mxu0 0.0
    %735 = vmatpush1.msra.mxu0 0.0
    %736 = vmatprep.subr.mxu0 0.0
    %737 = vmatpush1.msra.mxu0 0.0
    %738 = vmatprep.subr.mxu0 %v220
    %739 = vmatpush1.msra.mxu0 %v218
    %740 = vmatprep.subr.mxu0 0.0
    %741 = vmatpush2.msra.mxu0 0.0
    %742 = vmatprep.subr.mxu0 0.0
    %743 = vmatpush2.msra.mxu0 0.0
    %744 = vmatprep.subr.mxu0 0.0
    %745 = vmatpush2.msra.mxu0 0.0
    %746 = vmatprep.subr.mxu0 0.0
    %747 = vmatpush2.msra.mxu0 0.0
    %748 = vmatprep.subr.mxu0 0.0
    %749 = vmatpush2.msra.mxu0 0.0
    %750 = vmatprep.subr.mxu0 0.0
    %751 = vmatpush2.msra.mxu0 0.0
    %752 = vmatprep.subr.mxu0 0.0
    %753 = vmatpush2.msra.mxu0 0.0
    %754 = vmatprep.subr.mxu0 0.0
    %755 = vmatpush2.msra.mxu0 0.0
    %756 = vmatprep.subr.mxu0 0.0
    %757 = vmatpush2.msra.mxu0 0.0
    %758 = vmatprep.subr.mxu0 0.0
    %759 = vmatpush2.msra.mxu0 0.0
    %760 = vmatprep.subr.mxu0 0.0
    %761 = vmatpush2.msra.mxu0 0.0
    %762 = vmatprep.subr.mxu0 0.0
    %763 = vmatpush2.msra.mxu0 0.0
    %764 = vmatprep.subr.mxu0 0.0
    %765 = vmatpush2.msra.mxu0 0.0
    %766 = vmatprep.subr.mxu0 0.0
    %767 = vmatpush2.msra.mxu0 0.0
    %768 = vmatprep.subr.mxu0 0.0
    %769 = vmatpush2.msra.mxu0 0.0
    %770 = vmatprep.subr.mxu0 0.0
    %771 = vmatpush2.msra.mxu0 0.0
    %772 = vmatprep.mubr.f32.mxu0 0.0
    %773 = vmatmul.mubr.f32.gmra.mxu0 %v706
    %v774 = vpop.f32.mrf.mxu0
    %v775 = vadd.f32 0.0, %v774
    %v776 = vpop.f32.mrf.mxu0
    %v777 = vadd.f32 0.0, %v776
    %778 = vdwg.mxu0
    %779 = vst [vmem:[#allocation2 + $0x10] sm:$0xff] %v775
    %780 = vst [vmem:[#allocation2 + $0x18] sm:$0xff] %v777
    %781 = vrot.lane.b32.xlu0 %v505, 126
    %v782 = vpop.permute.xlu0 %781
    %784 = vxpose.xlu0.b32.start [1/16] %v782, 128
    %785 = vxpose.xlu0.b32.cont [2/16] 0.0, 128
    %786 = vxpose.xlu0.b32.cont [3/16] 0.0, 128
    %787 = vxpose.xlu0.b32.cont [4/16] 0.0, 128
    %788 = vxpose.xlu0.b32.cont [5/16] 0.0, 128
    %789 = vxpose.xlu0.b32.cont [6/16] 0.0, 128
    %790 = vxpose.xlu0.b32.cont [7/16] 0.0, 128
    %791 = vxpose.xlu0.b32.cont [8/16] 0.0, 128
    %792 = vxpose.xlu0.b32.cont [9/16] 0.0, 128
    %793 = vxpose.xlu0.b32.cont [10/16] 0.0, 128
    %794 = vxpose.xlu0.b32.cont [11/16] 0.0, 128
    %795 = vxpose.xlu0.b32.cont [12/16] 0.0, 128
    %796 = vxpose.xlu0.b32.cont [13/16] 0.0, 128
    %797 = vxpose.xlu0.b32.cont [14/16] 0.0, 128
    %798 = vxpose.xlu0.b32.cont [15/16] 0.0, 128
    %799 = vxpose.xlu0.b32.end [16/16] 0.0, 128
    %v800 = vpop.trf.xlu0
    %v801 = vpop.trf.xlu0
    %v802 = vpop.trf.xlu0
    %v803 = vpop.trf.xlu0
    %v804 = vpop.trf.xlu0
    %v805 = vpop.trf.xlu0
    %v806 = vpop.trf.xlu0
    %v807 = vpop.trf.xlu0
    %v808 = vpop.trf.xlu0
    %v809 = vpop.trf.xlu0
    %v810 = vpop.trf.xlu0
    %v811 = vpop.trf.xlu0
    %v812 = vpop.trf.xlu0
    %v813 = vpop.trf.xlu0
    %v814 = vpop.trf.xlu0
    %v815 = vpop.trf.xlu0
    %816 = vset.pattern.permute.xlu0 6
    %817 = vperm.xlu0 %816, %v505
    %v818 = vpop.permute.xlu0 %817
    %v820 = vlaneseq
    %v821 = vshrl.u32 %v820, 7
    %v822 = vsub.s32 0, %v821
    %v823 = vrot.slane %v800, %v822
    %v824 = vadd.f32 %v818, %v823
    %vm825 = vcmp.gt.f32.partialorder %v824, 0.0
    %v826 = vmul.f32 %v824, 0.2
    %v827 = vsel %vm825, %v824, %v826
    %v828 = vsel %vm32, %v827, -1e+30
    %v829 = vsel %vm556, %v828, -inf
    %830 = vmax.xlane.f32.xlu0 %v829
    %v831 = vpop.xlane.xlu0 %830
    %v832 = vsub.f32 %v828, %v831
    %v833 = vmul.f32 %v832, 1.442695
    %v834 = vpow.pop %v833
    %v835 = vsel %vm32, %v834, 0.0
    %v836 = vsel %vm556, %v835, 0.0
    %837 = vadd.xlane.f32.xlu0 %v836
    %v838 = vpop.xlane.xlu0 %837
    %v839 = vrcp.pop %v838
    %v840 = vmul.f32 %v835, %v839
    %v842 = vsel %vm556, %v840, 0
    %844 = vmatprep.subr.mxu0 0.0
    %845 = vmatpush1.msra.mxu0 0.0
    %846 = vmatprep.subr.mxu0 0.0
    %847 = vmatpush1.msra.mxu0 0.0
    %848 = vmatprep.subr.mxu0 0.0
    %849 = vmatpush1.msra.mxu0 0.0
    %850 = vmatprep.subr.mxu0 0.0
    %851 = vmatpush1.msra.mxu0 0.0
    %852 = vmatprep.subr.mxu0 0.0
    %853 = vmatpush1.msra.mxu0 0.0
    %854 = vmatprep.subr.mxu0 0.0
    %855 = vmatpush1.msra.mxu0 0.0
    %856 = vmatprep.subr.mxu0 0.0
    %857 = vmatpush1.msra.mxu0 0.0
    %858 = vmatprep.subr.mxu0 0.0
    %859 = vmatpush1.msra.mxu0 0.0
    %860 = vmatprep.subr.mxu0 0.0
    %861 = vmatpush1.msra.mxu0 0.0
    %862 = vmatprep.subr.mxu0 0.0
    %863 = vmatpush1.msra.mxu0 0.0
    %864 = vmatprep.subr.mxu0 0.0
    %865 = vmatpush1.msra.mxu0 0.0
    %866 = vmatprep.subr.mxu0 0.0
    %867 = vmatpush1.msra.mxu0 0.0
    %868 = vmatprep.subr.mxu0 0.0
    %869 = vmatpush1.msra.mxu0 0.0
    %870 = vmatprep.subr.mxu0 0.0
    %871 = vmatpush1.msra.mxu0 0.0
    %872 = vmatprep.subr.mxu0 0.0
    %873 = vmatpush1.msra.mxu0 0.0
    %874 = vmatprep.subr.mxu0 %v261
    %875 = vmatpush1.msra.mxu0 %v259
    %876 = vmatprep.subr.mxu0 0.0
    %877 = vmatpush2.msra.mxu0 0.0
    %878 = vmatprep.subr.mxu0 0.0
    %879 = vmatpush2.msra.mxu0 0.0
    %880 = vmatprep.subr.mxu0 0.0
    %881 = vmatpush2.msra.mxu0 0.0
    %882 = vmatprep.subr.mxu0 0.0
    %883 = vmatpush2.msra.mxu0 0.0
    %884 = vmatprep.subr.mxu0 0.0
    %885 = vmatpush2.msra.mxu0 0.0
    %886 = vmatprep.subr.mxu0 0.0
    %887 = vmatpush2.msra.mxu0 0.0
    %888 = vmatprep.subr.mxu0 0.0
    %889 = vmatpush2.msra.mxu0 0.0
    %890 = vmatprep.subr.mxu0 0.0
    %891 = vmatpush2.msra.mxu0 0.0
    %892 = vmatprep.subr.mxu0 0.0
    %893 = vmatpush2.msra.mxu0 0.0
    %894 = vmatprep.subr.mxu0 0.0
    %895 = vmatpush2.msra.mxu0 0.0
    %896 = vmatprep.subr.mxu0 0.0
    %897 = vmatpush2.msra.mxu0 0.0
    %898 = vmatprep.subr.mxu0 0.0
    %899 = vmatpush2.msra.mxu0 0.0
    %900 = vmatprep.subr.mxu0 0.0
    %901 = vmatpush2.msra.mxu0 0.0
    %902 = vmatprep.subr.mxu0 0.0
    %903 = vmatpush2.msra.mxu0 0.0
    %904 = vmatprep.subr.mxu0 0.0
    %905 = vmatpush2.msra.mxu0 0.0
    %906 = vmatprep.subr.mxu0 0.0
    %907 = vmatpush2.msra.mxu0 0.0
    %908 = vmatprep.mubr.f32.mxu0 0.0
    %909 = vmatmul.mubr.f32.gmra.mxu0 %v842
    %v910 = vpop.f32.mrf.mxu0
    %v911 = vadd.f32 0.0, %v910
    %v912 = vpop.f32.mrf.mxu0
    %v913 = vadd.f32 0.0, %v912
    %914 = vdwg.mxu0
    %915 = vst [vmem:[#allocation2 + $0x20] sm:$0xff] %v911
    %916 = vst [vmem:[#allocation2 + $0x28] sm:$0xff] %v913
    %917 = vrot.lane.b32.xlu0 %v505, 125
    %v918 = vpop.permute.xlu0 %917
    %920 = vxpose.xlu0.b32.start [1/16] %v918, 128
    %921 = vxpose.xlu0.b32.cont [2/16] 0.0, 128
    %922 = vxpose.xlu0.b32.cont [3/16] 0.0, 128
    %923 = vxpose.xlu0.b32.cont [4/16] 0.0, 128
    %924 = vxpose.xlu0.b32.cont [5/16] 0.0, 128
    %925 = vxpose.xlu0.b32.cont [6/16] 0.0, 128
    %926 = vxpose.xlu0.b32.cont [7/16] 0.0, 128
    %927 = vxpose.xlu0.b32.cont [8/16] 0.0, 128
    %928 = vxpose.xlu0.b32.cont [9/16] 0.0, 128
    %929 = vxpose.xlu0.b32.cont [10/16] 0.0, 128
    %930 = vxpose.xlu0.b32.cont [11/16] 0.0, 128
    %931 = vxpose.xlu0.b32.cont [12/16] 0.0, 128
    %932 = vxpose.xlu0.b32.cont [13/16] 0.0, 128
    %933 = vxpose.xlu0.b32.cont [14/16] 0.0, 128
    %934 = vxpose.xlu0.b32.cont [15/16] 0.0, 128
    %935 = vxpose.xlu0.b32.end [16/16] 0.0, 128
    %v936 = vpop.trf.xlu0
    %v937 = vpop.trf.xlu0
    %v938 = vpop.trf.xlu0
    %v939 = vpop.trf.xlu0
    %v940 = vpop.trf.xlu0
    %v941 = vpop.trf.xlu0
    %v942 = vpop.trf.xlu0
    %v943 = vpop.trf.xlu0
    %v944 = vpop.trf.xlu0
    %v945 = vpop.trf.xlu0
    %v946 = vpop.trf.xlu0
    %v947 = vpop.trf.xlu0
    %v948 = vpop.trf.xlu0
    %v949 = vpop.trf.xlu0
    %v950 = vpop.trf.xlu0
    %v951 = vpop.trf.xlu0
    %952 = vset.pattern.permute.xlu0 7
    %953 = vperm.xlu0 %952, %v505
    %v954 = vpop.permute.xlu0 %953
    %v956 = vlaneseq
    %v957 = vshrl.u32 %v956, 7
    %v958 = vsub.s32 0, %v957
    %v959 = vrot.slane %v936, %v958
    %v960 = vadd.f32 %v954, %v959
    %vm961 = vcmp.gt.f32.partialorder %v960, 0.0
    %v962 = vmul.f32 %v960, 0.2
    %v963 = vsel %vm961, %v960, %v962
    %v964 = vsel %vm32, %v963, -1e+30
    %v965 = vsel %vm556, %v964, -inf
    %966 = vmax.xlane.f32.xlu0 %v965
    %v967 = vpop.xlane.xlu0 %966
    %v968 = vsub.f32 %v964, %v967
    %v969 = vmul.f32 %v968, 1.442695
    %v970 = vpow.pop %v969
    %v971 = vsel %vm32, %v970, 0.0
    %v972 = vsel %vm556, %v971, 0.0
    %973 = vadd.xlane.f32.xlu0 %v972
    %v974 = vpop.xlane.xlu0 %973
    %v975 = vrcp.pop %v974
    %v976 = vmul.f32 %v971, %v975
    %v978 = vsel %vm556, %v976, 0
    %980 = vmatprep.subr.mxu0 0.0
    %981 = vmatpush1.msra.mxu0 0.0
    %982 = vmatprep.subr.mxu0 0.0
    %983 = vmatpush1.msra.mxu0 0.0
    %984 = vmatprep.subr.mxu0 0.0
    %985 = vmatpush1.msra.mxu0 0.0
    %986 = vmatprep.subr.mxu0 0.0
    %987 = vmatpush1.msra.mxu0 0.0
    %988 = vmatprep.subr.mxu0 0.0
    %989 = vmatpush1.msra.mxu0 0.0
    %990 = vmatprep.subr.mxu0 0.0
    %991 = vmatpush1.msra.mxu0 0.0
    %992 = vmatprep.subr.mxu0 0.0
    %993 = vmatpush1.msra.mxu0 0.0
    %994 = vmatprep.subr.mxu0 0.0
    %995 = vmatpush1.msra.mxu0 0.0
    %996 = vmatprep.subr.mxu0 0.0
    %997 = vmatpush1.msra.mxu0 0.0
    %998 = vmatprep.subr.mxu0 0.0
    %999 = vmatpush1.msra.mxu0 0.0
    %1000 = vmatprep.subr.mxu0 0.0
    %1001 = vmatpush1.msra.mxu0 0.0
    %1002 = vmatprep.subr.mxu0 0.0
    %1003 = vmatpush1.msra.mxu0 0.0
    %1004 = vmatprep.subr.mxu0 0.0
    %1005 = vmatpush1.msra.mxu0 0.0
    %1006 = vmatprep.subr.mxu0 0.0
    %1007 = vmatpush1.msra.mxu0 0.0
    %1008 = vmatprep.subr.mxu0 0.0
    %1009 = vmatpush1.msra.mxu0 0.0
    %1010 = vmatprep.subr.mxu0 %v302
    %1011 = vmatpush1.msra.mxu0 %v300
    %1012 = vmatprep.subr.mxu0 0.0
    %1013 = vmatpush2.msra.mxu0 0.0
    %1014 = vmatprep.subr.mxu0 0.0
    %1015 = vmatpush2.msra.mxu0 0.0
    %1016 = vmatprep.subr.mxu0 0.0
    %1017 = vmatpush2.msra.mxu0 0.0
    %1018 = vmatprep.subr.mxu0 0.0
    %1019 = vmatpush2.msra.mxu0 0.0
    %1020 = vmatprep.subr.mxu0 0.0
    %1021 = vmatpush2.msra.mxu0 0.0
    %1022 = vmatprep.subr.mxu0 0.0
    %1023 = vmatpush2.msra.mxu0 0.0
    %1024 = vmatprep.subr.mxu0 0.0
    %1025 = vmatpush2.msra.mxu0 0.0
    %1026 = vmatprep.subr.mxu0 0.0
    %1027 = vmatpush2.msra.mxu0 0.0
    %1028 = vmatprep.subr.mxu0 0.0
    %1029 = vmatpush2.msra.mxu0 0.0
    %1030 = vmatprep.subr.mxu0 0.0
    %1031 = vmatpush2.msra.mxu0 0.0
    %1032 = vmatprep.subr.mxu0 0.0
    %1033 = vmatpush2.msra.mxu0 0.0
    %1034 = vmatprep.subr.mxu0 0.0
    %1035 = vmatpush2.msra.mxu0 0.0
    %1036 = vmatprep.subr.mxu0 0.0
    %1037 = vmatpush2.msra.mxu0 0.0
    %1038 = vmatprep.subr.mxu0 0.0
    %1039 = vmatpush2.msra.mxu0 0.0
    %1040 = vmatprep.subr.mxu0 0.0
    %1041 = vmatpush2.msra.mxu0 0.0
    %1042 = vmatprep.subr.mxu0 0.0
    %1043 = vmatpush2.msra.mxu0 0.0
    %1044 = vmatprep.mubr.f32.mxu0 0.0
    %1045 = vmatmul.mubr.f32.gmra.mxu0 %v978
    %v1046 = vpop.f32.mrf.mxu0
    %v1047 = vadd.f32 0.0, %v1046
    %v1048 = vpop.f32.mrf.mxu0
    %v1049 = vadd.f32 0.0, %v1048
    %1050 = vdwg.mxu0
    %1051 = vst [vmem:[#allocation2 + $0x30] sm:$0xff] %v1047
    %1052 = vst [vmem:[#allocation2 + $0x38] sm:$0xff] %v1049
    %v1053 = vld [vmem:[#allocation2] sm:$0xff]
    %v1054 = vld [vmem:[#allocation2 + $0x8] sm:$0xff]
    %v1055 = vld [vmem:[#allocation2 + $0x10] sm:$0xff]
    %v1056 = vld [vmem:[#allocation2 + $0x18] sm:$0xff]
    %v1057 = vld [vmem:[#allocation2 + $0x20] sm:$0xff]
    %v1058 = vld [vmem:[#allocation2 + $0x28] sm:$0xff]
    %v1059 = vld [vmem:[#allocation2 + $0x30] sm:$0xff]
    %v1060 = vld [vmem:[#allocation2 + $0x38] sm:$0xff]
    %v1061 = vld [vmem:[%s3] sm:$0xff]
    %v1063 = vlaneseq
    %v1064 = vshrl.u32 %v1063, 7
    %v1065 = vsub.s32 0, %v1064
    %v1066 = vrot.slane %v1061, %v1065
    %v1067 = vlaneseq
    %v1068 = vshrl.u32 %v1067, 7
    %v1069 = vsub.s32 1, %v1068
    %v1070 = vrot.slane %v1061, %v1069
    %v1071 = vlaneseq
    %v1072 = vshrl.u32 %v1071, 7
    %v1073 = vsub.s32 2, %v1072
    %v1074 = vrot.slane %v1061, %v1073
    %v1075 = vlaneseq
    %v1076 = vshrl.u32 %v1075, 7
    %v1077 = vsub.s32 3, %v1076
    %v1078 = vrot.slane %v1061, %v1077
    %v1079 = vlaneseq
    %v1080 = vshrl.u32 %v1079, 7
    %v1081 = vsub.s32 4, %v1080
    %v1082 = vrot.slane %v1061, %v1081
    %v1083 = vlaneseq
    %v1084 = vshrl.u32 %v1083, 7
    %v1085 = vsub.s32 5, %v1084
    %v1086 = vrot.slane %v1061, %v1085
    %v1087 = vlaneseq
    %v1088 = vshrl.u32 %v1087, 7
    %v1089 = vsub.s32 6, %v1088
    %v1090 = vrot.slane %v1061, %v1089
    %v1091 = vlaneseq
    %v1092 = vshrl.u32 %v1091, 7
    %v1093 = vsub.s32 7, %v1092
    %v1094 = vrot.slane %v1061, %v1093
    %v1103 = vadd.f32 %v1053, %v1066
    %v1104 = vadd.f32 %v1054, %v1070
    %v1105 = vadd.f32 %v1055, %v1074
    %v1106 = vadd.f32 %v1056, %v1078
    %v1107 = vadd.f32 %v1057, %v1082
    %v1108 = vadd.f32 %v1058, %v1086
    %v1109 = vadd.f32 %v1059, %v1090
    %v1110 = vadd.f32 %v1060, %v1094
    %v1111 = vadd.f32 %v1103, %v341
    %v1112 = vadd.f32 %v1104, %v343
    %v1113 = vadd.f32 %v1105, %v382
    %v1114 = vadd.f32 %v1106, %v384
    %v1115 = vadd.f32 %v1107, %v423
    %v1116 = vadd.f32 %v1108, %v425
    %v1117 = vadd.f32 %v1109, %v464
    %v1118 = vadd.f32 %v1110, %v466
    %vm1119 = vcmp.gt.f32.partialorder %v1111, 0.0
    %vm1120 = vcmp.gt.f32.partialorder %v1112, 0.0
    %vm1121 = vcmp.gt.f32.partialorder %v1113, 0.0
    %vm1122 = vcmp.gt.f32.partialorder %v1114, 0.0
    %vm1123 = vcmp.gt.f32.partialorder %v1115, 0.0
    %vm1124 = vcmp.gt.f32.partialorder %v1116, 0.0
    %vm1125 = vcmp.gt.f32.partialorder %v1117, 0.0
    %vm1126 = vcmp.gt.f32.partialorder %v1118, 0.0
    %v1127 = vmul.f32 %v1111, 1.442695
    %v1128 = vpow.pop %v1127
    %v1129 = vmul.f32 %v1112, 1.442695
    %v1130 = vpow.pop %v1129
    %v1131 = vmul.f32 %v1113, 1.442695
    %v1132 = vpow.pop %v1131
    %v1133 = vmul.f32 %v1114, 1.442695
    %v1134 = vpow.pop %v1133
    %v1135 = vmul.f32 %v1115, 1.442695
    %v1136 = vpow.pop %v1135
    %v1137 = vmul.f32 %v1116, 1.442695
    %v1138 = vpow.pop %v1137
    %v1139 = vmul.f32 %v1117, 1.442695
    %v1140 = vpow.pop %v1139
    %v1141 = vmul.f32 %v1118, 1.442695
    %v1142 = vpow.pop %v1141
    %v1143 = vsub.f32 %v1128, 1.0
    %v1144 = vsub.f32 %v1130, 1.0
    %v1145 = vsub.f32 %v1132, 1.0
    %v1146 = vsub.f32 %v1134, 1.0
    %v1147 = vsub.f32 %v1136, 1.0
    %v1148 = vsub.f32 %v1138, 1.0
    %v1149 = vsub.f32 %v1140, 1.0
    %v1150 = vsub.f32 %v1142, 1.0
    %v1151 = vsel %vm1119, %v1111, %v1143
    %v1152 = vsel %vm1120, %v1112, %v1144
    %v1153 = vsel %vm1121, %v1113, %v1145
    %v1154 = vsel %vm1122, %v1114, %v1146
    %v1155 = vsel %vm1123, %v1115, %v1147
    %v1156 = vsel %vm1124, %v1116, %v1148
    %v1157 = vsel %vm1125, %v1117, %v1149
    %v1158 = vsel %vm1126, %v1118, %v1150
    %v1159 = vpack.c.bf16 %v1151, %v1151
    %v1160 = vpack.c.bf16 %v1152, %v1152
    %v1161 = vpack.c.bf16 %v1153, %v1153
    %v1162 = vpack.c.bf16 %v1154, %v1154
    %v1163 = vpack.c.bf16 %v1155, %v1155
    %v1164 = vpack.c.bf16 %v1156, %v1156
    %v1165 = vpack.c.bf16 %v1157, %v1157
    %v1166 = vpack.c.bf16 %v1158, %v1158
    %v1167 = vld [vmem:[%s4] sm:$0xff]
    %v1168 = vld [vmem:[%s4 + $0x8] sm:$0xff]
    %v1169 = vld [vmem:[%s4 + $0x10] sm:$0xff]
    %v1170 = vld [vmem:[%s4 + $0x18] sm:$0xff]
    %v1171 = vld [vmem:[%s4 + $0x20] sm:$0xff]
    %v1172 = vld [vmem:[%s4 + $0x28] sm:$0xff]
    %v1173 = vld [vmem:[%s4 + $0x30] sm:$0xff]
    %v1174 = vld [vmem:[%s4 + $0x38] sm:$0xff]
    %v1175 = vld [vmem:[%s4 + $0x40] sm:$0xf]
    %v1176 = vld [vmem:[%s4 + $0x44] sm:$0xff]
    %v1177 = vld [vmem:[%s4 + $0x4c] sm:$0xff]
    %v1178 = vld [vmem:[%s4 + $0x54] sm:$0xff]
    %v1179 = vld [vmem:[%s4 + $0x5c] sm:$0xff]
    %v1180 = vld [vmem:[%s4 + $0x64] sm:$0xff]
    %v1181 = vld [vmem:[%s4 + $0x6c] sm:$0xff]
    %v1182 = vld [vmem:[%s4 + $0x74] sm:$0xff]
    %v1183 = vld [vmem:[%s4 + $0x7c] sm:$0xff]
    %v1184 = vld [vmem:[%s4 + $0x84] sm:$0xf]
    %v1185 = vld [vmem:[%s4 + $0x88] sm:$0xff]
    %v1186 = vld [vmem:[%s4 + $0x90] sm:$0xff]
    %v1187 = vld [vmem:[%s4 + $0x98] sm:$0xff]
    %v1188 = vld [vmem:[%s4 + $0xa0] sm:$0xff]
    %v1189 = vld [vmem:[%s4 + $0xa8] sm:$0xff]
    %v1190 = vld [vmem:[%s4 + $0xb0] sm:$0xff]
    %v1191 = vld [vmem:[%s4 + $0xb8] sm:$0xff]
    %v1192 = vld [vmem:[%s4 + $0xc0] sm:$0xff]
    %v1193 = vld [vmem:[%s4 + $0xc8] sm:$0xf]
    %v1194 = vld [vmem:[%s4 + $0xcc] sm:$0xff]
    %v1195 = vld [vmem:[%s4 + $0xd4] sm:$0xff]
    %v1196 = vld [vmem:[%s4 + $0xdc] sm:$0xff]
    %v1197 = vld [vmem:[%s4 + $0xe4] sm:$0xff]
    %v1198 = vld [vmem:[%s4 + $0xec] sm:$0xff]
    %v1199 = vld [vmem:[%s4 + $0xf4] sm:$0xff]
    %v1200 = vld [vmem:[%s4 + $0xfc] sm:$0xff]
    %v1201 = vld [vmem:[%s4 + $0x104] sm:$0xff]
    %v1202 = vld [vmem:[%s4 + $0x10c] sm:$0xf]
    %v1203 = vld [vmem:[%s4 + $0x110] sm:$0xff]
    %v1204 = vld [vmem:[%s4 + $0x118] sm:$0xff]
    %v1205 = vld [vmem:[%s4 + $0x120] sm:$0xff]
    %v1206 = vld [vmem:[%s4 + $0x128] sm:$0xff]
    %v1207 = vld [vmem:[%s4 + $0x130] sm:$0xff]
    %v1208 = vld [vmem:[%s4 + $0x138] sm:$0xff]
    %v1209 = vld [vmem:[%s4 + $0x140] sm:$0xff]
    %v1210 = vld [vmem:[%s4 + $0x148] sm:$0xff]
    %v1211 = vld [vmem:[%s4 + $0x150] sm:$0xf]
    %v1212 = vld [vmem:[%s4 + $0x154] sm:$0xff]
    %v1213 = vld [vmem:[%s4 + $0x15c] sm:$0xff]
    %v1214 = vld [vmem:[%s4 + $0x164] sm:$0xff]
    %v1215 = vld [vmem:[%s4 + $0x16c] sm:$0xff]
    %v1216 = vld [vmem:[%s4 + $0x174] sm:$0xff]
    %v1217 = vld [vmem:[%s4 + $0x17c] sm:$0xff]
    %v1218 = vld [vmem:[%s4 + $0x184] sm:$0xff]
    %v1219 = vld [vmem:[%s4 + $0x18c] sm:$0xff]
    %v1220 = vld [vmem:[%s4 + $0x194] sm:$0xf]
    %v1221 = vld [vmem:[%s4 + $0x198] sm:$0xff]
    %v1222 = vld [vmem:[%s4 + $0x1a0] sm:$0xff]
    %v1223 = vld [vmem:[%s4 + $0x1a8] sm:$0xff]
    %v1224 = vld [vmem:[%s4 + $0x1b0] sm:$0xff]
    %v1225 = vld [vmem:[%s4 + $0x1b8] sm:$0xff]
    %v1226 = vld [vmem:[%s4 + $0x1c0] sm:$0xff]
    %v1227 = vld [vmem:[%s4 + $0x1c8] sm:$0xff]
    %v1228 = vld [vmem:[%s4 + $0x1d0] sm:$0xff]
    %v1229 = vld [vmem:[%s4 + $0x1d8] sm:$0xf]
    %v1230 = vld [vmem:[%s4 + $0x1dc] sm:$0xff]
    %v1231 = vld [vmem:[%s4 + $0x1e4] sm:$0xff]
    %v1232 = vld [vmem:[%s4 + $0x1ec] sm:$0xff]
    %v1233 = vld [vmem:[%s4 + $0x1f4] sm:$0xff]
    %v1234 = vld [vmem:[%s4 + $0x1fc] sm:$0xff]
    %v1235 = vld [vmem:[%s4 + $0x204] sm:$0xff]
    %v1236 = vld [vmem:[%s4 + $0x20c] sm:$0xff]
    %v1237 = vld [vmem:[%s4 + $0x214] sm:$0xff]
    %v1238 = vld [vmem:[%s4 + $0x21c] sm:$0xf]
    %v1239 = vld [vmem:[%s4 + $0x220] sm:$0xff]
    %v1240 = vld [vmem:[%s4 + $0x228] sm:$0xff]
    %v1241 = vld [vmem:[%s4 + $0x230] sm:$0xff]
    %v1242 = vld [vmem:[%s4 + $0x238] sm:$0xff]
    %v1243 = vld [vmem:[%s4 + $0x240] sm:$0xff]
    %v1244 = vld [vmem:[%s4 + $0x248] sm:$0xff]
    %v1245 = vld [vmem:[%s4 + $0x250] sm:$0xff]
    %v1246 = vld [vmem:[%s4 + $0x258] sm:$0xff]
    %v1247 = vld [vmem:[%s4 + $0x260] sm:$0xf]
    %v1248 = vld [vmem:[%s4 + $0x264] sm:$0xff]
    %v1249 = vld [vmem:[%s4 + $0x26c] sm:$0xff]
    %v1250 = vld [vmem:[%s4 + $0x274] sm:$0xff]
    %v1251 = vld [vmem:[%s4 + $0x27c] sm:$0xff]
    %v1252 = vld [vmem:[%s4 + $0x284] sm:$0xff]
    %v1253 = vld [vmem:[%s4 + $0x28c] sm:$0xff]
    %v1254 = vld [vmem:[%s4 + $0x294] sm:$0xff]
    %v1255 = vld [vmem:[%s4 + $0x29c] sm:$0xff]
    %v1256 = vld [vmem:[%s4 + $0x2a4] sm:$0xf]
    %v1257 = vld [vmem:[%s4 + $0x2a8] sm:$0xff]
    %v1258 = vld [vmem:[%s4 + $0x2b0] sm:$0xff]
    %v1259 = vld [vmem:[%s4 + $0x2b8] sm:$0xff]
    %v1260 = vld [vmem:[%s4 + $0x2c0] sm:$0xff]
    %v1261 = vld [vmem:[%s4 + $0x2c8] sm:$0xff]
    %v1262 = vld [vmem:[%s4 + $0x2d0] sm:$0xff]
    %v1263 = vld [vmem:[%s4 + $0x2d8] sm:$0xff]
    %v1264 = vld [vmem:[%s4 + $0x2e0] sm:$0xff]
    %v1265 = vld [vmem:[%s4 + $0x2e8] sm:$0xf]
    %v1266 = vld [vmem:[%s4 + $0x2ec] sm:$0xff]
    %v1267 = vld [vmem:[%s4 + $0x2f4] sm:$0xff]
    %v1268 = vld [vmem:[%s4 + $0x2fc] sm:$0xff]
    %v1269 = vld [vmem:[%s4 + $0x304] sm:$0xff]
    %v1270 = vld [vmem:[%s4 + $0x30c] sm:$0xff]
    %v1271 = vld [vmem:[%s4 + $0x314] sm:$0xff]
    %v1272 = vld [vmem:[%s4 + $0x31c] sm:$0xff]
    %v1273 = vld [vmem:[%s4 + $0x324] sm:$0xff]
    %v1274 = vld [vmem:[%s4 + $0x32c] sm:$0xf]
    %v1275 = vld [vmem:[%s4 + $0x330] sm:$0xff]
    %v1276 = vld [vmem:[%s4 + $0x338] sm:$0xff]
    %v1277 = vld [vmem:[%s4 + $0x340] sm:$0xff]
    %v1278 = vld [vmem:[%s4 + $0x348] sm:$0xff]
    %v1279 = vld [vmem:[%s4 + $0x350] sm:$0xff]
    %v1280 = vld [vmem:[%s4 + $0x358] sm:$0xff]
    %v1281 = vld [vmem:[%s4 + $0x360] sm:$0xff]
    %v1282 = vld [vmem:[%s4 + $0x368] sm:$0xff]
    %v1283 = vld [vmem:[%s4 + $0x370] sm:$0xf]
    %v1284 = vld [vmem:[%s4 + $0x374] sm:$0xff]
    %v1285 = vld [vmem:[%s4 + $0x37c] sm:$0xff]
    %v1286 = vld [vmem:[%s4 + $0x384] sm:$0xff]
    %v1287 = vld [vmem:[%s4 + $0x38c] sm:$0xff]
    %v1288 = vld [vmem:[%s4 + $0x394] sm:$0xff]
    %v1289 = vld [vmem:[%s4 + $0x39c] sm:$0xff]
    %v1290 = vld [vmem:[%s4 + $0x3a4] sm:$0xff]
    %v1291 = vld [vmem:[%s4 + $0x3ac] sm:$0xff]
    %v1292 = vld [vmem:[%s4 + $0x3b4] sm:$0xf]
    %v1293 = vld [vmem:[%s4 + $0x3b8] sm:$0xff]
    %v1294 = vld [vmem:[%s4 + $0x3c0] sm:$0xff]
    %v1295 = vld [vmem:[%s4 + $0x3c8] sm:$0xff]
    %v1296 = vld [vmem:[%s4 + $0x3d0] sm:$0xff]
    %v1297 = vld [vmem:[%s4 + $0x3d8] sm:$0xff]
    %v1298 = vld [vmem:[%s4 + $0x3e0] sm:$0xff]
    %v1299 = vld [vmem:[%s4 + $0x3e8] sm:$0xff]
    %v1300 = vld [vmem:[%s4 + $0x3f0] sm:$0xff]
    %v1301 = vld [vmem:[%s4 + $0x3f8] sm:$0xf]
    %v1302 = vld [vmem:[%s4 + $0x3fc] sm:$0xff]
    %v1303 = vld [vmem:[%s4 + $0x404] sm:$0xff]
    %v1304 = vld [vmem:[%s4 + $0x40c] sm:$0xff]
    %v1305 = vld [vmem:[%s4 + $0x414] sm:$0xff]
    %v1306 = vld [vmem:[%s4 + $0x41c] sm:$0xff]
    %v1307 = vld [vmem:[%s4 + $0x424] sm:$0xff]
    %v1308 = vld [vmem:[%s4 + $0x42c] sm:$0xff]
    %v1309 = vld [vmem:[%s4 + $0x434] sm:$0xff]
    %v1310 = vld [vmem:[%s4 + $0x43c] sm:$0xf]
    %v1311 = vld [vmem:[%s4 + $0x440] sm:$0xff]
    %v1312 = vld [vmem:[%s4 + $0x448] sm:$0xff]
    %v1313 = vld [vmem:[%s4 + $0x450] sm:$0xff]
    %v1314 = vld [vmem:[%s4 + $0x458] sm:$0xff]
    %v1315 = vld [vmem:[%s4 + $0x460] sm:$0xff]
    %v1316 = vld [vmem:[%s4 + $0x468] sm:$0xff]
    %v1317 = vld [vmem:[%s4 + $0x470] sm:$0xff]
    %v1318 = vld [vmem:[%s4 + $0x478] sm:$0xff]
    %v1319 = vld [vmem:[%s4 + $0x480] sm:$0xf]
    %v1320 = vld [vmem:[%s4 + $0x484] sm:$0xff]
    %v1321 = vld [vmem:[%s4 + $0x48c] sm:$0xff]
    %v1322 = vld [vmem:[%s4 + $0x494] sm:$0xff]
    %v1323 = vld [vmem:[%s4 + $0x49c] sm:$0xff]
    %v1324 = vld [vmem:[%s4 + $0x4a4] sm:$0xff]
    %v1325 = vld [vmem:[%s4 + $0x4ac] sm:$0xff]
    %v1326 = vld [vmem:[%s4 + $0x4b4] sm:$0xff]
    %v1327 = vld [vmem:[%s4 + $0x4bc] sm:$0xff]
    %v1328 = vld [vmem:[%s4 + $0x4c4] sm:$0xf]
    %v1329 = vld [vmem:[%s4 + $0x4c8] sm:$0xff]
    %v1330 = vld [vmem:[%s4 + $0x4d0] sm:$0xff]
    %v1331 = vld [vmem:[%s4 + $0x4d8] sm:$0xff]
    %v1332 = vld [vmem:[%s4 + $0x4e0] sm:$0xff]
    %v1333 = vld [vmem:[%s4 + $0x4e8] sm:$0xff]
    %v1334 = vld [vmem:[%s4 + $0x4f0] sm:$0xff]
    %v1335 = vld [vmem:[%s4 + $0x4f8] sm:$0xff]
    %v1336 = vld [vmem:[%s4 + $0x500] sm:$0xff]
    %v1337 = vld [vmem:[%s4 + $0x508] sm:$0xf]
    %v1338 = vld [vmem:[%s4 + $0x50c] sm:$0xff]
    %v1339 = vld [vmem:[%s4 + $0x514] sm:$0xff]
    %v1340 = vld [vmem:[%s4 + $0x51c] sm:$0xff]
    %v1341 = vld [vmem:[%s4 + $0x524] sm:$0xff]
    %v1342 = vld [vmem:[%s4 + $0x52c] sm:$0xff]
    %v1343 = vld [vmem:[%s4 + $0x534] sm:$0xff]
    %v1344 = vld [vmem:[%s4 + $0x53c] sm:$0xff]
    %v1345 = vld [vmem:[%s4 + $0x544] sm:$0xff]
    %v1346 = vld [vmem:[%s4 + $0x54c] sm:$0xf]
    %v1347 = vld [vmem:[%s4 + $0x550] sm:$0xff]
    %v1348 = vld [vmem:[%s4 + $0x558] sm:$0xff]
    %v1349 = vld [vmem:[%s4 + $0x560] sm:$0xff]
    %v1350 = vld [vmem:[%s4 + $0x568] sm:$0xff]
    %v1351 = vld [vmem:[%s4 + $0x570] sm:$0xff]
    %v1352 = vld [vmem:[%s4 + $0x578] sm:$0xff]
    %v1353 = vld [vmem:[%s4 + $0x580] sm:$0xff]
    %v1354 = vld [vmem:[%s4 + $0x588] sm:$0xff]
    %v1355 = vld [vmem:[%s4 + $0x590] sm:$0xf]
    %v1356 = vld [vmem:[%s4 + $0x594] sm:$0xff]
    %v1357 = vld [vmem:[%s4 + $0x59c] sm:$0xff]
    %v1358 = vld [vmem:[%s4 + $0x5a4] sm:$0xff]
    %v1359 = vld [vmem:[%s4 + $0x5ac] sm:$0xff]
    %v1360 = vld [vmem:[%s4 + $0x5b4] sm:$0xff]
    %v1361 = vld [vmem:[%s4 + $0x5bc] sm:$0xff]
    %v1362 = vld [vmem:[%s4 + $0x5c4] sm:$0xff]
    %v1363 = vld [vmem:[%s4 + $0x5cc] sm:$0xff]
    %v1364 = vld [vmem:[%s4 + $0x5d4] sm:$0xf]
    %v1365 = vld [vmem:[%s4 + $0x5d8] sm:$0xff]
    %v1366 = vld [vmem:[%s4 + $0x5e0] sm:$0xff]
    %v1367 = vld [vmem:[%s4 + $0x5e8] sm:$0xff]
    %v1368 = vld [vmem:[%s4 + $0x5f0] sm:$0xff]
    %v1369 = vld [vmem:[%s4 + $0x5f8] sm:$0xff]
    %v1370 = vld [vmem:[%s4 + $0x600] sm:$0xff]
    %v1371 = vld [vmem:[%s4 + $0x608] sm:$0xff]
    %v1372 = vld [vmem:[%s4 + $0x610] sm:$0xff]
    %v1373 = vld [vmem:[%s4 + $0x618] sm:$0xf]
    %v1374 = vld [vmem:[%s4 + $0x61c] sm:$0xff]
    %v1375 = vld [vmem:[%s4 + $0x624] sm:$0xff]
    %v1376 = vld [vmem:[%s4 + $0x62c] sm:$0xff]
    %v1377 = vld [vmem:[%s4 + $0x634] sm:$0xff]
    %v1378 = vld [vmem:[%s4 + $0x63c] sm:$0xff]
    %v1379 = vld [vmem:[%s4 + $0x644] sm:$0xff]
    %v1380 = vld [vmem:[%s4 + $0x64c] sm:$0xff]
    %v1381 = vld [vmem:[%s4 + $0x654] sm:$0xff]
    %v1382 = vld [vmem:[%s4 + $0x65c] sm:$0xf]
    %v1383 = vld [vmem:[%s4 + $0x660] sm:$0xff]
    %v1384 = vld [vmem:[%s4 + $0x668] sm:$0xff]
    %v1385 = vld [vmem:[%s4 + $0x670] sm:$0xff]
    %v1386 = vld [vmem:[%s4 + $0x678] sm:$0xff]
    %v1387 = vld [vmem:[%s4 + $0x680] sm:$0xff]
    %v1388 = vld [vmem:[%s4 + $0x688] sm:$0xff]
    %v1389 = vld [vmem:[%s4 + $0x690] sm:$0xff]
    %v1390 = vld [vmem:[%s4 + $0x698] sm:$0xff]
    %v1391 = vld [vmem:[%s4 + $0x6a0] sm:$0xf]
    %v1392 = vld [vmem:[%s4 + $0x6a4] sm:$0xff]
    %v1393 = vld [vmem:[%s4 + $0x6ac] sm:$0xff]
    %v1394 = vld [vmem:[%s4 + $0x6b4] sm:$0xff]
    %v1395 = vld [vmem:[%s4 + $0x6bc] sm:$0xff]
    %v1396 = vld [vmem:[%s4 + $0x6c4] sm:$0xff]
    %v1397 = vld [vmem:[%s4 + $0x6cc] sm:$0xff]
    %v1398 = vld [vmem:[%s4 + $0x6d4] sm:$0xff]
    %v1399 = vld [vmem:[%s4 + $0x6dc] sm:$0xff]
    %v1400 = vld [vmem:[%s4 + $0x6e4] sm:$0xf]
    %v1401 = vld [vmem:[%s4 + $0x6e8] sm:$0xff]
    %v1402 = vld [vmem:[%s4 + $0x6f0] sm:$0xff]
    %v1403 = vld [vmem:[%s4 + $0x6f8] sm:$0xff]
    %v1404 = vld [vmem:[%s4 + $0x700] sm:$0xff]
    %v1405 = vld [vmem:[%s4 + $0x708] sm:$0xff]
    %v1406 = vld [vmem:[%s4 + $0x710] sm:$0xff]
    %v1407 = vld [vmem:[%s4 + $0x718] sm:$0xff]
    %v1408 = vld [vmem:[%s4 + $0x720] sm:$0xff]
    %v1409 = vld [vmem:[%s4 + $0x728] sm:$0xf]
    %v1410 = vld [vmem:[%s4 + $0x72c] sm:$0xff]
    %v1411 = vld [vmem:[%s4 + $0x734] sm:$0xff]
    %v1412 = vld [vmem:[%s4 + $0x73c] sm:$0xff]
    %v1413 = vld [vmem:[%s4 + $0x744] sm:$0xff]
    %v1414 = vld [vmem:[%s4 + $0x74c] sm:$0xff]
    %v1415 = vld [vmem:[%s4 + $0x754] sm:$0xff]
    %v1416 = vld [vmem:[%s4 + $0x75c] sm:$0xff]
    %v1417 = vld [vmem:[%s4 + $0x764] sm:$0xff]
    %v1418 = vld [vmem:[%s4 + $0x76c] sm:$0xf]
    %v1419 = vld [vmem:[%s4 + $0x770] sm:$0xff]
    %v1420 = vld [vmem:[%s4 + $0x778] sm:$0xff]
    %v1421 = vld [vmem:[%s4 + $0x780] sm:$0xff]
    %v1422 = vld [vmem:[%s4 + $0x788] sm:$0xff]
    %v1423 = vld [vmem:[%s4 + $0x790] sm:$0xff]
    %v1424 = vld [vmem:[%s4 + $0x798] sm:$0xff]
    %v1425 = vld [vmem:[%s4 + $0x7a0] sm:$0xff]
    %v1426 = vld [vmem:[%s4 + $0x7a8] sm:$0xff]
    %v1427 = vld [vmem:[%s4 + $0x7b0] sm:$0xf]
    %v1428 = vld [vmem:[%s4 + $0x7b4] sm:$0xff]
    %v1429 = vld [vmem:[%s4 + $0x7bc] sm:$0xff]
    %v1430 = vld [vmem:[%s4 + $0x7c4] sm:$0xff]
    %v1431 = vld [vmem:[%s4 + $0x7cc] sm:$0xff]
    %v1432 = vld [vmem:[%s4 + $0x7d4] sm:$0xff]
    %v1433 = vld [vmem:[%s4 + $0x7dc] sm:$0xff]
    %v1434 = vld [vmem:[%s4 + $0x7e4] sm:$0xff]
    %v1435 = vld [vmem:[%s4 + $0x7ec] sm:$0xff]
    %v1436 = vld [vmem:[%s4 + $0x7f4] sm:$0xf]
    %v1437 = vld [vmem:[%s4 + $0x7f8] sm:$0xff]
    %v1438 = vld [vmem:[%s4 + $0x800] sm:$0xff]
    %v1439 = vld [vmem:[%s4 + $0x808] sm:$0xff]
    %v1440 = vld [vmem:[%s4 + $0x810] sm:$0xff]
    %v1441 = vld [vmem:[%s4 + $0x818] sm:$0xff]
    %v1442 = vld [vmem:[%s4 + $0x820] sm:$0xff]
    %v1443 = vld [vmem:[%s4 + $0x828] sm:$0xff]
    %v1444 = vld [vmem:[%s4 + $0x830] sm:$0xff]
    %v1445 = vld [vmem:[%s4 + $0x838] sm:$0xf]
    %v1446 = vld [vmem:[%s4 + $0x83c] sm:$0xff]
    %v1447 = vld [vmem:[%s4 + $0x844] sm:$0xff]
    %v1448 = vld [vmem:[%s4 + $0x84c] sm:$0xff]
    %v1449 = vld [vmem:[%s4 + $0x854] sm:$0xff]
    %v1450 = vld [vmem:[%s4 + $0x85c] sm:$0xff]
    %v1451 = vld [vmem:[%s4 + $0x864] sm:$0xff]
    %v1452 = vld [vmem:[%s4 + $0x86c] sm:$0xff]
    %v1453 = vld [vmem:[%s4 + $0x874] sm:$0xff]
    %v1454 = vld [vmem:[%s4 + $0x87c] sm:$0xf]
    %v1455 = vld [vmem:[%s4 + $0x880] sm:$0xff]
    %v1456 = vld [vmem:[%s4 + $0x888] sm:$0xff]
    %v1457 = vld [vmem:[%s4 + $0x890] sm:$0xff]
    %v1458 = vld [vmem:[%s4 + $0x898] sm:$0xff]
    %v1459 = vld [vmem:[%s4 + $0x8a0] sm:$0xff]
    %v1460 = vld [vmem:[%s4 + $0x8a8] sm:$0xff]
    %v1461 = vld [vmem:[%s4 + $0x8b0] sm:$0xff]
    %v1462 = vld [vmem:[%s4 + $0x8b8] sm:$0xff]
    %v1463 = vld [vmem:[%s4 + $0x8c0] sm:$0xf]
    %v1464 = vld [vmem:[%s4 + $0x8c4] sm:$0xff]
    %v1465 = vld [vmem:[%s4 + $0x8cc] sm:$0xff]
    %v1466 = vld [vmem:[%s4 + $0x8d4] sm:$0xff]
    %v1467 = vld [vmem:[%s4 + $0x8dc] sm:$0xff]
    %v1468 = vld [vmem:[%s4 + $0x8e4] sm:$0xff]
    %v1469 = vld [vmem:[%s4 + $0x8ec] sm:$0xff]
    %v1470 = vld [vmem:[%s4 + $0x8f4] sm:$0xff]
    %v1471 = vld [vmem:[%s4 + $0x8fc] sm:$0xff]
    %v1472 = vld [vmem:[%s4 + $0x904] sm:$0xf]
    %v1473 = vld [vmem:[%s4 + $0x908] sm:$0xff]
    %v1474 = vld [vmem:[%s4 + $0x910] sm:$0xff]
    %v1475 = vld [vmem:[%s4 + $0x918] sm:$0xff]
    %v1476 = vld [vmem:[%s4 + $0x920] sm:$0xff]
    %v1477 = vld [vmem:[%s4 + $0x928] sm:$0xff]
    %v1478 = vld [vmem:[%s4 + $0x930] sm:$0xff]
    %v1479 = vld [vmem:[%s4 + $0x938] sm:$0xff]
    %v1480 = vld [vmem:[%s4 + $0x940] sm:$0xff]
    %v1481 = vld [vmem:[%s4 + $0x948] sm:$0xf]
    %v1482 = vld [vmem:[%s4 + $0x94c] sm:$0xff]
    %v1483 = vld [vmem:[%s4 + $0x954] sm:$0xff]
    %v1484 = vld [vmem:[%s4 + $0x95c] sm:$0xff]
    %v1485 = vld [vmem:[%s4 + $0x964] sm:$0xff]
    %v1486 = vld [vmem:[%s4 + $0x96c] sm:$0xff]
    %v1487 = vld [vmem:[%s4 + $0x974] sm:$0xff]
    %v1488 = vld [vmem:[%s4 + $0x97c] sm:$0xff]
    %v1489 = vld [vmem:[%s4 + $0x984] sm:$0xff]
    %v1490 = vld [vmem:[%s4 + $0x98c] sm:$0xf]
    %v1491 = vld [vmem:[%s4 + $0x990] sm:$0xff]
    %v1492 = vld [vmem:[%s4 + $0x998] sm:$0xff]
    %v1493 = vld [vmem:[%s4 + $0x9a0] sm:$0xff]
    %v1494 = vld [vmem:[%s4 + $0x9a8] sm:$0xff]
    %v1495 = vld [vmem:[%s4 + $0x9b0] sm:$0xff]
    %v1496 = vld [vmem:[%s4 + $0x9b8] sm:$0xff]
    %v1497 = vld [vmem:[%s4 + $0x9c0] sm:$0xff]
    %v1498 = vld [vmem:[%s4 + $0x9c8] sm:$0xff]
    %v1499 = vld [vmem:[%s4 + $0x9d0] sm:$0xf]
    %v1500 = vld [vmem:[%s4 + $0x9d4] sm:$0xff]
    %v1501 = vld [vmem:[%s4 + $0x9dc] sm:$0xff]
    %v1502 = vld [vmem:[%s4 + $0x9e4] sm:$0xff]
    %v1503 = vld [vmem:[%s4 + $0x9ec] sm:$0xff]
    %v1504 = vld [vmem:[%s4 + $0x9f4] sm:$0xff]
    %v1505 = vld [vmem:[%s4 + $0x9fc] sm:$0xff]
    %v1506 = vld [vmem:[%s4 + $0xa04] sm:$0xff]
    %v1507 = vld [vmem:[%s4 + $0xa0c] sm:$0xff]
    %v1508 = vld [vmem:[%s4 + $0xa14] sm:$0xf]
    %v1509 = vld [vmem:[%s4 + $0xa18] sm:$0xff]
    %v1510 = vld [vmem:[%s4 + $0xa20] sm:$0xff]
    %v1511 = vld [vmem:[%s4 + $0xa28] sm:$0xff]
    %v1512 = vld [vmem:[%s4 + $0xa30] sm:$0xff]
    %v1513 = vld [vmem:[%s4 + $0xa38] sm:$0xff]
    %v1514 = vld [vmem:[%s4 + $0xa40] sm:$0xff]
    %v1515 = vld [vmem:[%s4 + $0xa48] sm:$0xff]
    %v1516 = vld [vmem:[%s4 + $0xa50] sm:$0xff]
    %v1517 = vld [vmem:[%s4 + $0xa58] sm:$0xf]
    %v1518 = vld [vmem:[%s4 + $0xa5c] sm:$0xff]
    %v1519 = vld [vmem:[%s4 + $0xa64] sm:$0xff]
    %v1520 = vld [vmem:[%s4 + $0xa6c] sm:$0xff]
    %v1521 = vld [vmem:[%s4 + $0xa74] sm:$0xff]
    %v1522 = vld [vmem:[%s4 + $0xa7c] sm:$0xff]
    %v1523 = vld [vmem:[%s4 + $0xa84] sm:$0xff]
    %v1524 = vld [vmem:[%s4 + $0xa8c] sm:$0xff]
    %v1525 = vld [vmem:[%s4 + $0xa94] sm:$0xff]
    %v1526 = vld [vmem:[%s4 + $0xa9c] sm:$0xf]
    %v1527 = vld [vmem:[%s4 + $0xaa0] sm:$0xff]
    %v1528 = vld [vmem:[%s4 + $0xaa8] sm:$0xff]
    %v1529 = vld [vmem:[%s4 + $0xab0] sm:$0xff]
    %v1530 = vld [vmem:[%s4 + $0xab8] sm:$0xff]
    %v1531 = vld [vmem:[%s4 + $0xac0] sm:$0xff]
    %v1532 = vld [vmem:[%s4 + $0xac8] sm:$0xff]
    %v1533 = vld [vmem:[%s4 + $0xad0] sm:$0xff]
    %v1534 = vld [vmem:[%s4 + $0xad8] sm:$0xff]
    %v1535 = vld [vmem:[%s4 + $0xae0] sm:$0xf]
    %v1536 = vld [vmem:[%s4 + $0xae4] sm:$0xff]
    %v1537 = vld [vmem:[%s4 + $0xaec] sm:$0xff]
    %v1538 = vld [vmem:[%s4 + $0xaf4] sm:$0xff]
    %v1539 = vld [vmem:[%s4 + $0xafc] sm:$0xff]
    %v1540 = vld [vmem:[%s4 + $0xb04] sm:$0xff]
    %v1541 = vld [vmem:[%s4 + $0xb0c] sm:$0xff]
    %v1542 = vld [vmem:[%s4 + $0xb14] sm:$0xff]
    %v1543 = vld [vmem:[%s4 + $0xb1c] sm:$0xff]
    %v1544 = vld [vmem:[%s4 + $0xb24] sm:$0xf]
    %v1545 = vld [vmem:[%s4 + $0xb28] sm:$0xff]
    %v1546 = vld [vmem:[%s4 + $0xb30] sm:$0xff]
    %v1547 = vld [vmem:[%s4 + $0xb38] sm:$0xff]
    %v1548 = vld [vmem:[%s4 + $0xb40] sm:$0xff]
    %v1549 = vld [vmem:[%s4 + $0xb48] sm:$0xff]
    %v1550 = vld [vmem:[%s4 + $0xb50] sm:$0xff]
    %v1551 = vld [vmem:[%s4 + $0xb58] sm:$0xff]
    %v1552 = vld [vmem:[%s4 + $0xb60] sm:$0xff]
    %v1553 = vld [vmem:[%s4 + $0xb68] sm:$0xf]
    %v1554 = vld [vmem:[%s4 + $0xb6c] sm:$0xff]
    %v1555 = vld [vmem:[%s4 + $0xb74] sm:$0xff]
    %v1556 = vld [vmem:[%s4 + $0xb7c] sm:$0xff]
    %v1557 = vld [vmem:[%s4 + $0xb84] sm:$0xff]
    %v1558 = vld [vmem:[%s4 + $0xb8c] sm:$0xff]
    %v1559 = vld [vmem:[%s4 + $0xb94] sm:$0xff]
    %v1560 = vld [vmem:[%s4 + $0xb9c] sm:$0xff]
    %v1561 = vld [vmem:[%s4 + $0xba4] sm:$0xff]
    %v1562 = vld [vmem:[%s4 + $0xbac] sm:$0xf]
    %v1563 = vld [vmem:[%s4 + $0xbb0] sm:$0xff]
    %v1564 = vld [vmem:[%s4 + $0xbb8] sm:$0xff]
    %v1565 = vld [vmem:[%s4 + $0xbc0] sm:$0xff]
    %v1566 = vld [vmem:[%s4 + $0xbc8] sm:$0xff]
    %v1567 = vld [vmem:[%s4 + $0xbd0] sm:$0xff]
    %v1568 = vld [vmem:[%s4 + $0xbd8] sm:$0xff]
    %v1569 = vld [vmem:[%s4 + $0xbe0] sm:$0xff]
    %v1570 = vld [vmem:[%s4 + $0xbe8] sm:$0xff]
    %v1571 = vld [vmem:[%s4 + $0xbf0] sm:$0xf]
    %v1572 = vld [vmem:[%s4 + $0xbf4] sm:$0xff]
    %v1573 = vld [vmem:[%s4 + $0xbfc] sm:$0xff]
    %v1574 = vld [vmem:[%s4 + $0xc04] sm:$0xff]
    %v1575 = vld [vmem:[%s4 + $0xc0c] sm:$0xff]
    %v1576 = vld [vmem:[%s4 + $0xc14] sm:$0xff]
    %v1577 = vld [vmem:[%s4 + $0xc1c] sm:$0xff]
    %v1578 = vld [vmem:[%s4 + $0xc24] sm:$0xff]
    %v1579 = vld [vmem:[%s4 + $0xc2c] sm:$0xff]
    %v1580 = vld [vmem:[%s4 + $0xc34] sm:$0xf]
    %v1581 = vld [vmem:[%s4 + $0xc38] sm:$0xff]
    %v1582 = vld [vmem:[%s4 + $0xc40] sm:$0xff]
    %v1583 = vld [vmem:[%s4 + $0xc48] sm:$0xff]
    %v1584 = vld [vmem:[%s4 + $0xc50] sm:$0xff]
    %v1585 = vld [vmem:[%s4 + $0xc58] sm:$0xff]
    %v1586 = vld [vmem:[%s4 + $0xc60] sm:$0xff]
    %v1587 = vld [vmem:[%s4 + $0xc68] sm:$0xff]
    %v1588 = vld [vmem:[%s4 + $0xc70] sm:$0xff]
    %v1589 = vld [vmem:[%s4 + $0xc78] sm:$0xf]
    %v1590 = vld [vmem:[%s4 + $0xc7c] sm:$0xff]
    %v1591 = vld [vmem:[%s4 + $0xc84] sm:$0xff]
    %v1592 = vld [vmem:[%s4 + $0xc8c] sm:$0xff]
    %v1593 = vld [vmem:[%s4 + $0xc94] sm:$0xff]
    %v1594 = vld [vmem:[%s4 + $0xc9c] sm:$0xff]
    %v1595 = vld [vmem:[%s4 + $0xca4] sm:$0xff]
    %v1596 = vld [vmem:[%s4 + $0xcac] sm:$0xff]
    %v1597 = vld [vmem:[%s4 + $0xcb4] sm:$0xff]
    %v1598 = vld [vmem:[%s4 + $0xcbc] sm:$0xf]
    %v1599 = vld [vmem:[%s4 + $0xcc0] sm:$0xff]
    %v1600 = vld [vmem:[%s4 + $0xcc8] sm:$0xff]
    %v1601 = vld [vmem:[%s4 + $0xcd0] sm:$0xff]
    %v1602 = vld [vmem:[%s4 + $0xcd8] sm:$0xff]
    %v1603 = vld [vmem:[%s4 + $0xce0] sm:$0xff]
    %v1604 = vld [vmem:[%s4 + $0xce8] sm:$0xff]
    %v1605 = vld [vmem:[%s4 + $0xcf0] sm:$0xff]
    %v1606 = vld [vmem:[%s4 + $0xcf8] sm:$0xff]
    %v1607 = vld [vmem:[%s4 + $0xd00] sm:$0xf]
    %v1608 = vld [vmem:[%s4 + $0xd04] sm:$0xff]
    %v1609 = vld [vmem:[%s4 + $0xd0c] sm:$0xff]
    %v1610 = vld [vmem:[%s4 + $0xd14] sm:$0xff]
    %v1611 = vld [vmem:[%s4 + $0xd1c] sm:$0xff]
    %v1612 = vld [vmem:[%s4 + $0xd24] sm:$0xff]
    %v1613 = vld [vmem:[%s4 + $0xd2c] sm:$0xff]
    %v1614 = vld [vmem:[%s4 + $0xd34] sm:$0xff]
    %v1615 = vld [vmem:[%s4 + $0xd3c] sm:$0xff]
    %v1616 = vld [vmem:[%s4 + $0xd44] sm:$0xf]
    %v1617 = vld [vmem:[%s4 + $0xd48] sm:$0xff]
    %v1618 = vld [vmem:[%s4 + $0xd50] sm:$0xff]
    %v1619 = vld [vmem:[%s4 + $0xd58] sm:$0xff]
    %v1620 = vld [vmem:[%s4 + $0xd60] sm:$0xff]
    %v1621 = vld [vmem:[%s4 + $0xd68] sm:$0xff]
    %v1622 = vld [vmem:[%s4 + $0xd70] sm:$0xff]
    %v1623 = vld [vmem:[%s4 + $0xd78] sm:$0xff]
    %v1624 = vld [vmem:[%s4 + $0xd80] sm:$0xff]
    %v1625 = vld [vmem:[%s4 + $0xd88] sm:$0xf]
    %v1626 = vld [vmem:[%s4 + $0xd8c] sm:$0xff]
    %v1627 = vld [vmem:[%s4 + $0xd94] sm:$0xff]
    %v1628 = vld [vmem:[%s4 + $0xd9c] sm:$0xff]
    %v1629 = vld [vmem:[%s4 + $0xda4] sm:$0xff]
    %v1630 = vld [vmem:[%s4 + $0xdac] sm:$0xff]
    %v1631 = vld [vmem:[%s4 + $0xdb4] sm:$0xff]
    %v1632 = vld [vmem:[%s4 + $0xdbc] sm:$0xff]
    %v1633 = vld [vmem:[%s4 + $0xdc4] sm:$0xff]
    %v1634 = vld [vmem:[%s4 + $0xdcc] sm:$0xf]
    %v1635 = vld [vmem:[%s4 + $0xdd0] sm:$0xff]
    %v1636 = vld [vmem:[%s4 + $0xdd8] sm:$0xff]
    %v1637 = vld [vmem:[%s4 + $0xde0] sm:$0xff]
    %v1638 = vld [vmem:[%s4 + $0xde8] sm:$0xff]
    %v1639 = vld [vmem:[%s4 + $0xdf0] sm:$0xff]
    %v1640 = vld [vmem:[%s4 + $0xdf8] sm:$0xff]
    %v1641 = vld [vmem:[%s4 + $0xe00] sm:$0xff]
    %v1642 = vld [vmem:[%s4 + $0xe08] sm:$0xff]
    %v1643 = vld [vmem:[%s4 + $0xe10] sm:$0xf]
    %v1644 = vld [vmem:[%s4 + $0xe14] sm:$0xff]
    %v1645 = vld [vmem:[%s4 + $0xe1c] sm:$0xff]
    %v1646 = vld [vmem:[%s4 + $0xe24] sm:$0xff]
    %v1647 = vld [vmem:[%s4 + $0xe2c] sm:$0xff]
    %v1648 = vld [vmem:[%s4 + $0xe34] sm:$0xff]
    %v1649 = vld [vmem:[%s4 + $0xe3c] sm:$0xff]
    %v1650 = vld [vmem:[%s4 + $0xe44] sm:$0xff]
    %v1651 = vld [vmem:[%s4 + $0xe4c] sm:$0xff]
    %v1652 = vld [vmem:[%s4 + $0xe54] sm:$0xf]
    %v1653 = vld [vmem:[%s4 + $0xe58] sm:$0xff]
    %v1654 = vld [vmem:[%s4 + $0xe60] sm:$0xff]
    %v1655 = vld [vmem:[%s4 + $0xe68] sm:$0xff]
    %v1656 = vld [vmem:[%s4 + $0xe70] sm:$0xff]
    %v1657 = vld [vmem:[%s4 + $0xe78] sm:$0xff]
    %v1658 = vld [vmem:[%s4 + $0xe80] sm:$0xff]
    %v1659 = vld [vmem:[%s4 + $0xe88] sm:$0xff]
    %v1660 = vld [vmem:[%s4 + $0xe90] sm:$0xff]
    %v1661 = vld [vmem:[%s4 + $0xe98] sm:$0xf]
    %v1662 = vld [vmem:[%s4 + $0xe9c] sm:$0xff]
    %v1663 = vld [vmem:[%s4 + $0xea4] sm:$0xff]
    %v1664 = vld [vmem:[%s4 + $0xeac] sm:$0xff]
    %v1665 = vld [vmem:[%s4 + $0xeb4] sm:$0xff]
    %v1666 = vld [vmem:[%s4 + $0xebc] sm:$0xff]
    %v1667 = vld [vmem:[%s4 + $0xec4] sm:$0xff]
    %v1668 = vld [vmem:[%s4 + $0xecc] sm:$0xff]
    %v1669 = vld [vmem:[%s4 + $0xed4] sm:$0xff]
    %v1670 = vld [vmem:[%s4 + $0xedc] sm:$0xf]
    %v1671 = vld [vmem:[%s4 + $0xee0] sm:$0xff]
    %v1672 = vld [vmem:[%s4 + $0xee8] sm:$0xff]
    %v1673 = vld [vmem:[%s4 + $0xef0] sm:$0xff]
    %v1674 = vld [vmem:[%s4 + $0xef8] sm:$0xff]
    %v1675 = vld [vmem:[%s4 + $0xf00] sm:$0xff]
    %v1676 = vld [vmem:[%s4 + $0xf08] sm:$0xff]
    %v1677 = vld [vmem:[%s4 + $0xf10] sm:$0xff]
    %v1678 = vld [vmem:[%s4 + $0xf18] sm:$0xff]
    %v1679 = vld [vmem:[%s4 + $0xf20] sm:$0xf]
    %v1680 = vld [vmem:[%s4 + $0xf24] sm:$0xff]
    %v1681 = vld [vmem:[%s4 + $0xf2c] sm:$0xff]
    %v1682 = vld [vmem:[%s4 + $0xf34] sm:$0xff]
    %v1683 = vld [vmem:[%s4 + $0xf3c] sm:$0xff]
    %v1684 = vld [vmem:[%s4 + $0xf44] sm:$0xff]
    %v1685 = vld [vmem:[%s4 + $0xf4c] sm:$0xff]
    %v1686 = vld [vmem:[%s4 + $0xf54] sm:$0xff]
    %v1687 = vld [vmem:[%s4 + $0xf5c] sm:$0xff]
    %v1688 = vld [vmem:[%s4 + $0xf64] sm:$0xf]
    %v1689 = vld [vmem:[%s4 + $0xf68] sm:$0xff]
    %v1690 = vld [vmem:[%s4 + $0xf70] sm:$0xff]
    %v1691 = vld [vmem:[%s4 + $0xf78] sm:$0xff]
    %v1692 = vld [vmem:[%s4 + $0xf80] sm:$0xff]
    %v1693 = vld [vmem:[%s4 + $0xf88] sm:$0xff]
    %v1694 = vld [vmem:[%s4 + $0xf90] sm:$0xff]
    %v1695 = vld [vmem:[%s4 + $0xf98] sm:$0xff]
    %v1696 = vld [vmem:[%s4 + $0xfa0] sm:$0xff]
    %v1697 = vld [vmem:[%s4 + $0xfa8] sm:$0xf]
    %v1698 = vld [vmem:[%s4 + $0xfac] sm:$0xff]
    %v1699 = vld [vmem:[%s4 + $0xfb4] sm:$0xff]
    %v1700 = vld [vmem:[%s4 + $0xfbc] sm:$0xff]
    %v1701 = vld [vmem:[%s4 + $0xfc4] sm:$0xff]
    %v1702 = vld [vmem:[%s4 + $0xfcc] sm:$0xff]
    %v1703 = vld [vmem:[%s4 + $0xfd4] sm:$0xff]
    %v1704 = vld [vmem:[%s4 + $0xfdc] sm:$0xff]
    %v1705 = vld [vmem:[%s4 + $0xfe4] sm:$0xff]
    %v1706 = vld [vmem:[%s4 + $0xfec] sm:$0xf]
    %v1707 = vld [vmem:[%s4 + $0xff0] sm:$0xff]
    %v1708 = vld [vmem:[%s4 + $0xff8] sm:$0xff]
    %v1709 = vld [vmem:[%s4 + $0x1000] sm:$0xff]
    %v1710 = vld [vmem:[%s4 + $0x1008] sm:$0xff]
    %v1711 = vld [vmem:[%s4 + $0x1010] sm:$0xff]
    %v1712 = vld [vmem:[%s4 + $0x1018] sm:$0xff]
    %v1713 = vld [vmem:[%s4 + $0x1020] sm:$0xff]
    %v1714 = vld [vmem:[%s4 + $0x1028] sm:$0xff]
    %v1715 = vld [vmem:[%s4 + $0x1030] sm:$0xf]
    %v1716 = vld [vmem:[%s4 + $0x1034] sm:$0xff]
    %v1717 = vld [vmem:[%s4 + $0x103c] sm:$0xff]
    %v1718 = vld [vmem:[%s4 + $0x1044] sm:$0xff]
    %v1719 = vld [vmem:[%s4 + $0x104c] sm:$0xff]
    %v1720 = vld [vmem:[%s4 + $0x1054] sm:$0xff]
    %v1721 = vld [vmem:[%s4 + $0x105c] sm:$0xff]
    %v1722 = vld [vmem:[%s4 + $0x1064] sm:$0xff]
    %v1723 = vld [vmem:[%s4 + $0x106c] sm:$0xff]
    %v1724 = vld [vmem:[%s4 + $0x1074] sm:$0xf]
    %v1725 = vld [vmem:[%s4 + $0x1078] sm:$0xff]
    %v1726 = vld [vmem:[%s4 + $0x1080] sm:$0xff]
    %v1727 = vld [vmem:[%s4 + $0x1088] sm:$0xff]
    %v1728 = vld [vmem:[%s4 + $0x1090] sm:$0xff]
    %v1729 = vld [vmem:[%s4 + $0x1098] sm:$0xff]
    %v1730 = vld [vmem:[%s4 + $0x10a0] sm:$0xff]
    %v1731 = vld [vmem:[%s4 + $0x10a8] sm:$0xff]
    %v1732 = vld [vmem:[%s4 + $0x10b0] sm:$0xff]
    %v1733 = vld [vmem:[%s4 + $0x10b8] sm:$0xf]
    %v1734 = vld [vmem:[%s4 + $0x10bc] sm:$0xff]
    %v1735 = vld [vmem:[%s4 + $0x10c4] sm:$0xff]
    %v1736 = vld [vmem:[%s4 + $0x10cc] sm:$0xff]
    %v1737 = vld [vmem:[%s4 + $0x10d4] sm:$0xff]
    %v1738 = vld [vmem:[%s4 + $0x10dc] sm:$0xff]
    %v1739 = vld [vmem:[%s4 + $0x10e4] sm:$0xff]
    %v1740 = vld [vmem:[%s4 + $0x10ec] sm:$0xff]
    %v1741 = vld [vmem:[%s4 + $0x10f4] sm:$0xff]
    %v1742 = vld [vmem:[%s4 + $0x10fc] sm:$0xf]
    %v1743 = vld [vmem:[%s4 + $0x1100] sm:$0xff]
    %v1744 = vld [vmem:[%s4 + $0x1108] sm:$0xff]
    %v1745 = vld [vmem:[%s4 + $0x1110] sm:$0xff]
    %v1746 = vld [vmem:[%s4 + $0x1118] sm:$0xff]
    %v1747 = vld [vmem:[%s4 + $0x1120] sm:$0xff]
    %v1748 = vld [vmem:[%s4 + $0x1128] sm:$0xff]
    %v1749 = vld [vmem:[%s4 + $0x1130] sm:$0xff]
    %v1750 = vld [vmem:[%s4 + $0x1138] sm:$0xff]
    %v1751 = vld [vmem:[%s4 + $0x1140] sm:$0xf]
    %v1752 = vld [vmem:[%s4 + $0x1144] sm:$0xff]
    %v1753 = vld [vmem:[%s4 + $0x114c] sm:$0xff]
    %v1754 = vld [vmem:[%s4 + $0x1154] sm:$0xff]
    %v1755 = vld [vmem:[%s4 + $0x115c] sm:$0xff]
    %v1756 = vld [vmem:[%s4 + $0x1164] sm:$0xff]
    %v1757 = vld [vmem:[%s4 + $0x116c] sm:$0xff]
    %v1758 = vld [vmem:[%s4 + $0x1174] sm:$0xff]
    %v1759 = vld [vmem:[%s4 + $0x117c] sm:$0xff]
    %v1760 = vld [vmem:[%s4 + $0x1184] sm:$0xf]
    %v1761 = vld [vmem:[%s4 + $0x1188] sm:$0xff]
    %v1762 = vld [vmem:[%s4 + $0x1190] sm:$0xff]
    %v1763 = vld [vmem:[%s4 + $0x1198] sm:$0xff]
    %v1764 = vld [vmem:[%s4 + $0x11a0] sm:$0xff]
    %v1765 = vld [vmem:[%s4 + $0x11a8] sm:$0xff]
    %v1766 = vld [vmem:[%s4 + $0x11b0] sm:$0xff]
    %v1767 = vld [vmem:[%s4 + $0x11b8] sm:$0xff]
    %v1768 = vld [vmem:[%s4 + $0x11c0] sm:$0xff]
    %v1769 = vld [vmem:[%s4 + $0x11c8] sm:$0xf]
    %v1770 = vld [vmem:[%s4 + $0x11cc] sm:$0xff]
    %v1771 = vld [vmem:[%s4 + $0x11d4] sm:$0xff]
    %v1772 = vld [vmem:[%s4 + $0x11dc] sm:$0xff]
    %v1773 = vld [vmem:[%s4 + $0x11e4] sm:$0xff]
    %v1774 = vld [vmem:[%s4 + $0x11ec] sm:$0xff]
    %v1775 = vld [vmem:[%s4 + $0x11f4] sm:$0xff]
    %v1776 = vld [vmem:[%s4 + $0x11fc] sm:$0xff]
    %v1777 = vld [vmem:[%s4 + $0x1204] sm:$0xff]
    %v1778 = vld [vmem:[%s4 + $0x120c] sm:$0xf]
    %v1779 = vld [vmem:[%s4 + $0x1210] sm:$0xff]
    %v1780 = vld [vmem:[%s4 + $0x1218] sm:$0xff]
    %v1781 = vld [vmem:[%s4 + $0x1220] sm:$0xff]
    %v1782 = vld [vmem:[%s4 + $0x1228] sm:$0xff]
    %v1783 = vld [vmem:[%s4 + $0x1230] sm:$0xff]
    %v1784 = vld [vmem:[%s4 + $0x1238] sm:$0xff]
    %v1785 = vld [vmem:[%s4 + $0x1240] sm:$0xff]
    %v1786 = vld [vmem:[%s4 + $0x1248] sm:$0xff]
    %v1787 = vld [vmem:[%s4 + $0x1250] sm:$0xf]
    %v1788 = vld [vmem:[%s4 + $0x1254] sm:$0xff]
    %v1789 = vld [vmem:[%s4 + $0x125c] sm:$0xff]
    %v1790 = vld [vmem:[%s4 + $0x1264] sm:$0xff]
    %v1791 = vld [vmem:[%s4 + $0x126c] sm:$0xff]
    %v1792 = vld [vmem:[%s4 + $0x1274] sm:$0xff]
    %v1793 = vld [vmem:[%s4 + $0x127c] sm:$0xff]
    %v1794 = vld [vmem:[%s4 + $0x1284] sm:$0xff]
    %v1795 = vld [vmem:[%s4 + $0x128c] sm:$0xff]
    %v1796 = vld [vmem:[%s4 + $0x1294] sm:$0xf]
    %v1797 = vld [vmem:[%s4 + $0x1298] sm:$0xff]
    %v1798 = vld [vmem:[%s4 + $0x12a0] sm:$0xff]
    %v1799 = vld [vmem:[%s4 + $0x12a8] sm:$0xff]
    %v1800 = vld [vmem:[%s4 + $0x12b0] sm:$0xff]
    %v1801 = vld [vmem:[%s4 + $0x12b8] sm:$0xff]
    %v1802 = vld [vmem:[%s4 + $0x12c0] sm:$0xff]
    %v1803 = vld [vmem:[%s4 + $0x12c8] sm:$0xff]
    %v1804 = vld [vmem:[%s4 + $0x12d0] sm:$0xff]
    %v1805 = vld [vmem:[%s4 + $0x12d8] sm:$0xf]
    %v1806 = vld [vmem:[%s4 + $0x12dc] sm:$0xff]
    %v1807 = vld [vmem:[%s4 + $0x12e4] sm:$0xff]
    %v1808 = vld [vmem:[%s4 + $0x12ec] sm:$0xff]
    %v1809 = vld [vmem:[%s4 + $0x12f4] sm:$0xff]
    %v1810 = vld [vmem:[%s4 + $0x12fc] sm:$0xff]
    %v1811 = vld [vmem:[%s4 + $0x1304] sm:$0xff]
    %v1812 = vld [vmem:[%s4 + $0x130c] sm:$0xff]
    %v1813 = vld [vmem:[%s4 + $0x1314] sm:$0xff]
    %v1814 = vld [vmem:[%s4 + $0x131c] sm:$0xf]
    %v1815 = vld [vmem:[%s4 + $0x1320] sm:$0xff]
    %v1816 = vld [vmem:[%s4 + $0x1328] sm:$0xff]
    %v1817 = vld [vmem:[%s4 + $0x1330] sm:$0xff]
    %v1818 = vld [vmem:[%s4 + $0x1338] sm:$0xff]
    %v1819 = vld [vmem:[%s4 + $0x1340] sm:$0xff]
    %v1820 = vld [vmem:[%s4 + $0x1348] sm:$0xff]
    %v1821 = vld [vmem:[%s4 + $0x1350] sm:$0xff]
    %v1822 = vld [vmem:[%s4 + $0x1358] sm:$0xff]
    %v1823 = vld [vmem:[%s4 + $0x1360] sm:$0xf]
    %v1824 = vld [vmem:[%s4 + $0x1364] sm:$0xff]
    %v1825 = vld [vmem:[%s4 + $0x136c] sm:$0xff]
    %v1826 = vld [vmem:[%s4 + $0x1374] sm:$0xff]
    %v1827 = vld [vmem:[%s4 + $0x137c] sm:$0xff]
    %v1828 = vld [vmem:[%s4 + $0x1384] sm:$0xff]
    %v1829 = vld [vmem:[%s4 + $0x138c] sm:$0xff]
    %v1830 = vld [vmem:[%s4 + $0x1394] sm:$0xff]
    %v1831 = vld [vmem:[%s4 + $0x139c] sm:$0xff]
    %v1832 = vld [vmem:[%s4 + $0x13a4] sm:$0xf]
    %v1833 = vld [vmem:[%s4 + $0x13a8] sm:$0xff]
    %v1834 = vld [vmem:[%s4 + $0x13b0] sm:$0xff]
    %v1835 = vld [vmem:[%s4 + $0x13b8] sm:$0xff]
    %v1836 = vld [vmem:[%s4 + $0x13c0] sm:$0xff]
    %v1837 = vld [vmem:[%s4 + $0x13c8] sm:$0xff]
    %v1838 = vld [vmem:[%s4 + $0x13d0] sm:$0xff]
    %v1839 = vld [vmem:[%s4 + $0x13d8] sm:$0xff]
    %v1840 = vld [vmem:[%s4 + $0x13e0] sm:$0xff]
    %v1841 = vld [vmem:[%s4 + $0x13e8] sm:$0xf]
    %v1842 = vld [vmem:[%s4 + $0x13ec] sm:$0xff]
    %v1843 = vld [vmem:[%s4 + $0x13f4] sm:$0xff]
    %v1844 = vld [vmem:[%s4 + $0x13fc] sm:$0xff]
    %v1845 = vld [vmem:[%s4 + $0x1404] sm:$0xff]
    %v1846 = vld [vmem:[%s4 + $0x140c] sm:$0xff]
    %v1847 = vld [vmem:[%s4 + $0x1414] sm:$0xff]
    %v1848 = vld [vmem:[%s4 + $0x141c] sm:$0xff]
    %v1849 = vld [vmem:[%s4 + $0x1424] sm:$0xff]
    %v1850 = vld [vmem:[%s4 + $0x142c] sm:$0xf]
    %v1851 = vld [vmem:[%s4 + $0x1430] sm:$0xff]
    %v1852 = vld [vmem:[%s4 + $0x1438] sm:$0xff]
    %v1853 = vld [vmem:[%s4 + $0x1440] sm:$0xff]
    %v1854 = vld [vmem:[%s4 + $0x1448] sm:$0xff]
    %v1855 = vld [vmem:[%s4 + $0x1450] sm:$0xff]
    %v1856 = vld [vmem:[%s4 + $0x1458] sm:$0xff]
    %v1857 = vld [vmem:[%s4 + $0x1460] sm:$0xff]
    %v1858 = vld [vmem:[%s4 + $0x1468] sm:$0xff]
    %v1859 = vld [vmem:[%s4 + $0x1470] sm:$0xf]
    %v1860 = vld [vmem:[%s4 + $0x1474] sm:$0xff]
    %v1861 = vld [vmem:[%s4 + $0x147c] sm:$0xff]
    %v1862 = vld [vmem:[%s4 + $0x1484] sm:$0xff]
    %v1863 = vld [vmem:[%s4 + $0x148c] sm:$0xff]
    %v1864 = vld [vmem:[%s4 + $0x1494] sm:$0xff]
    %v1865 = vld [vmem:[%s4 + $0x149c] sm:$0xff]
    %v1866 = vld [vmem:[%s4 + $0x14a4] sm:$0xff]
    %v1867 = vld [vmem:[%s4 + $0x14ac] sm:$0xff]
    %v1868 = vld [vmem:[%s4 + $0x14b4] sm:$0xf]
    %v1869 = vld [vmem:[%s4 + $0x14b8] sm:$0xff]
    %v1870 = vld [vmem:[%s4 + $0x14c0] sm:$0xff]
    %v1871 = vld [vmem:[%s4 + $0x14c8] sm:$0xff]
    %v1872 = vld [vmem:[%s4 + $0x14d0] sm:$0xff]
    %v1873 = vld [vmem:[%s4 + $0x14d8] sm:$0xff]
    %v1874 = vld [vmem:[%s4 + $0x14e0] sm:$0xff]
    %v1875 = vld [vmem:[%s4 + $0x14e8] sm:$0xff]
    %v1876 = vld [vmem:[%s4 + $0x14f0] sm:$0xff]
    %v1877 = vld [vmem:[%s4 + $0x14f8] sm:$0xf]
    %v1878 = vld [vmem:[%s4 + $0x14fc] sm:$0xff]
    %v1879 = vld [vmem:[%s4 + $0x1504] sm:$0xff]
    %v1880 = vld [vmem:[%s4 + $0x150c] sm:$0xff]
    %v1881 = vld [vmem:[%s4 + $0x1514] sm:$0xff]
    %v1882 = vld [vmem:[%s4 + $0x151c] sm:$0xff]
    %v1883 = vld [vmem:[%s4 + $0x1524] sm:$0xff]
    %v1884 = vld [vmem:[%s4 + $0x152c] sm:$0xff]
    %v1885 = vld [vmem:[%s4 + $0x1534] sm:$0xff]
    %v1886 = vld [vmem:[%s4 + $0x153c] sm:$0xf]
    %v1887 = vld [vmem:[%s4 + $0x1540] sm:$0xff]
    %v1888 = vld [vmem:[%s4 + $0x1548] sm:$0xff]
    %v1889 = vld [vmem:[%s4 + $0x1550] sm:$0xff]
    %v1890 = vld [vmem:[%s4 + $0x1558] sm:$0xff]
    %v1891 = vld [vmem:[%s4 + $0x1560] sm:$0xff]
    %v1892 = vld [vmem:[%s4 + $0x1568] sm:$0xff]
    %v1893 = vld [vmem:[%s4 + $0x1570] sm:$0xff]
    %v1894 = vld [vmem:[%s4 + $0x1578] sm:$0xff]
    %v1895 = vld [vmem:[%s4 + $0x1580] sm:$0xf]
    %v1896 = vld [vmem:[%s4 + $0x1584] sm:$0xff]
    %v1897 = vld [vmem:[%s4 + $0x158c] sm:$0xff]
    %v1898 = vld [vmem:[%s4 + $0x1594] sm:$0xff]
    %v1899 = vld [vmem:[%s4 + $0x159c] sm:$0xff]
    %v1900 = vld [vmem:[%s4 + $0x15a4] sm:$0xff]
    %v1901 = vld [vmem:[%s4 + $0x15ac] sm:$0xff]
    %v1902 = vld [vmem:[%s4 + $0x15b4] sm:$0xff]
    %v1903 = vld [vmem:[%s4 + $0x15bc] sm:$0xff]
    %v1904 = vld [vmem:[%s4 + $0x15c4] sm:$0xf]
    %v1905 = vld [vmem:[%s4 + $0x15c8] sm:$0xff]
    %v1906 = vld [vmem:[%s4 + $0x15d0] sm:$0xff]
    %v1907 = vld [vmem:[%s4 + $0x15d8] sm:$0xff]
    %v1908 = vld [vmem:[%s4 + $0x15e0] sm:$0xff]
    %v1909 = vld [vmem:[%s4 + $0x15e8] sm:$0xff]
    %v1910 = vld [vmem:[%s4 + $0x15f0] sm:$0xff]
    %v1911 = vld [vmem:[%s4 + $0x15f8] sm:$0xff]
    %v1912 = vld [vmem:[%s4 + $0x1600] sm:$0xff]
    %v1913 = vld [vmem:[%s4 + $0x1608] sm:$0xf]
    %v1914 = vld [vmem:[%s4 + $0x160c] sm:$0xff]
    %v1915 = vld [vmem:[%s4 + $0x1614] sm:$0xff]
    %v1916 = vld [vmem:[%s4 + $0x161c] sm:$0xff]
    %v1917 = vld [vmem:[%s4 + $0x1624] sm:$0xff]
    %v1918 = vld [vmem:[%s4 + $0x162c] sm:$0xff]
    %v1919 = vld [vmem:[%s4 + $0x1634] sm:$0xff]
    %v1920 = vld [vmem:[%s4 + $0x163c] sm:$0xff]
    %v1921 = vld [vmem:[%s4 + $0x1644] sm:$0xff]
    %v1922 = vld [vmem:[%s4 + $0x164c] sm:$0xf]
    %v1923 = vld [vmem:[%s4 + $0x1650] sm:$0xff]
    %v1924 = vld [vmem:[%s4 + $0x1658] sm:$0xff]
    %v1925 = vld [vmem:[%s4 + $0x1660] sm:$0xff]
    %v1926 = vld [vmem:[%s4 + $0x1668] sm:$0xff]
    %v1927 = vld [vmem:[%s4 + $0x1670] sm:$0xff]
    %v1928 = vld [vmem:[%s4 + $0x1678] sm:$0xff]
    %v1929 = vld [vmem:[%s4 + $0x1680] sm:$0xff]
    %v1930 = vld [vmem:[%s4 + $0x1688] sm:$0xff]
    %v1931 = vld [vmem:[%s4 + $0x1690] sm:$0xf]
    %v1932 = vld [vmem:[%s4 + $0x1694] sm:$0xff]
    %v1933 = vld [vmem:[%s4 + $0x169c] sm:$0xff]
    %v1934 = vld [vmem:[%s4 + $0x16a4] sm:$0xff]
    %v1935 = vld [vmem:[%s4 + $0x16ac] sm:$0xff]
    %v1936 = vld [vmem:[%s4 + $0x16b4] sm:$0xff]
    %v1937 = vld [vmem:[%s4 + $0x16bc] sm:$0xff]
    %v1938 = vld [vmem:[%s4 + $0x16c4] sm:$0xff]
    %v1939 = vld [vmem:[%s4 + $0x16cc] sm:$0xff]
    %v1940 = vld [vmem:[%s4 + $0x16d4] sm:$0xf]
    %v1941 = vld [vmem:[%s4 + $0x16d8] sm:$0xff]
    %v1942 = vld [vmem:[%s4 + $0x16e0] sm:$0xff]
    %v1943 = vld [vmem:[%s4 + $0x16e8] sm:$0xff]
    %v1944 = vld [vmem:[%s4 + $0x16f0] sm:$0xff]
    %v1945 = vld [vmem:[%s4 + $0x16f8] sm:$0xff]
    %v1946 = vld [vmem:[%s4 + $0x1700] sm:$0xff]
    %v1947 = vld [vmem:[%s4 + $0x1708] sm:$0xff]
    %v1948 = vld [vmem:[%s4 + $0x1710] sm:$0xff]
    %v1949 = vld [vmem:[%s4 + $0x1718] sm:$0xf]
    %v1950 = vld [vmem:[%s4 + $0x171c] sm:$0xff]
    %v1951 = vld [vmem:[%s4 + $0x1724] sm:$0xff]
    %v1952 = vld [vmem:[%s4 + $0x172c] sm:$0xff]
    %v1953 = vld [vmem:[%s4 + $0x1734] sm:$0xff]
    %v1954 = vld [vmem:[%s4 + $0x173c] sm:$0xff]
    %v1955 = vld [vmem:[%s4 + $0x1744] sm:$0xff]
    %v1956 = vld [vmem:[%s4 + $0x174c] sm:$0xff]
    %v1957 = vld [vmem:[%s4 + $0x1754] sm:$0xff]
    %v1958 = vld [vmem:[%s4 + $0x175c] sm:$0xf]
    %v1959 = vld [vmem:[%s4 + $0x1760] sm:$0xff]
    %v1960 = vld [vmem:[%s4 + $0x1768] sm:$0xff]
    %v1961 = vld [vmem:[%s4 + $0x1770] sm:$0xff]
    %v1962 = vld [vmem:[%s4 + $0x1778] sm:$0xff]
    %v1963 = vld [vmem:[%s4 + $0x1780] sm:$0xff]
    %v1964 = vld [vmem:[%s4 + $0x1788] sm:$0xff]
    %v1965 = vld [vmem:[%s4 + $0x1790] sm:$0xff]
    %v1966 = vld [vmem:[%s4 + $0x1798] sm:$0xff]
    %v1967 = vld [vmem:[%s4 + $0x17a0] sm:$0xf]
    %v1968 = vld [vmem:[%s4 + $0x17a4] sm:$0xff]
    %v1969 = vld [vmem:[%s4 + $0x17ac] sm:$0xff]
    %v1970 = vld [vmem:[%s4 + $0x17b4] sm:$0xff]
    %v1971 = vld [vmem:[%s4 + $0x17bc] sm:$0xff]
    %v1972 = vld [vmem:[%s4 + $0x17c4] sm:$0xff]
    %v1973 = vld [vmem:[%s4 + $0x17cc] sm:$0xff]
    %v1974 = vld [vmem:[%s4 + $0x17d4] sm:$0xff]
    %v1975 = vld [vmem:[%s4 + $0x17dc] sm:$0xff]
    %v1976 = vld [vmem:[%s4 + $0x17e4] sm:$0xf]
    %v1977 = vld [vmem:[%s4 + $0x17e8] sm:$0xff]
    %v1978 = vld [vmem:[%s4 + $0x17f0] sm:$0xff]
    %v1979 = vld [vmem:[%s4 + $0x17f8] sm:$0xff]
    %v1980 = vld [vmem:[%s4 + $0x1800] sm:$0xff]
    %v1981 = vld [vmem:[%s4 + $0x1808] sm:$0xff]
    %v1982 = vld [vmem:[%s4 + $0x1810] sm:$0xff]
    %v1983 = vld [vmem:[%s4 + $0x1818] sm:$0xff]
    %v1984 = vld [vmem:[%s4 + $0x1820] sm:$0xff]
    %v1985 = vld [vmem:[%s4 + $0x1828] sm:$0xf]
    %v1986 = vld [vmem:[%s4 + $0x182c] sm:$0xff]
    %v1987 = vld [vmem:[%s4 + $0x1834] sm:$0xff]
    %v1988 = vld [vmem:[%s4 + $0x183c] sm:$0xff]
    %v1989 = vld [vmem:[%s4 + $0x1844] sm:$0xff]
    %v1990 = vld [vmem:[%s4 + $0x184c] sm:$0xff]
    %v1991 = vld [vmem:[%s4 + $0x1854] sm:$0xff]
    %v1992 = vld [vmem:[%s4 + $0x185c] sm:$0xff]
    %v1993 = vld [vmem:[%s4 + $0x1864] sm:$0xff]
    %v1994 = vld [vmem:[%s4 + $0x186c] sm:$0xf]
    %v1995 = vld [vmem:[%s4 + $0x1870] sm:$0xff]
    %v1996 = vld [vmem:[%s4 + $0x1878] sm:$0xff]
    %v1997 = vld [vmem:[%s4 + $0x1880] sm:$0xff]
    %v1998 = vld [vmem:[%s4 + $0x1888] sm:$0xff]
    %v1999 = vld [vmem:[%s4 + $0x1890] sm:$0xff]
    %v2000 = vld [vmem:[%s4 + $0x1898] sm:$0xff]
    %v2001 = vld [vmem:[%s4 + $0x18a0] sm:$0xff]
    %v2002 = vld [vmem:[%s4 + $0x18a8] sm:$0xff]
    %v2003 = vld [vmem:[%s4 + $0x18b0] sm:$0xf]
    %v2004 = vld [vmem:[%s4 + $0x18b4] sm:$0xff]
    %v2005 = vld [vmem:[%s4 + $0x18bc] sm:$0xff]
    %v2006 = vld [vmem:[%s4 + $0x18c4] sm:$0xff]
    %v2007 = vld [vmem:[%s4 + $0x18cc] sm:$0xff]
    %v2008 = vld [vmem:[%s4 + $0x18d4] sm:$0xff]
    %v2009 = vld [vmem:[%s4 + $0x18dc] sm:$0xff]
    %v2010 = vld [vmem:[%s4 + $0x18e4] sm:$0xff]
    %v2011 = vld [vmem:[%s4 + $0x18ec] sm:$0xff]
    %v2012 = vld [vmem:[%s4 + $0x18f4] sm:$0xf]
    %v2013 = vld [vmem:[%s4 + $0x18f8] sm:$0xff]
    %v2014 = vld [vmem:[%s4 + $0x1900] sm:$0xff]
    %v2015 = vld [vmem:[%s4 + $0x1908] sm:$0xff]
    %v2016 = vld [vmem:[%s4 + $0x1910] sm:$0xff]
    %v2017 = vld [vmem:[%s4 + $0x1918] sm:$0xff]
    %v2018 = vld [vmem:[%s4 + $0x1920] sm:$0xff]
    %v2019 = vld [vmem:[%s4 + $0x1928] sm:$0xff]
    %v2020 = vld [vmem:[%s4 + $0x1930] sm:$0xff]
    %v2021 = vld [vmem:[%s4 + $0x1938] sm:$0xf]
    %v2022 = vld [vmem:[%s4 + $0x193c] sm:$0xff]
    %v2023 = vld [vmem:[%s4 + $0x1944] sm:$0xff]
    %v2024 = vld [vmem:[%s4 + $0x194c] sm:$0xff]
    %v2025 = vld [vmem:[%s4 + $0x1954] sm:$0xff]
    %v2026 = vld [vmem:[%s4 + $0x195c] sm:$0xff]
    %v2027 = vld [vmem:[%s4 + $0x1964] sm:$0xff]
    %v2028 = vld [vmem:[%s4 + $0x196c] sm:$0xff]
    %v2029 = vld [vmem:[%s4 + $0x1974] sm:$0xff]
    %v2030 = vld [vmem:[%s4 + $0x197c] sm:$0xf]
    %v2031 = vld [vmem:[%s4 + $0x1980] sm:$0xff]
    %v2032 = vld [vmem:[%s4 + $0x1988] sm:$0xff]
    %v2033 = vld [vmem:[%s4 + $0x1990] sm:$0xff]
    %v2034 = vld [vmem:[%s4 + $0x1998] sm:$0xff]
    %v2035 = vld [vmem:[%s4 + $0x19a0] sm:$0xff]
    %v2036 = vld [vmem:[%s4 + $0x19a8] sm:$0xff]
    %v2037 = vld [vmem:[%s4 + $0x19b0] sm:$0xff]
    %v2038 = vld [vmem:[%s4 + $0x19b8] sm:$0xff]
    %v2039 = vld [vmem:[%s4 + $0x19c0] sm:$0xf]
    %v2040 = vld [vmem:[%s4 + $0x19c4] sm:$0xff]
    %v2041 = vld [vmem:[%s4 + $0x19cc] sm:$0xff]
    %v2042 = vld [vmem:[%s4 + $0x19d4] sm:$0xff]
    %v2043 = vld [vmem:[%s4 + $0x19dc] sm:$0xff]
    %v2044 = vld [vmem:[%s4 + $0x19e4] sm:$0xff]
    %v2045 = vld [vmem:[%s4 + $0x19ec] sm:$0xff]
    %v2046 = vld [vmem:[%s4 + $0x19f4] sm:$0xff]
    %v2047 = vld [vmem:[%s4 + $0x19fc] sm:$0xff]
    %v2048 = vld [vmem:[%s4 + $0x1a04] sm:$0xf]
    %v2049 = vld [vmem:[%s4 + $0x1a08] sm:$0xff]
    %v2050 = vld [vmem:[%s4 + $0x1a10] sm:$0xff]
    %v2051 = vld [vmem:[%s4 + $0x1a18] sm:$0xff]
    %v2052 = vld [vmem:[%s4 + $0x1a20] sm:$0xff]
    %v2053 = vld [vmem:[%s4 + $0x1a28] sm:$0xff]
    %v2054 = vld [vmem:[%s4 + $0x1a30] sm:$0xff]
    %v2055 = vld [vmem:[%s4 + $0x1a38] sm:$0xff]
    %v2056 = vld [vmem:[%s4 + $0x1a40] sm:$0xff]
    %v2057 = vld [vmem:[%s4 + $0x1a48] sm:$0xf]
    %v2058 = vld [vmem:[%s4 + $0x1a4c] sm:$0xff]
    %v2059 = vld [vmem:[%s4 + $0x1a54] sm:$0xff]
    %v2060 = vld [vmem:[%s4 + $0x1a5c] sm:$0xff]
    %v2061 = vld [vmem:[%s4 + $0x1a64] sm:$0xff]
    %v2062 = vld [vmem:[%s4 + $0x1a6c] sm:$0xff]
    %v2063 = vld [vmem:[%s4 + $0x1a74] sm:$0xff]
    %v2064 = vld [vmem:[%s4 + $0x1a7c] sm:$0xff]
    %v2065 = vld [vmem:[%s4 + $0x1a84] sm:$0xff]
    %v2066 = vld [vmem:[%s4 + $0x1a8c] sm:$0xf]
    %v2067 = vld [vmem:[%s4 + $0x1a90] sm:$0xff]
    %v2068 = vld [vmem:[%s4 + $0x1a98] sm:$0xff]
    %v2069 = vld [vmem:[%s4 + $0x1aa0] sm:$0xff]
    %v2070 = vld [vmem:[%s4 + $0x1aa8] sm:$0xff]
    %v2071 = vld [vmem:[%s4 + $0x1ab0] sm:$0xff]
    %v2072 = vld [vmem:[%s4 + $0x1ab8] sm:$0xff]
    %v2073 = vld [vmem:[%s4 + $0x1ac0] sm:$0xff]
    %v2074 = vld [vmem:[%s4 + $0x1ac8] sm:$0xff]
    %v2075 = vld [vmem:[%s4 + $0x1ad0] sm:$0xf]
    %v2076 = vld [vmem:[%s4 + $0x1ad4] sm:$0xff]
    %v2077 = vld [vmem:[%s4 + $0x1adc] sm:$0xff]
    %v2078 = vld [vmem:[%s4 + $0x1ae4] sm:$0xff]
    %v2079 = vld [vmem:[%s4 + $0x1aec] sm:$0xff]
    %v2080 = vld [vmem:[%s4 + $0x1af4] sm:$0xff]
    %v2081 = vld [vmem:[%s4 + $0x1afc] sm:$0xff]
    %v2082 = vld [vmem:[%s4 + $0x1b04] sm:$0xff]
    %v2083 = vld [vmem:[%s4 + $0x1b0c] sm:$0xff]
    %v2084 = vld [vmem:[%s4 + $0x1b14] sm:$0xf]
    %v2085 = vld [vmem:[%s4 + $0x1b18] sm:$0xff]
    %v2086 = vld [vmem:[%s4 + $0x1b20] sm:$0xff]
    %v2087 = vld [vmem:[%s4 + $0x1b28] sm:$0xff]
    %v2088 = vld [vmem:[%s4 + $0x1b30] sm:$0xff]
    %v2089 = vld [vmem:[%s4 + $0x1b38] sm:$0xff]
    %v2090 = vld [vmem:[%s4 + $0x1b40] sm:$0xff]
    %v2091 = vld [vmem:[%s4 + $0x1b48] sm:$0xff]
    %v2092 = vld [vmem:[%s4 + $0x1b50] sm:$0xff]
    %v2093 = vld [vmem:[%s4 + $0x1b58] sm:$0xf]
    %v2094 = vld [vmem:[%s4 + $0x1b5c] sm:$0xff]
    %v2095 = vld [vmem:[%s4 + $0x1b64] sm:$0xff]
    %v2096 = vld [vmem:[%s4 + $0x1b6c] sm:$0xff]
    %v2097 = vld [vmem:[%s4 + $0x1b74] sm:$0xff]
    %v2098 = vld [vmem:[%s4 + $0x1b7c] sm:$0xff]
    %v2099 = vld [vmem:[%s4 + $0x1b84] sm:$0xff]
    %v2100 = vld [vmem:[%s4 + $0x1b8c] sm:$0xff]
    %v2101 = vld [vmem:[%s4 + $0x1b94] sm:$0xff]
    %v2102 = vld [vmem:[%s4 + $0x1b9c] sm:$0xf]
    %v2103 = vld [vmem:[%s4 + $0x1ba0] sm:$0xff]
    %v2104 = vld [vmem:[%s4 + $0x1ba8] sm:$0xff]
    %v2105 = vld [vmem:[%s4 + $0x1bb0] sm:$0xff]
    %v2106 = vld [vmem:[%s4 + $0x1bb8] sm:$0xff]
    %v2107 = vld [vmem:[%s4 + $0x1bc0] sm:$0xff]
    %v2108 = vld [vmem:[%s4 + $0x1bc8] sm:$0xff]
    %v2109 = vld [vmem:[%s4 + $0x1bd0] sm:$0xff]
    %v2110 = vld [vmem:[%s4 + $0x1bd8] sm:$0xff]
    %v2111 = vld [vmem:[%s4 + $0x1be0] sm:$0xf]
    %v2112 = vld [vmem:[%s4 + $0x1be4] sm:$0xff]
    %v2113 = vld [vmem:[%s4 + $0x1bec] sm:$0xff]
    %v2114 = vld [vmem:[%s4 + $0x1bf4] sm:$0xff]
    %v2115 = vld [vmem:[%s4 + $0x1bfc] sm:$0xff]
    %v2116 = vld [vmem:[%s4 + $0x1c04] sm:$0xff]
    %v2117 = vld [vmem:[%s4 + $0x1c0c] sm:$0xff]
    %v2118 = vld [vmem:[%s4 + $0x1c14] sm:$0xff]
    %v2119 = vld [vmem:[%s4 + $0x1c1c] sm:$0xff]
    %v2120 = vld [vmem:[%s4 + $0x1c24] sm:$0xf]
    %v2121 = vld [vmem:[%s4 + $0x1c28] sm:$0xff]
    %v2122 = vld [vmem:[%s4 + $0x1c30] sm:$0xff]
    %v2123 = vld [vmem:[%s4 + $0x1c38] sm:$0xff]
    %v2124 = vld [vmem:[%s4 + $0x1c40] sm:$0xff]
    %v2125 = vld [vmem:[%s4 + $0x1c48] sm:$0xff]
    %v2126 = vld [vmem:[%s4 + $0x1c50] sm:$0xff]
    %v2127 = vld [vmem:[%s4 + $0x1c58] sm:$0xff]
    %v2128 = vld [vmem:[%s4 + $0x1c60] sm:$0xff]
    %v2129 = vld [vmem:[%s4 + $0x1c68] sm:$0xf]
    %v2130 = vld [vmem:[%s4 + $0x1c6c] sm:$0xff]
    %v2131 = vld [vmem:[%s4 + $0x1c74] sm:$0xff]
    %v2132 = vld [vmem:[%s4 + $0x1c7c] sm:$0xff]
    %v2133 = vld [vmem:[%s4 + $0x1c84] sm:$0xff]
    %v2134 = vld [vmem:[%s4 + $0x1c8c] sm:$0xff]
    %v2135 = vld [vmem:[%s4 + $0x1c94] sm:$0xff]
    %v2136 = vld [vmem:[%s4 + $0x1c9c] sm:$0xff]
    %v2137 = vld [vmem:[%s4 + $0x1ca4] sm:$0xff]
    %v2138 = vld [vmem:[%s4 + $0x1cac] sm:$0xf]
    %v2139 = vld [vmem:[%s4 + $0x1cb0] sm:$0xff]
    %v2140 = vld [vmem:[%s4 + $0x1cb8] sm:$0xff]
    %v2141 = vld [vmem:[%s4 + $0x1cc0] sm:$0xff]
    %v2142 = vld [vmem:[%s4 + $0x1cc8] sm:$0xff]
    %v2143 = vld [vmem:[%s4 + $0x1cd0] sm:$0xff]
    %v2144 = vld [vmem:[%s4 + $0x1cd8] sm:$0xff]
    %v2145 = vld [vmem:[%s4 + $0x1ce0] sm:$0xff]
    %v2146 = vld [vmem:[%s4 + $0x1ce8] sm:$0xff]
    %v2147 = vld [vmem:[%s4 + $0x1cf0] sm:$0xf]
    %v2148 = vld [vmem:[%s4 + $0x1cf4] sm:$0xff]
    %v2149 = vld [vmem:[%s4 + $0x1cfc] sm:$0xff]
    %v2150 = vld [vmem:[%s4 + $0x1d04] sm:$0xff]
    %v2151 = vld [vmem:[%s4 + $0x1d0c] sm:$0xff]
    %v2152 = vld [vmem:[%s4 + $0x1d14] sm:$0xff]
    %v2153 = vld [vmem:[%s4 + $0x1d1c] sm:$0xff]
    %v2154 = vld [vmem:[%s4 + $0x1d24] sm:$0xff]
    %v2155 = vld [vmem:[%s4 + $0x1d2c] sm:$0xff]
    %v2156 = vld [vmem:[%s4 + $0x1d34] sm:$0xf]
    %v2157 = vld [vmem:[%s4 + $0x1d38] sm:$0xff]
    %v2158 = vld [vmem:[%s4 + $0x1d40] sm:$0xff]
    %v2159 = vld [vmem:[%s4 + $0x1d48] sm:$0xff]
    %v2160 = vld [vmem:[%s4 + $0x1d50] sm:$0xff]
    %v2161 = vld [vmem:[%s4 + $0x1d58] sm:$0xff]
    %v2162 = vld [vmem:[%s4 + $0x1d60] sm:$0xff]
    %v2163 = vld [vmem:[%s4 + $0x1d68] sm:$0xff]
    %v2164 = vld [vmem:[%s4 + $0x1d70] sm:$0xff]
    %v2165 = vld [vmem:[%s4 + $0x1d78] sm:$0xf]
    %v2166 = vld [vmem:[%s4 + $0x1d7c] sm:$0xff]
    %v2167 = vld [vmem:[%s4 + $0x1d84] sm:$0xff]
    %v2168 = vld [vmem:[%s4 + $0x1d8c] sm:$0xff]
    %v2169 = vld [vmem:[%s4 + $0x1d94] sm:$0xff]
    %v2170 = vld [vmem:[%s4 + $0x1d9c] sm:$0xff]
    %v2171 = vld [vmem:[%s4 + $0x1da4] sm:$0xff]
    %v2172 = vld [vmem:[%s4 + $0x1dac] sm:$0xff]
    %v2173 = vld [vmem:[%s4 + $0x1db4] sm:$0xff]
    %v2174 = vld [vmem:[%s4 + $0x1dbc] sm:$0xf]
    %v2175 = vld [vmem:[%s4 + $0x1dc0] sm:$0xff]
    %v2176 = vld [vmem:[%s4 + $0x1dc8] sm:$0xff]
    %v2177 = vld [vmem:[%s4 + $0x1dd0] sm:$0xff]
    %v2178 = vld [vmem:[%s4 + $0x1dd8] sm:$0xff]
    %v2179 = vld [vmem:[%s4 + $0x1de0] sm:$0xff]
    %v2180 = vld [vmem:[%s4 + $0x1de8] sm:$0xff]
    %v2181 = vld [vmem:[%s4 + $0x1df0] sm:$0xff]
    %v2182 = vld [vmem:[%s4 + $0x1df8] sm:$0xff]
    %v2183 = vld [vmem:[%s4 + $0x1e00] sm:$0xf]
    %v2184 = vld [vmem:[%s4 + $0x1e04] sm:$0xff]
    %v2185 = vld [vmem:[%s4 + $0x1e0c] sm:$0xff]
    %v2186 = vld [vmem:[%s4 + $0x1e14] sm:$0xff]
    %v2187 = vld [vmem:[%s4 + $0x1e1c] sm:$0xff]
    %v2188 = vld [vmem:[%s4 + $0x1e24] sm:$0xff]
    %v2189 = vld [vmem:[%s4 + $0x1e2c] sm:$0xff]
    %v2190 = vld [vmem:[%s4 + $0x1e34] sm:$0xff]
    %v2191 = vld [vmem:[%s4 + $0x1e3c] sm:$0xff]
    %v2192 = vld [vmem:[%s4 + $0x1e44] sm:$0xf]
    %v2193 = vld [vmem:[%s4 + $0x1e48] sm:$0xff]
    %v2194 = vld [vmem:[%s4 + $0x1e50] sm:$0xff]
    %v2195 = vld [vmem:[%s4 + $0x1e58] sm:$0xff]
    %v2196 = vld [vmem:[%s4 + $0x1e60] sm:$0xff]
    %v2197 = vld [vmem:[%s4 + $0x1e68] sm:$0xff]
    %v2198 = vld [vmem:[%s4 + $0x1e70] sm:$0xff]
    %v2199 = vld [vmem:[%s4 + $0x1e78] sm:$0xff]
    %v2200 = vld [vmem:[%s4 + $0x1e80] sm:$0xff]
    %v2201 = vld [vmem:[%s4 + $0x1e88] sm:$0xf]
    %v2202 = vld [vmem:[%s4 + $0x1e8c] sm:$0xff]
    %v2203 = vld [vmem:[%s4 + $0x1e94] sm:$0xff]
    %v2204 = vld [vmem:[%s4 + $0x1e9c] sm:$0xff]
    %v2205 = vld [vmem:[%s4 + $0x1ea4] sm:$0xff]
    %v2206 = vld [vmem:[%s4 + $0x1eac] sm:$0xff]
    %v2207 = vld [vmem:[%s4 + $0x1eb4] sm:$0xff]
    %v2208 = vld [vmem:[%s4 + $0x1ebc] sm:$0xff]
    %v2209 = vld [vmem:[%s4 + $0x1ec4] sm:$0xff]
    %v2210 = vld [vmem:[%s4 + $0x1ecc] sm:$0xf]
    %v2211 = vld [vmem:[%s4 + $0x1ed0] sm:$0xff]
    %v2212 = vld [vmem:[%s4 + $0x1ed8] sm:$0xff]
    %v2213 = vld [vmem:[%s4 + $0x1ee0] sm:$0xff]
    %v2214 = vld [vmem:[%s4 + $0x1ee8] sm:$0xff]
    %v2215 = vld [vmem:[%s4 + $0x1ef0] sm:$0xff]
    %v2216 = vld [vmem:[%s4 + $0x1ef8] sm:$0xff]
    %v2217 = vld [vmem:[%s4 + $0x1f00] sm:$0xff]
    %v2218 = vld [vmem:[%s4 + $0x1f08] sm:$0xff]
    %v2219 = vld [vmem:[%s4 + $0x1f10] sm:$0xf]
    %v2220 = vld [vmem:[%s4 + $0x1f14] sm:$0xff]
    %v2221 = vld [vmem:[%s4 + $0x1f1c] sm:$0xff]
    %v2222 = vld [vmem:[%s4 + $0x1f24] sm:$0xff]
    %v2223 = vld [vmem:[%s4 + $0x1f2c] sm:$0xff]
    %v2224 = vld [vmem:[%s4 + $0x1f34] sm:$0xff]
    %v2225 = vld [vmem:[%s4 + $0x1f3c] sm:$0xff]
    %v2226 = vld [vmem:[%s4 + $0x1f44] sm:$0xff]
    %v2227 = vld [vmem:[%s4 + $0x1f4c] sm:$0xff]
    %v2228 = vld [vmem:[%s4 + $0x1f54] sm:$0xf]
    %v2229 = vld [vmem:[%s4 + $0x1f58] sm:$0xff]
    %v2230 = vld [vmem:[%s4 + $0x1f60] sm:$0xff]
    %v2231 = vld [vmem:[%s4 + $0x1f68] sm:$0xff]
    %v2232 = vld [vmem:[%s4 + $0x1f70] sm:$0xff]
    %v2233 = vld [vmem:[%s4 + $0x1f78] sm:$0xff]
    %v2234 = vld [vmem:[%s4 + $0x1f80] sm:$0xff]
    %v2235 = vld [vmem:[%s4 + $0x1f88] sm:$0xff]
    %v2236 = vld [vmem:[%s4 + $0x1f90] sm:$0xff]
    %v2237 = vld [vmem:[%s4 + $0x1f98] sm:$0xf]
    %v2238 = vld [vmem:[%s4 + $0x1f9c] sm:$0xff]
    %v2239 = vld [vmem:[%s4 + $0x1fa4] sm:$0xff]
    %v2240 = vld [vmem:[%s4 + $0x1fac] sm:$0xff]
    %v2241 = vld [vmem:[%s4 + $0x1fb4] sm:$0xff]
    %v2242 = vld [vmem:[%s4 + $0x1fbc] sm:$0xff]
    %v2243 = vld [vmem:[%s4 + $0x1fc4] sm:$0xff]
    %v2244 = vld [vmem:[%s4 + $0x1fcc] sm:$0xff]
    %v2245 = vld [vmem:[%s4 + $0x1fd4] sm:$0xff]
    %v2246 = vld [vmem:[%s4 + $0x1fdc] sm:$0xf]
    %v2247 = vld [vmem:[%s4 + $0x1fe0] sm:$0xff]
    %v2248 = vld [vmem:[%s4 + $0x1fe8] sm:$0xff]
    %v2249 = vld [vmem:[%s4 + $0x1ff0] sm:$0xff]
    %v2250 = vld [vmem:[%s4 + $0x1ff8] sm:$0xff]
    %v2251 = vld [vmem:[%s4 + $0x2000] sm:$0xff]
    %v2252 = vld [vmem:[%s4 + $0x2008] sm:$0xff]
    %v2253 = vld [vmem:[%s4 + $0x2010] sm:$0xff]
    %v2254 = vld [vmem:[%s4 + $0x2018] sm:$0xff]
    %v2255 = vld [vmem:[%s4 + $0x2020] sm:$0xf]
    %v2256 = vld [vmem:[%s4 + $0x2024] sm:$0xff]
    %v2257 = vld [vmem:[%s4 + $0x202c] sm:$0xff]
    %v2258 = vld [vmem:[%s4 + $0x2034] sm:$0xff]
    %v2259 = vld [vmem:[%s4 + $0x203c] sm:$0xff]
    %v2260 = vld [vmem:[%s4 + $0x2044] sm:$0xff]
    %v2261 = vld [vmem:[%s4 + $0x204c] sm:$0xff]
    %v2262 = vld [vmem:[%s4 + $0x2054] sm:$0xff]
    %v2263 = vld [vmem:[%s4 + $0x205c] sm:$0xff]
    %v2264 = vld [vmem:[%s4 + $0x2064] sm:$0xf]
    %v2265 = vld [vmem:[%s4 + $0x2068] sm:$0xff]
    %v2266 = vld [vmem:[%s4 + $0x2070] sm:$0xff]
    %v2267 = vld [vmem:[%s4 + $0x2078] sm:$0xff]
    %v2268 = vld [vmem:[%s4 + $0x2080] sm:$0xff]
    %v2269 = vld [vmem:[%s4 + $0x2088] sm:$0xff]
    %v2270 = vld [vmem:[%s4 + $0x2090] sm:$0xff]
    %v2271 = vld [vmem:[%s4 + $0x2098] sm:$0xff]
    %v2272 = vld [vmem:[%s4 + $0x20a0] sm:$0xff]
    %v2273 = vld [vmem:[%s4 + $0x20a8] sm:$0xf]
    %v2274 = vld [vmem:[%s4 + $0x20ac] sm:$0xff]
    %v2275 = vld [vmem:[%s4 + $0x20b4] sm:$0xff]
    %v2276 = vld [vmem:[%s4 + $0x20bc] sm:$0xff]
    %v2277 = vld [vmem:[%s4 + $0x20c4] sm:$0xff]
    %v2278 = vld [vmem:[%s4 + $0x20cc] sm:$0xff]
    %v2279 = vld [vmem:[%s4 + $0x20d4] sm:$0xff]
    %v2280 = vld [vmem:[%s4 + $0x20dc] sm:$0xff]
    %v2281 = vld [vmem:[%s4 + $0x20e4] sm:$0xff]
    %v2282 = vld [vmem:[%s4 + $0x20ec] sm:$0xf]
    %v2283 = vld [vmem:[%s4 + $0x20f0] sm:$0xff]
    %v2284 = vld [vmem:[%s4 + $0x20f8] sm:$0xff]
    %v2285 = vld [vmem:[%s4 + $0x2100] sm:$0xff]
    %v2286 = vld [vmem:[%s4 + $0x2108] sm:$0xff]
    %v2287 = vld [vmem:[%s4 + $0x2110] sm:$0xff]
    %v2288 = vld [vmem:[%s4 + $0x2118] sm:$0xff]
    %v2289 = vld [vmem:[%s4 + $0x2120] sm:$0xff]
    %v2290 = vld [vmem:[%s4 + $0x2128] sm:$0xff]
    %v2291 = vld [vmem:[%s4 + $0x2130] sm:$0xf]
    %v2292 = vld [vmem:[%s4 + $0x2134] sm:$0xff]
    %v2293 = vld [vmem:[%s4 + $0x213c] sm:$0xff]
    %v2294 = vld [vmem:[%s4 + $0x2144] sm:$0xff]
    %v2295 = vld [vmem:[%s4 + $0x214c] sm:$0xff]
    %v2296 = vld [vmem:[%s4 + $0x2154] sm:$0xff]
    %v2297 = vld [vmem:[%s4 + $0x215c] sm:$0xff]
    %v2298 = vld [vmem:[%s4 + $0x2164] sm:$0xff]
    %v2299 = vld [vmem:[%s4 + $0x216c] sm:$0xff]
    %v2300 = vld [vmem:[%s4 + $0x2174] sm:$0xf]
    %v2301 = vld [vmem:[%s4 + $0x2178] sm:$0xff]
    %v2302 = vld [vmem:[%s4 + $0x2180] sm:$0xff]
    %v2303 = vld [vmem:[%s4 + $0x2188] sm:$0xff]
    %v2304 = vld [vmem:[%s4 + $0x2190] sm:$0xff]
    %v2305 = vld [vmem:[%s4 + $0x2198] sm:$0xff]
    %v2306 = vld [vmem:[%s4 + $0x21a0] sm:$0xff]
    %v2307 = vld [vmem:[%s4 + $0x21a8] sm:$0xff]
    %v2308 = vld [vmem:[%s4 + $0x21b0] sm:$0xff]
    %v2309 = vld [vmem:[%s4 + $0x21b8] sm:$0xf]
    %v2310 = vld [vmem:[%s4 + $0x21bc] sm:$0xff]
    %v2311 = vld [vmem:[%s4 + $0x21c4] sm:$0xff]
    %v2312 = vld [vmem:[%s4 + $0x21cc] sm:$0xff]
    %v2313 = vld [vmem:[%s4 + $0x21d4] sm:$0xff]
    %v2314 = vld [vmem:[%s4 + $0x21dc] sm:$0xff]
    %v2315 = vld [vmem:[%s4 + $0x21e4] sm:$0xff]
    %v2316 = vld [vmem:[%s4 + $0x21ec] sm:$0xff]
    %v2317 = vld [vmem:[%s4 + $0x21f4] sm:$0xff]
    %v2318 = vld [vmem:[%s4 + $0x21fc] sm:$0xf]
    %v3471 = vunpack.c.l.b16 %v1167
    %v3472 = vunpack.c.h.b16 %v1167
    %v3473 = vunpack.c.l.b16 %v1168
    %v3474 = vunpack.c.h.b16 %v1168
    %v3475 = vunpack.c.l.b16 %v1169
    %v3476 = vunpack.c.h.b16 %v1169
    %v3477 = vunpack.c.l.b16 %v1170
    %v3478 = vunpack.c.h.b16 %v1170
    %v3479 = vunpack.c.l.b16 %v1171
    %v3480 = vunpack.c.h.b16 %v1171
    %v3481 = vunpack.c.l.b16 %v1172
    %v3482 = vunpack.c.h.b16 %v1172
    %v3483 = vunpack.c.l.b16 %v1173
    %v3484 = vunpack.c.h.b16 %v1173
    %v3485 = vunpack.c.l.b16 %v1174
    %v3486 = vunpack.c.h.b16 %v1174
    %v3487 = vunpack.c.l.b16 %v1175
    %v3488 = vunpack.c.l.b16 %v1176
    %v3489 = vunpack.c.h.b16 %v1176
    %v3490 = vunpack.c.l.b16 %v1177
    %v3491 = vunpack.c.h.b16 %v1177
    %v3492 = vunpack.c.l.b16 %v1178
    %v3493 = vunpack.c.h.b16 %v1178
    %v3494 = vunpack.c.l.b16 %v1179
    %v3495 = vunpack.c.h.b16 %v1179
    %v3496 = vunpack.c.l.b16 %v1180
    %v3497 = vunpack.c.h.b16 %v1180
    %v3498 = vunpack.c.l.b16 %v1181
    %v3499 = vunpack.c.h.b16 %v1181
    %v3500 = vunpack.c.l.b16 %v1182
    %v3501 = vunpack.c.h.b16 %v1182
    %v3502 = vunpack.c.l.b16 %v1183
    %v3503 = vunpack.c.h.b16 %v1183
    %v3504 = vunpack.c.l.b16 %v1184
    %v3505 = vunpack.c.l.b16 %v1185
    %v3506 = vunpack.c.h.b16 %v1185
    %v3507 = vunpack.c.l.b16 %v1186
    %v3508 = vunpack.c.h.b16 %v1186
    %v3509 = vunpack.c.l.b16 %v1187
    %v3510 = vunpack.c.h.b16 %v1187
    %v3511 = vunpack.c.l.b16 %v1188
    %v3512 = vunpack.c.h.b16 %v1188
    %v3513 = vunpack.c.l.b16 %v1189
    %v3514 = vunpack.c.h.b16 %v1189
    %v3515 = vunpack.c.l.b16 %v1190
    %v3516 = vunpack.c.h.b16 %v1190
    %v3517 = vunpack.c.l.b16 %v1191
    %v3518 = vunpack.c.h.b16 %v1191
    %v3519 = vunpack.c.l.b16 %v1192
    %v3520 = vunpack.c.h.b16 %v1192
    %v3521 = vunpack.c.l.b16 %v1193
    %v3522 = vunpack.c.l.b16 %v1194
    %v3523 = vunpack.c.h.b16 %v1194
    %v3524 = vunpack.c.l.b16 %v1195
    %v3525 = vunpack.c.h.b16 %v1195
    %v3526 = vunpack.c.l.b16 %v1196
    %v3527 = vunpack.c.h.b16 %v1196
    %v3528 = vunpack.c.l.b16 %v1197
    %v3529 = vunpack.c.h.b16 %v1197
    %v3530 = vunpack.c.l.b16 %v1198
    %v3531 = vunpack.c.h.b16 %v1198
    %v3532 = vunpack.c.l.b16 %v1199
    %v3533 = vunpack.c.h.b16 %v1199
    %v3534 = vunpack.c.l.b16 %v1200
    %v3535 = vunpack.c.h.b16 %v1200
    %v3536 = vunpack.c.l.b16 %v1201
    %v3537 = vunpack.c.h.b16 %v1201
    %v3538 = vunpack.c.l.b16 %v1202
    %v3539 = vunpack.c.l.b16 %v1203
    %v3540 = vunpack.c.h.b16 %v1203
    %v3541 = vunpack.c.l.b16 %v1204
    %v3542 = vunpack.c.h.b16 %v1204
    %v3543 = vunpack.c.l.b16 %v1205
    %v3544 = vunpack.c.h.b16 %v1205
    %v3545 = vunpack.c.l.b16 %v1206
    %v3546 = vunpack.c.h.b16 %v1206
    %v3547 = vunpack.c.l.b16 %v1207
    %v3548 = vunpack.c.h.b16 %v1207
    %v3549 = vunpack.c.l.b16 %v1208
    %v3550 = vunpack.c.h.b16 %v1208
    %v3551 = vunpack.c.l.b16 %v1209
    %v3552 = vunpack.c.h.b16 %v1209
    %v3553 = vunpack.c.l.b16 %v1210
    %v3554 = vunpack.c.h.b16 %v1210
    %v3555 = vunpack.c.l.b16 %v1211
    %v3556 = vunpack.c.l.b16 %v1212
    %v3557 = vunpack.c.h.b16 %v1212
    %v3558 = vunpack.c.l.b16 %v1213
    %v3559 = vunpack.c.h.b16 %v1213
    %v3560 = vunpack.c.l.b16 %v1214
    %v3561 = vunpack.c.h.b16 %v1214
    %v3562 = vunpack.c.l.b16 %v1215
    %v3563 = vunpack.c.h.b16 %v1215
    %v3564 = vunpack.c.l.b16 %v1216
    %v3565 = vunpack.c.h.b16 %v1216
    %v3566 = vunpack.c.l.b16 %v1217
    %v3567 = vunpack.c.h.b16 %v1217
    %v3568 = vunpack.c.l.b16 %v1218
    %v3569 = vunpack.c.h.b16 %v1218
    %v3570 = vunpack.c.l.b16 %v1219
    %v3571 = vunpack.c.h.b16 %v1219
    %v3572 = vunpack.c.l.b16 %v1220
    %v3573 = vunpack.c.l.b16 %v1221
    %v3574 = vunpack.c.h.b16 %v1221
    %v3575 = vunpack.c.l.b16 %v1222
    %v3576 = vunpack.c.h.b16 %v1222
    %v3577 = vunpack.c.l.b16 %v1223
    %v3578 = vunpack.c.h.b16 %v1223
    %v3579 = vunpack.c.l.b16 %v1224
    %v3580 = vunpack.c.h.b16 %v1224
    %v3581 = vunpack.c.l.b16 %v1225
    %v3582 = vunpack.c.h.b16 %v1225
    %v3583 = vunpack.c.l.b16 %v1226
    %v3584 = vunpack.c.h.b16 %v1226
    %v3585 = vunpack.c.l.b16 %v1227
    %v3586 = vunpack.c.h.b16 %v1227
    %v3587 = vunpack.c.l.b16 %v1228
    %v3588 = vunpack.c.h.b16 %v1228
    %v3589 = vunpack.c.l.b16 %v1229
    %v3590 = vunpack.c.l.b16 %v1230
    %v3591 = vunpack.c.h.b16 %v1230
    %v3592 = vunpack.c.l.b16 %v1231
    %v3593 = vunpack.c.h.b16 %v1231
    %v3594 = vunpack.c.l.b16 %v1232
    %v3595 = vunpack.c.h.b16 %v1232
    %v3596 = vunpack.c.l.b16 %v1233
    %v3597 = vunpack.c.h.b16 %v1233
    %v3598 = vunpack.c.l.b16 %v1234
    %v3599 = vunpack.c.h.b16 %v1234
    %v3600 = vunpack.c.l.b16 %v1235
    %v3601 = vunpack.c.h.b16 %v1235
    %v3602 = vunpack.c.l.b16 %v1236
    %v3603 = vunpack.c.h.b16 %v1236
    %v3604 = vunpack.c.l.b16 %v1237
    %v3605 = vunpack.c.h.b16 %v1237
    %v3606 = vunpack.c.l.b16 %v1238
    %v3607 = vunpack.c.l.b16 %v1239
    %v3608 = vunpack.c.h.b16 %v1239
    %v3609 = vunpack.c.l.b16 %v1240
    %v3610 = vunpack.c.h.b16 %v1240
    %v3611 = vunpack.c.l.b16 %v1241
    %v3612 = vunpack.c.h.b16 %v1241
    %v3613 = vunpack.c.l.b16 %v1242
    %v3614 = vunpack.c.h.b16 %v1242
    %v3615 = vunpack.c.l.b16 %v1243
    %v3616 = vunpack.c.h.b16 %v1243
    %v3617 = vunpack.c.l.b16 %v1244
    %v3618 = vunpack.c.h.b16 %v1244
    %v3619 = vunpack.c.l.b16 %v1245
    %v3620 = vunpack.c.h.b16 %v1245
    %v3621 = vunpack.c.l.b16 %v1246
    %v3622 = vunpack.c.h.b16 %v1246
    %v3623 = vunpack.c.l.b16 %v1247
    %v3624 = vunpack.c.l.b16 %v1248
    %v3625 = vunpack.c.h.b16 %v1248
    %v3626 = vunpack.c.l.b16 %v1249
    %v3627 = vunpack.c.h.b16 %v1249
    %v3628 = vunpack.c.l.b16 %v1250
    %v3629 = vunpack.c.h.b16 %v1250
    %v3630 = vunpack.c.l.b16 %v1251
    %v3631 = vunpack.c.h.b16 %v1251
    %v3632 = vunpack.c.l.b16 %v1252
    %v3633 = vunpack.c.h.b16 %v1252
    %v3634 = vunpack.c.l.b16 %v1253
    %v3635 = vunpack.c.h.b16 %v1253
    %v3636 = vunpack.c.l.b16 %v1254
    %v3637 = vunpack.c.h.b16 %v1254
    %v3638 = vunpack.c.l.b16 %v1255
    %v3639 = vunpack.c.h.b16 %v1255
    %v3640 = vunpack.c.l.b16 %v1256
    %v3641 = vunpack.c.l.b16 %v1257
    %v3642 = vunpack.c.h.b16 %v1257
    %v3643 = vunpack.c.l.b16 %v1258
    %v3644 = vunpack.c.h.b16 %v1258
    %v3645 = vunpack.c.l.b16 %v1259
    %v3646 = vunpack.c.h.b16 %v1259
    %v3647 = vunpack.c.l.b16 %v1260
    %v3648 = vunpack.c.h.b16 %v1260
    %v3649 = vunpack.c.l.b16 %v1261
    %v3650 = vunpack.c.h.b16 %v1261
    %v3651 = vunpack.c.l.b16 %v1262
    %v3652 = vunpack.c.h.b16 %v1262
    %v3653 = vunpack.c.l.b16 %v1263
    %v3654 = vunpack.c.h.b16 %v1263
    %v3655 = vunpack.c.l.b16 %v1264
    %v3656 = vunpack.c.h.b16 %v1264
    %v3657 = vunpack.c.l.b16 %v1265
    %v3658 = vunpack.c.l.b16 %v1266
    %v3659 = vunpack.c.h.b16 %v1266
    %v3660 = vunpack.c.l.b16 %v1267
    %v3661 = vunpack.c.h.b16 %v1267
    %v3662 = vunpack.c.l.b16 %v1268
    %v3663 = vunpack.c.h.b16 %v1268
    %v3664 = vunpack.c.l.b16 %v1269
    %v3665 = vunpack.c.h.b16 %v1269
    %v3666 = vunpack.c.l.b16 %v1270
    %v3667 = vunpack.c.h.b16 %v1270
    %v3668 = vunpack.c.l.b16 %v1271
    %v3669 = vunpack.c.h.b16 %v1271
    %v3670 = vunpack.c.l.b16 %v1272
    %v3671 = vunpack.c.h.b16 %v1272
    %v3672 = vunpack.c.l.b16 %v1273
    %v3673 = vunpack.c.h.b16 %v1273
    %v3674 = vunpack.c.l.b16 %v1274
    %v3675 = vunpack.c.l.b16 %v1275
    %v3676 = vunpack.c.h.b16 %v1275
    %v3677 = vunpack.c.l.b16 %v1276
    %v3678 = vunpack.c.h.b16 %v1276
    %v3679 = vunpack.c.l.b16 %v1277
    %v3680 = vunpack.c.h.b16 %v1277
    %v3681 = vunpack.c.l.b16 %v1278
    %v3682 = vunpack.c.h.b16 %v1278
    %v3683 = vunpack.c.l.b16 %v1279
    %v3684 = vunpack.c.h.b16 %v1279
    %v3685 = vunpack.c.l.b16 %v1280
    %v3686 = vunpack.c.h.b16 %v1280
    %v3687 = vunpack.c.l.b16 %v1281
    %v3688 = vunpack.c.h.b16 %v1281
    %v3689 = vunpack.c.l.b16 %v1282
    %v3690 = vunpack.c.h.b16 %v1282
    %v3691 = vunpack.c.l.b16 %v1283
    %v3692 = vunpack.c.l.b16 %v1284
    %v3693 = vunpack.c.h.b16 %v1284
    %v3694 = vunpack.c.l.b16 %v1285
    %v3695 = vunpack.c.h.b16 %v1285
    %v3696 = vunpack.c.l.b16 %v1286
    %v3697 = vunpack.c.h.b16 %v1286
    %v3698 = vunpack.c.l.b16 %v1287
    %v3699 = vunpack.c.h.b16 %v1287
    %v3700 = vunpack.c.l.b16 %v1288
    %v3701 = vunpack.c.h.b16 %v1288
    %v3702 = vunpack.c.l.b16 %v1289
    %v3703 = vunpack.c.h.b16 %v1289
    %v3704 = vunpack.c.l.b16 %v1290
    %v3705 = vunpack.c.h.b16 %v1290
    %v3706 = vunpack.c.l.b16 %v1291
    %v3707 = vunpack.c.h.b16 %v1291
    %v3708 = vunpack.c.l.b16 %v1292
    %v3709 = vunpack.c.l.b16 %v1293
    %v3710 = vunpack.c.h.b16 %v1293
    %v3711 = vunpack.c.l.b16 %v1294
    %v3712 = vunpack.c.h.b16 %v1294
    %v3713 = vunpack.c.l.b16 %v1295
    %v3714 = vunpack.c.h.b16 %v1295
    %v3715 = vunpack.c.l.b16 %v1296
    %v3716 = vunpack.c.h.b16 %v1296
    %v3717 = vunpack.c.l.b16 %v1297
    %v3718 = vunpack.c.h.b16 %v1297
    %v3719 = vunpack.c.l.b16 %v1298
    %v3720 = vunpack.c.h.b16 %v1298
    %v3721 = vunpack.c.l.b16 %v1299
    %v3722 = vunpack.c.h.b16 %v1299
    %v3723 = vunpack.c.l.b16 %v1300
    %v3724 = vunpack.c.h.b16 %v1300
    %v3725 = vunpack.c.l.b16 %v1301
    %v3726 = vunpack.c.l.b16 %v1302
    %v3727 = vunpack.c.h.b16 %v1302
    %v3728 = vunpack.c.l.b16 %v1303
    %v3729 = vunpack.c.h.b16 %v1303
    %v3730 = vunpack.c.l.b16 %v1304
    %v3731 = vunpack.c.h.b16 %v1304
    %v3732 = vunpack.c.l.b16 %v1305
    %v3733 = vunpack.c.h.b16 %v1305
    %v3734 = vunpack.c.l.b16 %v1306
    %v3735 = vunpack.c.h.b16 %v1306
    %v3736 = vunpack.c.l.b16 %v1307
    %v3737 = vunpack.c.h.b16 %v1307
    %v3738 = vunpack.c.l.b16 %v1308
    %v3739 = vunpack.c.h.b16 %v1308
    %v3740 = vunpack.c.l.b16 %v1309
    %v3741 = vunpack.c.h.b16 %v1309
    %v3742 = vunpack.c.l.b16 %v1310
    %v3743 = vunpack.c.l.b16 %v1311
    %v3744 = vunpack.c.h.b16 %v1311
    %v3745 = vunpack.c.l.b16 %v1312
    %v3746 = vunpack.c.h.b16 %v1312
    %v3747 = vunpack.c.l.b16 %v1313
    %v3748 = vunpack.c.h.b16 %v1313
    %v3749 = vunpack.c.l.b16 %v1314
    %v3750 = vunpack.c.h.b16 %v1314
    %v3751 = vunpack.c.l.b16 %v1315
    %v3752 = vunpack.c.h.b16 %v1315
    %v3753 = vunpack.c.l.b16 %v1316
    %v3754 = vunpack.c.h.b16 %v1316
    %v3755 = vunpack.c.l.b16 %v1317
    %v3756 = vunpack.c.h.b16 %v1317
    %v3757 = vunpack.c.l.b16 %v1318
    %v3758 = vunpack.c.h.b16 %v1318
    %v3759 = vunpack.c.l.b16 %v1319
    %v3760 = vunpack.c.l.b16 %v1320
    %v3761 = vunpack.c.h.b16 %v1320
    %v3762 = vunpack.c.l.b16 %v1321
    %v3763 = vunpack.c.h.b16 %v1321
    %v3764 = vunpack.c.l.b16 %v1322
    %v3765 = vunpack.c.h.b16 %v1322
    %v3766 = vunpack.c.l.b16 %v1323
    %v3767 = vunpack.c.h.b16 %v1323
    %v3768 = vunpack.c.l.b16 %v1324
    %v3769 = vunpack.c.h.b16 %v1324
    %v3770 = vunpack.c.l.b16 %v1325
    %v3771 = vunpack.c.h.b16 %v1325
    %v3772 = vunpack.c.l.b16 %v1326
    %v3773 = vunpack.c.h.b16 %v1326
    %v3774 = vunpack.c.l.b16 %v1327
    %v3775 = vunpack.c.h.b16 %v1327
    %v3776 = vunpack.c.l.b16 %v1328
    %v3777 = vunpack.c.l.b16 %v1329
    %v3778 = vunpack.c.h.b16 %v1329
    %v3779 = vunpack.c.l.b16 %v1330
    %v3780 = vunpack.c.h.b16 %v1330
    %v3781 = vunpack.c.l.b16 %v1331
    %v3782 = vunpack.c.h.b16 %v1331
    %v3783 = vunpack.c.l.b16 %v1332
    %v3784 = vunpack.c.h.b16 %v1332
    %v3785 = vunpack.c.l.b16 %v1333
    %v3786 = vunpack.c.h.b16 %v1333
    %v3787 = vunpack.c.l.b16 %v1334
    %v3788 = vunpack.c.h.b16 %v1334
    %v3789 = vunpack.c.l.b16 %v1335
    %v3790 = vunpack.c.h.b16 %v1335
    %v3791 = vunpack.c.l.b16 %v1336
    %v3792 = vunpack.c.h.b16 %v1336
    %v3793 = vunpack.c.l.b16 %v1337
    %v3794 = vunpack.c.l.b16 %v1338
    %v3795 = vunpack.c.h.b16 %v1338
    %v3796 = vunpack.c.l.b16 %v1339
    %v3797 = vunpack.c.h.b16 %v1339
    %v3798 = vunpack.c.l.b16 %v1340
    %v3799 = vunpack.c.h.b16 %v1340
    %v3800 = vunpack.c.l.b16 %v1341
    %v3801 = vunpack.c.h.b16 %v1341
    %v3802 = vunpack.c.l.b16 %v1342
    %v3803 = vunpack.c.h.b16 %v1342
    %v3804 = vunpack.c.l.b16 %v1343
    %v3805 = vunpack.c.h.b16 %v1343
    %v3806 = vunpack.c.l.b16 %v1344
    %v3807 = vunpack.c.h.b16 %v1344
    %v3808 = vunpack.c.l.b16 %v1345
    %v3809 = vunpack.c.h.b16 %v1345
    %v3810 = vunpack.c.l.b16 %v1346
    %v3811 = vunpack.c.l.b16 %v1347
    %v3812 = vunpack.c.h.b16 %v1347
    %v3813 = vunpack.c.l.b16 %v1348
    %v3814 = vunpack.c.h.b16 %v1348
    %v3815 = vunpack.c.l.b16 %v1349
    %v3816 = vunpack.c.h.b16 %v1349
    %v3817 = vunpack.c.l.b16 %v1350
    %v3818 = vunpack.c.h.b16 %v1350
    %v3819 = vunpack.c.l.b16 %v1351
    %v3820 = vunpack.c.h.b16 %v1351
    %v3821 = vunpack.c.l.b16 %v1352
    %v3822 = vunpack.c.h.b16 %v1352
    %v3823 = vunpack.c.l.b16 %v1353
    %v3824 = vunpack.c.h.b16 %v1353
    %v3825 = vunpack.c.l.b16 %v1354
    %v3826 = vunpack.c.h.b16 %v1354
    %v3827 = vunpack.c.l.b16 %v1355
    %v3828 = vunpack.c.l.b16 %v1356
    %v3829 = vunpack.c.h.b16 %v1356
    %v3830 = vunpack.c.l.b16 %v1357
    %v3831 = vunpack.c.h.b16 %v1357
    %v3832 = vunpack.c.l.b16 %v1358
    %v3833 = vunpack.c.h.b16 %v1358
    %v3834 = vunpack.c.l.b16 %v1359
    %v3835 = vunpack.c.h.b16 %v1359
    %v3836 = vunpack.c.l.b16 %v1360
    %v3837 = vunpack.c.h.b16 %v1360
    %v3838 = vunpack.c.l.b16 %v1361
    %v3839 = vunpack.c.h.b16 %v1361
    %v3840 = vunpack.c.l.b16 %v1362
    %v3841 = vunpack.c.h.b16 %v1362
    %v3842 = vunpack.c.l.b16 %v1363
    %v3843 = vunpack.c.h.b16 %v1363
    %v3844 = vunpack.c.l.b16 %v1364
    %v3845 = vunpack.c.l.b16 %v1365
    %v3846 = vunpack.c.h.b16 %v1365
    %v3847 = vunpack.c.l.b16 %v1366
    %v3848 = vunpack.c.h.b16 %v1366
    %v3849 = vunpack.c.l.b16 %v1367
    %v3850 = vunpack.c.h.b16 %v1367
    %v3851 = vunpack.c.l.b16 %v1368
    %v3852 = vunpack.c.h.b16 %v1368
    %v3853 = vunpack.c.l.b16 %v1369
    %v3854 = vunpack.c.h.b16 %v1369
    %v3855 = vunpack.c.l.b16 %v1370
    %v3856 = vunpack.c.h.b16 %v1370
    %v3857 = vunpack.c.l.b16 %v1371
    %v3858 = vunpack.c.h.b16 %v1371
    %v3859 = vunpack.c.l.b16 %v1372
    %v3860 = vunpack.c.h.b16 %v1372
    %v3861 = vunpack.c.l.b16 %v1373
    %v3862 = vunpack.c.l.b16 %v1374
    %v3863 = vunpack.c.h.b16 %v1374
    %v3864 = vunpack.c.l.b16 %v1375
    %v3865 = vunpack.c.h.b16 %v1375
    %v3866 = vunpack.c.l.b16 %v1376
    %v3867 = vunpack.c.h.b16 %v1376
    %v3868 = vunpack.c.l.b16 %v1377
    %v3869 = vunpack.c.h.b16 %v1377
    %v3870 = vunpack.c.l.b16 %v1378
    %v3871 = vunpack.c.h.b16 %v1378
    %v3872 = vunpack.c.l.b16 %v1379
    %v3873 = vunpack.c.h.b16 %v1379
    %v3874 = vunpack.c.l.b16 %v1380
    %v3875 = vunpack.c.h.b16 %v1380
    %v3876 = vunpack.c.l.b16 %v1381
    %v3877 = vunpack.c.h.b16 %v1381
    %v3878 = vunpack.c.l.b16 %v1382
    %v3879 = vunpack.c.l.b16 %v1383
    %v3880 = vunpack.c.h.b16 %v1383
    %v3881 = vunpack.c.l.b16 %v1384
    %v3882 = vunpack.c.h.b16 %v1384
    %v3883 = vunpack.c.l.b16 %v1385
    %v3884 = vunpack.c.h.b16 %v1385
    %v3885 = vunpack.c.l.b16 %v1386
    %v3886 = vunpack.c.h.b16 %v1386
    %v3887 = vunpack.c.l.b16 %v1387
    %v3888 = vunpack.c.h.b16 %v1387
    %v3889 = vunpack.c.l.b16 %v1388
    %v3890 = vunpack.c.h.b16 %v1388
    %v3891 = vunpack.c.l.b16 %v1389
    %v3892 = vunpack.c.h.b16 %v1389
    %v3893 = vunpack.c.l.b16 %v1390
    %v3894 = vunpack.c.h.b16 %v1390
    %v3895 = vunpack.c.l.b16 %v1391
    %v3896 = vunpack.c.l.b16 %v1392
    %v3897 = vunpack.c.h.b16 %v1392
    %v3898 = vunpack.c.l.b16 %v1393
    %v3899 = vunpack.c.h.b16 %v1393
    %v3900 = vunpack.c.l.b16 %v1394
    %v3901 = vunpack.c.h.b16 %v1394
    %v3902 = vunpack.c.l.b16 %v1395
    %v3903 = vunpack.c.h.b16 %v1395
    %v3904 = vunpack.c.l.b16 %v1396
    %v3905 = vunpack.c.h.b16 %v1396
    %v3906 = vunpack.c.l.b16 %v1397
    %v3907 = vunpack.c.h.b16 %v1397
    %v3908 = vunpack.c.l.b16 %v1398
    %v3909 = vunpack.c.h.b16 %v1398
    %v3910 = vunpack.c.l.b16 %v1399
    %v3911 = vunpack.c.h.b16 %v1399
    %v3912 = vunpack.c.l.b16 %v1400
    %v3913 = vunpack.c.l.b16 %v1401
    %v3914 = vunpack.c.h.b16 %v1401
    %v3915 = vunpack.c.l.b16 %v1402
    %v3916 = vunpack.c.h.b16 %v1402
    %v3917 = vunpack.c.l.b16 %v1403
    %v3918 = vunpack.c.h.b16 %v1403
    %v3919 = vunpack.c.l.b16 %v1404
    %v3920 = vunpack.c.h.b16 %v1404
    %v3921 = vunpack.c.l.b16 %v1405
    %v3922 = vunpack.c.h.b16 %v1405
    %v3923 = vunpack.c.l.b16 %v1406
    %v3924 = vunpack.c.h.b16 %v1406
    %v3925 = vunpack.c.l.b16 %v1407
    %v3926 = vunpack.c.h.b16 %v1407
    %v3927 = vunpack.c.l.b16 %v1408
    %v3928 = vunpack.c.h.b16 %v1408
    %v3929 = vunpack.c.l.b16 %v1409
    %v3930 = vunpack.c.l.b16 %v1410
    %v3931 = vunpack.c.h.b16 %v1410
    %v3932 = vunpack.c.l.b16 %v1411
    %v3933 = vunpack.c.h.b16 %v1411
    %v3934 = vunpack.c.l.b16 %v1412
    %v3935 = vunpack.c.h.b16 %v1412
    %v3936 = vunpack.c.l.b16 %v1413
    %v3937 = vunpack.c.h.b16 %v1413
    %v3938 = vunpack.c.l.b16 %v1414
    %v3939 = vunpack.c.h.b16 %v1414
    %v3940 = vunpack.c.l.b16 %v1415
    %v3941 = vunpack.c.h.b16 %v1415
    %v3942 = vunpack.c.l.b16 %v1416
    %v3943 = vunpack.c.h.b16 %v1416
    %v3944 = vunpack.c.l.b16 %v1417
    %v3945 = vunpack.c.h.b16 %v1417
    %v3946 = vunpack.c.l.b16 %v1418
    %v3947 = vunpack.c.l.b16 %v1419
    %v3948 = vunpack.c.h.b16 %v1419
    %v3949 = vunpack.c.l.b16 %v1420
    %v3950 = vunpack.c.h.b16 %v1420
    %v3951 = vunpack.c.l.b16 %v1421
    %v3952 = vunpack.c.h.b16 %v1421
    %v3953 = vunpack.c.l.b16 %v1422
    %v3954 = vunpack.c.h.b16 %v1422
    %v3955 = vunpack.c.l.b16 %v1423
    %v3956 = vunpack.c.h.b16 %v1423
    %v3957 = vunpack.c.l.b16 %v1424
    %v3958 = vunpack.c.h.b16 %v1424
    %v3959 = vunpack.c.l.b16 %v1425
    %v3960 = vunpack.c.h.b16 %v1425
    %v3961 = vunpack.c.l.b16 %v1426
    %v3962 = vunpack.c.h.b16 %v1426
    %v3963 = vunpack.c.l.b16 %v1427
    %v3964 = vunpack.c.l.b16 %v1428
    %v3965 = vunpack.c.h.b16 %v1428
    %v3966 = vunpack.c.l.b16 %v1429
    %v3967 = vunpack.c.h.b16 %v1429
    %v3968 = vunpack.c.l.b16 %v1430
    %v3969 = vunpack.c.h.b16 %v1430
    %v3970 = vunpack.c.l.b16 %v1431
    %v3971 = vunpack.c.h.b16 %v1431
    %v3972 = vunpack.c.l.b16 %v1432
    %v3973 = vunpack.c.h.b16 %v1432
    %v3974 = vunpack.c.l.b16 %v1433
    %v3975 = vunpack.c.h.b16 %v1433
    %v3976 = vunpack.c.l.b16 %v1434
    %v3977 = vunpack.c.h.b16 %v1434
    %v3978 = vunpack.c.l.b16 %v1435
    %v3979 = vunpack.c.h.b16 %v1435
    %v3980 = vunpack.c.l.b16 %v1436
    %v3981 = vunpack.c.l.b16 %v1437
    %v3982 = vunpack.c.h.b16 %v1437
    %v3983 = vunpack.c.l.b16 %v1438
    %v3984 = vunpack.c.h.b16 %v1438
    %v3985 = vunpack.c.l.b16 %v1439
    %v3986 = vunpack.c.h.b16 %v1439
    %v3987 = vunpack.c.l.b16 %v1440
    %v3988 = vunpack.c.h.b16 %v1440
    %v3989 = vunpack.c.l.b16 %v1441
    %v3990 = vunpack.c.h.b16 %v1441
    %v3991 = vunpack.c.l.b16 %v1442
    %v3992 = vunpack.c.h.b16 %v1442
    %v3993 = vunpack.c.l.b16 %v1443
    %v3994 = vunpack.c.h.b16 %v1443
    %v3995 = vunpack.c.l.b16 %v1444
    %v3996 = vunpack.c.h.b16 %v1444
    %v3997 = vunpack.c.l.b16 %v1445
    %v3998 = vunpack.c.l.b16 %v1446
    %v3999 = vunpack.c.h.b16 %v1446
    %v4000 = vunpack.c.l.b16 %v1447
    %v4001 = vunpack.c.h.b16 %v1447
    %v4002 = vunpack.c.l.b16 %v1448
    %v4003 = vunpack.c.h.b16 %v1448
    %v4004 = vunpack.c.l.b16 %v1449
    %v4005 = vunpack.c.h.b16 %v1449
    %v4006 = vunpack.c.l.b16 %v1450
    %v4007 = vunpack.c.h.b16 %v1450
    %v4008 = vunpack.c.l.b16 %v1451
    %v4009 = vunpack.c.h.b16 %v1451
    %v4010 = vunpack.c.l.b16 %v1452
    %v4011 = vunpack.c.h.b16 %v1452
    %v4012 = vunpack.c.l.b16 %v1453
    %v4013 = vunpack.c.h.b16 %v1453
    %v4014 = vunpack.c.l.b16 %v1454
    %v4015 = vunpack.c.l.b16 %v1455
    %v4016 = vunpack.c.h.b16 %v1455
    %v4017 = vunpack.c.l.b16 %v1456
    %v4018 = vunpack.c.h.b16 %v1456
    %v4019 = vunpack.c.l.b16 %v1457
    %v4020 = vunpack.c.h.b16 %v1457
    %v4021 = vunpack.c.l.b16 %v1458
    %v4022 = vunpack.c.h.b16 %v1458
    %v4023 = vunpack.c.l.b16 %v1459
    %v4024 = vunpack.c.h.b16 %v1459
    %v4025 = vunpack.c.l.b16 %v1460
    %v4026 = vunpack.c.h.b16 %v1460
    %v4027 = vunpack.c.l.b16 %v1461
    %v4028 = vunpack.c.h.b16 %v1461
    %v4029 = vunpack.c.l.b16 %v1462
    %v4030 = vunpack.c.h.b16 %v1462
    %v4031 = vunpack.c.l.b16 %v1463
    %v4032 = vunpack.c.l.b16 %v1464
    %v4033 = vunpack.c.h.b16 %v1464
    %v4034 = vunpack.c.l.b16 %v1465
    %v4035 = vunpack.c.h.b16 %v1465
    %v4036 = vunpack.c.l.b16 %v1466
    %v4037 = vunpack.c.h.b16 %v1466
    %v4038 = vunpack.c.l.b16 %v1467
    %v4039 = vunpack.c.h.b16 %v1467
    %v4040 = vunpack.c.l.b16 %v1468
    %v4041 = vunpack.c.h.b16 %v1468
    %v4042 = vunpack.c.l.b16 %v1469
    %v4043 = vunpack.c.h.b16 %v1469
    %v4044 = vunpack.c.l.b16 %v1470
    %v4045 = vunpack.c.h.b16 %v1470
    %v4046 = vunpack.c.l.b16 %v1471
    %v4047 = vunpack.c.h.b16 %v1471
    %v4048 = vunpack.c.l.b16 %v1472
    %v4049 = vunpack.c.l.b16 %v1473
    %v4050 = vunpack.c.h.b16 %v1473
    %v4051 = vunpack.c.l.b16 %v1474
    %v4052 = vunpack.c.h.b16 %v1474
    %v4053 = vunpack.c.l.b16 %v1475
    %v4054 = vunpack.c.h.b16 %v1475
    %v4055 = vunpack.c.l.b16 %v1476
    %v4056 = vunpack.c.h.b16 %v1476
    %v4057 = vunpack.c.l.b16 %v1477
    %v4058 = vunpack.c.h.b16 %v1477
    %v4059 = vunpack.c.l.b16 %v1478
    %v4060 = vunpack.c.h.b16 %v1478
    %v4061 = vunpack.c.l.b16 %v1479
    %v4062 = vunpack.c.h.b16 %v1479
    %v4063 = vunpack.c.l.b16 %v1480
    %v4064 = vunpack.c.h.b16 %v1480
    %v4065 = vunpack.c.l.b16 %v1481
    %v4066 = vunpack.c.l.b16 %v1482
    %v4067 = vunpack.c.h.b16 %v1482
    %v4068 = vunpack.c.l.b16 %v1483
    %v4069 = vunpack.c.h.b16 %v1483
    %v4070 = vunpack.c.l.b16 %v1484
    %v4071 = vunpack.c.h.b16 %v1484
    %v4072 = vunpack.c.l.b16 %v1485
    %v4073 = vunpack.c.h.b16 %v1485
    %v4074 = vunpack.c.l.b16 %v1486
    %v4075 = vunpack.c.h.b16 %v1486
    %v4076 = vunpack.c.l.b16 %v1487
    %v4077 = vunpack.c.h.b16 %v1487
    %v4078 = vunpack.c.l.b16 %v1488
    %v4079 = vunpack.c.h.b16 %v1488
    %v4080 = vunpack.c.l.b16 %v1489
    %v4081 = vunpack.c.h.b16 %v1489
    %v4082 = vunpack.c.l.b16 %v1490
    %v4083 = vunpack.c.l.b16 %v1491
    %v4084 = vunpack.c.h.b16 %v1491
    %v4085 = vunpack.c.l.b16 %v1492
    %v4086 = vunpack.c.h.b16 %v1492
    %v4087 = vunpack.c.l.b16 %v1493
    %v4088 = vunpack.c.h.b16 %v1493
    %v4089 = vunpack.c.l.b16 %v1494
    %v4090 = vunpack.c.h.b16 %v1494
    %v4091 = vunpack.c.l.b16 %v1495
    %v4092 = vunpack.c.h.b16 %v1495
    %v4093 = vunpack.c.l.b16 %v1496
    %v4094 = vunpack.c.h.b16 %v1496
    %v4095 = vunpack.c.l.b16 %v1497
    %v4096 = vunpack.c.h.b16 %v1497
    %v4097 = vunpack.c.l.b16 %v1498
    %v4098 = vunpack.c.h.b16 %v1498
    %v4099 = vunpack.c.l.b16 %v1499
    %v4100 = vunpack.c.l.b16 %v1500
    %v4101 = vunpack.c.h.b16 %v1500
    %v4102 = vunpack.c.l.b16 %v1501
    %v4103 = vunpack.c.h.b16 %v1501
    %v4104 = vunpack.c.l.b16 %v1502
    %v4105 = vunpack.c.h.b16 %v1502
    %v4106 = vunpack.c.l.b16 %v1503
    %v4107 = vunpack.c.h.b16 %v1503
    %v4108 = vunpack.c.l.b16 %v1504
    %v4109 = vunpack.c.h.b16 %v1504
    %v4110 = vunpack.c.l.b16 %v1505
    %v4111 = vunpack.c.h.b16 %v1505
    %v4112 = vunpack.c.l.b16 %v1506
    %v4113 = vunpack.c.h.b16 %v1506
    %v4114 = vunpack.c.l.b16 %v1507
    %v4115 = vunpack.c.h.b16 %v1507
    %v4116 = vunpack.c.l.b16 %v1508
    %v4117 = vunpack.c.l.b16 %v1509
    %v4118 = vunpack.c.h.b16 %v1509
    %v4119 = vunpack.c.l.b16 %v1510
    %v4120 = vunpack.c.h.b16 %v1510
    %v4121 = vunpack.c.l.b16 %v1511
    %v4122 = vunpack.c.h.b16 %v1511
    %v4123 = vunpack.c.l.b16 %v1512
    %v4124 = vunpack.c.h.b16 %v1512
    %v4125 = vunpack.c.l.b16 %v1513
    %v4126 = vunpack.c.h.b16 %v1513
    %v4127 = vunpack.c.l.b16 %v1514
    %v4128 = vunpack.c.h.b16 %v1514
    %v4129 = vunpack.c.l.b16 %v1515
    %v4130 = vunpack.c.h.b16 %v1515
    %v4131 = vunpack.c.l.b16 %v1516
    %v4132 = vunpack.c.h.b16 %v1516
    %v4133 = vunpack.c.l.b16 %v1517
    %v4134 = vunpack.c.l.b16 %v1518
    %v4135 = vunpack.c.h.b16 %v1518
    %v4136 = vunpack.c.l.b16 %v1519
    %v4137 = vunpack.c.h.b16 %v1519
    %v4138 = vunpack.c.l.b16 %v1520
    %v4139 = vunpack.c.h.b16 %v1520
    %v4140 = vunpack.c.l.b16 %v1521
    %v4141 = vunpack.c.h.b16 %v1521
    %v4142 = vunpack.c.l.b16 %v1522
    %v4143 = vunpack.c.h.b16 %v1522
    %v4144 = vunpack.c.l.b16 %v1523
    %v4145 = vunpack.c.h.b16 %v1523
    %v4146 = vunpack.c.l.b16 %v1524
    %v4147 = vunpack.c.h.b16 %v1524
    %v4148 = vunpack.c.l.b16 %v1525
    %v4149 = vunpack.c.h.b16 %v1525
    %v4150 = vunpack.c.l.b16 %v1526
    %v4151 = vunpack.c.l.b16 %v1527
    %v4152 = vunpack.c.h.b16 %v1527
    %v4153 = vunpack.c.l.b16 %v1528
    %v4154 = vunpack.c.h.b16 %v1528
    %v4155 = vunpack.c.l.b16 %v1529
    %v4156 = vunpack.c.h.b16 %v1529
    %v4157 = vunpack.c.l.b16 %v1530
    %v4158 = vunpack.c.h.b16 %v1530
    %v4159 = vunpack.c.l.b16 %v1531
    %v4160 = vunpack.c.h.b16 %v1531
    %v4161 = vunpack.c.l.b16 %v1532
    %v4162 = vunpack.c.h.b16 %v1532
    %v4163 = vunpack.c.l.b16 %v1533
    %v4164 = vunpack.c.h.b16 %v1533
    %v4165 = vunpack.c.l.b16 %v1534
    %v4166 = vunpack.c.h.b16 %v1534
    %v4167 = vunpack.c.l.b16 %v1535
    %v4168 = vunpack.c.l.b16 %v1536
    %v4169 = vunpack.c.h.b16 %v1536
    %v4170 = vunpack.c.l.b16 %v1537
    %v4171 = vunpack.c.h.b16 %v1537
    %v4172 = vunpack.c.l.b16 %v1538
    %v4173 = vunpack.c.h.b16 %v1538
    %v4174 = vunpack.c.l.b16 %v1539
    %v4175 = vunpack.c.h.b16 %v1539
    %v4176 = vunpack.c.l.b16 %v1540
    %v4177 = vunpack.c.h.b16 %v1540
    %v4178 = vunpack.c.l.b16 %v1541
    %v4179 = vunpack.c.h.b16 %v1541
    %v4180 = vunpack.c.l.b16 %v1542
    %v4181 = vunpack.c.h.b16 %v1542
    %v4182 = vunpack.c.l.b16 %v1543
    %v4183 = vunpack.c.h.b16 %v1543
    %v4184 = vunpack.c.l.b16 %v1544
    %v4185 = vunpack.c.l.b16 %v1545
    %v4186 = vunpack.c.h.b16 %v1545
    %v4187 = vunpack.c.l.b16 %v1546
    %v4188 = vunpack.c.h.b16 %v1546
    %v4189 = vunpack.c.l.b16 %v1547
    %v4190 = vunpack.c.h.b16 %v1547
    %v4191 = vunpack.c.l.b16 %v1548
    %v4192 = vunpack.c.h.b16 %v1548
    %v4193 = vunpack.c.l.b16 %v1549
    %v4194 = vunpack.c.h.b16 %v1549
    %v4195 = vunpack.c.l.b16 %v1550
    %v4196 = vunpack.c.h.b16 %v1550
    %v4197 = vunpack.c.l.b16 %v1551
    %v4198 = vunpack.c.h.b16 %v1551
    %v4199 = vunpack.c.l.b16 %v1552
    %v4200 = vunpack.c.h.b16 %v1552
    %v4201 = vunpack.c.l.b16 %v1553
    %v4202 = vunpack.c.l.b16 %v1554
    %v4203 = vunpack.c.h.b16 %v1554
    %v4204 = vunpack.c.l.b16 %v1555
    %v4205 = vunpack.c.h.b16 %v1555
    %v4206 = vunpack.c.l.b16 %v1556
    %v4207 = vunpack.c.h.b16 %v1556
    %v4208 = vunpack.c.l.b16 %v1557
    %v4209 = vunpack.c.h.b16 %v1557
    %v4210 = vunpack.c.l.b16 %v1558
    %v4211 = vunpack.c.h.b16 %v1558
    %v4212 = vunpack.c.l.b16 %v1559
    %v4213 = vunpack.c.h.b16 %v1559
    %v4214 = vunpack.c.l.b16 %v1560
    %v4215 = vunpack.c.h.b16 %v1560
    %v4216 = vunpack.c.l.b16 %v1561
    %v4217 = vunpack.c.h.b16 %v1561
    %v4218 = vunpack.c.l.b16 %v1562
    %v4219 = vunpack.c.l.b16 %v1563
    %v4220 = vunpack.c.h.b16 %v1563
    %v4221 = vunpack.c.l.b16 %v1564
    %v4222 = vunpack.c.h.b16 %v1564
    %v4223 = vunpack.c.l.b16 %v1565
    %v4224 = vunpack.c.h.b16 %v1565
    %v4225 = vunpack.c.l.b16 %v1566
    %v4226 = vunpack.c.h.b16 %v1566
    %v4227 = vunpack.c.l.b16 %v1567
    %v4228 = vunpack.c.h.b16 %v1567
    %v4229 = vunpack.c.l.b16 %v1568
    %v4230 = vunpack.c.h.b16 %v1568
    %v4231 = vunpack.c.l.b16 %v1569
    %v4232 = vunpack.c.h.b16 %v1569
    %v4233 = vunpack.c.l.b16 %v1570
    %v4234 = vunpack.c.h.b16 %v1570
    %v4235 = vunpack.c.l.b16 %v1571
    %v4236 = vunpack.c.l.b16 %v1572
    %v4237 = vunpack.c.h.b16 %v1572
    %v4238 = vunpack.c.l.b16 %v1573
    %v4239 = vunpack.c.h.b16 %v1573
    %v4240 = vunpack.c.l.b16 %v1574
    %v4241 = vunpack.c.h.b16 %v1574
    %v4242 = vunpack.c.l.b16 %v1575
    %v4243 = vunpack.c.h.b16 %v1575
    %v4244 = vunpack.c.l.b16 %v1576
    %v4245 = vunpack.c.h.b16 %v1576
    %v4246 = vunpack.c.l.b16 %v1577
    %v4247 = vunpack.c.h.b16 %v1577
    %v4248 = vunpack.c.l.b16 %v1578
    %v4249 = vunpack.c.h.b16 %v1578
    %v4250 = vunpack.c.l.b16 %v1579
    %v4251 = vunpack.c.h.b16 %v1579
    %v4252 = vunpack.c.l.b16 %v1580
    %v4253 = vunpack.c.l.b16 %v1581
    %v4254 = vunpack.c.h.b16 %v1581
    %v4255 = vunpack.c.l.b16 %v1582
    %v4256 = vunpack.c.h.b16 %v1582
    %v4257 = vunpack.c.l.b16 %v1583
    %v4258 = vunpack.c.h.b16 %v1583
    %v4259 = vunpack.c.l.b16 %v1584
    %v4260 = vunpack.c.h.b16 %v1584
    %v4261 = vunpack.c.l.b16 %v1585
    %v4262 = vunpack.c.h.b16 %v1585
    %v4263 = vunpack.c.l.b16 %v1586
    %v4264 = vunpack.c.h.b16 %v1586
    %v4265 = vunpack.c.l.b16 %v1587
    %v4266 = vunpack.c.h.b16 %v1587
    %v4267 = vunpack.c.l.b16 %v1588
    %v4268 = vunpack.c.h.b16 %v1588
    %v4269 = vunpack.c.l.b16 %v1589
    %v4270 = vunpack.c.l.b16 %v1590
    %v4271 = vunpack.c.h.b16 %v1590
    %v4272 = vunpack.c.l.b16 %v1591
    %v4273 = vunpack.c.h.b16 %v1591
    %v4274 = vunpack.c.l.b16 %v1592
    %v4275 = vunpack.c.h.b16 %v1592
    %v4276 = vunpack.c.l.b16 %v1593
    %v4277 = vunpack.c.h.b16 %v1593
    %v4278 = vunpack.c.l.b16 %v1594
    %v4279 = vunpack.c.h.b16 %v1594
    %v4280 = vunpack.c.l.b16 %v1595
    %v4281 = vunpack.c.h.b16 %v1595
    %v4282 = vunpack.c.l.b16 %v1596
    %v4283 = vunpack.c.h.b16 %v1596
    %v4284 = vunpack.c.l.b16 %v1597
    %v4285 = vunpack.c.h.b16 %v1597
    %v4286 = vunpack.c.l.b16 %v1598
    %v4287 = vunpack.c.l.b16 %v1599
    %v4288 = vunpack.c.h.b16 %v1599
    %v4289 = vunpack.c.l.b16 %v1600
    %v4290 = vunpack.c.h.b16 %v1600
    %v4291 = vunpack.c.l.b16 %v1601
    %v4292 = vunpack.c.h.b16 %v1601
    %v4293 = vunpack.c.l.b16 %v1602
    %v4294 = vunpack.c.h.b16 %v1602
    %v4295 = vunpack.c.l.b16 %v1603
    %v4296 = vunpack.c.h.b16 %v1603
    %v4297 = vunpack.c.l.b16 %v1604
    %v4298 = vunpack.c.h.b16 %v1604
    %v4299 = vunpack.c.l.b16 %v1605
    %v4300 = vunpack.c.h.b16 %v1605
    %v4301 = vunpack.c.l.b16 %v1606
    %v4302 = vunpack.c.h.b16 %v1606
    %v4303 = vunpack.c.l.b16 %v1607
    %v4304 = vunpack.c.l.b16 %v1608
    %v4305 = vunpack.c.h.b16 %v1608
    %v4306 = vunpack.c.l.b16 %v1609
    %v4307 = vunpack.c.h.b16 %v1609
    %v4308 = vunpack.c.l.b16 %v1610
    %v4309 = vunpack.c.h.b16 %v1610
    %v4310 = vunpack.c.l.b16 %v1611
    %v4311 = vunpack.c.h.b16 %v1611
    %v4312 = vunpack.c.l.b16 %v1612
    %v4313 = vunpack.c.h.b16 %v1612
    %v4314 = vunpack.c.l.b16 %v1613
    %v4315 = vunpack.c.h.b16 %v1613
    %v4316 = vunpack.c.l.b16 %v1614
    %v4317 = vunpack.c.h.b16 %v1614
    %v4318 = vunpack.c.l.b16 %v1615
    %v4319 = vunpack.c.h.b16 %v1615
    %v4320 = vunpack.c.l.b16 %v1616
    %v4321 = vunpack.c.l.b16 %v1617
    %v4322 = vunpack.c.h.b16 %v1617
    %v4323 = vunpack.c.l.b16 %v1618
    %v4324 = vunpack.c.h.b16 %v1618
    %v4325 = vunpack.c.l.b16 %v1619
    %v4326 = vunpack.c.h.b16 %v1619
    %v4327 = vunpack.c.l.b16 %v1620
    %v4328 = vunpack.c.h.b16 %v1620
    %v4329 = vunpack.c.l.b16 %v1621
    %v4330 = vunpack.c.h.b16 %v1621
    %v4331 = vunpack.c.l.b16 %v1622
    %v4332 = vunpack.c.h.b16 %v1622
    %v4333 = vunpack.c.l.b16 %v1623
    %v4334 = vunpack.c.h.b16 %v1623
    %v4335 = vunpack.c.l.b16 %v1624
    %v4336 = vunpack.c.h.b16 %v1624
    %v4337 = vunpack.c.l.b16 %v1625
    %v4338 = vunpack.c.l.b16 %v1626
    %v4339 = vunpack.c.h.b16 %v1626
    %v4340 = vunpack.c.l.b16 %v1627
    %v4341 = vunpack.c.h.b16 %v1627
    %v4342 = vunpack.c.l.b16 %v1628
    %v4343 = vunpack.c.h.b16 %v1628
    %v4344 = vunpack.c.l.b16 %v1629
    %v4345 = vunpack.c.h.b16 %v1629
    %v4346 = vunpack.c.l.b16 %v1630
    %v4347 = vunpack.c.h.b16 %v1630
    %v4348 = vunpack.c.l.b16 %v1631
    %v4349 = vunpack.c.h.b16 %v1631
    %v4350 = vunpack.c.l.b16 %v1632
    %v4351 = vunpack.c.h.b16 %v1632
    %v4352 = vunpack.c.l.b16 %v1633
    %v4353 = vunpack.c.h.b16 %v1633
    %v4354 = vunpack.c.l.b16 %v1634
    %v4355 = vunpack.c.l.b16 %v1635
    %v4356 = vunpack.c.h.b16 %v1635
    %v4357 = vunpack.c.l.b16 %v1636
    %v4358 = vunpack.c.h.b16 %v1636
    %v4359 = vunpack.c.l.b16 %v1637
    %v4360 = vunpack.c.h.b16 %v1637
    %v4361 = vunpack.c.l.b16 %v1638
    %v4362 = vunpack.c.h.b16 %v1638
    %v4363 = vunpack.c.l.b16 %v1639
    %v4364 = vunpack.c.h.b16 %v1639
    %v4365 = vunpack.c.l.b16 %v1640
    %v4366 = vunpack.c.h.b16 %v1640
    %v4367 = vunpack.c.l.b16 %v1641
    %v4368 = vunpack.c.h.b16 %v1641
    %v4369 = vunpack.c.l.b16 %v1642
    %v4370 = vunpack.c.h.b16 %v1642
    %v4371 = vunpack.c.l.b16 %v1643
    %v4372 = vunpack.c.l.b16 %v1644
    %v4373 = vunpack.c.h.b16 %v1644
    %v4374 = vunpack.c.l.b16 %v1645
    %v4375 = vunpack.c.h.b16 %v1645
    %v4376 = vunpack.c.l.b16 %v1646
    %v4377 = vunpack.c.h.b16 %v1646
    %v4378 = vunpack.c.l.b16 %v1647
    %v4379 = vunpack.c.h.b16 %v1647
    %v4380 = vunpack.c.l.b16 %v1648
    %v4381 = vunpack.c.h.b16 %v1648
    %v4382 = vunpack.c.l.b16 %v1649
    %v4383 = vunpack.c.h.b16 %v1649
    %v4384 = vunpack.c.l.b16 %v1650
    %v4385 = vunpack.c.h.b16 %v1650
    %v4386 = vunpack.c.l.b16 %v1651
    %v4387 = vunpack.c.h.b16 %v1651
    %v4388 = vunpack.c.l.b16 %v1652
    %v4389 = vunpack.c.l.b16 %v1653
    %v4390 = vunpack.c.h.b16 %v1653
    %v4391 = vunpack.c.l.b16 %v1654
    %v4392 = vunpack.c.h.b16 %v1654
    %v4393 = vunpack.c.l.b16 %v1655
    %v4394 = vunpack.c.h.b16 %v1655
    %v4395 = vunpack.c.l.b16 %v1656
    %v4396 = vunpack.c.h.b16 %v1656
    %v4397 = vunpack.c.l.b16 %v1657
    %v4398 = vunpack.c.h.b16 %v1657
    %v4399 = vunpack.c.l.b16 %v1658
    %v4400 = vunpack.c.h.b16 %v1658
    %v4401 = vunpack.c.l.b16 %v1659
    %v4402 = vunpack.c.h.b16 %v1659
    %v4403 = vunpack.c.l.b16 %v1660
    %v4404 = vunpack.c.h.b16 %v1660
    %v4405 = vunpack.c.l.b16 %v1661
    %v4406 = vunpack.c.l.b16 %v1662
    %v4407 = vunpack.c.h.b16 %v1662
    %v4408 = vunpack.c.l.b16 %v1663
    %v4409 = vunpack.c.h.b16 %v1663
    %v4410 = vunpack.c.l.b16 %v1664
    %v4411 = vunpack.c.h.b16 %v1664
    %v4412 = vunpack.c.l.b16 %v1665
    %v4413 = vunpack.c.h.b16 %v1665
    %v4414 = vunpack.c.l.b16 %v1666
    %v4415 = vunpack.c.h.b16 %v1666
    %v4416 = vunpack.c.l.b16 %v1667
    %v4417 = vunpack.c.h.b16 %v1667
    %v4418 = vunpack.c.l.b16 %v1668
    %v4419 = vunpack.c.h.b16 %v1668
    %v4420 = vunpack.c.l.b16 %v1669
    %v4421 = vunpack.c.h.b16 %v1669
    %v4422 = vunpack.c.l.b16 %v1670
    %v4423 = vunpack.c.l.b16 %v1671
    %v4424 = vunpack.c.h.b16 %v1671
    %v4425 = vunpack.c.l.b16 %v1672
    %v4426 = vunpack.c.h.b16 %v1672
    %v4427 = vunpack.c.l.b16 %v1673
    %v4428 = vunpack.c.h.b16 %v1673
    %v4429 = vunpack.c.l.b16 %v1674
    %v4430 = vunpack.c.h.b16 %v1674
    %v4431 = vunpack.c.l.b16 %v1675
    %v4432 = vunpack.c.h.b16 %v1675
    %v4433 = vunpack.c.l.b16 %v1676
    %v4434 = vunpack.c.h.b16 %v1676
    %v4435 = vunpack.c.l.b16 %v1677
    %v4436 = vunpack.c.h.b16 %v1677
    %v4437 = vunpack.c.l.b16 %v1678
    %v4438 = vunpack.c.h.b16 %v1678
    %v4439 = vunpack.c.l.b16 %v1679
    %v4440 = vunpack.c.l.b16 %v1680
    %v4441 = vunpack.c.h.b16 %v1680
    %v4442 = vunpack.c.l.b16 %v1681
    %v4443 = vunpack.c.h.b16 %v1681
    %v4444 = vunpack.c.l.b16 %v1682
    %v4445 = vunpack.c.h.b16 %v1682
    %v4446 = vunpack.c.l.b16 %v1683
    %v4447 = vunpack.c.h.b16 %v1683
    %v4448 = vunpack.c.l.b16 %v1684
    %v4449 = vunpack.c.h.b16 %v1684
    %v4450 = vunpack.c.l.b16 %v1685
    %v4451 = vunpack.c.h.b16 %v1685
    %v4452 = vunpack.c.l.b16 %v1686
    %v4453 = vunpack.c.h.b16 %v1686
    %v4454 = vunpack.c.l.b16 %v1687
    %v4455 = vunpack.c.h.b16 %v1687
    %v4456 = vunpack.c.l.b16 %v1688
    %v4457 = vunpack.c.l.b16 %v1689
    %v4458 = vunpack.c.h.b16 %v1689
    %v4459 = vunpack.c.l.b16 %v1690
    %v4460 = vunpack.c.h.b16 %v1690
    %v4461 = vunpack.c.l.b16 %v1691
    %v4462 = vunpack.c.h.b16 %v1691
    %v4463 = vunpack.c.l.b16 %v1692
    %v4464 = vunpack.c.h.b16 %v1692
    %v4465 = vunpack.c.l.b16 %v1693
    %v4466 = vunpack.c.h.b16 %v1693
    %v4467 = vunpack.c.l.b16 %v1694
    %v4468 = vunpack.c.h.b16 %v1694
    %v4469 = vunpack.c.l.b16 %v1695
    %v4470 = vunpack.c.h.b16 %v1695
    %v4471 = vunpack.c.l.b16 %v1696
    %v4472 = vunpack.c.h.b16 %v1696
    %v4473 = vunpack.c.l.b16 %v1697
    %v4474 = vunpack.c.l.b16 %v1698
    %v4475 = vunpack.c.h.b16 %v1698
    %v4476 = vunpack.c.l.b16 %v1699
    %v4477 = vunpack.c.h.b16 %v1699
    %v4478 = vunpack.c.l.b16 %v1700
    %v4479 = vunpack.c.h.b16 %v1700
    %v4480 = vunpack.c.l.b16 %v1701
    %v4481 = vunpack.c.h.b16 %v1701
    %v4482 = vunpack.c.l.b16 %v1702
    %v4483 = vunpack.c.h.b16 %v1702
    %v4484 = vunpack.c.l.b16 %v1703
    %v4485 = vunpack.c.h.b16 %v1703
    %v4486 = vunpack.c.l.b16 %v1704
    %v4487 = vunpack.c.h.b16 %v1704
    %v4488 = vunpack.c.l.b16 %v1705
    %v4489 = vunpack.c.h.b16 %v1705
    %v4490 = vunpack.c.l.b16 %v1706
    %v4491 = vunpack.c.l.b16 %v1707
    %v4492 = vunpack.c.h.b16 %v1707
    %v4493 = vunpack.c.l.b16 %v1708
    %v4494 = vunpack.c.h.b16 %v1708
    %v4495 = vunpack.c.l.b16 %v1709
    %v4496 = vunpack.c.h.b16 %v1709
    %v4497 = vunpack.c.l.b16 %v1710
    %v4498 = vunpack.c.h.b16 %v1710
    %v4499 = vunpack.c.l.b16 %v1711
    %v4500 = vunpack.c.h.b16 %v1711
    %v4501 = vunpack.c.l.b16 %v1712
    %v4502 = vunpack.c.h.b16 %v1712
    %v4503 = vunpack.c.l.b16 %v1713
    %v4504 = vunpack.c.h.b16 %v1713
    %v4505 = vunpack.c.l.b16 %v1714
    %v4506 = vunpack.c.h.b16 %v1714
    %v4507 = vunpack.c.l.b16 %v1715
    %v4508 = vunpack.c.l.b16 %v1716
    %v4509 = vunpack.c.h.b16 %v1716
    %v4510 = vunpack.c.l.b16 %v1717
    %v4511 = vunpack.c.h.b16 %v1717
    %v4512 = vunpack.c.l.b16 %v1718
    %v4513 = vunpack.c.h.b16 %v1718
    %v4514 = vunpack.c.l.b16 %v1719
    %v4515 = vunpack.c.h.b16 %v1719
    %v4516 = vunpack.c.l.b16 %v1720
    %v4517 = vunpack.c.h.b16 %v1720
    %v4518 = vunpack.c.l.b16 %v1721
    %v4519 = vunpack.c.h.b16 %v1721
    %v4520 = vunpack.c.l.b16 %v1722
    %v4521 = vunpack.c.h.b16 %v1722
    %v4522 = vunpack.c.l.b16 %v1723
    %v4523 = vunpack.c.h.b16 %v1723
    %v4524 = vunpack.c.l.b16 %v1724
    %v4525 = vunpack.c.l.b16 %v1725
    %v4526 = vunpack.c.h.b16 %v1725
    %v4527 = vunpack.c.l.b16 %v1726
    %v4528 = vunpack.c.h.b16 %v1726
    %v4529 = vunpack.c.l.b16 %v1727
    %v4530 = vunpack.c.h.b16 %v1727
    %v4531 = vunpack.c.l.b16 %v1728
    %v4532 = vunpack.c.h.b16 %v1728
    %v4533 = vunpack.c.l.b16 %v1729
    %v4534 = vunpack.c.h.b16 %v1729
    %v4535 = vunpack.c.l.b16 %v1730
    %v4536 = vunpack.c.h.b16 %v1730
    %v4537 = vunpack.c.l.b16 %v1731
    %v4538 = vunpack.c.h.b16 %v1731
    %v4539 = vunpack.c.l.b16 %v1732
    %v4540 = vunpack.c.h.b16 %v1732
    %v4541 = vunpack.c.l.b16 %v1733
    %v4542 = vunpack.c.l.b16 %v1734
    %v4543 = vunpack.c.h.b16 %v1734
    %v4544 = vunpack.c.l.b16 %v1735
    %v4545 = vunpack.c.h.b16 %v1735
    %v4546 = vunpack.c.l.b16 %v1736
    %v4547 = vunpack.c.h.b16 %v1736
    %v4548 = vunpack.c.l.b16 %v1737
    %v4549 = vunpack.c.h.b16 %v1737
    %v4550 = vunpack.c.l.b16 %v1738
    %v4551 = vunpack.c.h.b16 %v1738
    %v4552 = vunpack.c.l.b16 %v1739
    %v4553 = vunpack.c.h.b16 %v1739
    %v4554 = vunpack.c.l.b16 %v1740
    %v4555 = vunpack.c.h.b16 %v1740
    %v4556 = vunpack.c.l.b16 %v1741
    %v4557 = vunpack.c.h.b16 %v1741
    %v4558 = vunpack.c.l.b16 %v1742
    %v4559 = vunpack.c.l.b16 %v1743
    %v4560 = vunpack.c.h.b16 %v1743
    %v4561 = vunpack.c.l.b16 %v1744
    %v4562 = vunpack.c.h.b16 %v1744
    %v4563 = vunpack.c.l.b16 %v1745
    %v4564 = vunpack.c.h.b16 %v1745
    %v4565 = vunpack.c.l.b16 %v1746
    %v4566 = vunpack.c.h.b16 %v1746
    %v4567 = vunpack.c.l.b16 %v1747
    %v4568 = vunpack.c.h.b16 %v1747
    %v4569 = vunpack.c.l.b16 %v1748
    %v4570 = vunpack.c.h.b16 %v1748
    %v4571 = vunpack.c.l.b16 %v1749
    %v4572 = vunpack.c.h.b16 %v1749
    %v4573 = vunpack.c.l.b16 %v1750
    %v4574 = vunpack.c.h.b16 %v1750
    %v4575 = vunpack.c.l.b16 %v1751
    %v4576 = vunpack.c.l.b16 %v1752
    %v4577 = vunpack.c.h.b16 %v1752
    %v4578 = vunpack.c.l.b16 %v1753
    %v4579 = vunpack.c.h.b16 %v1753
    %v4580 = vunpack.c.l.b16 %v1754
    %v4581 = vunpack.c.h.b16 %v1754
    %v4582 = vunpack.c.l.b16 %v1755
    %v4583 = vunpack.c.h.b16 %v1755
    %v4584 = vunpack.c.l.b16 %v1756
    %v4585 = vunpack.c.h.b16 %v1756
    %v4586 = vunpack.c.l.b16 %v1757
    %v4587 = vunpack.c.h.b16 %v1757
    %v4588 = vunpack.c.l.b16 %v1758
    %v4589 = vunpack.c.h.b16 %v1758
    %v4590 = vunpack.c.l.b16 %v1759
    %v4591 = vunpack.c.h.b16 %v1759
    %v4592 = vunpack.c.l.b16 %v1760
    %v4593 = vunpack.c.l.b16 %v1761
    %v4594 = vunpack.c.h.b16 %v1761
    %v4595 = vunpack.c.l.b16 %v1762
    %v4596 = vunpack.c.h.b16 %v1762
    %v4597 = vunpack.c.l.b16 %v1763
    %v4598 = vunpack.c.h.b16 %v1763
    %v4599 = vunpack.c.l.b16 %v1764
    %v4600 = vunpack.c.h.b16 %v1764
    %v4601 = vunpack.c.l.b16 %v1765
    %v4602 = vunpack.c.h.b16 %v1765
    %v4603 = vunpack.c.l.b16 %v1766
    %v4604 = vunpack.c.h.b16 %v1766
    %v4605 = vunpack.c.l.b16 %v1767
    %v4606 = vunpack.c.h.b16 %v1767
    %v4607 = vunpack.c.l.b16 %v1768
    %v4608 = vunpack.c.h.b16 %v1768
    %v4609 = vunpack.c.l.b16 %v1769
    %v4610 = vunpack.c.l.b16 %v1770
    %v4611 = vunpack.c.h.b16 %v1770
    %v4612 = vunpack.c.l.b16 %v1771
    %v4613 = vunpack.c.h.b16 %v1771
    %v4614 = vunpack.c.l.b16 %v1772
    %v4615 = vunpack.c.h.b16 %v1772
    %v4616 = vunpack.c.l.b16 %v1773
    %v4617 = vunpack.c.h.b16 %v1773
    %v4618 = vunpack.c.l.b16 %v1774
    %v4619 = vunpack.c.h.b16 %v1774
    %v4620 = vunpack.c.l.b16 %v1775
    %v4621 = vunpack.c.h.b16 %v1775
    %v4622 = vunpack.c.l.b16 %v1776
    %v4623 = vunpack.c.h.b16 %v1776
    %v4624 = vunpack.c.l.b16 %v1777
    %v4625 = vunpack.c.h.b16 %v1777
    %v4626 = vunpack.c.l.b16 %v1778
    %v4627 = vunpack.c.l.b16 %v1779
    %v4628 = vunpack.c.h.b16 %v1779
    %v4629 = vunpack.c.l.b16 %v1780
    %v4630 = vunpack.c.h.b16 %v1780
    %v4631 = vunpack.c.l.b16 %v1781
    %v4632 = vunpack.c.h.b16 %v1781
    %v4633 = vunpack.c.l.b16 %v1782
    %v4634 = vunpack.c.h.b16 %v1782
    %v4635 = vunpack.c.l.b16 %v1783
    %v4636 = vunpack.c.h.b16 %v1783
    %v4637 = vunpack.c.l.b16 %v1784
    %v4638 = vunpack.c.h.b16 %v1784
    %v4639 = vunpack.c.l.b16 %v1785
    %v4640 = vunpack.c.h.b16 %v1785
    %v4641 = vunpack.c.l.b16 %v1786
    %v4642 = vunpack.c.h.b16 %v1786
    %v4643 = vunpack.c.l.b16 %v1787
    %v4644 = vunpack.c.l.b16 %v1788
    %v4645 = vunpack.c.h.b16 %v1788
    %v4646 = vunpack.c.l.b16 %v1789
    %v4647 = vunpack.c.h.b16 %v1789
    %v4648 = vunpack.c.l.b16 %v1790
    %v4649 = vunpack.c.h.b16 %v1790
    %v4650 = vunpack.c.l.b16 %v1791
    %v4651 = vunpack.c.h.b16 %v1791
    %v4652 = vunpack.c.l.b16 %v1792
    %v4653 = vunpack.c.h.b16 %v1792
    %v4654 = vunpack.c.l.b16 %v1793
    %v4655 = vunpack.c.h.b16 %v1793
    %v4656 = vunpack.c.l.b16 %v1794
    %v4657 = vunpack.c.h.b16 %v1794
    %v4658 = vunpack.c.l.b16 %v1795
    %v4659 = vunpack.c.h.b16 %v1795
    %v4660 = vunpack.c.l.b16 %v1796
    %v4661 = vunpack.c.l.b16 %v1797
    %v4662 = vunpack.c.h.b16 %v1797
    %v4663 = vunpack.c.l.b16 %v1798
    %v4664 = vunpack.c.h.b16 %v1798
    %v4665 = vunpack.c.l.b16 %v1799
    %v4666 = vunpack.c.h.b16 %v1799
    %v4667 = vunpack.c.l.b16 %v1800
    %v4668 = vunpack.c.h.b16 %v1800
    %v4669 = vunpack.c.l.b16 %v1801
    %v4670 = vunpack.c.h.b16 %v1801
    %v4671 = vunpack.c.l.b16 %v1802
    %v4672 = vunpack.c.h.b16 %v1802
    %v4673 = vunpack.c.l.b16 %v1803
    %v4674 = vunpack.c.h.b16 %v1803
    %v4675 = vunpack.c.l.b16 %v1804
    %v4676 = vunpack.c.h.b16 %v1804
    %v4677 = vunpack.c.l.b16 %v1805
    %v4678 = vunpack.c.l.b16 %v1806
    %v4679 = vunpack.c.h.b16 %v1806
    %v4680 = vunpack.c.l.b16 %v1807
    %v4681 = vunpack.c.h.b16 %v1807
    %v4682 = vunpack.c.l.b16 %v1808
    %v4683 = vunpack.c.h.b16 %v1808
    %v4684 = vunpack.c.l.b16 %v1809
    %v4685 = vunpack.c.h.b16 %v1809
    %v4686 = vunpack.c.l.b16 %v1810
    %v4687 = vunpack.c.h.b16 %v1810
    %v4688 = vunpack.c.l.b16 %v1811
    %v4689 = vunpack.c.h.b16 %v1811
    %v4690 = vunpack.c.l.b16 %v1812
    %v4691 = vunpack.c.h.b16 %v1812
    %v4692 = vunpack.c.l.b16 %v1813
    %v4693 = vunpack.c.h.b16 %v1813
    %v4694 = vunpack.c.l.b16 %v1814
    %v4695 = vunpack.c.l.b16 %v1815
    %v4696 = vunpack.c.h.b16 %v1815
    %v4697 = vunpack.c.l.b16 %v1816
    %v4698 = vunpack.c.h.b16 %v1816
    %v4699 = vunpack.c.l.b16 %v1817
    %v4700 = vunpack.c.h.b16 %v1817
    %v4701 = vunpack.c.l.b16 %v1818
    %v4702 = vunpack.c.h.b16 %v1818
    %v4703 = vunpack.c.l.b16 %v1819
    %v4704 = vunpack.c.h.b16 %v1819
    %v4705 = vunpack.c.l.b16 %v1820
    %v4706 = vunpack.c.h.b16 %v1820
    %v4707 = vunpack.c.l.b16 %v1821
    %v4708 = vunpack.c.h.b16 %v1821
    %v4709 = vunpack.c.l.b16 %v1822
    %v4710 = vunpack.c.h.b16 %v1822
    %v4711 = vunpack.c.l.b16 %v1823
    %v4712 = vunpack.c.l.b16 %v1824
    %v4713 = vunpack.c.h.b16 %v1824
    %v4714 = vunpack.c.l.b16 %v1825
    %v4715 = vunpack.c.h.b16 %v1825
    %v4716 = vunpack.c.l.b16 %v1826
    %v4717 = vunpack.c.h.b16 %v1826
    %v4718 = vunpack.c.l.b16 %v1827
    %v4719 = vunpack.c.h.b16 %v1827
    %v4720 = vunpack.c.l.b16 %v1828
    %v4721 = vunpack.c.h.b16 %v1828
    %v4722 = vunpack.c.l.b16 %v1829
    %v4723 = vunpack.c.h.b16 %v1829
    %v4724 = vunpack.c.l.b16 %v1830
    %v4725 = vunpack.c.h.b16 %v1830
    %v4726 = vunpack.c.l.b16 %v1831
    %v4727 = vunpack.c.h.b16 %v1831
    %v4728 = vunpack.c.l.b16 %v1832
    %v4729 = vunpack.c.l.b16 %v1833
    %v4730 = vunpack.c.h.b16 %v1833
    %v4731 = vunpack.c.l.b16 %v1834
    %v4732 = vunpack.c.h.b16 %v1834
    %v4733 = vunpack.c.l.b16 %v1835
    %v4734 = vunpack.c.h.b16 %v1835
    %v4735 = vunpack.c.l.b16 %v1836
    %v4736 = vunpack.c.h.b16 %v1836
    %v4737 = vunpack.c.l.b16 %v1837
    %v4738 = vunpack.c.h.b16 %v1837
    %v4739 = vunpack.c.l.b16 %v1838
    %v4740 = vunpack.c.h.b16 %v1838
    %v4741 = vunpack.c.l.b16 %v1839
    %v4742 = vunpack.c.h.b16 %v1839
    %v4743 = vunpack.c.l.b16 %v1840
    %v4744 = vunpack.c.h.b16 %v1840
    %v4745 = vunpack.c.l.b16 %v1841
    %v4746 = vunpack.c.l.b16 %v1842
    %v4747 = vunpack.c.h.b16 %v1842
    %v4748 = vunpack.c.l.b16 %v1843
    %v4749 = vunpack.c.h.b16 %v1843
    %v4750 = vunpack.c.l.b16 %v1844
    %v4751 = vunpack.c.h.b16 %v1844
    %v4752 = vunpack.c.l.b16 %v1845
    %v4753 = vunpack.c.h.b16 %v1845
    %v4754 = vunpack.c.l.b16 %v1846
    %v4755 = vunpack.c.h.b16 %v1846
    %v4756 = vunpack.c.l.b16 %v1847
    %v4757 = vunpack.c.h.b16 %v1847
    %v4758 = vunpack.c.l.b16 %v1848
    %v4759 = vunpack.c.h.b16 %v1848
    %v4760 = vunpack.c.l.b16 %v1849
    %v4761 = vunpack.c.h.b16 %v1849
    %v4762 = vunpack.c.l.b16 %v1850
    %v4763 = vunpack.c.l.b16 %v1851
    %v4764 = vunpack.c.h.b16 %v1851
    %v4765 = vunpack.c.l.b16 %v1852
    %v4766 = vunpack.c.h.b16 %v1852
    %v4767 = vunpack.c.l.b16 %v1853
    %v4768 = vunpack.c.h.b16 %v1853
    %v4769 = vunpack.c.l.b16 %v1854
    %v4770 = vunpack.c.h.b16 %v1854
    %v4771 = vunpack.c.l.b16 %v1855
    %v4772 = vunpack.c.h.b16 %v1855
    %v4773 = vunpack.c.l.b16 %v1856
    %v4774 = vunpack.c.h.b16 %v1856
    %v4775 = vunpack.c.l.b16 %v1857
    %v4776 = vunpack.c.h.b16 %v1857
    %v4777 = vunpack.c.l.b16 %v1858
    %v4778 = vunpack.c.h.b16 %v1858
    %v4779 = vunpack.c.l.b16 %v1859
    %v4780 = vunpack.c.l.b16 %v1860
    %v4781 = vunpack.c.h.b16 %v1860
    %v4782 = vunpack.c.l.b16 %v1861
    %v4783 = vunpack.c.h.b16 %v1861
    %v4784 = vunpack.c.l.b16 %v1862
    %v4785 = vunpack.c.h.b16 %v1862
    %v4786 = vunpack.c.l.b16 %v1863
    %v4787 = vunpack.c.h.b16 %v1863
    %v4788 = vunpack.c.l.b16 %v1864
    %v4789 = vunpack.c.h.b16 %v1864
    %v4790 = vunpack.c.l.b16 %v1865
    %v4791 = vunpack.c.h.b16 %v1865
    %v4792 = vunpack.c.l.b16 %v1866
    %v4793 = vunpack.c.h.b16 %v1866
    %v4794 = vunpack.c.l.b16 %v1867
    %v4795 = vunpack.c.h.b16 %v1867
    %v4796 = vunpack.c.l.b16 %v1868
    %v4797 = vunpack.c.l.b16 %v1869
    %v4798 = vunpack.c.h.b16 %v1869
    %v4799 = vunpack.c.l.b16 %v1870
    %v4800 = vunpack.c.h.b16 %v1870
    %v4801 = vunpack.c.l.b16 %v1871
    %v4802 = vunpack.c.h.b16 %v1871
    %v4803 = vunpack.c.l.b16 %v1872
    %v4804 = vunpack.c.h.b16 %v1872
    %v4805 = vunpack.c.l.b16 %v1873
    %v4806 = vunpack.c.h.b16 %v1873
    %v4807 = vunpack.c.l.b16 %v1874
    %v4808 = vunpack.c.h.b16 %v1874
    %v4809 = vunpack.c.l.b16 %v1875
    %v4810 = vunpack.c.h.b16 %v1875
    %v4811 = vunpack.c.l.b16 %v1876
    %v4812 = vunpack.c.h.b16 %v1876
    %v4813 = vunpack.c.l.b16 %v1877
    %v4814 = vunpack.c.l.b16 %v1878
    %v4815 = vunpack.c.h.b16 %v1878
    %v4816 = vunpack.c.l.b16 %v1879
    %v4817 = vunpack.c.h.b16 %v1879
    %v4818 = vunpack.c.l.b16 %v1880
    %v4819 = vunpack.c.h.b16 %v1880
    %v4820 = vunpack.c.l.b16 %v1881
    %v4821 = vunpack.c.h.b16 %v1881
    %v4822 = vunpack.c.l.b16 %v1882
    %v4823 = vunpack.c.h.b16 %v1882
    %v4824 = vunpack.c.l.b16 %v1883
    %v4825 = vunpack.c.h.b16 %v1883
    %v4826 = vunpack.c.l.b16 %v1884
    %v4827 = vunpack.c.h.b16 %v1884
    %v4828 = vunpack.c.l.b16 %v1885
    %v4829 = vunpack.c.h.b16 %v1885
    %v4830 = vunpack.c.l.b16 %v1886
    %v4831 = vunpack.c.l.b16 %v1887
    %v4832 = vunpack.c.h.b16 %v1887
    %v4833 = vunpack.c.l.b16 %v1888
    %v4834 = vunpack.c.h.b16 %v1888
    %v4835 = vunpack.c.l.b16 %v1889
    %v4836 = vunpack.c.h.b16 %v1889
    %v4837 = vunpack.c.l.b16 %v1890
    %v4838 = vunpack.c.h.b16 %v1890
    %v4839 = vunpack.c.l.b16 %v1891
    %v4840 = vunpack.c.h.b16 %v1891
    %v4841 = vunpack.c.l.b16 %v1892
    %v4842 = vunpack.c.h.b16 %v1892
    %v4843 = vunpack.c.l.b16 %v1893
    %v4844 = vunpack.c.h.b16 %v1893
    %v4845 = vunpack.c.l.b16 %v1894
    %v4846 = vunpack.c.h.b16 %v1894
    %v4847 = vunpack.c.l.b16 %v1895
    %v4848 = vunpack.c.l.b16 %v1896
    %v4849 = vunpack.c.h.b16 %v1896
    %v4850 = vunpack.c.l.b16 %v1897
    %v4851 = vunpack.c.h.b16 %v1897
    %v4852 = vunpack.c.l.b16 %v1898
    %v4853 = vunpack.c.h.b16 %v1898
    %v4854 = vunpack.c.l.b16 %v1899
    %v4855 = vunpack.c.h.b16 %v1899
    %v4856 = vunpack.c.l.b16 %v1900
    %v4857 = vunpack.c.h.b16 %v1900
    %v4858 = vunpack.c.l.b16 %v1901
    %v4859 = vunpack.c.h.b16 %v1901
    %v4860 = vunpack.c.l.b16 %v1902
    %v4861 = vunpack.c.h.b16 %v1902
    %v4862 = vunpack.c.l.b16 %v1903
    %v4863 = vunpack.c.h.b16 %v1903
    %v4864 = vunpack.c.l.b16 %v1904
    %v4865 = vunpack.c.l.b16 %v1905
    %v4866 = vunpack.c.h.b16 %v1905
    %v4867 = vunpack.c.l.b16 %v1906
    %v4868 = vunpack.c.h.b16 %v1906
    %v4869 = vunpack.c.l.b16 %v1907
    %v4870 = vunpack.c.h.b16 %v1907
    %v4871 = vunpack.c.l.b16 %v1908
    %v4872 = vunpack.c.h.b16 %v1908
    %v4873 = vunpack.c.l.b16 %v1909
    %v4874 = vunpack.c.h.b16 %v1909
    %v4875 = vunpack.c.l.b16 %v1910
    %v4876 = vunpack.c.h.b16 %v1910
    %v4877 = vunpack.c.l.b16 %v1911
    %v4878 = vunpack.c.h.b16 %v1911
    %v4879 = vunpack.c.l.b16 %v1912
    %v4880 = vunpack.c.h.b16 %v1912
    %v4881 = vunpack.c.l.b16 %v1913
    %v4882 = vunpack.c.l.b16 %v1914
    %v4883 = vunpack.c.h.b16 %v1914
    %v4884 = vunpack.c.l.b16 %v1915
    %v4885 = vunpack.c.h.b16 %v1915
    %v4886 = vunpack.c.l.b16 %v1916
    %v4887 = vunpack.c.h.b16 %v1916
    %v4888 = vunpack.c.l.b16 %v1917
    %v4889 = vunpack.c.h.b16 %v1917
    %v4890 = vunpack.c.l.b16 %v1918
    %v4891 = vunpack.c.h.b16 %v1918
    %v4892 = vunpack.c.l.b16 %v1919
    %v4893 = vunpack.c.h.b16 %v1919
    %v4894 = vunpack.c.l.b16 %v1920
    %v4895 = vunpack.c.h.b16 %v1920
    %v4896 = vunpack.c.l.b16 %v1921
    %v4897 = vunpack.c.h.b16 %v1921
    %v4898 = vunpack.c.l.b16 %v1922
    %v4899 = vunpack.c.l.b16 %v1923
    %v4900 = vunpack.c.h.b16 %v1923
    %v4901 = vunpack.c.l.b16 %v1924
    %v4902 = vunpack.c.h.b16 %v1924
    %v4903 = vunpack.c.l.b16 %v1925
    %v4904 = vunpack.c.h.b16 %v1925
    %v4905 = vunpack.c.l.b16 %v1926
    %v4906 = vunpack.c.h.b16 %v1926
    %v4907 = vunpack.c.l.b16 %v1927
    %v4908 = vunpack.c.h.b16 %v1927
    %v4909 = vunpack.c.l.b16 %v1928
    %v4910 = vunpack.c.h.b16 %v1928
    %v4911 = vunpack.c.l.b16 %v1929
    %v4912 = vunpack.c.h.b16 %v1929
    %v4913 = vunpack.c.l.b16 %v1930
    %v4914 = vunpack.c.h.b16 %v1930
    %v4915 = vunpack.c.l.b16 %v1931
    %v4916 = vunpack.c.l.b16 %v1932
    %v4917 = vunpack.c.h.b16 %v1932
    %v4918 = vunpack.c.l.b16 %v1933
    %v4919 = vunpack.c.h.b16 %v1933
    %v4920 = vunpack.c.l.b16 %v1934
    %v4921 = vunpack.c.h.b16 %v1934
    %v4922 = vunpack.c.l.b16 %v1935
    %v4923 = vunpack.c.h.b16 %v1935
    %v4924 = vunpack.c.l.b16 %v1936
    %v4925 = vunpack.c.h.b16 %v1936
    %v4926 = vunpack.c.l.b16 %v1937
    %v4927 = vunpack.c.h.b16 %v1937
    %v4928 = vunpack.c.l.b16 %v1938
    %v4929 = vunpack.c.h.b16 %v1938
    %v4930 = vunpack.c.l.b16 %v1939
    %v4931 = vunpack.c.h.b16 %v1939
    %v4932 = vunpack.c.l.b16 %v1940
    %v4933 = vunpack.c.l.b16 %v1941
    %v4934 = vunpack.c.h.b16 %v1941
    %v4935 = vunpack.c.l.b16 %v1942
    %v4936 = vunpack.c.h.b16 %v1942
    %v4937 = vunpack.c.l.b16 %v1943
    %v4938 = vunpack.c.h.b16 %v1943
    %v4939 = vunpack.c.l.b16 %v1944
    %v4940 = vunpack.c.h.b16 %v1944
    %v4941 = vunpack.c.l.b16 %v1945
    %v4942 = vunpack.c.h.b16 %v1945
    %v4943 = vunpack.c.l.b16 %v1946
    %v4944 = vunpack.c.h.b16 %v1946
    %v4945 = vunpack.c.l.b16 %v1947
    %v4946 = vunpack.c.h.b16 %v1947
    %v4947 = vunpack.c.l.b16 %v1948
    %v4948 = vunpack.c.h.b16 %v1948
    %v4949 = vunpack.c.l.b16 %v1949
    %v4950 = vunpack.c.l.b16 %v1950
    %v4951 = vunpack.c.h.b16 %v1950
    %v4952 = vunpack.c.l.b16 %v1951
    %v4953 = vunpack.c.h.b16 %v1951
    %v4954 = vunpack.c.l.b16 %v1952
    %v4955 = vunpack.c.h.b16 %v1952
    %v4956 = vunpack.c.l.b16 %v1953
    %v4957 = vunpack.c.h.b16 %v1953
    %v4958 = vunpack.c.l.b16 %v1954
    %v4959 = vunpack.c.h.b16 %v1954
    %v4960 = vunpack.c.l.b16 %v1955
    %v4961 = vunpack.c.h.b16 %v1955
    %v4962 = vunpack.c.l.b16 %v1956
    %v4963 = vunpack.c.h.b16 %v1956
    %v4964 = vunpack.c.l.b16 %v1957
    %v4965 = vunpack.c.h.b16 %v1957
    %v4966 = vunpack.c.l.b16 %v1958
    %v4967 = vunpack.c.l.b16 %v1959
    %v4968 = vunpack.c.h.b16 %v1959
    %v4969 = vunpack.c.l.b16 %v1960
    %v4970 = vunpack.c.h.b16 %v1960
    %v4971 = vunpack.c.l.b16 %v1961
    %v4972 = vunpack.c.h.b16 %v1961
    %v4973 = vunpack.c.l.b16 %v1962
    %v4974 = vunpack.c.h.b16 %v1962
    %v4975 = vunpack.c.l.b16 %v1963
    %v4976 = vunpack.c.h.b16 %v1963
    %v4977 = vunpack.c.l.b16 %v1964
    %v4978 = vunpack.c.h.b16 %v1964
    %v4979 = vunpack.c.l.b16 %v1965
    %v4980 = vunpack.c.h.b16 %v1965
    %v4981 = vunpack.c.l.b16 %v1966
    %v4982 = vunpack.c.h.b16 %v1966
    %v4983 = vunpack.c.l.b16 %v1967
    %v4984 = vunpack.c.l.b16 %v1968
    %v4985 = vunpack.c.h.b16 %v1968
    %v4986 = vunpack.c.l.b16 %v1969
    %v4987 = vunpack.c.h.b16 %v1969
    %v4988 = vunpack.c.l.b16 %v1970
    %v4989 = vunpack.c.h.b16 %v1970
    %v4990 = vunpack.c.l.b16 %v1971
    %v4991 = vunpack.c.h.b16 %v1971
    %v4992 = vunpack.c.l.b16 %v1972
    %v4993 = vunpack.c.h.b16 %v1972
    %v4994 = vunpack.c.l.b16 %v1973
    %v4995 = vunpack.c.h.b16 %v1973
    %v4996 = vunpack.c.l.b16 %v1974
    %v4997 = vunpack.c.h.b16 %v1974
    %v4998 = vunpack.c.l.b16 %v1975
    %v4999 = vunpack.c.h.b16 %v1975
    %v5000 = vunpack.c.l.b16 %v1976
    %v5001 = vunpack.c.l.b16 %v1977
    %v5002 = vunpack.c.h.b16 %v1977
    %v5003 = vunpack.c.l.b16 %v1978
    %v5004 = vunpack.c.h.b16 %v1978
    %v5005 = vunpack.c.l.b16 %v1979
    %v5006 = vunpack.c.h.b16 %v1979
    %v5007 = vunpack.c.l.b16 %v1980
    %v5008 = vunpack.c.h.b16 %v1980
    %v5009 = vunpack.c.l.b16 %v1981
    %v5010 = vunpack.c.h.b16 %v1981
    %v5011 = vunpack.c.l.b16 %v1982
    %v5012 = vunpack.c.h.b16 %v1982
    %v5013 = vunpack.c.l.b16 %v1983
    %v5014 = vunpack.c.h.b16 %v1983
    %v5015 = vunpack.c.l.b16 %v1984
    %v5016 = vunpack.c.h.b16 %v1984
    %v5017 = vunpack.c.l.b16 %v1985
    %v5018 = vunpack.c.l.b16 %v1986
    %v5019 = vunpack.c.h.b16 %v1986
    %v5020 = vunpack.c.l.b16 %v1987
    %v5021 = vunpack.c.h.b16 %v1987
    %v5022 = vunpack.c.l.b16 %v1988
    %v5023 = vunpack.c.h.b16 %v1988
    %v5024 = vunpack.c.l.b16 %v1989
    %v5025 = vunpack.c.h.b16 %v1989
    %v5026 = vunpack.c.l.b16 %v1990
    %v5027 = vunpack.c.h.b16 %v1990
    %v5028 = vunpack.c.l.b16 %v1991
    %v5029 = vunpack.c.h.b16 %v1991
    %v5030 = vunpack.c.l.b16 %v1992
    %v5031 = vunpack.c.h.b16 %v1992
    %v5032 = vunpack.c.l.b16 %v1993
    %v5033 = vunpack.c.h.b16 %v1993
    %v5034 = vunpack.c.l.b16 %v1994
    %v5035 = vunpack.c.l.b16 %v1995
    %v5036 = vunpack.c.h.b16 %v1995
    %v5037 = vunpack.c.l.b16 %v1996
    %v5038 = vunpack.c.h.b16 %v1996
    %v5039 = vunpack.c.l.b16 %v1997
    %v5040 = vunpack.c.h.b16 %v1997
    %v5041 = vunpack.c.l.b16 %v1998
    %v5042 = vunpack.c.h.b16 %v1998
    %v5043 = vunpack.c.l.b16 %v1999
    %v5044 = vunpack.c.h.b16 %v1999
    %v5045 = vunpack.c.l.b16 %v2000
    %v5046 = vunpack.c.h.b16 %v2000
    %v5047 = vunpack.c.l.b16 %v2001
    %v5048 = vunpack.c.h.b16 %v2001
    %v5049 = vunpack.c.l.b16 %v2002
    %v5050 = vunpack.c.h.b16 %v2002
    %v5051 = vunpack.c.l.b16 %v2003
    %v5052 = vunpack.c.l.b16 %v2004
    %v5053 = vunpack.c.h.b16 %v2004
    %v5054 = vunpack.c.l.b16 %v2005
    %v5055 = vunpack.c.h.b16 %v2005
    %v5056 = vunpack.c.l.b16 %v2006
    %v5057 = vunpack.c.h.b16 %v2006
    %v5058 = vunpack.c.l.b16 %v2007
    %v5059 = vunpack.c.h.b16 %v2007
    %v5060 = vunpack.c.l.b16 %v2008
    %v5061 = vunpack.c.h.b16 %v2008
    %v5062 = vunpack.c.l.b16 %v2009
    %v5063 = vunpack.c.h.b16 %v2009
    %v5064 = vunpack.c.l.b16 %v2010
    %v5065 = vunpack.c.h.b16 %v2010
    %v5066 = vunpack.c.l.b16 %v2011
    %v5067 = vunpack.c.h.b16 %v2011
    %v5068 = vunpack.c.l.b16 %v2012
    %v5069 = vunpack.c.l.b16 %v2013
    %v5070 = vunpack.c.h.b16 %v2013
    %v5071 = vunpack.c.l.b16 %v2014
    %v5072 = vunpack.c.h.b16 %v2014
    %v5073 = vunpack.c.l.b16 %v2015
    %v5074 = vunpack.c.h.b16 %v2015
    %v5075 = vunpack.c.l.b16 %v2016
    %v5076 = vunpack.c.h.b16 %v2016
    %v5077 = vunpack.c.l.b16 %v2017
    %v5078 = vunpack.c.h.b16 %v2017
    %v5079 = vunpack.c.l.b16 %v2018
    %v5080 = vunpack.c.h.b16 %v2018
    %v5081 = vunpack.c.l.b16 %v2019
    %v5082 = vunpack.c.h.b16 %v2019
    %v5083 = vunpack.c.l.b16 %v2020
    %v5084 = vunpack.c.h.b16 %v2020
    %v5085 = vunpack.c.l.b16 %v2021
    %v5086 = vunpack.c.l.b16 %v2022
    %v5087 = vunpack.c.h.b16 %v2022
    %v5088 = vunpack.c.l.b16 %v2023
    %v5089 = vunpack.c.h.b16 %v2023
    %v5090 = vunpack.c.l.b16 %v2024
    %v5091 = vunpack.c.h.b16 %v2024
    %v5092 = vunpack.c.l.b16 %v2025
    %v5093 = vunpack.c.h.b16 %v2025
    %v5094 = vunpack.c.l.b16 %v2026
    %v5095 = vunpack.c.h.b16 %v2026
    %v5096 = vunpack.c.l.b16 %v2027
    %v5097 = vunpack.c.h.b16 %v2027
    %v5098 = vunpack.c.l.b16 %v2028
    %v5099 = vunpack.c.h.b16 %v2028
    %v5100 = vunpack.c.l.b16 %v2029
    %v5101 = vunpack.c.h.b16 %v2029
    %v5102 = vunpack.c.l.b16 %v2030
    %v5103 = vunpack.c.l.b16 %v2031
    %v5104 = vunpack.c.h.b16 %v2031
    %v5105 = vunpack.c.l.b16 %v2032
    %v5106 = vunpack.c.h.b16 %v2032
    %v5107 = vunpack.c.l.b16 %v2033
    %v5108 = vunpack.c.h.b16 %v2033
    %v5109 = vunpack.c.l.b16 %v2034
    %v5110 = vunpack.c.h.b16 %v2034
    %v5111 = vunpack.c.l.b16 %v2035
    %v5112 = vunpack.c.h.b16 %v2035
    %v5113 = vunpack.c.l.b16 %v2036
    %v5114 = vunpack.c.h.b16 %v2036
    %v5115 = vunpack.c.l.b16 %v2037
    %v5116 = vunpack.c.h.b16 %v2037
    %v5117 = vunpack.c.l.b16 %v2038
    %v5118 = vunpack.c.h.b16 %v2038
    %v5119 = vunpack.c.l.b16 %v2039
    %v5120 = vunpack.c.l.b16 %v2040
    %v5121 = vunpack.c.h.b16 %v2040
    %v5122 = vunpack.c.l.b16 %v2041
    %v5123 = vunpack.c.h.b16 %v2041
    %v5124 = vunpack.c.l.b16 %v2042
    %v5125 = vunpack.c.h.b16 %v2042
    %v5126 = vunpack.c.l.b16 %v2043
    %v5127 = vunpack.c.h.b16 %v2043
    %v5128 = vunpack.c.l.b16 %v2044
    %v5129 = vunpack.c.h.b16 %v2044
    %v5130 = vunpack.c.l.b16 %v2045
    %v5131 = vunpack.c.h.b16 %v2045
    %v5132 = vunpack.c.l.b16 %v2046
    %v5133 = vunpack.c.h.b16 %v2046
    %v5134 = vunpack.c.l.b16 %v2047
    %v5135 = vunpack.c.h.b16 %v2047
    %v5136 = vunpack.c.l.b16 %v2048
    %v5137 = vunpack.c.l.b16 %v2049
    %v5138 = vunpack.c.h.b16 %v2049
    %v5139 = vunpack.c.l.b16 %v2050
    %v5140 = vunpack.c.h.b16 %v2050
    %v5141 = vunpack.c.l.b16 %v2051
    %v5142 = vunpack.c.h.b16 %v2051
    %v5143 = vunpack.c.l.b16 %v2052
    %v5144 = vunpack.c.h.b16 %v2052
    %v5145 = vunpack.c.l.b16 %v2053
    %v5146 = vunpack.c.h.b16 %v2053
    %v5147 = vunpack.c.l.b16 %v2054
    %v5148 = vunpack.c.h.b16 %v2054
    %v5149 = vunpack.c.l.b16 %v2055
    %v5150 = vunpack.c.h.b16 %v2055
    %v5151 = vunpack.c.l.b16 %v2056
    %v5152 = vunpack.c.h.b16 %v2056
    %v5153 = vunpack.c.l.b16 %v2057
    %v5154 = vunpack.c.l.b16 %v2058
    %v5155 = vunpack.c.h.b16 %v2058
    %v5156 = vunpack.c.l.b16 %v2059
    %v5157 = vunpack.c.h.b16 %v2059
    %v5158 = vunpack.c.l.b16 %v2060
    %v5159 = vunpack.c.h.b16 %v2060
    %v5160 = vunpack.c.l.b16 %v2061
    %v5161 = vunpack.c.h.b16 %v2061
    %v5162 = vunpack.c.l.b16 %v2062
    %v5163 = vunpack.c.h.b16 %v2062
    %v5164 = vunpack.c.l.b16 %v2063
    %v5165 = vunpack.c.h.b16 %v2063
    %v5166 = vunpack.c.l.b16 %v2064
    %v5167 = vunpack.c.h.b16 %v2064
    %v5168 = vunpack.c.l.b16 %v2065
    %v5169 = vunpack.c.h.b16 %v2065
    %v5170 = vunpack.c.l.b16 %v2066
    %v5171 = vunpack.c.l.b16 %v2067
    %v5172 = vunpack.c.h.b16 %v2067
    %v5173 = vunpack.c.l.b16 %v2068
    %v5174 = vunpack.c.h.b16 %v2068
    %v5175 = vunpack.c.l.b16 %v2069
    %v5176 = vunpack.c.h.b16 %v2069
    %v5177 = vunpack.c.l.b16 %v2070
    %v5178 = vunpack.c.h.b16 %v2070
    %v5179 = vunpack.c.l.b16 %v2071
    %v5180 = vunpack.c.h.b16 %v2071
    %v5181 = vunpack.c.l.b16 %v2072
    %v5182 = vunpack.c.h.b16 %v2072
    %v5183 = vunpack.c.l.b16 %v2073
    %v5184 = vunpack.c.h.b16 %v2073
    %v5185 = vunpack.c.l.b16 %v2074
    %v5186 = vunpack.c.h.b16 %v2074
    %v5187 = vunpack.c.l.b16 %v2075
    %v5188 = vunpack.c.l.b16 %v2076
    %v5189 = vunpack.c.h.b16 %v2076
    %v5190 = vunpack.c.l.b16 %v2077
    %v5191 = vunpack.c.h.b16 %v2077
    %v5192 = vunpack.c.l.b16 %v2078
    %v5193 = vunpack.c.h.b16 %v2078
    %v5194 = vunpack.c.l.b16 %v2079
    %v5195 = vunpack.c.h.b16 %v2079
    %v5196 = vunpack.c.l.b16 %v2080
    %v5197 = vunpack.c.h.b16 %v2080
    %v5198 = vunpack.c.l.b16 %v2081
    %v5199 = vunpack.c.h.b16 %v2081
    %v5200 = vunpack.c.l.b16 %v2082
    %v5201 = vunpack.c.h.b16 %v2082
    %v5202 = vunpack.c.l.b16 %v2083
    %v5203 = vunpack.c.h.b16 %v2083
    %v5204 = vunpack.c.l.b16 %v2084
    %v5205 = vunpack.c.l.b16 %v2085
    %v5206 = vunpack.c.h.b16 %v2085
    %v5207 = vunpack.c.l.b16 %v2086
    %v5208 = vunpack.c.h.b16 %v2086
    %v5209 = vunpack.c.l.b16 %v2087
    %v5210 = vunpack.c.h.b16 %v2087
    %v5211 = vunpack.c.l.b16 %v2088
    %v5212 = vunpack.c.h.b16 %v2088
    %v5213 = vunpack.c.l.b16 %v2089
    %v5214 = vunpack.c.h.b16 %v2089
    %v5215 = vunpack.c.l.b16 %v2090
    %v5216 = vunpack.c.h.b16 %v2090
    %v5217 = vunpack.c.l.b16 %v2091
    %v5218 = vunpack.c.h.b16 %v2091
    %v5219 = vunpack.c.l.b16 %v2092
    %v5220 = vunpack.c.h.b16 %v2092
    %v5221 = vunpack.c.l.b16 %v2093
    %v5222 = vunpack.c.l.b16 %v2094
    %v5223 = vunpack.c.h.b16 %v2094
    %v5224 = vunpack.c.l.b16 %v2095
    %v5225 = vunpack.c.h.b16 %v2095
    %v5226 = vunpack.c.l.b16 %v2096
    %v5227 = vunpack.c.h.b16 %v2096
    %v5228 = vunpack.c.l.b16 %v2097
    %v5229 = vunpack.c.h.b16 %v2097
    %v5230 = vunpack.c.l.b16 %v2098
    %v5231 = vunpack.c.h.b16 %v2098
    %v5232 = vunpack.c.l.b16 %v2099
    %v5233 = vunpack.c.h.b16 %v2099
    %v5234 = vunpack.c.l.b16 %v2100
    %v5235 = vunpack.c.h.b16 %v2100
    %v5236 = vunpack.c.l.b16 %v2101
    %v5237 = vunpack.c.h.b16 %v2101
    %v5238 = vunpack.c.l.b16 %v2102
    %v5239 = vunpack.c.l.b16 %v2103
    %v5240 = vunpack.c.h.b16 %v2103
    %v5241 = vunpack.c.l.b16 %v2104
    %v5242 = vunpack.c.h.b16 %v2104
    %v5243 = vunpack.c.l.b16 %v2105
    %v5244 = vunpack.c.h.b16 %v2105
    %v5245 = vunpack.c.l.b16 %v2106
    %v5246 = vunpack.c.h.b16 %v2106
    %v5247 = vunpack.c.l.b16 %v2107
    %v5248 = vunpack.c.h.b16 %v2107
    %v5249 = vunpack.c.l.b16 %v2108
    %v5250 = vunpack.c.h.b16 %v2108
    %v5251 = vunpack.c.l.b16 %v2109
    %v5252 = vunpack.c.h.b16 %v2109
    %v5253 = vunpack.c.l.b16 %v2110
    %v5254 = vunpack.c.h.b16 %v2110
    %v5255 = vunpack.c.l.b16 %v2111
    %v5256 = vunpack.c.l.b16 %v2112
    %v5257 = vunpack.c.h.b16 %v2112
    %v5258 = vunpack.c.l.b16 %v2113
    %v5259 = vunpack.c.h.b16 %v2113
    %v5260 = vunpack.c.l.b16 %v2114
    %v5261 = vunpack.c.h.b16 %v2114
    %v5262 = vunpack.c.l.b16 %v2115
    %v5263 = vunpack.c.h.b16 %v2115
    %v5264 = vunpack.c.l.b16 %v2116
    %v5265 = vunpack.c.h.b16 %v2116
    %v5266 = vunpack.c.l.b16 %v2117
    %v5267 = vunpack.c.h.b16 %v2117
    %v5268 = vunpack.c.l.b16 %v2118
    %v5269 = vunpack.c.h.b16 %v2118
    %v5270 = vunpack.c.l.b16 %v2119
    %v5271 = vunpack.c.h.b16 %v2119
    %v5272 = vunpack.c.l.b16 %v2120
    %v5273 = vunpack.c.l.b16 %v2121
    %v5274 = vunpack.c.h.b16 %v2121
    %v5275 = vunpack.c.l.b16 %v2122
    %v5276 = vunpack.c.h.b16 %v2122
    %v5277 = vunpack.c.l.b16 %v2123
    %v5278 = vunpack.c.h.b16 %v2123
    %v5279 = vunpack.c.l.b16 %v2124
    %v5280 = vunpack.c.h.b16 %v2124
    %v5281 = vunpack.c.l.b16 %v2125
    %v5282 = vunpack.c.h.b16 %v2125
    %v5283 = vunpack.c.l.b16 %v2126
    %v5284 = vunpack.c.h.b16 %v2126
    %v5285 = vunpack.c.l.b16 %v2127
    %v5286 = vunpack.c.h.b16 %v2127
    %v5287 = vunpack.c.l.b16 %v2128
    %v5288 = vunpack.c.h.b16 %v2128
    %v5289 = vunpack.c.l.b16 %v2129
    %v5290 = vunpack.c.l.b16 %v2130
    %v5291 = vunpack.c.h.b16 %v2130
    %v5292 = vunpack.c.l.b16 %v2131
    %v5293 = vunpack.c.h.b16 %v2131
    %v5294 = vunpack.c.l.b16 %v2132
    %v5295 = vunpack.c.h.b16 %v2132
    %v5296 = vunpack.c.l.b16 %v2133
    %v5297 = vunpack.c.h.b16 %v2133
    %v5298 = vunpack.c.l.b16 %v2134
    %v5299 = vunpack.c.h.b16 %v2134
    %v5300 = vunpack.c.l.b16 %v2135
    %v5301 = vunpack.c.h.b16 %v2135
    %v5302 = vunpack.c.l.b16 %v2136
    %v5303 = vunpack.c.h.b16 %v2136
    %v5304 = vunpack.c.l.b16 %v2137
    %v5305 = vunpack.c.h.b16 %v2137
    %v5306 = vunpack.c.l.b16 %v2138
    %v5307 = vunpack.c.l.b16 %v2139
    %v5308 = vunpack.c.h.b16 %v2139
    %v5309 = vunpack.c.l.b16 %v2140
    %v5310 = vunpack.c.h.b16 %v2140
    %v5311 = vunpack.c.l.b16 %v2141
    %v5312 = vunpack.c.h.b16 %v2141
    %v5313 = vunpack.c.l.b16 %v2142
    %v5314 = vunpack.c.h.b16 %v2142
    %v5315 = vunpack.c.l.b16 %v2143
    %v5316 = vunpack.c.h.b16 %v2143
    %v5317 = vunpack.c.l.b16 %v2144
    %v5318 = vunpack.c.h.b16 %v2144
    %v5319 = vunpack.c.l.b16 %v2145
    %v5320 = vunpack.c.h.b16 %v2145
    %v5321 = vunpack.c.l.b16 %v2146
    %v5322 = vunpack.c.h.b16 %v2146
    %v5323 = vunpack.c.l.b16 %v2147
    %v5324 = vunpack.c.l.b16 %v2148
    %v5325 = vunpack.c.h.b16 %v2148
    %v5326 = vunpack.c.l.b16 %v2149
    %v5327 = vunpack.c.h.b16 %v2149
    %v5328 = vunpack.c.l.b16 %v2150
    %v5329 = vunpack.c.h.b16 %v2150
    %v5330 = vunpack.c.l.b16 %v2151
    %v5331 = vunpack.c.h.b16 %v2151
    %v5332 = vunpack.c.l.b16 %v2152
    %v5333 = vunpack.c.h.b16 %v2152
    %v5334 = vunpack.c.l.b16 %v2153
    %v5335 = vunpack.c.h.b16 %v2153
    %v5336 = vunpack.c.l.b16 %v2154
    %v5337 = vunpack.c.h.b16 %v2154
    %v5338 = vunpack.c.l.b16 %v2155
    %v5339 = vunpack.c.h.b16 %v2155
    %v5340 = vunpack.c.l.b16 %v2156
    %v5341 = vunpack.c.l.b16 %v2157
    %v5342 = vunpack.c.h.b16 %v2157
    %v5343 = vunpack.c.l.b16 %v2158
    %v5344 = vunpack.c.h.b16 %v2158
    %v5345 = vunpack.c.l.b16 %v2159
    %v5346 = vunpack.c.h.b16 %v2159
    %v5347 = vunpack.c.l.b16 %v2160
    %v5348 = vunpack.c.h.b16 %v2160
    %v5349 = vunpack.c.l.b16 %v2161
    %v5350 = vunpack.c.h.b16 %v2161
    %v5351 = vunpack.c.l.b16 %v2162
    %v5352 = vunpack.c.h.b16 %v2162
    %v5353 = vunpack.c.l.b16 %v2163
    %v5354 = vunpack.c.h.b16 %v2163
    %v5355 = vunpack.c.l.b16 %v2164
    %v5356 = vunpack.c.h.b16 %v2164
    %v5357 = vunpack.c.l.b16 %v2165
    %v5358 = vunpack.c.l.b16 %v2166
    %v5359 = vunpack.c.h.b16 %v2166
    %v5360 = vunpack.c.l.b16 %v2167
    %v5361 = vunpack.c.h.b16 %v2167
    %v5362 = vunpack.c.l.b16 %v2168
    %v5363 = vunpack.c.h.b16 %v2168
    %v5364 = vunpack.c.l.b16 %v2169
    %v5365 = vunpack.c.h.b16 %v2169
    %v5366 = vunpack.c.l.b16 %v2170
    %v5367 = vunpack.c.h.b16 %v2170
    %v5368 = vunpack.c.l.b16 %v2171
    %v5369 = vunpack.c.h.b16 %v2171
    %v5370 = vunpack.c.l.b16 %v2172
    %v5371 = vunpack.c.h.b16 %v2172
    %v5372 = vunpack.c.l.b16 %v2173
    %v5373 = vunpack.c.h.b16 %v2173
    %v5374 = vunpack.c.l.b16 %v2174
    %v5375 = vunpack.c.l.b16 %v2175
    %v5376 = vunpack.c.h.b16 %v2175
    %v5377 = vunpack.c.l.b16 %v2176
    %v5378 = vunpack.c.h.b16 %v2176
    %v5379 = vunpack.c.l.b16 %v2177
    %v5380 = vunpack.c.h.b16 %v2177
    %v5381 = vunpack.c.l.b16 %v2178
    %v5382 = vunpack.c.h.b16 %v2178
    %v5383 = vunpack.c.l.b16 %v2179
    %v5384 = vunpack.c.h.b16 %v2179
    %v5385 = vunpack.c.l.b16 %v2180
    %v5386 = vunpack.c.h.b16 %v2180
    %v5387 = vunpack.c.l.b16 %v2181
    %v5388 = vunpack.c.h.b16 %v2181
    %v5389 = vunpack.c.l.b16 %v2182
    %v5390 = vunpack.c.h.b16 %v2182
    %v5391 = vunpack.c.l.b16 %v2183
    %v5392 = vunpack.c.l.b16 %v2184
    %v5393 = vunpack.c.h.b16 %v2184
    %v5394 = vunpack.c.l.b16 %v2185
    %v5395 = vunpack.c.h.b16 %v2185
    %v5396 = vunpack.c.l.b16 %v2186
    %v5397 = vunpack.c.h.b16 %v2186
    %v5398 = vunpack.c.l.b16 %v2187
    %v5399 = vunpack.c.h.b16 %v2187
    %v5400 = vunpack.c.l.b16 %v2188
    %v5401 = vunpack.c.h.b16 %v2188
    %v5402 = vunpack.c.l.b16 %v2189
    %v5403 = vunpack.c.h.b16 %v2189
    %v5404 = vunpack.c.l.b16 %v2190
    %v5405 = vunpack.c.h.b16 %v2190
    %v5406 = vunpack.c.l.b16 %v2191
    %v5407 = vunpack.c.h.b16 %v2191
    %v5408 = vunpack.c.l.b16 %v2192
    %v5409 = vunpack.c.l.b16 %v2193
    %v5410 = vunpack.c.h.b16 %v2193
    %v5411 = vunpack.c.l.b16 %v2194
    %v5412 = vunpack.c.h.b16 %v2194
    %v5413 = vunpack.c.l.b16 %v2195
    %v5414 = vunpack.c.h.b16 %v2195
    %v5415 = vunpack.c.l.b16 %v2196
    %v5416 = vunpack.c.h.b16 %v2196
    %v5417 = vunpack.c.l.b16 %v2197
    %v5418 = vunpack.c.h.b16 %v2197
    %v5419 = vunpack.c.l.b16 %v2198
    %v5420 = vunpack.c.h.b16 %v2198
    %v5421 = vunpack.c.l.b16 %v2199
    %v5422 = vunpack.c.h.b16 %v2199
    %v5423 = vunpack.c.l.b16 %v2200
    %v5424 = vunpack.c.h.b16 %v2200
    %v5425 = vunpack.c.l.b16 %v2201
    %v5426 = vunpack.c.l.b16 %v2202
    %v5427 = vunpack.c.h.b16 %v2202
    %v5428 = vunpack.c.l.b16 %v2203
    %v5429 = vunpack.c.h.b16 %v2203
    %v5430 = vunpack.c.l.b16 %v2204
    %v5431 = vunpack.c.h.b16 %v2204
    %v5432 = vunpack.c.l.b16 %v2205
    %v5433 = vunpack.c.h.b16 %v2205
    %v5434 = vunpack.c.l.b16 %v2206
    %v5435 = vunpack.c.h.b16 %v2206
    %v5436 = vunpack.c.l.b16 %v2207
    %v5437 = vunpack.c.h.b16 %v2207
    %v5438 = vunpack.c.l.b16 %v2208
    %v5439 = vunpack.c.h.b16 %v2208
    %v5440 = vunpack.c.l.b16 %v2209
    %v5441 = vunpack.c.h.b16 %v2209
    %v5442 = vunpack.c.l.b16 %v2210
    %v5443 = vunpack.c.l.b16 %v2211
    %v5444 = vunpack.c.h.b16 %v2211
    %v5445 = vunpack.c.l.b16 %v2212
    %v5446 = vunpack.c.h.b16 %v2212
    %v5447 = vunpack.c.l.b16 %v2213
    %v5448 = vunpack.c.h.b16 %v2213
    %v5449 = vunpack.c.l.b16 %v2214
    %v5450 = vunpack.c.h.b16 %v2214
    %v5451 = vunpack.c.l.b16 %v2215
    %v5452 = vunpack.c.h.b16 %v2215
    %v5453 = vunpack.c.l.b16 %v2216
    %v5454 = vunpack.c.h.b16 %v2216
    %v5455 = vunpack.c.l.b16 %v2217
    %v5456 = vunpack.c.h.b16 %v2217
    %v5457 = vunpack.c.l.b16 %v2218
    %v5458 = vunpack.c.h.b16 %v2218
    %v5459 = vunpack.c.l.b16 %v2219
    %v5460 = vunpack.c.l.b16 %v2220
    %v5461 = vunpack.c.h.b16 %v2220
    %v5462 = vunpack.c.l.b16 %v2221
    %v5463 = vunpack.c.h.b16 %v2221
    %v5464 = vunpack.c.l.b16 %v2222
    %v5465 = vunpack.c.h.b16 %v2222
    %v5466 = vunpack.c.l.b16 %v2223
    %v5467 = vunpack.c.h.b16 %v2223
    %v5468 = vunpack.c.l.b16 %v2224
    %v5469 = vunpack.c.h.b16 %v2224
    %v5470 = vunpack.c.l.b16 %v2225
    %v5471 = vunpack.c.h.b16 %v2225
    %v5472 = vunpack.c.l.b16 %v2226
    %v5473 = vunpack.c.h.b16 %v2226
    %v5474 = vunpack.c.l.b16 %v2227
    %v5475 = vunpack.c.h.b16 %v2227
    %v5476 = vunpack.c.l.b16 %v2228
    %v5477 = vunpack.c.l.b16 %v2229
    %v5478 = vunpack.c.h.b16 %v2229
    %v5479 = vunpack.c.l.b16 %v2230
    %v5480 = vunpack.c.h.b16 %v2230
    %v5481 = vunpack.c.l.b16 %v2231
    %v5482 = vunpack.c.h.b16 %v2231
    %v5483 = vunpack.c.l.b16 %v2232
    %v5484 = vunpack.c.h.b16 %v2232
    %v5485 = vunpack.c.l.b16 %v2233
    %v5486 = vunpack.c.h.b16 %v2233
    %v5487 = vunpack.c.l.b16 %v2234
    %v5488 = vunpack.c.h.b16 %v2234
    %v5489 = vunpack.c.l.b16 %v2235
    %v5490 = vunpack.c.h.b16 %v2235
    %v5491 = vunpack.c.l.b16 %v2236
    %v5492 = vunpack.c.h.b16 %v2236
    %v5493 = vunpack.c.l.b16 %v2237
    %v5494 = vunpack.c.l.b16 %v2238
    %v5495 = vunpack.c.h.b16 %v2238
    %v5496 = vunpack.c.l.b16 %v2239
    %v5497 = vunpack.c.h.b16 %v2239
    %v5498 = vunpack.c.l.b16 %v2240
    %v5499 = vunpack.c.h.b16 %v2240
    %v5500 = vunpack.c.l.b16 %v2241
    %v5501 = vunpack.c.h.b16 %v2241
    %v5502 = vunpack.c.l.b16 %v2242
    %v5503 = vunpack.c.h.b16 %v2242
    %v5504 = vunpack.c.l.b16 %v2243
    %v5505 = vunpack.c.h.b16 %v2243
    %v5506 = vunpack.c.l.b16 %v2244
    %v5507 = vunpack.c.h.b16 %v2244
    %v5508 = vunpack.c.l.b16 %v2245
    %v5509 = vunpack.c.h.b16 %v2245
    %v5510 = vunpack.c.l.b16 %v2246
    %v5511 = vunpack.c.l.b16 %v2247
    %v5512 = vunpack.c.h.b16 %v2247
    %v5513 = vunpack.c.l.b16 %v2248
    %v5514 = vunpack.c.h.b16 %v2248
    %v5515 = vunpack.c.l.b16 %v2249
    %v5516 = vunpack.c.h.b16 %v2249
    %v5517 = vunpack.c.l.b16 %v2250
    %v5518 = vunpack.c.h.b16 %v2250
    %v5519 = vunpack.c.l.b16 %v2251
    %v5520 = vunpack.c.h.b16 %v2251
    %v5521 = vunpack.c.l.b16 %v2252
    %v5522 = vunpack.c.h.b16 %v2252
    %v5523 = vunpack.c.l.b16 %v2253
    %v5524 = vunpack.c.h.b16 %v2253
    %v5525 = vunpack.c.l.b16 %v2254
    %v5526 = vunpack.c.h.b16 %v2254
    %v5527 = vunpack.c.l.b16 %v2255
    %v5528 = vunpack.c.l.b16 %v2256
    %v5529 = vunpack.c.h.b16 %v2256
    %v5530 = vunpack.c.l.b16 %v2257
    %v5531 = vunpack.c.h.b16 %v2257
    %v5532 = vunpack.c.l.b16 %v2258
    %v5533 = vunpack.c.h.b16 %v2258
    %v5534 = vunpack.c.l.b16 %v2259
    %v5535 = vunpack.c.h.b16 %v2259
    %v5536 = vunpack.c.l.b16 %v2260
    %v5537 = vunpack.c.h.b16 %v2260
    %v5538 = vunpack.c.l.b16 %v2261
    %v5539 = vunpack.c.h.b16 %v2261
    %v5540 = vunpack.c.l.b16 %v2262
    %v5541 = vunpack.c.h.b16 %v2262
    %v5542 = vunpack.c.l.b16 %v2263
    %v5543 = vunpack.c.h.b16 %v2263
    %v5544 = vunpack.c.l.b16 %v2264
    %v5545 = vunpack.c.l.b16 %v2265
    %v5546 = vunpack.c.h.b16 %v2265
    %v5547 = vunpack.c.l.b16 %v2266
    %v5548 = vunpack.c.h.b16 %v2266
    %v5549 = vunpack.c.l.b16 %v2267
    %v5550 = vunpack.c.h.b16 %v2267
    %v5551 = vunpack.c.l.b16 %v2268
    %v5552 = vunpack.c.h.b16 %v2268
    %v5553 = vunpack.c.l.b16 %v2269
    %v5554 = vunpack.c.h.b16 %v2269
    %v5555 = vunpack.c.l.b16 %v2270
    %v5556 = vunpack.c.h.b16 %v2270
    %v5557 = vunpack.c.l.b16 %v2271
    %v5558 = vunpack.c.h.b16 %v2271
    %v5559 = vunpack.c.l.b16 %v2272
    %v5560 = vunpack.c.h.b16 %v2272
    %v5561 = vunpack.c.l.b16 %v2273
    %v5562 = vunpack.c.l.b16 %v2274
    %v5563 = vunpack.c.h.b16 %v2274
    %v5564 = vunpack.c.l.b16 %v2275
    %v5565 = vunpack.c.h.b16 %v2275
    %v5566 = vunpack.c.l.b16 %v2276
    %v5567 = vunpack.c.h.b16 %v2276
    %v5568 = vunpack.c.l.b16 %v2277
    %v5569 = vunpack.c.h.b16 %v2277
    %v5570 = vunpack.c.l.b16 %v2278
    %v5571 = vunpack.c.h.b16 %v2278
    %v5572 = vunpack.c.l.b16 %v2279
    %v5573 = vunpack.c.h.b16 %v2279
    %v5574 = vunpack.c.l.b16 %v2280
    %v5575 = vunpack.c.h.b16 %v2280
    %v5576 = vunpack.c.l.b16 %v2281
    %v5577 = vunpack.c.h.b16 %v2281
    %v5578 = vunpack.c.l.b16 %v2282
    %v5579 = vunpack.c.l.b16 %v2283
    %v5580 = vunpack.c.h.b16 %v2283
    %v5581 = vunpack.c.l.b16 %v2284
    %v5582 = vunpack.c.h.b16 %v2284
    %v5583 = vunpack.c.l.b16 %v2285
    %v5584 = vunpack.c.h.b16 %v2285
    %v5585 = vunpack.c.l.b16 %v2286
    %v5586 = vunpack.c.h.b16 %v2286
    %v5587 = vunpack.c.l.b16 %v2287
    %v5588 = vunpack.c.h.b16 %v2287
    %v5589 = vunpack.c.l.b16 %v2288
    %v5590 = vunpack.c.h.b16 %v2288
    %v5591 = vunpack.c.l.b16 %v2289
    %v5592 = vunpack.c.h.b16 %v2289
    %v5593 = vunpack.c.l.b16 %v2290
    %v5594 = vunpack.c.h.b16 %v2290
    %v5595 = vunpack.c.l.b16 %v2291
    %v5596 = vunpack.c.l.b16 %v2292
    %v5597 = vunpack.c.h.b16 %v2292
    %v5598 = vunpack.c.l.b16 %v2293
    %v5599 = vunpack.c.h.b16 %v2293
    %v5600 = vunpack.c.l.b16 %v2294
    %v5601 = vunpack.c.h.b16 %v2294
    %v5602 = vunpack.c.l.b16 %v2295
    %v5603 = vunpack.c.h.b16 %v2295
    %v5604 = vunpack.c.l.b16 %v2296
    %v5605 = vunpack.c.h.b16 %v2296
    %v5606 = vunpack.c.l.b16 %v2297
    %v5607 = vunpack.c.h.b16 %v2297
    %v5608 = vunpack.c.l.b16 %v2298
    %v5609 = vunpack.c.h.b16 %v2298
    %v5610 = vunpack.c.l.b16 %v2299
    %v5611 = vunpack.c.h.b16 %v2299
    %v5612 = vunpack.c.l.b16 %v2300
    %v5613 = vunpack.c.l.b16 %v2301
    %v5614 = vunpack.c.h.b16 %v2301
    %v5615 = vunpack.c.l.b16 %v2302
    %v5616 = vunpack.c.h.b16 %v2302
    %v5617 = vunpack.c.l.b16 %v2303
    %v5618 = vunpack.c.h.b16 %v2303
    %v5619 = vunpack.c.l.b16 %v2304
    %v5620 = vunpack.c.h.b16 %v2304
    %v5621 = vunpack.c.l.b16 %v2305
    %v5622 = vunpack.c.h.b16 %v2305
    %v5623 = vunpack.c.l.b16 %v2306
    %v5624 = vunpack.c.h.b16 %v2306
    %v5625 = vunpack.c.l.b16 %v2307
    %v5626 = vunpack.c.h.b16 %v2307
    %v5627 = vunpack.c.l.b16 %v2308
    %v5628 = vunpack.c.h.b16 %v2308
    %v5629 = vunpack.c.l.b16 %v2309
    %v5630 = vunpack.c.l.b16 %v2310
    %v5631 = vunpack.c.h.b16 %v2310
    %v5632 = vunpack.c.l.b16 %v2311
    %v5633 = vunpack.c.h.b16 %v2311
    %v5634 = vunpack.c.l.b16 %v2312
    %v5635 = vunpack.c.h.b16 %v2312
    %v5636 = vunpack.c.l.b16 %v2313
    %v5637 = vunpack.c.h.b16 %v2313
    %v5638 = vunpack.c.l.b16 %v2314
    %v5639 = vunpack.c.h.b16 %v2314
    %v5640 = vunpack.c.l.b16 %v2315
    %v5641 = vunpack.c.h.b16 %v2315
    %v5642 = vunpack.c.l.b16 %v2316
    %v5643 = vunpack.c.h.b16 %v2316
    %v5644 = vunpack.c.l.b16 %v2317
    %v5645 = vunpack.c.h.b16 %v2317
    %v5646 = vunpack.c.l.b16 %v2318
    %v5647 = vpack.c.b16 %v3488, %v3471
    %v5648 = vpack.c.b16 %v3489, %v3472
    %v5649 = vpack.c.b16 %v3490, %v3473
    %v5650 = vpack.c.b16 %v3491, %v3474
    %v5651 = vpack.c.b16 %v3492, %v3475
    %v5652 = vpack.c.b16 %v3493, %v3476
    %v5653 = vpack.c.b16 %v3494, %v3477
    %v5654 = vpack.c.b16 %v3495, %v3478
    %v5655 = vpack.c.b16 %v3496, %v3479
    %v5656 = vpack.c.b16 %v3497, %v3480
    %v5657 = vpack.c.b16 %v3498, %v3481
    %v5658 = vpack.c.b16 %v3499, %v3482
    %v5659 = vpack.c.b16 %v3500, %v3483
    %v5660 = vpack.c.b16 %v3501, %v3484
    %v5661 = vpack.c.b16 %v3502, %v3485
    %v5662 = vpack.c.b16 %v3503, %v3486
    %v5663 = vpack.c.b16 %v3504, %v3487
    %v5664 = vpack.c.b16 %v3522, %v3505
    %v5665 = vpack.c.b16 %v3523, %v3506
    %v5666 = vpack.c.b16 %v3524, %v3507
    %v5667 = vpack.c.b16 %v3525, %v3508
    %v5668 = vpack.c.b16 %v3526, %v3509
    %v5669 = vpack.c.b16 %v3527, %v3510
    %v5670 = vpack.c.b16 %v3528, %v3511
    %v5671 = vpack.c.b16 %v3529, %v3512
    %v5672 = vpack.c.b16 %v3530, %v3513
    %v5673 = vpack.c.b16 %v3531, %v3514
    %v5674 = vpack.c.b16 %v3532, %v3515
    %v5675 = vpack.c.b16 %v3533, %v3516
    %v5676 = vpack.c.b16 %v3534, %v3517
    %v5677 = vpack.c.b16 %v3535, %v3518
    %v5678 = vpack.c.b16 %v3536, %v3519
    %v5679 = vpack.c.b16 %v3537, %v3520
    %v5680 = vpack.c.b16 %v3538, %v3521
    %v5681 = vpack.c.b16 %v3556, %v3539
    %v5682 = vpack.c.b16 %v3557, %v3540
    %v5683 = vpack.c.b16 %v3558, %v3541
    %v5684 = vpack.c.b16 %v3559, %v3542
    %v5685 = vpack.c.b16 %v3560, %v3543
    %v5686 = vpack.c.b16 %v3561, %v3544
    %v5687 = vpack.c.b16 %v3562, %v3545
    %v5688 = vpack.c.b16 %v3563, %v3546
    %v5689 = vpack.c.b16 %v3564, %v3547
    %v5690 = vpack.c.b16 %v3565, %v3548
    %v5691 = vpack.c.b16 %v3566, %v3549
    %v5692 = vpack.c.b16 %v3567, %v3550
    %v5693 = vpack.c.b16 %v3568, %v3551
    %v5694 = vpack.c.b16 %v3569, %v3552
    %v5695 = vpack.c.b16 %v3570, %v3553
    %v5696 = vpack.c.b16 %v3571, %v3554
    %v5697 = vpack.c.b16 %v3572, %v3555
    %v5698 = vpack.c.b16 %v3590, %v3573
    %v5699 = vpack.c.b16 %v3591, %v3574
    %v5700 = vpack.c.b16 %v3592, %v3575
    %v5701 = vpack.c.b16 %v3593, %v3576
    %v5702 = vpack.c.b16 %v3594, %v3577
    %v5703 = vpack.c.b16 %v3595, %v3578
    %v5704 = vpack.c.b16 %v3596, %v3579
    %v5705 = vpack.c.b16 %v3597, %v3580
    %v5706 = vpack.c.b16 %v3598, %v3581
    %v5707 = vpack.c.b16 %v3599, %v3582
    %v5708 = vpack.c.b16 %v3600, %v3583
    %v5709 = vpack.c.b16 %v3601, %v3584
    %v5710 = vpack.c.b16 %v3602, %v3585
    %v5711 = vpack.c.b16 %v3603, %v3586
    %v5712 = vpack.c.b16 %v3604, %v3587
    %v5713 = vpack.c.b16 %v3605, %v3588
    %v5714 = vpack.c.b16 %v3606, %v3589
    %v5715 = vpack.c.b16 %v3624, %v3607
    %v5716 = vpack.c.b16 %v3625, %v3608
    %v5717 = vpack.c.b16 %v3626, %v3609
    %v5718 = vpack.c.b16 %v3627, %v3610
    %v5719 = vpack.c.b16 %v3628, %v3611
    %v5720 = vpack.c.b16 %v3629, %v3612
    %v5721 = vpack.c.b16 %v3630, %v3613
    %v5722 = vpack.c.b16 %v3631, %v3614
    %v5723 = vpack.c.b16 %v3632, %v3615
    %v5724 = vpack.c.b16 %v3633, %v3616
    %v5725 = vpack.c.b16 %v3634, %v3617
    %v5726 = vpack.c.b16 %v3635, %v3618
    %v5727 = vpack.c.b16 %v3636, %v3619
    %v5728 = vpack.c.b16 %v3637, %v3620
    %v5729 = vpack.c.b16 %v3638, %v3621
    %v5730 = vpack.c.b16 %v3639, %v3622
    %v5731 = vpack.c.b16 %v3640, %v3623
    %v5732 = vpack.c.b16 %v3658, %v3641
    %v5733 = vpack.c.b16 %v3659, %v3642
    %v5734 = vpack.c.b16 %v3660, %v3643
    %v5735 = vpack.c.b16 %v3661, %v3644
    %v5736 = vpack.c.b16 %v3662, %v3645
    %v5737 = vpack.c.b16 %v3663, %v3646
    %v5738 = vpack.c.b16 %v3664, %v3647
    %v5739 = vpack.c.b16 %v3665, %v3648
    %v5740 = vpack.c.b16 %v3666, %v3649
    %v5741 = vpack.c.b16 %v3667, %v3650
    %v5742 = vpack.c.b16 %v3668, %v3651
    %v5743 = vpack.c.b16 %v3669, %v3652
    %v5744 = vpack.c.b16 %v3670, %v3653
    %v5745 = vpack.c.b16 %v3671, %v3654
    %v5746 = vpack.c.b16 %v3672, %v3655
    %v5747 = vpack.c.b16 %v3673, %v3656
    %v5748 = vpack.c.b16 %v3674, %v3657
    %v5749 = vpack.c.b16 %v3692, %v3675
    %v5750 = vpack.c.b16 %v3693, %v3676
    %v5751 = vpack.c.b16 %v3694, %v3677
    %v5752 = vpack.c.b16 %v3695, %v3678
    %v5753 = vpack.c.b16 %v3696, %v3679
    %v5754 = vpack.c.b16 %v3697, %v3680
    %v5755 = vpack.c.b16 %v3698, %v3681
    %v5756 = vpack.c.b16 %v3699, %v3682
    %v5757 = vpack.c.b16 %v3700, %v3683
    %v5758 = vpack.c.b16 %v3701, %v3684
    %v5759 = vpack.c.b16 %v3702, %v3685
    %v5760 = vpack.c.b16 %v3703, %v3686
    %v5761 = vpack.c.b16 %v3704, %v3687
    %v5762 = vpack.c.b16 %v3705, %v3688
    %v5763 = vpack.c.b16 %v3706, %v3689
    %v5764 = vpack.c.b16 %v3707, %v3690
    %v5765 = vpack.c.b16 %v3708, %v3691
    %v5766 = vpack.c.b16 %v3726, %v3709
    %v5767 = vpack.c.b16 %v3727, %v3710
    %v5768 = vpack.c.b16 %v3728, %v3711
    %v5769 = vpack.c.b16 %v3729, %v3712
    %v5770 = vpack.c.b16 %v3730, %v3713
    %v5771 = vpack.c.b16 %v3731, %v3714
    %v5772 = vpack.c.b16 %v3732, %v3715
    %v5773 = vpack.c.b16 %v3733, %v3716
    %v5774 = vpack.c.b16 %v3734, %v3717
    %v5775 = vpack.c.b16 %v3735, %v3718
    %v5776 = vpack.c.b16 %v3736, %v3719
    %v5777 = vpack.c.b16 %v3737, %v3720
    %v5778 = vpack.c.b16 %v3738, %v3721
    %v5779 = vpack.c.b16 %v3739, %v3722
    %v5780 = vpack.c.b16 %v3740, %v3723
    %v5781 = vpack.c.b16 %v3741, %v3724
    %v5782 = vpack.c.b16 %v3742, %v3725
    %v5783 = vpack.c.b16 %v3760, %v3743
    %v5784 = vpack.c.b16 %v3761, %v3744
    %v5785 = vpack.c.b16 %v3762, %v3745
    %v5786 = vpack.c.b16 %v3763, %v3746
    %v5787 = vpack.c.b16 %v3764, %v3747
    %v5788 = vpack.c.b16 %v3765, %v3748
    %v5789 = vpack.c.b16 %v3766, %v3749
    %v5790 = vpack.c.b16 %v3767, %v3750
    %v5791 = vpack.c.b16 %v3768, %v3751
    %v5792 = vpack.c.b16 %v3769, %v3752
    %v5793 = vpack.c.b16 %v3770, %v3753
    %v5794 = vpack.c.b16 %v3771, %v3754
    %v5795 = vpack.c.b16 %v3772, %v3755
    %v5796 = vpack.c.b16 %v3773, %v3756
    %v5797 = vpack.c.b16 %v3774, %v3757
    %v5798 = vpack.c.b16 %v3775, %v3758
    %v5799 = vpack.c.b16 %v3776, %v3759
    %v5800 = vpack.c.b16 %v3794, %v3777
    %v5801 = vpack.c.b16 %v3795, %v3778
    %v5802 = vpack.c.b16 %v3796, %v3779
    %v5803 = vpack.c.b16 %v3797, %v3780
    %v5804 = vpack.c.b16 %v3798, %v3781
    %v5805 = vpack.c.b16 %v3799, %v3782
    %v5806 = vpack.c.b16 %v3800, %v3783
    %v5807 = vpack.c.b16 %v3801, %v3784
    %v5808 = vpack.c.b16 %v3802, %v3785
    %v5809 = vpack.c.b16 %v3803, %v3786
    %v5810 = vpack.c.b16 %v3804, %v3787
    %v5811 = vpack.c.b16 %v3805, %v3788
    %v5812 = vpack.c.b16 %v3806, %v3789
    %v5813 = vpack.c.b16 %v3807, %v3790
    %v5814 = vpack.c.b16 %v3808, %v3791
    %v5815 = vpack.c.b16 %v3809, %v3792
    %v5816 = vpack.c.b16 %v3810, %v3793
    %v5817 = vpack.c.b16 %v3828, %v3811
    %v5818 = vpack.c.b16 %v3829, %v3812
    %v5819 = vpack.c.b16 %v3830, %v3813
    %v5820 = vpack.c.b16 %v3831, %v3814
    %v5821 = vpack.c.b16 %v3832, %v3815
    %v5822 = vpack.c.b16 %v3833, %v3816
    %v5823 = vpack.c.b16 %v3834, %v3817
    %v5824 = vpack.c.b16 %v3835, %v3818
    %v5825 = vpack.c.b16 %v3836, %v3819
    %v5826 = vpack.c.b16 %v3837, %v3820
    %v5827 = vpack.c.b16 %v3838, %v3821
    %v5828 = vpack.c.b16 %v3839, %v3822
    %v5829 = vpack.c.b16 %v3840, %v3823
    %v5830 = vpack.c.b16 %v3841, %v3824
    %v5831 = vpack.c.b16 %v3842, %v3825
    %v5832 = vpack.c.b16 %v3843, %v3826
    %v5833 = vpack.c.b16 %v3844, %v3827
    %v5834 = vpack.c.b16 %v3862, %v3845
    %v5835 = vpack.c.b16 %v3863, %v3846
    %v5836 = vpack.c.b16 %v3864, %v3847
    %v5837 = vpack.c.b16 %v3865, %v3848
    %v5838 = vpack.c.b16 %v3866, %v3849
    %v5839 = vpack.c.b16 %v3867, %v3850
    %v5840 = vpack.c.b16 %v3868, %v3851
    %v5841 = vpack.c.b16 %v3869, %v3852
    %v5842 = vpack.c.b16 %v3870, %v3853
    %v5843 = vpack.c.b16 %v3871, %v3854
    %v5844 = vpack.c.b16 %v3872, %v3855
    %v5845 = vpack.c.b16 %v3873, %v3856
    %v5846 = vpack.c.b16 %v3874, %v3857
    %v5847 = vpack.c.b16 %v3875, %v3858
    %v5848 = vpack.c.b16 %v3876, %v3859
    %v5849 = vpack.c.b16 %v3877, %v3860
    %v5850 = vpack.c.b16 %v3878, %v3861
    %v5851 = vpack.c.b16 %v3896, %v3879
    %v5852 = vpack.c.b16 %v3897, %v3880
    %v5853 = vpack.c.b16 %v3898, %v3881
    %v5854 = vpack.c.b16 %v3899, %v3882
    %v5855 = vpack.c.b16 %v3900, %v3883
    %v5856 = vpack.c.b16 %v3901, %v3884
    %v5857 = vpack.c.b16 %v3902, %v3885
    %v5858 = vpack.c.b16 %v3903, %v3886
    %v5859 = vpack.c.b16 %v3904, %v3887
    %v5860 = vpack.c.b16 %v3905, %v3888
    %v5861 = vpack.c.b16 %v3906, %v3889
    %v5862 = vpack.c.b16 %v3907, %v3890
    %v5863 = vpack.c.b16 %v3908, %v3891
    %v5864 = vpack.c.b16 %v3909, %v3892
    %v5865 = vpack.c.b16 %v3910, %v3893
    %v5866 = vpack.c.b16 %v3911, %v3894
    %v5867 = vpack.c.b16 %v3912, %v3895
    %v5868 = vpack.c.b16 %v3930, %v3913
    %v5869 = vpack.c.b16 %v3931, %v3914
    %v5870 = vpack.c.b16 %v3932, %v3915
    %v5871 = vpack.c.b16 %v3933, %v3916
    %v5872 = vpack.c.b16 %v3934, %v3917
    %v5873 = vpack.c.b16 %v3935, %v3918
    %v5874 = vpack.c.b16 %v3936, %v3919
    %v5875 = vpack.c.b16 %v3937, %v3920
    %v5876 = vpack.c.b16 %v3938, %v3921
    %v5877 = vpack.c.b16 %v3939, %v3922
    %v5878 = vpack.c.b16 %v3940, %v3923
    %v5879 = vpack.c.b16 %v3941, %v3924
    %v5880 = vpack.c.b16 %v3942, %v3925
    %v5881 = vpack.c.b16 %v3943, %v3926
    %v5882 = vpack.c.b16 %v3944, %v3927
    %v5883 = vpack.c.b16 %v3945, %v3928
    %v5884 = vpack.c.b16 %v3946, %v3929
    %v5885 = vpack.c.b16 %v3964, %v3947
    %v5886 = vpack.c.b16 %v3965, %v3948
    %v5887 = vpack.c.b16 %v3966, %v3949
    %v5888 = vpack.c.b16 %v3967, %v3950
    %v5889 = vpack.c.b16 %v3968, %v3951
    %v5890 = vpack.c.b16 %v3969, %v3952
    %v5891 = vpack.c.b16 %v3970, %v3953
    %v5892 = vpack.c.b16 %v3971, %v3954
    %v5893 = vpack.c.b16 %v3972, %v3955
    %v5894 = vpack.c.b16 %v3973, %v3956
    %v5895 = vpack.c.b16 %v3974, %v3957
    %v5896 = vpack.c.b16 %v3975, %v3958
    %v5897 = vpack.c.b16 %v3976, %v3959
    %v5898 = vpack.c.b16 %v3977, %v3960
    %v5899 = vpack.c.b16 %v3978, %v3961
    %v5900 = vpack.c.b16 %v3979, %v3962
    %v5901 = vpack.c.b16 %v3980, %v3963
    %v5902 = vpack.c.b16 %v3998, %v3981
    %v5903 = vpack.c.b16 %v3999, %v3982
    %v5904 = vpack.c.b16 %v4000, %v3983
    %v5905 = vpack.c.b16 %v4001, %v3984
    %v5906 = vpack.c.b16 %v4002, %v3985
    %v5907 = vpack.c.b16 %v4003, %v3986
    %v5908 = vpack.c.b16 %v4004, %v3987
    %v5909 = vpack.c.b16 %v4005, %v3988
    %v5910 = vpack.c.b16 %v4006, %v3989
    %v5911 = vpack.c.b16 %v4007, %v3990
    %v5912 = vpack.c.b16 %v4008, %v3991
    %v5913 = vpack.c.b16 %v4009, %v3992
    %v5914 = vpack.c.b16 %v4010, %v3993
    %v5915 = vpack.c.b16 %v4011, %v3994
    %v5916 = vpack.c.b16 %v4012, %v3995
    %v5917 = vpack.c.b16 %v4013, %v3996
    %v5918 = vpack.c.b16 %v4014, %v3997
    %v5919 = vpack.c.b16 %v4032, %v4015
    %v5920 = vpack.c.b16 %v4033, %v4016
    %v5921 = vpack.c.b16 %v4034, %v4017
    %v5922 = vpack.c.b16 %v4035, %v4018
    %v5923 = vpack.c.b16 %v4036, %v4019
    %v5924 = vpack.c.b16 %v4037, %v4020
    %v5925 = vpack.c.b16 %v4038, %v4021
    %v5926 = vpack.c.b16 %v4039, %v4022
    %v5927 = vpack.c.b16 %v4040, %v4023
    %v5928 = vpack.c.b16 %v4041, %v4024
    %v5929 = vpack.c.b16 %v4042, %v4025
    %v5930 = vpack.c.b16 %v4043, %v4026
    %v5931 = vpack.c.b16 %v4044, %v4027
    %v5932 = vpack.c.b16 %v4045, %v4028
    %v5933 = vpack.c.b16 %v4046, %v4029
    %v5934 = vpack.c.b16 %v4047, %v4030
    %v5935 = vpack.c.b16 %v4048, %v4031
    %v5936 = vpack.c.b16 %v4066, %v4049
    %v5937 = vpack.c.b16 %v4067, %v4050
    %v5938 = vpack.c.b16 %v4068, %v4051
    %v5939 = vpack.c.b16 %v4069, %v4052
    %v5940 = vpack.c.b16 %v4070, %v4053
    %v5941 = vpack.c.b16 %v4071, %v4054
    %v5942 = vpack.c.b16 %v4072, %v4055
    %v5943 = vpack.c.b16 %v4073, %v4056
    %v5944 = vpack.c.b16 %v4074, %v4057
    %v5945 = vpack.c.b16 %v4075, %v4058
    %v5946 = vpack.c.b16 %v4076, %v4059
    %v5947 = vpack.c.b16 %v4077, %v4060
    %v5948 = vpack.c.b16 %v4078, %v4061
    %v5949 = vpack.c.b16 %v4079, %v4062
    %v5950 = vpack.c.b16 %v4080, %v4063
    %v5951 = vpack.c.b16 %v4081, %v4064
    %v5952 = vpack.c.b16 %v4082, %v4065
    %v5953 = vpack.c.b16 %v4100, %v4083
    %v5954 = vpack.c.b16 %v4101, %v4084
    %v5955 = vpack.c.b16 %v4102, %v4085
    %v5956 = vpack.c.b16 %v4103, %v4086
    %v5957 = vpack.c.b16 %v4104, %v4087
    %v5958 = vpack.c.b16 %v4105, %v4088
    %v5959 = vpack.c.b16 %v4106, %v4089
    %v5960 = vpack.c.b16 %v4107, %v4090
    %v5961 = vpack.c.b16 %v4108, %v4091
    %v5962 = vpack.c.b16 %v4109, %v4092
    %v5963 = vpack.c.b16 %v4110, %v4093
    %v5964 = vpack.c.b16 %v4111, %v4094
    %v5965 = vpack.c.b16 %v4112, %v4095
    %v5966 = vpack.c.b16 %v4113, %v4096
    %v5967 = vpack.c.b16 %v4114, %v4097
    %v5968 = vpack.c.b16 %v4115, %v4098
    %v5969 = vpack.c.b16 %v4116, %v4099
    %v5970 = vpack.c.b16 %v4134, %v4117
    %v5971 = vpack.c.b16 %v4135, %v4118
    %v5972 = vpack.c.b16 %v4136, %v4119
    %v5973 = vpack.c.b16 %v4137, %v4120
    %v5974 = vpack.c.b16 %v4138, %v4121
    %v5975 = vpack.c.b16 %v4139, %v4122
    %v5976 = vpack.c.b16 %v4140, %v4123
    %v5977 = vpack.c.b16 %v4141, %v4124
    %v5978 = vpack.c.b16 %v4142, %v4125
    %v5979 = vpack.c.b16 %v4143, %v4126
    %v5980 = vpack.c.b16 %v4144, %v4127
    %v5981 = vpack.c.b16 %v4145, %v4128
    %v5982 = vpack.c.b16 %v4146, %v4129
    %v5983 = vpack.c.b16 %v4147, %v4130
    %v5984 = vpack.c.b16 %v4148, %v4131
    %v5985 = vpack.c.b16 %v4149, %v4132
    %v5986 = vpack.c.b16 %v4150, %v4133
    %v5987 = vpack.c.b16 %v4168, %v4151
    %v5988 = vpack.c.b16 %v4169, %v4152
    %v5989 = vpack.c.b16 %v4170, %v4153
    %v5990 = vpack.c.b16 %v4171, %v4154
    %v5991 = vpack.c.b16 %v4172, %v4155
    %v5992 = vpack.c.b16 %v4173, %v4156
    %v5993 = vpack.c.b16 %v4174, %v4157
    %v5994 = vpack.c.b16 %v4175, %v4158
    %v5995 = vpack.c.b16 %v4176, %v4159
    %v5996 = vpack.c.b16 %v4177, %v4160
    %v5997 = vpack.c.b16 %v4178, %v4161
    %v5998 = vpack.c.b16 %v4179, %v4162
    %v5999 = vpack.c.b16 %v4180, %v4163
    %v6000 = vpack.c.b16 %v4181, %v4164
    %v6001 = vpack.c.b16 %v4182, %v4165
    %v6002 = vpack.c.b16 %v4183, %v4166
    %v6003 = vpack.c.b16 %v4184, %v4167
    %v6004 = vpack.c.b16 %v4202, %v4185
    %v6005 = vpack.c.b16 %v4203, %v4186
    %v6006 = vpack.c.b16 %v4204, %v4187
    %v6007 = vpack.c.b16 %v4205, %v4188
    %v6008 = vpack.c.b16 %v4206, %v4189
    %v6009 = vpack.c.b16 %v4207, %v4190
    %v6010 = vpack.c.b16 %v4208, %v4191
    %v6011 = vpack.c.b16 %v4209, %v4192
    %v6012 = vpack.c.b16 %v4210, %v4193
    %v6013 = vpack.c.b16 %v4211, %v4194
    %v6014 = vpack.c.b16 %v4212, %v4195
    %v6015 = vpack.c.b16 %v4213, %v4196
    %v6016 = vpack.c.b16 %v4214, %v4197
    %v6017 = vpack.c.b16 %v4215, %v4198
    %v6018 = vpack.c.b16 %v4216, %v4199
    %v6019 = vpack.c.b16 %v4217, %v4200
    %v6020 = vpack.c.b16 %v4218, %v4201
    %v6021 = vpack.c.b16 %v4236, %v4219
    %v6022 = vpack.c.b16 %v4237, %v4220
    %v6023 = vpack.c.b16 %v4238, %v4221
    %v6024 = vpack.c.b16 %v4239, %v4222
    %v6025 = vpack.c.b16 %v4240, %v4223
    %v6026 = vpack.c.b16 %v4241, %v4224
    %v6027 = vpack.c.b16 %v4242, %v4225
    %v6028 = vpack.c.b16 %v4243, %v4226
    %v6029 = vpack.c.b16 %v4244, %v4227
    %v6030 = vpack.c.b16 %v4245, %v4228
    %v6031 = vpack.c.b16 %v4246, %v4229
    %v6032 = vpack.c.b16 %v4247, %v4230
    %v6033 = vpack.c.b16 %v4248, %v4231
    %v6034 = vpack.c.b16 %v4249, %v4232
    %v6035 = vpack.c.b16 %v4250, %v4233
    %v6036 = vpack.c.b16 %v4251, %v4234
    %v6037 = vpack.c.b16 %v4252, %v4235
    %v6038 = vpack.c.b16 %v4270, %v4253
    %v6039 = vpack.c.b16 %v4271, %v4254
    %v6040 = vpack.c.b16 %v4272, %v4255
    %v6041 = vpack.c.b16 %v4273, %v4256
    %v6042 = vpack.c.b16 %v4274, %v4257
    %v6043 = vpack.c.b16 %v4275, %v4258
    %v6044 = vpack.c.b16 %v4276, %v4259
    %v6045 = vpack.c.b16 %v4277, %v4260
    %v6046 = vpack.c.b16 %v4278, %v4261
    %v6047 = vpack.c.b16 %v4279, %v4262
    %v6048 = vpack.c.b16 %v4280, %v4263
    %v6049 = vpack.c.b16 %v4281, %v4264
    %v6050 = vpack.c.b16 %v4282, %v4265
    %v6051 = vpack.c.b16 %v4283, %v4266
    %v6052 = vpack.c.b16 %v4284, %v4267
    %v6053 = vpack.c.b16 %v4285, %v4268
    %v6054 = vpack.c.b16 %v4286, %v4269
    %v6055 = vpack.c.b16 %v4304, %v4287
    %v6056 = vpack.c.b16 %v4305, %v4288
    %v6057 = vpack.c.b16 %v4306, %v4289
    %v6058 = vpack.c.b16 %v4307, %v4290
    %v6059 = vpack.c.b16 %v4308, %v4291
    %v6060 = vpack.c.b16 %v4309, %v4292
    %v6061 = vpack.c.b16 %v4310, %v4293
    %v6062 = vpack.c.b16 %v4311, %v4294
    %v6063 = vpack.c.b16 %v4312, %v4295
    %v6064 = vpack.c.b16 %v4313, %v4296
    %v6065 = vpack.c.b16 %v4314, %v4297
    %v6066 = vpack.c.b16 %v4315, %v4298
    %v6067 = vpack.c.b16 %v4316, %v4299
    %v6068 = vpack.c.b16 %v4317, %v4300
    %v6069 = vpack.c.b16 %v4318, %v4301
    %v6070 = vpack.c.b16 %v4319, %v4302
    %v6071 = vpack.c.b16 %v4320, %v4303
    %v6072 = vpack.c.b16 %v4338, %v4321
    %v6073 = vpack.c.b16 %v4339, %v4322
    %v6074 = vpack.c.b16 %v4340, %v4323
    %v6075 = vpack.c.b16 %v4341, %v4324
    %v6076 = vpack.c.b16 %v4342, %v4325
    %v6077 = vpack.c.b16 %v4343, %v4326
    %v6078 = vpack.c.b16 %v4344, %v4327
    %v6079 = vpack.c.b16 %v4345, %v4328
    %v6080 = vpack.c.b16 %v4346, %v4329
    %v6081 = vpack.c.b16 %v4347, %v4330
    %v6082 = vpack.c.b16 %v4348, %v4331
    %v6083 = vpack.c.b16 %v4349, %v4332
    %v6084 = vpack.c.b16 %v4350, %v4333
    %v6085 = vpack.c.b16 %v4351, %v4334
    %v6086 = vpack.c.b16 %v4352, %v4335
    %v6087 = vpack.c.b16 %v4353, %v4336
    %v6088 = vpack.c.b16 %v4354, %v4337
    %v6089 = vpack.c.b16 %v4372, %v4355
    %v6090 = vpack.c.b16 %v4373, %v4356
    %v6091 = vpack.c.b16 %v4374, %v4357
    %v6092 = vpack.c.b16 %v4375, %v4358
    %v6093 = vpack.c.b16 %v4376, %v4359
    %v6094 = vpack.c.b16 %v4377, %v4360
    %v6095 = vpack.c.b16 %v4378, %v4361
    %v6096 = vpack.c.b16 %v4379, %v4362
    %v6097 = vpack.c.b16 %v4380, %v4363
    %v6098 = vpack.c.b16 %v4381, %v4364
    %v6099 = vpack.c.b16 %v4382, %v4365
    %v6100 = vpack.c.b16 %v4383, %v4366
    %v6101 = vpack.c.b16 %v4384, %v4367
    %v6102 = vpack.c.b16 %v4385, %v4368
    %v6103 = vpack.c.b16 %v4386, %v4369
    %v6104 = vpack.c.b16 %v4387, %v4370
    %v6105 = vpack.c.b16 %v4388, %v4371
    %v6106 = vpack.c.b16 %v4406, %v4389
    %v6107 = vpack.c.b16 %v4407, %v4390
    %v6108 = vpack.c.b16 %v4408, %v4391
    %v6109 = vpack.c.b16 %v4409, %v4392
    %v6110 = vpack.c.b16 %v4410, %v4393
    %v6111 = vpack.c.b16 %v4411, %v4394
    %v6112 = vpack.c.b16 %v4412, %v4395
    %v6113 = vpack.c.b16 %v4413, %v4396
    %v6114 = vpack.c.b16 %v4414, %v4397
    %v6115 = vpack.c.b16 %v4415, %v4398
    %v6116 = vpack.c.b16 %v4416, %v4399
    %v6117 = vpack.c.b16 %v4417, %v4400
    %v6118 = vpack.c.b16 %v4418, %v4401
    %v6119 = vpack.c.b16 %v4419, %v4402
    %v6120 = vpack.c.b16 %v4420, %v4403
    %v6121 = vpack.c.b16 %v4421, %v4404
    %v6122 = vpack.c.b16 %v4422, %v4405
    %v6123 = vpack.c.b16 %v4440, %v4423
    %v6124 = vpack.c.b16 %v4441, %v4424
    %v6125 = vpack.c.b16 %v4442, %v4425
    %v6126 = vpack.c.b16 %v4443, %v4426
    %v6127 = vpack.c.b16 %v4444, %v4427
    %v6128 = vpack.c.b16 %v4445, %v4428
    %v6129 = vpack.c.b16 %v4446, %v4429
    %v6130 = vpack.c.b16 %v4447, %v4430
    %v6131 = vpack.c.b16 %v4448, %v4431
    %v6132 = vpack.c.b16 %v4449, %v4432
    %v6133 = vpack.c.b16 %v4450, %v4433
    %v6134 = vpack.c.b16 %v4451, %v4434
    %v6135 = vpack.c.b16 %v4452, %v4435
    %v6136 = vpack.c.b16 %v4453, %v4436
    %v6137 = vpack.c.b16 %v4454, %v4437
    %v6138 = vpack.c.b16 %v4455, %v4438
    %v6139 = vpack.c.b16 %v4456, %v4439
    %v6140 = vpack.c.b16 %v4474, %v4457
    %v6141 = vpack.c.b16 %v4475, %v4458
    %v6142 = vpack.c.b16 %v4476, %v4459
    %v6143 = vpack.c.b16 %v4477, %v4460
    %v6144 = vpack.c.b16 %v4478, %v4461
    %v6145 = vpack.c.b16 %v4479, %v4462
    %v6146 = vpack.c.b16 %v4480, %v4463
    %v6147 = vpack.c.b16 %v4481, %v4464
    %v6148 = vpack.c.b16 %v4482, %v4465
    %v6149 = vpack.c.b16 %v4483, %v4466
    %v6150 = vpack.c.b16 %v4484, %v4467
    %v6151 = vpack.c.b16 %v4485, %v4468
    %v6152 = vpack.c.b16 %v4486, %v4469
    %v6153 = vpack.c.b16 %v4487, %v4470
    %v6154 = vpack.c.b16 %v4488, %v4471
    %v6155 = vpack.c.b16 %v4489, %v4472
    %v6156 = vpack.c.b16 %v4490, %v4473
    %v6157 = vpack.c.b16 %v4508, %v4491
    %v6158 = vpack.c.b16 %v4509, %v4492
    %v6159 = vpack.c.b16 %v4510, %v4493
    %v6160 = vpack.c.b16 %v4511, %v4494
    %v6161 = vpack.c.b16 %v4512, %v4495
    %v6162 = vpack.c.b16 %v4513, %v4496
    %v6163 = vpack.c.b16 %v4514, %v4497
    %v6164 = vpack.c.b16 %v4515, %v4498
    %v6165 = vpack.c.b16 %v4516, %v4499
    %v6166 = vpack.c.b16 %v4517, %v4500
    %v6167 = vpack.c.b16 %v4518, %v4501
    %v6168 = vpack.c.b16 %v4519, %v4502
    %v6169 = vpack.c.b16 %v4520, %v4503
    %v6170 = vpack.c.b16 %v4521, %v4504
    %v6171 = vpack.c.b16 %v4522, %v4505
    %v6172 = vpack.c.b16 %v4523, %v4506
    %v6173 = vpack.c.b16 %v4524, %v4507
    %v6174 = vpack.c.b16 %v4542, %v4525
    %v6175 = vpack.c.b16 %v4543, %v4526
    %v6176 = vpack.c.b16 %v4544, %v4527
    %v6177 = vpack.c.b16 %v4545, %v4528
    %v6178 = vpack.c.b16 %v4546, %v4529
    %v6179 = vpack.c.b16 %v4547, %v4530
    %v6180 = vpack.c.b16 %v4548, %v4531
    %v6181 = vpack.c.b16 %v4549, %v4532
    %v6182 = vpack.c.b16 %v4550, %v4533
    %v6183 = vpack.c.b16 %v4551, %v4534
    %v6184 = vpack.c.b16 %v4552, %v4535
    %v6185 = vpack.c.b16 %v4553, %v4536
    %v6186 = vpack.c.b16 %v4554, %v4537
    %v6187 = vpack.c.b16 %v4555, %v4538
    %v6188 = vpack.c.b16 %v4556, %v4539
    %v6189 = vpack.c.b16 %v4557, %v4540
    %v6190 = vpack.c.b16 %v4558, %v4541
    %v6191 = vpack.c.b16 %v4576, %v4559
    %v6192 = vpack.c.b16 %v4577, %v4560
    %v6193 = vpack.c.b16 %v4578, %v4561
    %v6194 = vpack.c.b16 %v4579, %v4562
    %v6195 = vpack.c.b16 %v4580, %v4563
    %v6196 = vpack.c.b16 %v4581, %v4564
    %v6197 = vpack.c.b16 %v4582, %v4565
    %v6198 = vpack.c.b16 %v4583, %v4566
    %v6199 = vpack.c.b16 %v4584, %v4567
    %v6200 = vpack.c.b16 %v4585, %v4568
    %v6201 = vpack.c.b16 %v4586, %v4569
    %v6202 = vpack.c.b16 %v4587, %v4570
    %v6203 = vpack.c.b16 %v4588, %v4571
    %v6204 = vpack.c.b16 %v4589, %v4572
    %v6205 = vpack.c.b16 %v4590, %v4573
    %v6206 = vpack.c.b16 %v4591, %v4574
    %v6207 = vpack.c.b16 %v4592, %v4575
    %v6208 = vpack.c.b16 %v4610, %v4593
    %v6209 = vpack.c.b16 %v4611, %v4594
    %v6210 = vpack.c.b16 %v4612, %v4595
    %v6211 = vpack.c.b16 %v4613, %v4596
    %v6212 = vpack.c.b16 %v4614, %v4597
    %v6213 = vpack.c.b16 %v4615, %v4598
    %v6214 = vpack.c.b16 %v4616, %v4599
    %v6215 = vpack.c.b16 %v4617, %v4600
    %v6216 = vpack.c.b16 %v4618, %v4601
    %v6217 = vpack.c.b16 %v4619, %v4602
    %v6218 = vpack.c.b16 %v4620, %v4603
    %v6219 = vpack.c.b16 %v4621, %v4604
    %v6220 = vpack.c.b16 %v4622, %v4605
    %v6221 = vpack.c.b16 %v4623, %v4606
    %v6222 = vpack.c.b16 %v4624, %v4607
    %v6223 = vpack.c.b16 %v4625, %v4608
    %v6224 = vpack.c.b16 %v4626, %v4609
    %v6225 = vpack.c.b16 %v4644, %v4627
    %v6226 = vpack.c.b16 %v4645, %v4628
    %v6227 = vpack.c.b16 %v4646, %v4629
    %v6228 = vpack.c.b16 %v4647, %v4630
    %v6229 = vpack.c.b16 %v4648, %v4631
    %v6230 = vpack.c.b16 %v4649, %v4632
    %v6231 = vpack.c.b16 %v4650, %v4633
    %v6232 = vpack.c.b16 %v4651, %v4634
    %v6233 = vpack.c.b16 %v4652, %v4635
    %v6234 = vpack.c.b16 %v4653, %v4636
    %v6235 = vpack.c.b16 %v4654, %v4637
    %v6236 = vpack.c.b16 %v4655, %v4638
    %v6237 = vpack.c.b16 %v4656, %v4639
    %v6238 = vpack.c.b16 %v4657, %v4640
    %v6239 = vpack.c.b16 %v4658, %v4641
    %v6240 = vpack.c.b16 %v4659, %v4642
    %v6241 = vpack.c.b16 %v4660, %v4643
    %v6242 = vpack.c.b16 %v4678, %v4661
    %v6243 = vpack.c.b16 %v4679, %v4662
    %v6244 = vpack.c.b16 %v4680, %v4663
    %v6245 = vpack.c.b16 %v4681, %v4664
    %v6246 = vpack.c.b16 %v4682, %v4665
    %v6247 = vpack.c.b16 %v4683, %v4666
    %v6248 = vpack.c.b16 %v4684, %v4667
    %v6249 = vpack.c.b16 %v4685, %v4668
    %v6250 = vpack.c.b16 %v4686, %v4669
    %v6251 = vpack.c.b16 %v4687, %v4670
    %v6252 = vpack.c.b16 %v4688, %v4671
    %v6253 = vpack.c.b16 %v4689, %v4672
    %v6254 = vpack.c.b16 %v4690, %v4673
    %v6255 = vpack.c.b16 %v4691, %v4674
    %v6256 = vpack.c.b16 %v4692, %v4675
    %v6257 = vpack.c.b16 %v4693, %v4676
    %v6258 = vpack.c.b16 %v4694, %v4677
    %v6259 = vpack.c.b16 %v4712, %v4695
    %v6260 = vpack.c.b16 %v4713, %v4696
    %v6261 = vpack.c.b16 %v4714, %v4697
    %v6262 = vpack.c.b16 %v4715, %v4698
    %v6263 = vpack.c.b16 %v4716, %v4699
    %v6264 = vpack.c.b16 %v4717, %v4700
    %v6265 = vpack.c.b16 %v4718, %v4701
    %v6266 = vpack.c.b16 %v4719, %v4702
    %v6267 = vpack.c.b16 %v4720, %v4703
    %v6268 = vpack.c.b16 %v4721, %v4704
    %v6269 = vpack.c.b16 %v4722, %v4705
    %v6270 = vpack.c.b16 %v4723, %v4706
    %v6271 = vpack.c.b16 %v4724, %v4707
    %v6272 = vpack.c.b16 %v4725, %v4708
    %v6273 = vpack.c.b16 %v4726, %v4709
    %v6274 = vpack.c.b16 %v4727, %v4710
    %v6275 = vpack.c.b16 %v4728, %v4711
    %v6276 = vpack.c.b16 %v4746, %v4729
    %v6277 = vpack.c.b16 %v4747, %v4730
    %v6278 = vpack.c.b16 %v4748, %v4731
    %v6279 = vpack.c.b16 %v4749, %v4732
    %v6280 = vpack.c.b16 %v4750, %v4733
    %v6281 = vpack.c.b16 %v4751, %v4734
    %v6282 = vpack.c.b16 %v4752, %v4735
    %v6283 = vpack.c.b16 %v4753, %v4736
    %v6284 = vpack.c.b16 %v4754, %v4737
    %v6285 = vpack.c.b16 %v4755, %v4738
    %v6286 = vpack.c.b16 %v4756, %v4739
    %v6287 = vpack.c.b16 %v4757, %v4740
    %v6288 = vpack.c.b16 %v4758, %v4741
    %v6289 = vpack.c.b16 %v4759, %v4742
    %v6290 = vpack.c.b16 %v4760, %v4743
    %v6291 = vpack.c.b16 %v4761, %v4744
    %v6292 = vpack.c.b16 %v4762, %v4745
    %v6293 = vpack.c.b16 %v4780, %v4763
    %v6294 = vpack.c.b16 %v4781, %v4764
    %v6295 = vpack.c.b16 %v4782, %v4765
    %v6296 = vpack.c.b16 %v4783, %v4766
    %v6297 = vpack.c.b16 %v4784, %v4767
    %v6298 = vpack.c.b16 %v4785, %v4768
    %v6299 = vpack.c.b16 %v4786, %v4769
    %v6300 = vpack.c.b16 %v4787, %v4770
    %v6301 = vpack.c.b16 %v4788, %v4771
    %v6302 = vpack.c.b16 %v4789, %v4772
    %v6303 = vpack.c.b16 %v4790, %v4773
    %v6304 = vpack.c.b16 %v4791, %v4774
    %v6305 = vpack.c.b16 %v4792, %v4775
    %v6306 = vpack.c.b16 %v4793, %v4776
    %v6307 = vpack.c.b16 %v4794, %v4777
    %v6308 = vpack.c.b16 %v4795, %v4778
    %v6309 = vpack.c.b16 %v4796, %v4779
    %v6310 = vpack.c.b16 %v4814, %v4797
    %v6311 = vpack.c.b16 %v4815, %v4798
    %v6312 = vpack.c.b16 %v4816, %v4799
    %v6313 = vpack.c.b16 %v4817, %v4800
    %v6314 = vpack.c.b16 %v4818, %v4801
    %v6315 = vpack.c.b16 %v4819, %v4802
    %v6316 = vpack.c.b16 %v4820, %v4803
    %v6317 = vpack.c.b16 %v4821, %v4804
    %v6318 = vpack.c.b16 %v4822, %v4805
    %v6319 = vpack.c.b16 %v4823, %v4806
    %v6320 = vpack.c.b16 %v4824, %v4807
    %v6321 = vpack.c.b16 %v4825, %v4808
    %v6322 = vpack.c.b16 %v4826, %v4809
    %v6323 = vpack.c.b16 %v4827, %v4810
    %v6324 = vpack.c.b16 %v4828, %v4811
    %v6325 = vpack.c.b16 %v4829, %v4812
    %v6326 = vpack.c.b16 %v4830, %v4813
    %v6327 = vpack.c.b16 %v4848, %v4831
    %v6328 = vpack.c.b16 %v4849, %v4832
    %v6329 = vpack.c.b16 %v4850, %v4833
    %v6330 = vpack.c.b16 %v4851, %v4834
    %v6331 = vpack.c.b16 %v4852, %v4835
    %v6332 = vpack.c.b16 %v4853, %v4836
    %v6333 = vpack.c.b16 %v4854, %v4837
    %v6334 = vpack.c.b16 %v4855, %v4838
    %v6335 = vpack.c.b16 %v4856, %v4839
    %v6336 = vpack.c.b16 %v4857, %v4840
    %v6337 = vpack.c.b16 %v4858, %v4841
    %v6338 = vpack.c.b16 %v4859, %v4842
    %v6339 = vpack.c.b16 %v4860, %v4843
    %v6340 = vpack.c.b16 %v4861, %v4844
    %v6341 = vpack.c.b16 %v4862, %v4845
    %v6342 = vpack.c.b16 %v4863, %v4846
    %v6343 = vpack.c.b16 %v4864, %v4847
    %v6344 = vpack.c.b16 %v4882, %v4865
    %v6345 = vpack.c.b16 %v4883, %v4866
    %v6346 = vpack.c.b16 %v4884, %v4867
    %v6347 = vpack.c.b16 %v4885, %v4868
    %v6348 = vpack.c.b16 %v4886, %v4869
    %v6349 = vpack.c.b16 %v4887, %v4870
    %v6350 = vpack.c.b16 %v4888, %v4871
    %v6351 = vpack.c.b16 %v4889, %v4872
    %v6352 = vpack.c.b16 %v4890, %v4873
    %v6353 = vpack.c.b16 %v4891, %v4874
    %v6354 = vpack.c.b16 %v4892, %v4875
    %v6355 = vpack.c.b16 %v4893, %v4876
    %v6356 = vpack.c.b16 %v4894, %v4877
    %v6357 = vpack.c.b16 %v4895, %v4878
    %v6358 = vpack.c.b16 %v4896, %v4879
    %v6359 = vpack.c.b16 %v4897, %v4880
    %v6360 = vpack.c.b16 %v4898, %v4881
    %v6361 = vpack.c.b16 %v4916, %v4899
    %v6362 = vpack.c.b16 %v4917, %v4900
    %v6363 = vpack.c.b16 %v4918, %v4901
    %v6364 = vpack.c.b16 %v4919, %v4902
    %v6365 = vpack.c.b16 %v4920, %v4903
    %v6366 = vpack.c.b16 %v4921, %v4904
    %v6367 = vpack.c.b16 %v4922, %v4905
    %v6368 = vpack.c.b16 %v4923, %v4906
    %v6369 = vpack.c.b16 %v4924, %v4907
    %v6370 = vpack.c.b16 %v4925, %v4908
    %v6371 = vpack.c.b16 %v4926, %v4909
    %v6372 = vpack.c.b16 %v4927, %v4910
    %v6373 = vpack.c.b16 %v4928, %v4911
    %v6374 = vpack.c.b16 %v4929, %v4912
    %v6375 = vpack.c.b16 %v4930, %v4913
    %v6376 = vpack.c.b16 %v4931, %v4914
    %v6377 = vpack.c.b16 %v4932, %v4915
    %v6378 = vpack.c.b16 %v4950, %v4933
    %v6379 = vpack.c.b16 %v4951, %v4934
    %v6380 = vpack.c.b16 %v4952, %v4935
    %v6381 = vpack.c.b16 %v4953, %v4936
    %v6382 = vpack.c.b16 %v4954, %v4937
    %v6383 = vpack.c.b16 %v4955, %v4938
    %v6384 = vpack.c.b16 %v4956, %v4939
    %v6385 = vpack.c.b16 %v4957, %v4940
    %v6386 = vpack.c.b16 %v4958, %v4941
    %v6387 = vpack.c.b16 %v4959, %v4942
    %v6388 = vpack.c.b16 %v4960, %v4943
    %v6389 = vpack.c.b16 %v4961, %v4944
    %v6390 = vpack.c.b16 %v4962, %v4945
    %v6391 = vpack.c.b16 %v4963, %v4946
    %v6392 = vpack.c.b16 %v4964, %v4947
    %v6393 = vpack.c.b16 %v4965, %v4948
    %v6394 = vpack.c.b16 %v4966, %v4949
    %v6395 = vpack.c.b16 %v4984, %v4967
    %v6396 = vpack.c.b16 %v4985, %v4968
    %v6397 = vpack.c.b16 %v4986, %v4969
    %v6398 = vpack.c.b16 %v4987, %v4970
    %v6399 = vpack.c.b16 %v4988, %v4971
    %v6400 = vpack.c.b16 %v4989, %v4972
    %v6401 = vpack.c.b16 %v4990, %v4973
    %v6402 = vpack.c.b16 %v4991, %v4974
    %v6403 = vpack.c.b16 %v4992, %v4975
    %v6404 = vpack.c.b16 %v4993, %v4976
    %v6405 = vpack.c.b16 %v4994, %v4977
    %v6406 = vpack.c.b16 %v4995, %v4978
    %v6407 = vpack.c.b16 %v4996, %v4979
    %v6408 = vpack.c.b16 %v4997, %v4980
    %v6409 = vpack.c.b16 %v4998, %v4981
    %v6410 = vpack.c.b16 %v4999, %v4982
    %v6411 = vpack.c.b16 %v5000, %v4983
    %v6412 = vpack.c.b16 %v5018, %v5001
    %v6413 = vpack.c.b16 %v5019, %v5002
    %v6414 = vpack.c.b16 %v5020, %v5003
    %v6415 = vpack.c.b16 %v5021, %v5004
    %v6416 = vpack.c.b16 %v5022, %v5005
    %v6417 = vpack.c.b16 %v5023, %v5006
    %v6418 = vpack.c.b16 %v5024, %v5007
    %v6419 = vpack.c.b16 %v5025, %v5008
    %v6420 = vpack.c.b16 %v5026, %v5009
    %v6421 = vpack.c.b16 %v5027, %v5010
    %v6422 = vpack.c.b16 %v5028, %v5011
    %v6423 = vpack.c.b16 %v5029, %v5012
    %v6424 = vpack.c.b16 %v5030, %v5013
    %v6425 = vpack.c.b16 %v5031, %v5014
    %v6426 = vpack.c.b16 %v5032, %v5015
    %v6427 = vpack.c.b16 %v5033, %v5016
    %v6428 = vpack.c.b16 %v5034, %v5017
    %v6429 = vpack.c.b16 %v5052, %v5035
    %v6430 = vpack.c.b16 %v5053, %v5036
    %v6431 = vpack.c.b16 %v5054, %v5037
    %v6432 = vpack.c.b16 %v5055, %v5038
    %v6433 = vpack.c.b16 %v5056, %v5039
    %v6434 = vpack.c.b16 %v5057, %v5040
    %v6435 = vpack.c.b16 %v5058, %v5041
    %v6436 = vpack.c.b16 %v5059, %v5042
    %v6437 = vpack.c.b16 %v5060, %v5043
    %v6438 = vpack.c.b16 %v5061, %v5044
    %v6439 = vpack.c.b16 %v5062, %v5045
    %v6440 = vpack.c.b16 %v5063, %v5046
    %v6441 = vpack.c.b16 %v5064, %v5047
    %v6442 = vpack.c.b16 %v5065, %v5048
    %v6443 = vpack.c.b16 %v5066, %v5049
    %v6444 = vpack.c.b16 %v5067, %v5050
    %v6445 = vpack.c.b16 %v5068, %v5051
    %v6446 = vpack.c.b16 %v5086, %v5069
    %v6447 = vpack.c.b16 %v5087, %v5070
    %v6448 = vpack.c.b16 %v5088, %v5071
    %v6449 = vpack.c.b16 %v5089, %v5072
    %v6450 = vpack.c.b16 %v5090, %v5073
    %v6451 = vpack.c.b16 %v5091, %v5074
    %v6452 = vpack.c.b16 %v5092, %v5075
    %v6453 = vpack.c.b16 %v5093, %v5076
    %v6454 = vpack.c.b16 %v5094, %v5077
    %v6455 = vpack.c.b16 %v5095, %v5078
    %v6456 = vpack.c.b16 %v5096, %v5079
    %v6457 = vpack.c.b16 %v5097, %v5080
    %v6458 = vpack.c.b16 %v5098, %v5081
    %v6459 = vpack.c.b16 %v5099, %v5082
    %v6460 = vpack.c.b16 %v5100, %v5083
    %v6461 = vpack.c.b16 %v5101, %v5084
    %v6462 = vpack.c.b16 %v5102, %v5085
    %v6463 = vpack.c.b16 %v5120, %v5103
    %v6464 = vpack.c.b16 %v5121, %v5104
    %v6465 = vpack.c.b16 %v5122, %v5105
    %v6466 = vpack.c.b16 %v5123, %v5106
    %v6467 = vpack.c.b16 %v5124, %v5107
    %v6468 = vpack.c.b16 %v5125, %v5108
    %v6469 = vpack.c.b16 %v5126, %v5109
    %v6470 = vpack.c.b16 %v5127, %v5110
    %v6471 = vpack.c.b16 %v5128, %v5111
    %v6472 = vpack.c.b16 %v5129, %v5112
    %v6473 = vpack.c.b16 %v5130, %v5113
    %v6474 = vpack.c.b16 %v5131, %v5114
    %v6475 = vpack.c.b16 %v5132, %v5115
    %v6476 = vpack.c.b16 %v5133, %v5116
    %v6477 = vpack.c.b16 %v5134, %v5117
    %v6478 = vpack.c.b16 %v5135, %v5118
    %v6479 = vpack.c.b16 %v5136, %v5119
    %v6480 = vpack.c.b16 %v5154, %v5137
    %v6481 = vpack.c.b16 %v5155, %v5138
    %v6482 = vpack.c.b16 %v5156, %v5139
    %v6483 = vpack.c.b16 %v5157, %v5140
    %v6484 = vpack.c.b16 %v5158, %v5141
    %v6485 = vpack.c.b16 %v5159, %v5142
    %v6486 = vpack.c.b16 %v5160, %v5143
    %v6487 = vpack.c.b16 %v5161, %v5144
    %v6488 = vpack.c.b16 %v5162, %v5145
    %v6489 = vpack.c.b16 %v5163, %v5146
    %v6490 = vpack.c.b16 %v5164, %v5147
    %v6491 = vpack.c.b16 %v5165, %v5148
    %v6492 = vpack.c.b16 %v5166, %v5149
    %v6493 = vpack.c.b16 %v5167, %v5150
    %v6494 = vpack.c.b16 %v5168, %v5151
    %v6495 = vpack.c.b16 %v5169, %v5152
    %v6496 = vpack.c.b16 %v5170, %v5153
    %v6497 = vpack.c.b16 %v5188, %v5171
    %v6498 = vpack.c.b16 %v5189, %v5172
    %v6499 = vpack.c.b16 %v5190, %v5173
    %v6500 = vpack.c.b16 %v5191, %v5174
    %v6501 = vpack.c.b16 %v5192, %v5175
    %v6502 = vpack.c.b16 %v5193, %v5176
    %v6503 = vpack.c.b16 %v5194, %v5177
    %v6504 = vpack.c.b16 %v5195, %v5178
    %v6505 = vpack.c.b16 %v5196, %v5179
    %v6506 = vpack.c.b16 %v5197, %v5180
    %v6507 = vpack.c.b16 %v5198, %v5181
    %v6508 = vpack.c.b16 %v5199, %v5182
    %v6509 = vpack.c.b16 %v5200, %v5183
    %v6510 = vpack.c.b16 %v5201, %v5184
    %v6511 = vpack.c.b16 %v5202, %v5185
    %v6512 = vpack.c.b16 %v5203, %v5186
    %v6513 = vpack.c.b16 %v5204, %v5187
    %v6514 = vpack.c.b16 %v5222, %v5205
    %v6515 = vpack.c.b16 %v5223, %v5206
    %v6516 = vpack.c.b16 %v5224, %v5207
    %v6517 = vpack.c.b16 %v5225, %v5208
    %v6518 = vpack.c.b16 %v5226, %v5209
    %v6519 = vpack.c.b16 %v5227, %v5210
    %v6520 = vpack.c.b16 %v5228, %v5211
    %v6521 = vpack.c.b16 %v5229, %v5212
    %v6522 = vpack.c.b16 %v5230, %v5213
    %v6523 = vpack.c.b16 %v5231, %v5214
    %v6524 = vpack.c.b16 %v5232, %v5215
    %v6525 = vpack.c.b16 %v5233, %v5216
    %v6526 = vpack.c.b16 %v5234, %v5217
    %v6527 = vpack.c.b16 %v5235, %v5218
    %v6528 = vpack.c.b16 %v5236, %v5219
    %v6529 = vpack.c.b16 %v5237, %v5220
    %v6530 = vpack.c.b16 %v5238, %v5221
    %v6531 = vpack.c.b16 %v5256, %v5239
    %v6532 = vpack.c.b16 %v5257, %v5240
    %v6533 = vpack.c.b16 %v5258, %v5241
    %v6534 = vpack.c.b16 %v5259, %v5242
    %v6535 = vpack.c.b16 %v5260, %v5243
    %v6536 = vpack.c.b16 %v5261, %v5244
    %v6537 = vpack.c.b16 %v5262, %v5245
    %v6538 = vpack.c.b16 %v5263, %v5246
    %v6539 = vpack.c.b16 %v5264, %v5247
    %v6540 = vpack.c.b16 %v5265, %v5248
    %v6541 = vpack.c.b16 %v5266, %v5249
    %v6542 = vpack.c.b16 %v5267, %v5250
    %v6543 = vpack.c.b16 %v5268, %v5251
    %v6544 = vpack.c.b16 %v5269, %v5252
    %v6545 = vpack.c.b16 %v5270, %v5253
    %v6546 = vpack.c.b16 %v5271, %v5254
    %v6547 = vpack.c.b16 %v5272, %v5255
    %v6548 = vpack.c.b16 %v5290, %v5273
    %v6549 = vpack.c.b16 %v5291, %v5274
    %v6550 = vpack.c.b16 %v5292, %v5275
    %v6551 = vpack.c.b16 %v5293, %v5276
    %v6552 = vpack.c.b16 %v5294, %v5277
    %v6553 = vpack.c.b16 %v5295, %v5278
    %v6554 = vpack.c.b16 %v5296, %v5279
    %v6555 = vpack.c.b16 %v5297, %v5280
    %v6556 = vpack.c.b16 %v5298, %v5281
    %v6557 = vpack.c.b16 %v5299, %v5282
    %v6558 = vpack.c.b16 %v5300, %v5283
    %v6559 = vpack.c.b16 %v5301, %v5284
    %v6560 = vpack.c.b16 %v5302, %v5285
    %v6561 = vpack.c.b16 %v5303, %v5286
    %v6562 = vpack.c.b16 %v5304, %v5287
    %v6563 = vpack.c.b16 %v5305, %v5288
    %v6564 = vpack.c.b16 %v5306, %v5289
    %v6565 = vpack.c.b16 %v5324, %v5307
    %v6566 = vpack.c.b16 %v5325, %v5308
    %v6567 = vpack.c.b16 %v5326, %v5309
    %v6568 = vpack.c.b16 %v5327, %v5310
    %v6569 = vpack.c.b16 %v5328, %v5311
    %v6570 = vpack.c.b16 %v5329, %v5312
    %v6571 = vpack.c.b16 %v5330, %v5313
    %v6572 = vpack.c.b16 %v5331, %v5314
    %v6573 = vpack.c.b16 %v5332, %v5315
    %v6574 = vpack.c.b16 %v5333, %v5316
    %v6575 = vpack.c.b16 %v5334, %v5317
    %v6576 = vpack.c.b16 %v5335, %v5318
    %v6577 = vpack.c.b16 %v5336, %v5319
    %v6578 = vpack.c.b16 %v5337, %v5320
    %v6579 = vpack.c.b16 %v5338, %v5321
    %v6580 = vpack.c.b16 %v5339, %v5322
    %v6581 = vpack.c.b16 %v5340, %v5323
    %v6582 = vpack.c.b16 %v5358, %v5341
    %v6583 = vpack.c.b16 %v5359, %v5342
    %v6584 = vpack.c.b16 %v5360, %v5343
    %v6585 = vpack.c.b16 %v5361, %v5344
    %v6586 = vpack.c.b16 %v5362, %v5345
    %v6587 = vpack.c.b16 %v5363, %v5346
    %v6588 = vpack.c.b16 %v5364, %v5347
    %v6589 = vpack.c.b16 %v5365, %v5348
    %v6590 = vpack.c.b16 %v5366, %v5349
    %v6591 = vpack.c.b16 %v5367, %v5350
    %v6592 = vpack.c.b16 %v5368, %v5351
    %v6593 = vpack.c.b16 %v5369, %v5352
    %v6594 = vpack.c.b16 %v5370, %v5353
    %v6595 = vpack.c.b16 %v5371, %v5354
    %v6596 = vpack.c.b16 %v5372, %v5355
    %v6597 = vpack.c.b16 %v5373, %v5356
    %v6598 = vpack.c.b16 %v5374, %v5357
    %v6599 = vpack.c.b16 %v5392, %v5375
    %v6600 = vpack.c.b16 %v5393, %v5376
    %v6601 = vpack.c.b16 %v5394, %v5377
    %v6602 = vpack.c.b16 %v5395, %v5378
    %v6603 = vpack.c.b16 %v5396, %v5379
    %v6604 = vpack.c.b16 %v5397, %v5380
    %v6605 = vpack.c.b16 %v5398, %v5381
    %v6606 = vpack.c.b16 %v5399, %v5382
    %v6607 = vpack.c.b16 %v5400, %v5383
    %v6608 = vpack.c.b16 %v5401, %v5384
    %v6609 = vpack.c.b16 %v5402, %v5385
    %v6610 = vpack.c.b16 %v5403, %v5386
    %v6611 = vpack.c.b16 %v5404, %v5387
    %v6612 = vpack.c.b16 %v5405, %v5388
    %v6613 = vpack.c.b16 %v5406, %v5389
    %v6614 = vpack.c.b16 %v5407, %v5390
    %v6615 = vpack.c.b16 %v5408, %v5391
    %v6616 = vpack.c.b16 %v5426, %v5409
    %v6617 = vpack.c.b16 %v5427, %v5410
    %v6618 = vpack.c.b16 %v5428, %v5411
    %v6619 = vpack.c.b16 %v5429, %v5412
    %v6620 = vpack.c.b16 %v5430, %v5413
    %v6621 = vpack.c.b16 %v5431, %v5414
    %v6622 = vpack.c.b16 %v5432, %v5415
    %v6623 = vpack.c.b16 %v5433, %v5416
    %v6624 = vpack.c.b16 %v5434, %v5417
    %v6625 = vpack.c.b16 %v5435, %v5418
    %v6626 = vpack.c.b16 %v5436, %v5419
    %v6627 = vpack.c.b16 %v5437, %v5420
    %v6628 = vpack.c.b16 %v5438, %v5421
    %v6629 = vpack.c.b16 %v5439, %v5422
    %v6630 = vpack.c.b16 %v5440, %v5423
    %v6631 = vpack.c.b16 %v5441, %v5424
    %v6632 = vpack.c.b16 %v5442, %v5425
    %v6633 = vpack.c.b16 %v5460, %v5443
    %v6634 = vpack.c.b16 %v5461, %v5444
    %v6635 = vpack.c.b16 %v5462, %v5445
    %v6636 = vpack.c.b16 %v5463, %v5446
    %v6637 = vpack.c.b16 %v5464, %v5447
    %v6638 = vpack.c.b16 %v5465, %v5448
    %v6639 = vpack.c.b16 %v5466, %v5449
    %v6640 = vpack.c.b16 %v5467, %v5450
    %v6641 = vpack.c.b16 %v5468, %v5451
    %v6642 = vpack.c.b16 %v5469, %v5452
    %v6643 = vpack.c.b16 %v5470, %v5453
    %v6644 = vpack.c.b16 %v5471, %v5454
    %v6645 = vpack.c.b16 %v5472, %v5455
    %v6646 = vpack.c.b16 %v5473, %v5456
    %v6647 = vpack.c.b16 %v5474, %v5457
    %v6648 = vpack.c.b16 %v5475, %v5458
    %v6649 = vpack.c.b16 %v5476, %v5459
    %v6650 = vpack.c.b16 %v5494, %v5477
    %v6651 = vpack.c.b16 %v5495, %v5478
    %v6652 = vpack.c.b16 %v5496, %v5479
    %v6653 = vpack.c.b16 %v5497, %v5480
    %v6654 = vpack.c.b16 %v5498, %v5481
    %v6655 = vpack.c.b16 %v5499, %v5482
    %v6656 = vpack.c.b16 %v5500, %v5483
    %v6657 = vpack.c.b16 %v5501, %v5484
    %v6658 = vpack.c.b16 %v5502, %v5485
    %v6659 = vpack.c.b16 %v5503, %v5486
    %v6660 = vpack.c.b16 %v5504, %v5487
    %v6661 = vpack.c.b16 %v5505, %v5488
    %v6662 = vpack.c.b16 %v5506, %v5489
    %v6663 = vpack.c.b16 %v5507, %v5490
    %v6664 = vpack.c.b16 %v5508, %v5491
    %v6665 = vpack.c.b16 %v5509, %v5492
    %v6666 = vpack.c.b16 %v5510, %v5493
    %v6667 = vpack.c.b16 %v5528, %v5511
    %v6668 = vpack.c.b16 %v5529, %v5512
    %v6669 = vpack.c.b16 %v5530, %v5513
    %v6670 = vpack.c.b16 %v5531, %v5514
    %v6671 = vpack.c.b16 %v5532, %v5515
    %v6672 = vpack.c.b16 %v5533, %v5516
    %v6673 = vpack.c.b16 %v5534, %v5517
    %v6674 = vpack.c.b16 %v5535, %v5518
    %v6675 = vpack.c.b16 %v5536, %v5519
    %v6676 = vpack.c.b16 %v5537, %v5520
    %v6677 = vpack.c.b16 %v5538, %v5521
    %v6678 = vpack.c.b16 %v5539, %v5522
    %v6679 = vpack.c.b16 %v5540, %v5523
    %v6680 = vpack.c.b16 %v5541, %v5524
    %v6681 = vpack.c.b16 %v5542, %v5525
    %v6682 = vpack.c.b16 %v5543, %v5526
    %v6683 = vpack.c.b16 %v5544, %v5527
    %v6684 = vpack.c.b16 %v5562, %v5545
    %v6685 = vpack.c.b16 %v5563, %v5546
    %v6686 = vpack.c.b16 %v5564, %v5547
    %v6687 = vpack.c.b16 %v5565, %v5548
    %v6688 = vpack.c.b16 %v5566, %v5549
    %v6689 = vpack.c.b16 %v5567, %v5550
    %v6690 = vpack.c.b16 %v5568, %v5551
    %v6691 = vpack.c.b16 %v5569, %v5552
    %v6692 = vpack.c.b16 %v5570, %v5553
    %v6693 = vpack.c.b16 %v5571, %v5554
    %v6694 = vpack.c.b16 %v5572, %v5555
    %v6695 = vpack.c.b16 %v5573, %v5556
    %v6696 = vpack.c.b16 %v5574, %v5557
    %v6697 = vpack.c.b16 %v5575, %v5558
    %v6698 = vpack.c.b16 %v5576, %v5559
    %v6699 = vpack.c.b16 %v5577, %v5560
    %v6700 = vpack.c.b16 %v5578, %v5561
    %v6701 = vpack.c.b16 %v5596, %v5579
    %v6702 = vpack.c.b16 %v5597, %v5580
    %v6703 = vpack.c.b16 %v5598, %v5581
    %v6704 = vpack.c.b16 %v5599, %v5582
    %v6705 = vpack.c.b16 %v5600, %v5583
    %v6706 = vpack.c.b16 %v5601, %v5584
    %v6707 = vpack.c.b16 %v5602, %v5585
    %v6708 = vpack.c.b16 %v5603, %v5586
    %v6709 = vpack.c.b16 %v5604, %v5587
    %v6710 = vpack.c.b16 %v5605, %v5588
    %v6711 = vpack.c.b16 %v5606, %v5589
    %v6712 = vpack.c.b16 %v5607, %v5590
    %v6713 = vpack.c.b16 %v5608, %v5591
    %v6714 = vpack.c.b16 %v5609, %v5592
    %v6715 = vpack.c.b16 %v5610, %v5593
    %v6716 = vpack.c.b16 %v5611, %v5594
    %v6717 = vpack.c.b16 %v5612, %v5595
    %v6718 = vpack.c.b16 %v5630, %v5613
    %v6719 = vpack.c.b16 %v5631, %v5614
    %v6720 = vpack.c.b16 %v5632, %v5615
    %v6721 = vpack.c.b16 %v5633, %v5616
    %v6722 = vpack.c.b16 %v5634, %v5617
    %v6723 = vpack.c.b16 %v5635, %v5618
    %v6724 = vpack.c.b16 %v5636, %v5619
    %v6725 = vpack.c.b16 %v5637, %v5620
    %v6726 = vpack.c.b16 %v5638, %v5621
    %v6727 = vpack.c.b16 %v5639, %v5622
    %v6728 = vpack.c.b16 %v5640, %v5623
    %v6729 = vpack.c.b16 %v5641, %v5624
    %v6730 = vpack.c.b16 %v5642, %v5625
    %v6731 = vpack.c.b16 %v5643, %v5626
    %v6732 = vpack.c.b16 %v5644, %v5627
    %v6733 = vpack.c.b16 %v5645, %v5628
    %v6734 = vpack.c.b16 %v5646, %v5629
    %7823 = vmatprep.subr.bf16.mxu0 %v5767
    %7824 = vmatpush1.bf16.msra.mxu0 %v5766
    %7825 = vmatprep.subr.bf16.mxu0 %v5750
    %7826 = vmatpush1.bf16.msra.mxu0 %v5749
    %7827 = vmatprep.subr.bf16.mxu0 %v5733
    %7828 = vmatpush1.bf16.msra.mxu0 %v5732
    %7829 = vmatprep.subr.bf16.mxu0 %v5716
    %7830 = vmatpush1.bf16.msra.mxu0 %v5715
    %7831 = vmatprep.subr.bf16.mxu0 %v5699
    %7832 = vmatpush1.bf16.msra.mxu0 %v5698
    %7833 = vmatprep.subr.bf16.mxu0 %v5682
    %7834 = vmatpush1.bf16.msra.mxu0 %v5681
    %7835 = vmatprep.subr.bf16.mxu0 %v5665
    %7836 = vmatpush1.bf16.msra.mxu0 %v5664
    %7837 = vmatprep.subr.bf16.mxu0 %v5648
    %7838 = vmatpush1.bf16.msra.mxu0 %v5647
    %7839 = vmatprep.subr.bf16.mxu0 %v5903
    %7840 = vmatpush2.bf16.msra.mxu0 %v5902
    %7841 = vmatprep.subr.bf16.mxu0 %v5886
    %7842 = vmatpush2.bf16.msra.mxu0 %v5885
    %7843 = vmatprep.subr.bf16.mxu0 %v5869
    %7844 = vmatpush2.bf16.msra.mxu0 %v5868
    %7845 = vmatprep.subr.bf16.mxu0 %v5852
    %7846 = vmatpush2.bf16.msra.mxu0 %v5851
    %7847 = vmatprep.subr.bf16.mxu0 %v5835
    %7848 = vmatpush2.bf16.msra.mxu0 %v5834
    %7849 = vmatprep.subr.bf16.mxu0 %v5818
    %7850 = vmatpush2.bf16.msra.mxu0 %v5817
    %7851 = vmatprep.subr.bf16.mxu0 %v5801
    %7852 = vmatpush2.bf16.msra.mxu0 %v5800
    %7853 = vmatprep.subr.bf16.mxu0 %v5784
    %7854 = vmatpush2.bf16.msra.mxu0 %v5783
    %7855 = vmatprep.mubr.bf16.mxu0 %v1160
    %7856 = vmatmul.mubr.bf16.gmra.mxu0 %v1159
    %v7857 = vpop.f32.mrf.mxu0
    %v7858 = vadd.f32 0.0, %v7857
    %v7859 = vpop.f32.mrf.mxu0
    %v7860 = vadd.f32 0.0, %v7859
    %v7861 = vpop.f32.mrf.mxu0
    %v7862 = vpop.f32.mrf.mxu0
    %7863 = vdwg.mxu0
    %7864 = vmatprep.subr.bf16.mxu0 %v6039
    %7865 = vmatpush1.bf16.msra.mxu0 %v6038
    %7866 = vmatprep.subr.bf16.mxu0 %v6022
    %7867 = vmatpush1.bf16.msra.mxu0 %v6021
    %7868 = vmatprep.subr.bf16.mxu0 %v6005
    %7869 = vmatpush1.bf16.msra.mxu0 %v6004
    %7870 = vmatprep.subr.bf16.mxu0 %v5988
    %7871 = vmatpush1.bf16.msra.mxu0 %v5987
    %7872 = vmatprep.subr.bf16.mxu0 %v5971
    %7873 = vmatpush1.bf16.msra.mxu0 %v5970
    %7874 = vmatprep.subr.bf16.mxu0 %v5954
    %7875 = vmatpush1.bf16.msra.mxu0 %v5953
    %7876 = vmatprep.subr.bf16.mxu0 %v5937
    %7877 = vmatpush1.bf16.msra.mxu0 %v5936
    %7878 = vmatprep.subr.bf16.mxu0 %v5920
    %7879 = vmatpush1.bf16.msra.mxu0 %v5919
    %7880 = vmatprep.subr.bf16.mxu0 %v6175
    %7881 = vmatpush2.bf16.msra.mxu0 %v6174
    %7882 = vmatprep.subr.bf16.mxu0 %v6158
    %7883 = vmatpush2.bf16.msra.mxu0 %v6157
    %7884 = vmatprep.subr.bf16.mxu0 %v6141
    %7885 = vmatpush2.bf16.msra.mxu0 %v6140
    %7886 = vmatprep.subr.bf16.mxu0 %v6124
    %7887 = vmatpush2.bf16.msra.mxu0 %v6123
    %7888 = vmatprep.subr.bf16.mxu0 %v6107
    %7889 = vmatpush2.bf16.msra.mxu0 %v6106
    %7890 = vmatprep.subr.bf16.mxu0 %v6090
    %7891 = vmatpush2.bf16.msra.mxu0 %v6089
    %7892 = vmatprep.subr.bf16.mxu0 %v6073
    %7893 = vmatpush2.bf16.msra.mxu0 %v6072
    %7894 = vmatprep.subr.bf16.mxu0 %v6056
    %7895 = vmatpush2.bf16.msra.mxu0 %v6055
    %7896 = vmatprep.mubr.bf16.mxu0 %v1162
    %7897 = vmatmul.mubr.bf16.gmra.mxu0 %v1161
    %v7898 = vpop.f32.mrf.mxu0
    %v7899 = vadd.f32 %v7858, %v7898
    %v7900 = vpop.f32.mrf.mxu0
    %v7901 = vadd.f32 %v7860, %v7900
    %v7902 = vpop.f32.mrf.mxu0
    %v7903 = vpop.f32.mrf.mxu0
    %7904 = vdwg.mxu0
    %7905 = vmatprep.subr.bf16.mxu0 %v6311
    %7906 = vmatpush1.bf16.msra.mxu0 %v6310
    %7907 = vmatprep.subr.bf16.mxu0 %v6294
    %7908 = vmatpush1.bf16.msra.mxu0 %v6293
    %7909 = vmatprep.subr.bf16.mxu0 %v6277
    %7910 = vmatpush1.bf16.msra.mxu0 %v6276
    %7911 = vmatprep.subr.bf16.mxu0 %v6260
    %7912 = vmatpush1.bf16.msra.mxu0 %v6259
    %7913 = vmatprep.subr.bf16.mxu0 %v6243
    %7914 = vmatpush1.bf16.msra.mxu0 %v6242
    %7915 = vmatprep.subr.bf16.mxu0 %v6226
    %7916 = vmatpush1.bf16.msra.mxu0 %v6225
    %7917 = vmatprep.subr.bf16.mxu0 %v6209
    %7918 = vmatpush1.bf16.msra.mxu0 %v6208
    %7919 = vmatprep.subr.bf16.mxu0 %v6192
    %7920 = vmatpush1.bf16.msra.mxu0 %v6191
    %7921 = vmatprep.subr.bf16.mxu0 %v6447
    %7922 = vmatpush2.bf16.msra.mxu0 %v6446
    %7923 = vmatprep.subr.bf16.mxu0 %v6430
    %7924 = vmatpush2.bf16.msra.mxu0 %v6429
    %7925 = vmatprep.subr.bf16.mxu0 %v6413
    %7926 = vmatpush2.bf16.msra.mxu0 %v6412
    %7927 = vmatprep.subr.bf16.mxu0 %v6396
    %7928 = vmatpush2.bf16.msra.mxu0 %v6395
    %7929 = vmatprep.subr.bf16.mxu0 %v6379
    %7930 = vmatpush2.bf16.msra.mxu0 %v6378
    %7931 = vmatprep.subr.bf16.mxu0 %v6362
    %7932 = vmatpush2.bf16.msra.mxu0 %v6361
    %7933 = vmatprep.subr.bf16.mxu0 %v6345
    %7934 = vmatpush2.bf16.msra.mxu0 %v6344
    %7935 = vmatprep.subr.bf16.mxu0 %v6328
    %7936 = vmatpush2.bf16.msra.mxu0 %v6327
    %7937 = vmatprep.mubr.bf16.mxu0 %v1164
    %7938 = vmatmul.mubr.bf16.gmra.mxu0 %v1163
    %v7939 = vpop.f32.mrf.mxu0
    %v7940 = vadd.f32 %v7899, %v7939
    %v7941 = vpop.f32.mrf.mxu0
    %v7942 = vadd.f32 %v7901, %v7941
    %v7943 = vpop.f32.mrf.mxu0
    %v7944 = vpop.f32.mrf.mxu0
    %7945 = vdwg.mxu0
    %7946 = vmatprep.subr.bf16.mxu0 %v6583
    %7947 = vmatpush1.bf16.msra.mxu0 %v6582
    %7948 = vmatprep.subr.bf16.mxu0 %v6566
    %7949 = vmatpush1.bf16.msra.mxu0 %v6565
    %7950 = vmatprep.subr.bf16.mxu0 %v6549
    %7951 = vmatpush1.bf16.msra.mxu0 %v6548
    %7952 = vmatprep.subr.bf16.mxu0 %v6532
    %7953 = vmatpush1.bf16.msra.mxu0 %v6531
    %7954 = vmatprep.subr.bf16.mxu0 %v6515
    %7955 = vmatpush1.bf16.msra.mxu0 %v6514
    %7956 = vmatprep.subr.bf16.mxu0 %v6498
    %7957 = vmatpush1.bf16.msra.mxu0 %v6497
    %7958 = vmatprep.subr.bf16.mxu0 %v6481
    %7959 = vmatpush1.bf16.msra.mxu0 %v6480
    %7960 = vmatprep.subr.bf16.mxu0 %v6464
    %7961 = vmatpush1.bf16.msra.mxu0 %v6463
    %7962 = vmatprep.subr.bf16.mxu0 %v6719
    %7963 = vmatpush2.bf16.msra.mxu0 %v6718
    %7964 = vmatprep.subr.bf16.mxu0 %v6702
    %7965 = vmatpush2.bf16.msra.mxu0 %v6701
    %7966 = vmatprep.subr.bf16.mxu0 %v6685
    %7967 = vmatpush2.bf16.msra.mxu0 %v6684
    %7968 = vmatprep.subr.bf16.mxu0 %v6668
    %7969 = vmatpush2.bf16.msra.mxu0 %v6667
    %7970 = vmatprep.subr.bf16.mxu0 %v6651
    %7971 = vmatpush2.bf16.msra.mxu0 %v6650
    %7972 = vmatprep.subr.bf16.mxu0 %v6634
    %7973 = vmatpush2.bf16.msra.mxu0 %v6633
    %7974 = vmatprep.subr.bf16.mxu0 %v6617
    %7975 = vmatpush2.bf16.msra.mxu0 %v6616
    %7976 = vmatprep.subr.bf16.mxu0 %v6600
    %7977 = vmatpush2.bf16.msra.mxu0 %v6599
    %7978 = vmatprep.mubr.bf16.mxu0 %v1166
    %7979 = vmatmul.mubr.bf16.gmra.mxu0 %v1165
    %v7980 = vpop.f32.mrf.mxu0
    %v7981 = vadd.f32 %v7940, %v7980
    %v7982 = vpop.f32.mrf.mxu0
    %v7983 = vadd.f32 %v7942, %v7982
    %v7984 = vpop.f32.mrf.mxu0
    %v7985 = vpop.f32.mrf.mxu0
    %7986 = vdwg.mxu0
    %7987 = vmatprep.subr.bf16.mxu0 %v5769
    %7988 = vmatpush1.bf16.msra.mxu0 %v5768
    %7989 = vmatprep.subr.bf16.mxu0 %v5752
    %7990 = vmatpush1.bf16.msra.mxu0 %v5751
    %7991 = vmatprep.subr.bf16.mxu0 %v5735
    %7992 = vmatpush1.bf16.msra.mxu0 %v5734
    %7993 = vmatprep.subr.bf16.mxu0 %v5718
    %7994 = vmatpush1.bf16.msra.mxu0 %v5717
    %7995 = vmatprep.subr.bf16.mxu0 %v5701
    %7996 = vmatpush1.bf16.msra.mxu0 %v5700
    %7997 = vmatprep.subr.bf16.mxu0 %v5684
    %7998 = vmatpush1.bf16.msra.mxu0 %v5683
    %7999 = vmatprep.subr.bf16.mxu0 %v5667
    %8000 = vmatpush1.bf16.msra.mxu0 %v5666
    %8001 = vmatprep.subr.bf16.mxu0 %v5650
    %8002 = vmatpush1.bf16.msra.mxu0 %v5649
    %8003 = vmatprep.subr.bf16.mxu0 %v5905
    %8004 = vmatpush2.bf16.msra.mxu0 %v5904
    %8005 = vmatprep.subr.bf16.mxu0 %v5888
    %8006 = vmatpush2.bf16.msra.mxu0 %v5887
    %8007 = vmatprep.subr.bf16.mxu0 %v5871
    %8008 = vmatpush2.bf16.msra.mxu0 %v5870
    %8009 = vmatprep.subr.bf16.mxu0 %v5854
    %8010 = vmatpush2.bf16.msra.mxu0 %v5853
    %8011 = vmatprep.subr.bf16.mxu0 %v5837
    %8012 = vmatpush2.bf16.msra.mxu0 %v5836
    %8013 = vmatprep.subr.bf16.mxu0 %v5820
    %8014 = vmatpush2.bf16.msra.mxu0 %v5819
    %8015 = vmatprep.subr.bf16.mxu0 %v5803
    %8016 = vmatpush2.bf16.msra.mxu0 %v5802
    %8017 = vmatprep.subr.bf16.mxu0 %v5786
    %8018 = vmatpush2.bf16.msra.mxu0 %v5785
    %8019 = vmatprep.mubr.bf16.mxu0 %v1160
    %8020 = vmatmul.mubr.bf16.gmra.mxu0 %v1159
    %v8021 = vpop.f32.mrf.mxu0
    %v8022 = vadd.f32 0.0, %v8021
    %v8023 = vpop.f32.mrf.mxu0
    %v8024 = vadd.f32 0.0, %v8023
    %v8025 = vpop.f32.mrf.mxu0
    %v8026 = vpop.f32.mrf.mxu0
    %8027 = vdwg.mxu0
    %8028 = vmatprep.subr.bf16.mxu0 %v6041
    %8029 = vmatpush1.bf16.msra.mxu0 %v6040
    %8030 = vmatprep.subr.bf16.mxu0 %v6024
    %8031 = vmatpush1.bf16.msra.mxu0 %v6023
    %8032 = vmatprep.subr.bf16.mxu0 %v6007
    %8033 = vmatpush1.bf16.msra.mxu0 %v6006
    %8034 = vmatprep.subr.bf16.mxu0 %v5990
    %8035 = vmatpush1.bf16.msra.mxu0 %v5989
    %8036 = vmatprep.subr.bf16.mxu0 %v5973
    %8037 = vmatpush1.bf16.msra.mxu0 %v5972
    %8038 = vmatprep.subr.bf16.mxu0 %v5956
    %8039 = vmatpush1.bf16.msra.mxu0 %v5955
    %8040 = vmatprep.subr.bf16.mxu0 %v5939
    %8041 = vmatpush1.bf16.msra.mxu0 %v5938
    %8042 = vmatprep.subr.bf16.mxu0 %v5922
    %8043 = vmatpush1.bf16.msra.mxu0 %v5921
    %8044 = vmatprep.subr.bf16.mxu0 %v6177
    %8045 = vmatpush2.bf16.msra.mxu0 %v6176
    %8046 = vmatprep.subr.bf16.mxu0 %v6160
    %8047 = vmatpush2.bf16.msra.mxu0 %v6159
    %8048 = vmatprep.subr.bf16.mxu0 %v6143
    %8049 = vmatpush2.bf16.msra.mxu0 %v6142
    %8050 = vmatprep.subr.bf16.mxu0 %v6126
    %8051 = vmatpush2.bf16.msra.mxu0 %v6125
    %8052 = vmatprep.subr.bf16.mxu0 %v6109
    %8053 = vmatpush2.bf16.msra.mxu0 %v6108
    %8054 = vmatprep.subr.bf16.mxu0 %v6092
    %8055 = vmatpush2.bf16.msra.mxu0 %v6091
    %8056 = vmatprep.subr.bf16.mxu0 %v6075
    %8057 = vmatpush2.bf16.msra.mxu0 %v6074
    %8058 = vmatprep.subr.bf16.mxu0 %v6058
    %8059 = vmatpush2.bf16.msra.mxu0 %v6057
    %8060 = vmatprep.mubr.bf16.mxu0 %v1162
    %8061 = vmatmul.mubr.bf16.gmra.mxu0 %v1161
    %v8062 = vpop.f32.mrf.mxu0
    %v8063 = vadd.f32 %v8022, %v8062
    %v8064 = vpop.f32.mrf.mxu0
    %v8065 = vadd.f32 %v8024, %v8064
    %v8066 = vpop.f32.mrf.mxu0
    %v8067 = vpop.f32.mrf.mxu0
    %8068 = vdwg.mxu0
    %8069 = vmatprep.subr.bf16.mxu0 %v6313
    %8070 = vmatpush1.bf16.msra.mxu0 %v6312
    %8071 = vmatprep.subr.bf16.mxu0 %v6296
    %8072 = vmatpush1.bf16.msra.mxu0 %v6295
    %8073 = vmatprep.subr.bf16.mxu0 %v6279
    %8074 = vmatpush1.bf16.msra.mxu0 %v6278
    %8075 = vmatprep.subr.bf16.mxu0 %v6262
    %8076 = vmatpush1.bf16.msra.mxu0 %v6261
    %8077 = vmatprep.subr.bf16.mxu0 %v6245
    %8078 = vmatpush1.bf16.msra.mxu0 %v6244
    %8079 = vmatprep.subr.bf16.mxu0 %v6228
    %8080 = vmatpush1.bf16.msra.mxu0 %v6227
    %8081 = vmatprep.subr.bf16.mxu0 %v6211
    %8082 = vmatpush1.bf16.msra.mxu0 %v6210
    %8083 = vmatprep.subr.bf16.mxu0 %v6194
    %8084 = vmatpush1.bf16.msra.mxu0 %v6193
    %8085 = vmatprep.subr.bf16.mxu0 %v6449
    %8086 = vmatpush2.bf16.msra.mxu0 %v6448
    %8087 = vmatprep.subr.bf16.mxu0 %v6432
    %8088 = vmatpush2.bf16.msra.mxu0 %v6431
    %8089 = vmatprep.subr.bf16.mxu0 %v6415
    %8090 = vmatpush2.bf16.msra.mxu0 %v6414
    %8091 = vmatprep.subr.bf16.mxu0 %v6398
    %8092 = vmatpush2.bf16.msra.mxu0 %v6397
    %8093 = vmatprep.subr.bf16.mxu0 %v6381
    %8094 = vmatpush2.bf16.msra.mxu0 %v6380
    %8095 = vmatprep.subr.bf16.mxu0 %v6364
    %8096 = vmatpush2.bf16.msra.mxu0 %v6363
    %8097 = vmatprep.subr.bf16.mxu0 %v6347
    %8098 = vmatpush2.bf16.msra.mxu0 %v6346
    %8099 = vmatprep.subr.bf16.mxu0 %v6330
    %8100 = vmatpush2.bf16.msra.mxu0 %v6329
    %8101 = vmatprep.mubr.bf16.mxu0 %v1164
    %8102 = vmatmul.mubr.bf16.gmra.mxu0 %v1163
    %v8103 = vpop.f32.mrf.mxu0
    %v8104 = vadd.f32 %v8063, %v8103
    %v8105 = vpop.f32.mrf.mxu0
    %v8106 = vadd.f32 %v8065, %v8105
    %v8107 = vpop.f32.mrf.mxu0
    %v8108 = vpop.f32.mrf.mxu0
    %8109 = vdwg.mxu0
    %8110 = vmatprep.subr.bf16.mxu0 %v6585
    %8111 = vmatpush1.bf16.msra.mxu0 %v6584
    %8112 = vmatprep.subr.bf16.mxu0 %v6568
    %8113 = vmatpush1.bf16.msra.mxu0 %v6567
    %8114 = vmatprep.subr.bf16.mxu0 %v6551
    %8115 = vmatpush1.bf16.msra.mxu0 %v6550
    %8116 = vmatprep.subr.bf16.mxu0 %v6534
    %8117 = vmatpush1.bf16.msra.mxu0 %v6533
    %8118 = vmatprep.subr.bf16.mxu0 %v6517
    %8119 = vmatpush1.bf16.msra.mxu0 %v6516
    %8120 = vmatprep.subr.bf16.mxu0 %v6500
    %8121 = vmatpush1.bf16.msra.mxu0 %v6499
    %8122 = vmatprep.subr.bf16.mxu0 %v6483
    %8123 = vmatpush1.bf16.msra.mxu0 %v6482
    %8124 = vmatprep.subr.bf16.mxu0 %v6466
    %8125 = vmatpush1.bf16.msra.mxu0 %v6465
    %8126 = vmatprep.subr.bf16.mxu0 %v6721
    %8127 = vmatpush2.bf16.msra.mxu0 %v6720
    %8128 = vmatprep.subr.bf16.mxu0 %v6704
    %8129 = vmatpush2.bf16.msra.mxu0 %v6703
    %8130 = vmatprep.subr.bf16.mxu0 %v6687
    %8131 = vmatpush2.bf16.msra.mxu0 %v6686
    %8132 = vmatprep.subr.bf16.mxu0 %v6670
    %8133 = vmatpush2.bf16.msra.mxu0 %v6669
    %8134 = vmatprep.subr.bf16.mxu0 %v6653
    %8135 = vmatpush2.bf16.msra.mxu0 %v6652
    %8136 = vmatprep.subr.bf16.mxu0 %v6636
    %8137 = vmatpush2.bf16.msra.mxu0 %v6635
    %8138 = vmatprep.subr.bf16.mxu0 %v6619
    %8139 = vmatpush2.bf16.msra.mxu0 %v6618
    %8140 = vmatprep.subr.bf16.mxu0 %v6602
    %8141 = vmatpush2.bf16.msra.mxu0 %v6601
    %8142 = vmatprep.mubr.bf16.mxu0 %v1166
    %8143 = vmatmul.mubr.bf16.gmra.mxu0 %v1165
    %v8144 = vpop.f32.mrf.mxu0
    %v8145 = vadd.f32 %v8104, %v8144
    %v8146 = vpop.f32.mrf.mxu0
    %v8147 = vadd.f32 %v8106, %v8146
    %v8148 = vpop.f32.mrf.mxu0
    %v8149 = vpop.f32.mrf.mxu0
    %8150 = vdwg.mxu0
    %8151 = vmatprep.subr.bf16.mxu0 %v5771
    %8152 = vmatpush1.bf16.msra.mxu0 %v5770
    %8153 = vmatprep.subr.bf16.mxu0 %v5754
    %8154 = vmatpush1.bf16.msra.mxu0 %v5753
    %8155 = vmatprep.subr.bf16.mxu0 %v5737
    %8156 = vmatpush1.bf16.msra.mxu0 %v5736
    %8157 = vmatprep.subr.bf16.mxu0 %v5720
    %8158 = vmatpush1.bf16.msra.mxu0 %v5719
    %8159 = vmatprep.subr.bf16.mxu0 %v5703
    %8160 = vmatpush1.bf16.msra.mxu0 %v5702
    %8161 = vmatprep.subr.bf16.mxu0 %v5686
    %8162 = vmatpush1.bf16.msra.mxu0 %v5685
    %8163 = vmatprep.subr.bf16.mxu0 %v5669
    %8164 = vmatpush1.bf16.msra.mxu0 %v5668
    %8165 = vmatprep.subr.bf16.mxu0 %v5652
    %8166 = vmatpush1.bf16.msra.mxu0 %v5651
    %8167 = vmatprep.subr.bf16.mxu0 %v5907
    %8168 = vmatpush2.bf16.msra.mxu0 %v5906
    %8169 = vmatprep.subr.bf16.mxu0 %v5890
    %8170 = vmatpush2.bf16.msra.mxu0 %v5889
    %8171 = vmatprep.subr.bf16.mxu0 %v5873
    %8172 = vmatpush2.bf16.msra.mxu0 %v5872
    %8173 = vmatprep.subr.bf16.mxu0 %v5856
    %8174 = vmatpush2.bf16.msra.mxu0 %v5855
    %8175 = vmatprep.subr.bf16.mxu0 %v5839
    %8176 = vmatpush2.bf16.msra.mxu0 %v5838
    %8177 = vmatprep.subr.bf16.mxu0 %v5822
    %8178 = vmatpush2.bf16.msra.mxu0 %v5821
    %8179 = vmatprep.subr.bf16.mxu0 %v5805
    %8180 = vmatpush2.bf16.msra.mxu0 %v5804
    %8181 = vmatprep.subr.bf16.mxu0 %v5788
    %8182 = vmatpush2.bf16.msra.mxu0 %v5787
    %8183 = vmatprep.mubr.bf16.mxu0 %v1160
    %8184 = vmatmul.mubr.bf16.gmra.mxu0 %v1159
    %v8185 = vpop.f32.mrf.mxu0
    %v8186 = vadd.f32 0.0, %v8185
    %v8187 = vpop.f32.mrf.mxu0
    %v8188 = vadd.f32 0.0, %v8187
    %v8189 = vpop.f32.mrf.mxu0
    %v8190 = vpop.f32.mrf.mxu0
    %8191 = vdwg.mxu0
    %8192 = vmatprep.subr.bf16.mxu0 %v6043
    %8193 = vmatpush1.bf16.msra.mxu0 %v6042
    %8194 = vmatprep.subr.bf16.mxu0 %v6026
    %8195 = vmatpush1.bf16.msra.mxu0 %v6025
    %8196 = vmatprep.subr.bf16.mxu0 %v6009
    %8197 = vmatpush1.bf16.msra.mxu0 %v6008
    %8198 = vmatprep.subr.bf16.mxu0 %v5992
    %8199 = vmatpush1.bf16.msra.mxu0 %v5991
    %8200 = vmatprep.subr.bf16.mxu0 %v5975
    %8201 = vmatpush1.bf16.msra.mxu0 %v5974
    %8202 = vmatprep.subr.bf16.mxu0 %v5958
    %8203 = vmatpush1.bf16.msra.mxu0 %v5957
    %8204 = vmatprep.subr.bf16.mxu0 %v5941
    %8205 = vmatpush1.bf16.msra.mxu0 %v5940
    %8206 = vmatprep.subr.bf16.mxu0 %v5924
    %8207 = vmatpush1.bf16.msra.mxu0 %v5923
    %8208 = vmatprep.subr.bf16.mxu0 %v6179
    %8209 = vmatpush2.bf16.msra.mxu0 %v6178
    %8210 = vmatprep.subr.bf16.mxu0 %v6162
    %8211 = vmatpush2.bf16.msra.mxu0 %v6161
    %8212 = vmatprep.subr.bf16.mxu0 %v6145
    %8213 = vmatpush2.bf16.msra.mxu0 %v6144
    %8214 = vmatprep.subr.bf16.mxu0 %v6128
    %8215 = vmatpush2.bf16.msra.mxu0 %v6127
    %8216 = vmatprep.subr.bf16.mxu0 %v6111
    %8217 = vmatpush2.bf16.msra.mxu0 %v6110
    %8218 = vmatprep.subr.bf16.mxu0 %v6094
    %8219 = vmatpush2.bf16.msra.mxu0 %v6093
    %8220 = vmatprep.subr.bf16.mxu0 %v6077
    %8221 = vmatpush2.bf16.msra.mxu0 %v6076
    %8222 = vmatprep.subr.bf16.mxu0 %v6060
    %8223 = vmatpush2.bf16.msra.mxu0 %v6059
    %8224 = vmatprep.mubr.bf16.mxu0 %v1162
    %8225 = vmatmul.mubr.bf16.gmra.mxu0 %v1161
    %v8226 = vpop.f32.mrf.mxu0
    %v8227 = vadd.f32 %v8186, %v8226
    %v8228 = vpop.f32.mrf.mxu0
    %v8229 = vadd.f32 %v8188, %v8228
    %v8230 = vpop.f32.mrf.mxu0
    %v8231 = vpop.f32.mrf.mxu0
    %8232 = vdwg.mxu0
    %8233 = vmatprep.subr.bf16.mxu0 %v6315
    %8234 = vmatpush1.bf16.msra.mxu0 %v6314
    %8235 = vmatprep.subr.bf16.mxu0 %v6298
    %8236 = vmatpush1.bf16.msra.mxu0 %v6297
    %8237 = vmatprep.subr.bf16.mxu0 %v6281
    %8238 = vmatpush1.bf16.msra.mxu0 %v6280
    %8239 = vmatprep.subr.bf16.mxu0 %v6264
    %8240 = vmatpush1.bf16.msra.mxu0 %v6263
    %8241 = vmatprep.subr.bf16.mxu0 %v6247
    %8242 = vmatpush1.bf16.msra.mxu0 %v6246
    %8243 = vmatprep.subr.bf16.mxu0 %v6230
    %8244 = vmatpush1.bf16.msra.mxu0 %v6229
    %8245 = vmatprep.subr.bf16.mxu0 %v6213
    %8246 = vmatpush1.bf16.msra.mxu0 %v6212
    %8247 = vmatprep.subr.bf16.mxu0 %v6196
    %8248 = vmatpush1.bf16.msra.mxu0 %v6195
    %8249 = vmatprep.subr.bf16.mxu0 %v6451
    %8250 = vmatpush2.bf16.msra.mxu0 %v6450
    %8251 = vmatprep.subr.bf16.mxu0 %v6434
    %8252 = vmatpush2.bf16.msra.mxu0 %v6433
    %8253 = vmatprep.subr.bf16.mxu0 %v6417
    %8254 = vmatpush2.bf16.msra.mxu0 %v6416
    %8255 = vmatprep.subr.bf16.mxu0 %v6400
    %8256 = vmatpush2.bf16.msra.mxu0 %v6399
    %8257 = vmatprep.subr.bf16.mxu0 %v6383
    %8258 = vmatpush2.bf16.msra.mxu0 %v6382
    %8259 = vmatprep.subr.bf16.mxu0 %v6366
    %8260 = vmatpush2.bf16.msra.mxu0 %v6365
    %8261 = vmatprep.subr.bf16.mxu0 %v6349
    %8262 = vmatpush2.bf16.msra.mxu0 %v6348
    %8263 = vmatprep.subr.bf16.mxu0 %v6332
    %8264 = vmatpush2.bf16.msra.mxu0 %v6331
    %8265 = vmatprep.mubr.bf16.mxu0 %v1164
    %8266 = vmatmul.mubr.bf16.gmra.mxu0 %v1163
    %v8267 = vpop.f32.mrf.mxu0
    %v8268 = vadd.f32 %v8227, %v8267
    %v8269 = vpop.f32.mrf.mxu0
    %v8270 = vadd.f32 %v8229, %v8269
    %v8271 = vpop.f32.mrf.mxu0
    %v8272 = vpop.f32.mrf.mxu0
    %8273 = vdwg.mxu0
    %8274 = vmatprep.subr.bf16.mxu0 %v6587
    %8275 = vmatpush1.bf16.msra.mxu0 %v6586
    %8276 = vmatprep.subr.bf16.mxu0 %v6570
    %8277 = vmatpush1.bf16.msra.mxu0 %v6569
    %8278 = vmatprep.subr.bf16.mxu0 %v6553
    %8279 = vmatpush1.bf16.msra.mxu0 %v6552
    %8280 = vmatprep.subr.bf16.mxu0 %v6536
    %8281 = vmatpush1.bf16.msra.mxu0 %v6535
    %8282 = vmatprep.subr.bf16.mxu0 %v6519
    %8283 = vmatpush1.bf16.msra.mxu0 %v6518
    %8284 = vmatprep.subr.bf16.mxu0 %v6502
    %8285 = vmatpush1.bf16.msra.mxu0 %v6501
    %8286 = vmatprep.subr.bf16.mxu0 %v6485
    %8287 = vmatpush1.bf16.msra.mxu0 %v6484
    %8288 = vmatprep.subr.bf16.mxu0 %v6468
    %8289 = vmatpush1.bf16.msra.mxu0 %v6467
    %8290 = vmatprep.subr.bf16.mxu0 %v6723
    %8291 = vmatpush2.bf16.msra.mxu0 %v6722
    %8292 = vmatprep.subr.bf16.mxu0 %v6706
    %8293 = vmatpush2.bf16.msra.mxu0 %v6705
    %8294 = vmatprep.subr.bf16.mxu0 %v6689
    %8295 = vmatpush2.bf16.msra.mxu0 %v6688
    %8296 = vmatprep.subr.bf16.mxu0 %v6672
    %8297 = vmatpush2.bf16.msra.mxu0 %v6671
    %8298 = vmatprep.subr.bf16.mxu0 %v6655
    %8299 = vmatpush2.bf16.msra.mxu0 %v6654
    %8300 = vmatprep.subr.bf16.mxu0 %v6638
    %8301 = vmatpush2.bf16.msra.mxu0 %v6637
    %8302 = vmatprep.subr.bf16.mxu0 %v6621
    %8303 = vmatpush2.bf16.msra.mxu0 %v6620
    %8304 = vmatprep.subr.bf16.mxu0 %v6604
    %8305 = vmatpush2.bf16.msra.mxu0 %v6603
    %8306 = vmatprep.mubr.bf16.mxu0 %v1166
    %8307 = vmatmul.mubr.bf16.gmra.mxu0 %v1165
    %v8308 = vpop.f32.mrf.mxu0
    %v8309 = vadd.f32 %v8268, %v8308
    %v8310 = vpop.f32.mrf.mxu0
    %v8311 = vadd.f32 %v8270, %v8310
    %v8312 = vpop.f32.mrf.mxu0
    %v8313 = vpop.f32.mrf.mxu0
    %8314 = vdwg.mxu0
    %8315 = vmatprep.subr.bf16.mxu0 %v5773
    %8316 = vmatpush1.bf16.msra.mxu0 %v5772
    %8317 = vmatprep.subr.bf16.mxu0 %v5756
    %8318 = vmatpush1.bf16.msra.mxu0 %v5755
    %8319 = vmatprep.subr.bf16.mxu0 %v5739
    %8320 = vmatpush1.bf16.msra.mxu0 %v5738
    %8321 = vmatprep.subr.bf16.mxu0 %v5722
    %8322 = vmatpush1.bf16.msra.mxu0 %v5721
    %8323 = vmatprep.subr.bf16.mxu0 %v5705
    %8324 = vmatpush1.bf16.msra.mxu0 %v5704
    %8325 = vmatprep.subr.bf16.mxu0 %v5688
    %8326 = vmatpush1.bf16.msra.mxu0 %v5687
    %8327 = vmatprep.subr.bf16.mxu0 %v5671
    %8328 = vmatpush1.bf16.msra.mxu0 %v5670
    %8329 = vmatprep.subr.bf16.mxu0 %v5654
    %8330 = vmatpush1.bf16.msra.mxu0 %v5653
    %8331 = vmatprep.subr.bf16.mxu0 %v5909
    %8332 = vmatpush2.bf16.msra.mxu0 %v5908
    %8333 = vmatprep.subr.bf16.mxu0 %v5892
    %8334 = vmatpush2.bf16.msra.mxu0 %v5891
    %8335 = vmatprep.subr.bf16.mxu0 %v5875
    %8336 = vmatpush2.bf16.msra.mxu0 %v5874
    %8337 = vmatprep.subr.bf16.mxu0 %v5858
    %8338 = vmatpush2.bf16.msra.mxu0 %v5857
    %8339 = vmatprep.subr.bf16.mxu0 %v5841
    %8340 = vmatpush2.bf16.msra.mxu0 %v5840
    %8341 = vmatprep.subr.bf16.mxu0 %v5824
    %8342 = vmatpush2.bf16.msra.mxu0 %v5823
    %8343 = vmatprep.subr.bf16.mxu0 %v5807
    %8344 = vmatpush2.bf16.msra.mxu0 %v5806
    %8345 = vmatprep.subr.bf16.mxu0 %v5790
    %8346 = vmatpush2.bf16.msra.mxu0 %v5789
    %8347 = vmatprep.mubr.bf16.mxu0 %v1160
    %8348 = vmatmul.mubr.bf16.gmra.mxu0 %v1159
    %v8349 = vpop.f32.mrf.mxu0
    %v8350 = vadd.f32 0.0, %v8349
    %v8351 = vpop.f32.mrf.mxu0
    %v8352 = vadd.f32 0.0, %v8351
    %v8353 = vpop.f32.mrf.mxu0
    %v8354 = vpop.f32.mrf.mxu0
    %8355 = vdwg.mxu0
    %8356 = vmatprep.subr.bf16.mxu0 %v6045
    %8357 = vmatpush1.bf16.msra.mxu0 %v6044
    %8358 = vmatprep.subr.bf16.mxu0 %v6028
    %8359 = vmatpush1.bf16.msra.mxu0 %v6027
    %8360 = vmatprep.subr.bf16.mxu0 %v6011
    %8361 = vmatpush1.bf16.msra.mxu0 %v6010
    %8362 = vmatprep.subr.bf16.mxu0 %v5994
    %8363 = vmatpush1.bf16.msra.mxu0 %v5993
    %8364 = vmatprep.subr.bf16.mxu0 %v5977
    %8365 = vmatpush1.bf16.msra.mxu0 %v5976
    %8366 = vmatprep.subr.bf16.mxu0 %v5960
    %8367 = vmatpush1.bf16.msra.mxu0 %v5959
    %8368 = vmatprep.subr.bf16.mxu0 %v5943
    %8369 = vmatpush1.bf16.msra.mxu0 %v5942
    %8370 = vmatprep.subr.bf16.mxu0 %v5926
    %8371 = vmatpush1.bf16.msra.mxu0 %v5925
    %8372 = vmatprep.subr.bf16.mxu0 %v6181
    %8373 = vmatpush2.bf16.msra.mxu0 %v6180
    %8374 = vmatprep.subr.bf16.mxu0 %v6164
    %8375 = vmatpush2.bf16.msra.mxu0 %v6163
    %8376 = vmatprep.subr.bf16.mxu0 %v6147
    %8377 = vmatpush2.bf16.msra.mxu0 %v6146
    %8378 = vmatprep.subr.bf16.mxu0 %v6130
    %8379 = vmatpush2.bf16.msra.mxu0 %v6129
    %8380 = vmatprep.subr.bf16.mxu0 %v6113
    %8381 = vmatpush2.bf16.msra.mxu0 %v6112
    %8382 = vmatprep.subr.bf16.mxu0 %v6096
    %8383 = vmatpush2.bf16.msra.mxu0 %v6095
    %8384 = vmatprep.subr.bf16.mxu0 %v6079
    %8385 = vmatpush2.bf16.msra.mxu0 %v6078
    %8386 = vmatprep.subr.bf16.mxu0 %v6062
    %8387 = vmatpush2.bf16.msra.mxu0 %v6061
    %8388 = vmatprep.mubr.bf16.mxu0 %v1162
    %8389 = vmatmul.mubr.bf16.gmra.mxu0 %v1161
    %v8390 = vpop.f32.mrf.mxu0
    %v8391 = vadd.f32 %v8350, %v8390
    %v8392 = vpop.f32.mrf.mxu0
    %v8393 = vadd.f32 %v8352, %v8392
    %v8394 = vpop.f32.mrf.mxu0
    %v8395 = vpop.f32.mrf.mxu0
    %8396 = vdwg.mxu0
    %8397 = vmatprep.subr.bf16.mxu0 %v6317
    %8398 = vmatpush1.bf16.msra.mxu0 %v6316
    %8399 = vmatprep.subr.bf16.mxu0 %v6300
    %8400 = vmatpush1.bf16.msra.mxu0 %v6299
    %8401 = vmatprep.subr.bf16.mxu0 %v6283
    %8402 = vmatpush1.bf16.msra.mxu0 %v6282
    %8403 = vmatprep.subr.bf16.mxu0 %v6266
    %8404 = vmatpush1.bf16.msra.mxu0 %v6265
    %8405 = vmatprep.subr.bf16.mxu0 %v6249
    %8406 = vmatpush1.bf16.msra.mxu0 %v6248
    %8407 = vmatprep.subr.bf16.mxu0 %v6232
    %8408 = vmatpush1.bf16.msra.mxu0 %v6231
    %8409 = vmatprep.subr.bf16.mxu0 %v6215
    %8410 = vmatpush1.bf16.msra.mxu0 %v6214
    %8411 = vmatprep.subr.bf16.mxu0 %v6198
    %8412 = vmatpush1.bf16.msra.mxu0 %v6197
    %8413 = vmatprep.subr.bf16.mxu0 %v6453
    %8414 = vmatpush2.bf16.msra.mxu0 %v6452
    %8415 = vmatprep.subr.bf16.mxu0 %v6436
    %8416 = vmatpush2.bf16.msra.mxu0 %v6435
    %8417 = vmatprep.subr.bf16.mxu0 %v6419
    %8418 = vmatpush2.bf16.msra.mxu0 %v6418
    %8419 = vmatprep.subr.bf16.mxu0 %v6402
    %8420 = vmatpush2.bf16.msra.mxu0 %v6401
    %8421 = vmatprep.subr.bf16.mxu0 %v6385
    %8422 = vmatpush2.bf16.msra.mxu0 %v6384
    %8423 = vmatprep.subr.bf16.mxu0 %v6368
    %8424 = vmatpush2.bf16.msra.mxu0 %v6367
    %8425 = vmatprep.subr.bf16.mxu0 %v6351
    %8426 = vmatpush2.bf16.msra.mxu0 %v6350
    %8427 = vmatprep.subr.bf16.mxu0 %v6334
    %8428 = vmatpush2.bf16.msra.mxu0 %v6333
    %8429 = vmatprep.mubr.bf16.mxu0 %v1164
    %8430 = vmatmul.mubr.bf16.gmra.mxu0 %v1163
    %v8431 = vpop.f32.mrf.mxu0
    %v8432 = vadd.f32 %v8391, %v8431
    %v8433 = vpop.f32.mrf.mxu0
    %v8434 = vadd.f32 %v8393, %v8433
    %v8435 = vpop.f32.mrf.mxu0
    %v8436 = vpop.f32.mrf.mxu0
    %8437 = vdwg.mxu0
    %8438 = vmatprep.subr.bf16.mxu0 %v6589
    %8439 = vmatpush1.bf16.msra.mxu0 %v6588
    %8440 = vmatprep.subr.bf16.mxu0 %v6572
    %8441 = vmatpush1.bf16.msra.mxu0 %v6571
    %8442 = vmatprep.subr.bf16.mxu0 %v6555
    %8443 = vmatpush1.bf16.msra.mxu0 %v6554
    %8444 = vmatprep.subr.bf16.mxu0 %v6538
    %8445 = vmatpush1.bf16.msra.mxu0 %v6537
    %8446 = vmatprep.subr.bf16.mxu0 %v6521
    %8447 = vmatpush1.bf16.msra.mxu0 %v6520
    %8448 = vmatprep.subr.bf16.mxu0 %v6504
    %8449 = vmatpush1.bf16.msra.mxu0 %v6503
    %8450 = vmatprep.subr.bf16.mxu0 %v6487
    %8451 = vmatpush1.bf16.msra.mxu0 %v6486
    %8452 = vmatprep.subr.bf16.mxu0 %v6470
    %8453 = vmatpush1.bf16.msra.mxu0 %v6469
    %8454 = vmatprep.subr.bf16.mxu0 %v6725
    %8455 = vmatpush2.bf16.msra.mxu0 %v6724
    %8456 = vmatprep.subr.bf16.mxu0 %v6708
    %8457 = vmatpush2.bf16.msra.mxu0 %v6707
    %8458 = vmatprep.subr.bf16.mxu0 %v6691
    %8459 = vmatpush2.bf16.msra.mxu0 %v6690
    %8460 = vmatprep.subr.bf16.mxu0 %v6674
    %8461 = vmatpush2.bf16.msra.mxu0 %v6673
    %8462 = vmatprep.subr.bf16.mxu0 %v6657
    %8463 = vmatpush2.bf16.msra.mxu0 %v6656
    %8464 = vmatprep.subr.bf16.mxu0 %v6640
    %8465 = vmatpush2.bf16.msra.mxu0 %v6639
    %8466 = vmatprep.subr.bf16.mxu0 %v6623
    %8467 = vmatpush2.bf16.msra.mxu0 %v6622
    %8468 = vmatprep.subr.bf16.mxu0 %v6606
    %8469 = vmatpush2.bf16.msra.mxu0 %v6605
    %8470 = vmatprep.mubr.bf16.mxu0 %v1166
    %8471 = vmatmul.mubr.bf16.gmra.mxu0 %v1165
    %v8472 = vpop.f32.mrf.mxu0
    %v8473 = vadd.f32 %v8432, %v8472
    %v8474 = vpop.f32.mrf.mxu0
    %v8475 = vadd.f32 %v8434, %v8474
    %v8476 = vpop.f32.mrf.mxu0
    %v8477 = vpop.f32.mrf.mxu0
    %8478 = vdwg.mxu0
    %8479 = vmatprep.subr.bf16.mxu0 %v5775
    %8480 = vmatpush1.bf16.msra.mxu0 %v5774
    %8481 = vmatprep.subr.bf16.mxu0 %v5758
    %8482 = vmatpush1.bf16.msra.mxu0 %v5757
    %8483 = vmatprep.subr.bf16.mxu0 %v5741
    %8484 = vmatpush1.bf16.msra.mxu0 %v5740
    %8485 = vmatprep.subr.bf16.mxu0 %v5724
    %8486 = vmatpush1.bf16.msra.mxu0 %v5723
    %8487 = vmatprep.subr.bf16.mxu0 %v5707
    %8488 = vmatpush1.bf16.msra.mxu0 %v5706
    %8489 = vmatprep.subr.bf16.mxu0 %v5690
    %8490 = vmatpush1.bf16.msra.mxu0 %v5689
    %8491 = vmatprep.subr.bf16.mxu0 %v5673
    %8492 = vmatpush1.bf16.msra.mxu0 %v5672
    %8493 = vmatprep.subr.bf16.mxu0 %v5656
    %8494 = vmatpush1.bf16.msra.mxu0 %v5655
    %8495 = vmatprep.subr.bf16.mxu0 %v5911
    %8496 = vmatpush2.bf16.msra.mxu0 %v5910
    %8497 = vmatprep.subr.bf16.mxu0 %v5894
    %8498 = vmatpush2.bf16.msra.mxu0 %v5893
    %8499 = vmatprep.subr.bf16.mxu0 %v5877
    %8500 = vmatpush2.bf16.msra.mxu0 %v5876
    %8501 = vmatprep.subr.bf16.mxu0 %v5860
    %8502 = vmatpush2.bf16.msra.mxu0 %v5859
    %8503 = vmatprep.subr.bf16.mxu0 %v5843
    %8504 = vmatpush2.bf16.msra.mxu0 %v5842
    %8505 = vmatprep.subr.bf16.mxu0 %v5826
    %8506 = vmatpush2.bf16.msra.mxu0 %v5825
    %8507 = vmatprep.subr.bf16.mxu0 %v5809
    %8508 = vmatpush2.bf16.msra.mxu0 %v5808
    %8509 = vmatprep.subr.bf16.mxu0 %v5792
    %8510 = vmatpush2.bf16.msra.mxu0 %v5791
    %8511 = vmatprep.mubr.bf16.mxu0 %v1160
    %8512 = vmatmul.mubr.bf16.gmra.mxu0 %v1159
    %v8513 = vpop.f32.mrf.mxu0
    %v8514 = vadd.f32 0.0, %v8513
    %v8515 = vpop.f32.mrf.mxu0
    %v8516 = vadd.f32 0.0, %v8515
    %v8517 = vpop.f32.mrf.mxu0
    %v8518 = vpop.f32.mrf.mxu0
    %8519 = vdwg.mxu0
    %8520 = vmatprep.subr.bf16.mxu0 %v6047
    %8521 = vmatpush1.bf16.msra.mxu0 %v6046
    %8522 = vmatprep.subr.bf16.mxu0 %v6030
    %8523 = vmatpush1.bf16.msra.mxu0 %v6029
    %8524 = vmatprep.subr.bf16.mxu0 %v6013
    %8525 = vmatpush1.bf16.msra.mxu0 %v6012
    %8526 = vmatprep.subr.bf16.mxu0 %v5996
    %8527 = vmatpush1.bf16.msra.mxu0 %v5995
    %8528 = vmatprep.subr.bf16.mxu0 %v5979
    %8529 = vmatpush1.bf16.msra.mxu0 %v5978
    %8530 = vmatprep.subr.bf16.mxu0 %v5962
    %8531 = vmatpush1.bf16.msra.mxu0 %v5961
    %8532 = vmatprep.subr.bf16.mxu0 %v5945
    %8533 = vmatpush1.bf16.msra.mxu0 %v5944
    %8534 = vmatprep.subr.bf16.mxu0 %v5928
    %8535 = vmatpush1.bf16.msra.mxu0 %v5927
    %8536 = vmatprep.subr.bf16.mxu0 %v6183
    %8537 = vmatpush2.bf16.msra.mxu0 %v6182
    %8538 = vmatprep.subr.bf16.mxu0 %v6166
    %8539 = vmatpush2.bf16.msra.mxu0 %v6165
    %8540 = vmatprep.subr.bf16.mxu0 %v6149
    %8541 = vmatpush2.bf16.msra.mxu0 %v6148
    %8542 = vmatprep.subr.bf16.mxu0 %v6132
    %8543 = vmatpush2.bf16.msra.mxu0 %v6131
    %8544 = vmatprep.subr.bf16.mxu0 %v6115
    %8545 = vmatpush2.bf16.msra.mxu0 %v6114
    %8546 = vmatprep.subr.bf16.mxu0 %v6098
    %8547 = vmatpush2.bf16.msra.mxu0 %v6097
    %8548 = vmatprep.subr.bf16.mxu0 %v6081
    %8549 = vmatpush2.bf16.msra.mxu0 %v6080
    %8550 = vmatprep.subr.bf16.mxu0 %v6064
    %8551 = vmatpush2.bf16.msra.mxu0 %v6063
    %8552 = vmatprep.mubr.bf16.mxu0 %v1162
    %8553 = vmatmul.mubr.bf16.gmra.mxu0 %v1161
    %v8554 = vpop.f32.mrf.mxu0
    %v8555 = vadd.f32 %v8514, %v8554
    %v8556 = vpop.f32.mrf.mxu0
    %v8557 = vadd.f32 %v8516, %v8556
    %v8558 = vpop.f32.mrf.mxu0
    %v8559 = vpop.f32.mrf.mxu0
    %8560 = vdwg.mxu0
    %8561 = vmatprep.subr.bf16.mxu0 %v6319
    %8562 = vmatpush1.bf16.msra.mxu0 %v6318
    %8563 = vmatprep.subr.bf16.mxu0 %v6302
    %8564 = vmatpush1.bf16.msra.mxu0 %v6301
    %8565 = vmatprep.subr.bf16.mxu0 %v6285
    %8566 = vmatpush1.bf16.msra.mxu0 %v6284
    %8567 = vmatprep.subr.bf16.mxu0 %v6268
    %8568 = vmatpush1.bf16.msra.mxu0 %v6267
    %8569 = vmatprep.subr.bf16.mxu0 %v6251
    %8570 = vmatpush1.bf16.msra.mxu0 %v6250
    %8571 = vmatprep.subr.bf16.mxu0 %v6234
    %8572 = vmatpush1.bf16.msra.mxu0 %v6233
    %8573 = vmatprep.subr.bf16.mxu0 %v6217
    %8574 = vmatpush1.bf16.msra.mxu0 %v6216
    %8575 = vmatprep.subr.bf16.mxu0 %v6200
    %8576 = vmatpush1.bf16.msra.mxu0 %v6199
    %8577 = vmatprep.subr.bf16.mxu0 %v6455
    %8578 = vmatpush2.bf16.msra.mxu0 %v6454
    %8579 = vmatprep.subr.bf16.mxu0 %v6438
    %8580 = vmatpush2.bf16.msra.mxu0 %v6437
    %8581 = vmatprep.subr.bf16.mxu0 %v6421
    %8582 = vmatpush2.bf16.msra.mxu0 %v6420
    %8583 = vmatprep.subr.bf16.mxu0 %v6404
    %8584 = vmatpush2.bf16.msra.mxu0 %v6403
    %8585 = vmatprep.subr.bf16.mxu0 %v6387
    %8586 = vmatpush2.bf16.msra.mxu0 %v6386
    %8587 = vmatprep.subr.bf16.mxu0 %v6370
    %8588 = vmatpush2.bf16.msra.mxu0 %v6369
    %8589 = vmatprep.subr.bf16.mxu0 %v6353
    %8590 = vmatpush2.bf16.msra.mxu0 %v6352
    %8591 = vmatprep.subr.bf16.mxu0 %v6336
    %8592 = vmatpush2.bf16.msra.mxu0 %v6335
    %8593 = vmatprep.mubr.bf16.mxu0 %v1164
    %8594 = vmatmul.mubr.bf16.gmra.mxu0 %v1163
    %v8595 = vpop.f32.mrf.mxu0
    %v8596 = vadd.f32 %v8555, %v8595
    %v8597 = vpop.f32.mrf.mxu0
    %v8598 = vadd.f32 %v8557, %v8597
    %v8599 = vpop.f32.mrf.mxu0
    %v8600 = vpop.f32.mrf.mxu0
    %8601 = vdwg.mxu0
    %8602 = vmatprep.subr.bf16.mxu0 %v6591
    %8603 = vmatpush1.bf16.msra.mxu0 %v6590
    %8604 = vmatprep.subr.bf16.mxu0 %v6574
    %8605 = vmatpush1.bf16.msra.mxu0 %v6573
    %8606 = vmatprep.subr.bf16.mxu0 %v6557
    %8607 = vmatpush1.bf16.msra.mxu0 %v6556
    %8608 = vmatprep.subr.bf16.mxu0 %v6540
    %8609 = vmatpush1.bf16.msra.mxu0 %v6539
    %8610 = vmatprep.subr.bf16.mxu0 %v6523
    %8611 = vmatpush1.bf16.msra.mxu0 %v6522
    %8612 = vmatprep.subr.bf16.mxu0 %v6506
    %8613 = vmatpush1.bf16.msra.mxu0 %v6505
    %8614 = vmatprep.subr.bf16.mxu0 %v6489
    %8615 = vmatpush1.bf16.msra.mxu0 %v6488
    %8616 = vmatprep.subr.bf16.mxu0 %v6472
    %8617 = vmatpush1.bf16.msra.mxu0 %v6471
    %8618 = vmatprep.subr.bf16.mxu0 %v6727
    %8619 = vmatpush2.bf16.msra.mxu0 %v6726
    %8620 = vmatprep.subr.bf16.mxu0 %v6710
    %8621 = vmatpush2.bf16.msra.mxu0 %v6709
    %8622 = vmatprep.subr.bf16.mxu0 %v6693
    %8623 = vmatpush2.bf16.msra.mxu0 %v6692
    %8624 = vmatprep.subr.bf16.mxu0 %v6676
    %8625 = vmatpush2.bf16.msra.mxu0 %v6675
    %8626 = vmatprep.subr.bf16.mxu0 %v6659
    %8627 = vmatpush2.bf16.msra.mxu0 %v6658
    %8628 = vmatprep.subr.bf16.mxu0 %v6642
    %8629 = vmatpush2.bf16.msra.mxu0 %v6641
    %8630 = vmatprep.subr.bf16.mxu0 %v6625
    %8631 = vmatpush2.bf16.msra.mxu0 %v6624
    %8632 = vmatprep.subr.bf16.mxu0 %v6608
    %8633 = vmatpush2.bf16.msra.mxu0 %v6607
    %8634 = vmatprep.mubr.bf16.mxu0 %v1166
    %8635 = vmatmul.mubr.bf16.gmra.mxu0 %v1165
    %v8636 = vpop.f32.mrf.mxu0
    %v8637 = vadd.f32 %v8596, %v8636
    %v8638 = vpop.f32.mrf.mxu0
    %v8639 = vadd.f32 %v8598, %v8638
    %v8640 = vpop.f32.mrf.mxu0
    %v8641 = vpop.f32.mrf.mxu0
    %8642 = vdwg.mxu0
    %8643 = vmatprep.subr.bf16.mxu0 %v5777
    %8644 = vmatpush1.bf16.msra.mxu0 %v5776
    %8645 = vmatprep.subr.bf16.mxu0 %v5760
    %8646 = vmatpush1.bf16.msra.mxu0 %v5759
    %8647 = vmatprep.subr.bf16.mxu0 %v5743
    %8648 = vmatpush1.bf16.msra.mxu0 %v5742
    %8649 = vmatprep.subr.bf16.mxu0 %v5726
    %8650 = vmatpush1.bf16.msra.mxu0 %v5725
    %8651 = vmatprep.subr.bf16.mxu0 %v5709
    %8652 = vmatpush1.bf16.msra.mxu0 %v5708
    %8653 = vmatprep.subr.bf16.mxu0 %v5692
    %8654 = vmatpush1.bf16.msra.mxu0 %v5691
    %8655 = vmatprep.subr.bf16.mxu0 %v5675
    %8656 = vmatpush1.bf16.msra.mxu0 %v5674
    %8657 = vmatprep.subr.bf16.mxu0 %v5658
    %8658 = vmatpush1.bf16.msra.mxu0 %v5657
    %8659 = vmatprep.subr.bf16.mxu0 %v5913
    %8660 = vmatpush2.bf16.msra.mxu0 %v5912
    %8661 = vmatprep.subr.bf16.mxu0 %v5896
    %8662 = vmatpush2.bf16.msra.mxu0 %v5895
    %8663 = vmatprep.subr.bf16.mxu0 %v5879
    %8664 = vmatpush2.bf16.msra.mxu0 %v5878
    %8665 = vmatprep.subr.bf16.mxu0 %v5862
    %8666 = vmatpush2.bf16.msra.mxu0 %v5861
    %8667 = vmatprep.subr.bf16.mxu0 %v5845
    %8668 = vmatpush2.bf16.msra.mxu0 %v5844
    %8669 = vmatprep.subr.bf16.mxu0 %v5828
    %8670 = vmatpush2.bf16.msra.mxu0 %v5827
    %8671 = vmatprep.subr.bf16.mxu0 %v5811
    %8672 = vmatpush2.bf16.msra.mxu0 %v5810
    %8673 = vmatprep.subr.bf16.mxu0 %v5794
    %8674 = vmatpush2.bf16.msra.mxu0 %v5793
    %8675 = vmatprep.mubr.bf16.mxu0 %v1160
    %8676 = vmatmul.mubr.bf16.gmra.mxu0 %v1159
    %v8677 = vpop.f32.mrf.mxu0
    %v8678 = vadd.f32 0.0, %v8677
    %v8679 = vpop.f32.mrf.mxu0
    %v8680 = vadd.f32 0.0, %v8679
    %v8681 = vpop.f32.mrf.mxu0
    %v8682 = vpop.f32.mrf.mxu0
    %8683 = vdwg.mxu0
    %8684 = vmatprep.subr.bf16.mxu0 %v6049
    %8685 = vmatpush1.bf16.msra.mxu0 %v6048
    %8686 = vmatprep.subr.bf16.mxu0 %v6032
    %8687 = vmatpush1.bf16.msra.mxu0 %v6031
    %8688 = vmatprep.subr.bf16.mxu0 %v6015
    %8689 = vmatpush1.bf16.msra.mxu0 %v6014
    %8690 = vmatprep.subr.bf16.mxu0 %v5998
    %8691 = vmatpush1.bf16.msra.mxu0 %v5997
    %8692 = vmatprep.subr.bf16.mxu0 %v5981
    %8693 = vmatpush1.bf16.msra.mxu0 %v5980
    %8694 = vmatprep.subr.bf16.mxu0 %v5964
    %8695 = vmatpush1.bf16.msra.mxu0 %v5963
    %8696 = vmatprep.subr.bf16.mxu0 %v5947
    %8697 = vmatpush1.bf16.msra.mxu0 %v5946
    %8698 = vmatprep.subr.bf16.mxu0 %v5930
    %8699 = vmatpush1.bf16.msra.mxu0 %v5929
    %8700 = vmatprep.subr.bf16.mxu0 %v6185
    %8701 = vmatpush2.bf16.msra.mxu0 %v6184
    %8702 = vmatprep.subr.bf16.mxu0 %v6168
    %8703 = vmatpush2.bf16.msra.mxu0 %v6167
    %8704 = vmatprep.subr.bf16.mxu0 %v6151
    %8705 = vmatpush2.bf16.msra.mxu0 %v6150
    %8706 = vmatprep.subr.bf16.mxu0 %v6134
    %8707 = vmatpush2.bf16.msra.mxu0 %v6133
    %8708 = vmatprep.subr.bf16.mxu0 %v6117
    %8709 = vmatpush2.bf16.msra.mxu0 %v6116
    %8710 = vmatprep.subr.bf16.mxu0 %v6100
    %8711 = vmatpush2.bf16.msra.mxu0 %v6099
    %8712 = vmatprep.subr.bf16.mxu0 %v6083
    %8713 = vmatpush2.bf16.msra.mxu0 %v6082
    %8714 = vmatprep.subr.bf16.mxu0 %v6066
    %8715 = vmatpush2.bf16.msra.mxu0 %v6065
    %8716 = vmatprep.mubr.bf16.mxu0 %v1162
    %8717 = vmatmul.mubr.bf16.gmra.mxu0 %v1161
    %v8718 = vpop.f32.mrf.mxu0
    %v8719 = vadd.f32 %v8678, %v8718
    %v8720 = vpop.f32.mrf.mxu0
    %v8721 = vadd.f32 %v8680, %v8720
    %v8722 = vpop.f32.mrf.mxu0
    %v8723 = vpop.f32.mrf.mxu0
    %8724 = vdwg.mxu0
    %8725 = vmatprep.subr.bf16.mxu0 %v6321
    %8726 = vmatpush1.bf16.msra.mxu0 %v6320
    %8727 = vmatprep.subr.bf16.mxu0 %v6304
    %8728 = vmatpush1.bf16.msra.mxu0 %v6303
    %8729 = vmatprep.subr.bf16.mxu0 %v6287
    %8730 = vmatpush1.bf16.msra.mxu0 %v6286
    %8731 = vmatprep.subr.bf16.mxu0 %v6270
    %8732 = vmatpush1.bf16.msra.mxu0 %v6269
    %8733 = vmatprep.subr.bf16.mxu0 %v6253
    %8734 = vmatpush1.bf16.msra.mxu0 %v6252
    %8735 = vmatprep.subr.bf16.mxu0 %v6236
    %8736 = vmatpush1.bf16.msra.mxu0 %v6235
    %8737 = vmatprep.subr.bf16.mxu0 %v6219
    %8738 = vmatpush1.bf16.msra.mxu0 %v6218
    %8739 = vmatprep.subr.bf16.mxu0 %v6202
    %8740 = vmatpush1.bf16.msra.mxu0 %v6201
    %8741 = vmatprep.subr.bf16.mxu0 %v6457
    %8742 = vmatpush2.bf16.msra.mxu0 %v6456
    %8743 = vmatprep.subr.bf16.mxu0 %v6440
    %8744 = vmatpush2.bf16.msra.mxu0 %v6439
    %8745 = vmatprep.subr.bf16.mxu0 %v6423
    %8746 = vmatpush2.bf16.msra.mxu0 %v6422
    %8747 = vmatprep.subr.bf16.mxu0 %v6406
    %8748 = vmatpush2.bf16.msra.mxu0 %v6405
    %8749 = vmatprep.subr.bf16.mxu0 %v6389
    %8750 = vmatpush2.bf16.msra.mxu0 %v6388
    %8751 = vmatprep.subr.bf16.mxu0 %v6372
    %8752 = vmatpush2.bf16.msra.mxu0 %v6371
    %8753 = vmatprep.subr.bf16.mxu0 %v6355
    %8754 = vmatpush2.bf16.msra.mxu0 %v6354
    %8755 = vmatprep.subr.bf16.mxu0 %v6338
    %8756 = vmatpush2.bf16.msra.mxu0 %v6337
    %8757 = vmatprep.mubr.bf16.mxu0 %v1164
    %8758 = vmatmul.mubr.bf16.gmra.mxu0 %v1163
    %v8759 = vpop.f32.mrf.mxu0
    %v8760 = vadd.f32 %v8719, %v8759
    %v8761 = vpop.f32.mrf.mxu0
    %v8762 = vadd.f32 %v8721, %v8761
    %v8763 = vpop.f32.mrf.mxu0
    %v8764 = vpop.f32.mrf.mxu0
    %8765 = vdwg.mxu0
    %8766 = vmatprep.subr.bf16.mxu0 %v6593
    %8767 = vmatpush1.bf16.msra.mxu0 %v6592
    %8768 = vmatprep.subr.bf16.mxu0 %v6576
    %8769 = vmatpush1.bf16.msra.mxu0 %v6575
    %8770 = vmatprep.subr.bf16.mxu0 %v6559
    %8771 = vmatpush1.bf16.msra.mxu0 %v6558
    %8772 = vmatprep.subr.bf16.mxu0 %v6542
    %8773 = vmatpush1.bf16.msra.mxu0 %v6541
    %8774 = vmatprep.subr.bf16.mxu0 %v6525
    %8775 = vmatpush1.bf16.msra.mxu0 %v6524
    %8776 = vmatprep.subr.bf16.mxu0 %v6508
    %8777 = vmatpush1.bf16.msra.mxu0 %v6507
    %8778 = vmatprep.subr.bf16.mxu0 %v6491
    %8779 = vmatpush1.bf16.msra.mxu0 %v6490
    %8780 = vmatprep.subr.bf16.mxu0 %v6474
    %8781 = vmatpush1.bf16.msra.mxu0 %v6473
    %8782 = vmatprep.subr.bf16.mxu0 %v6729
    %8783 = vmatpush2.bf16.msra.mxu0 %v6728
    %8784 = vmatprep.subr.bf16.mxu0 %v6712
    %8785 = vmatpush2.bf16.msra.mxu0 %v6711
    %8786 = vmatprep.subr.bf16.mxu0 %v6695
    %8787 = vmatpush2.bf16.msra.mxu0 %v6694
    %8788 = vmatprep.subr.bf16.mxu0 %v6678
    %8789 = vmatpush2.bf16.msra.mxu0 %v6677
    %8790 = vmatprep.subr.bf16.mxu0 %v6661
    %8791 = vmatpush2.bf16.msra.mxu0 %v6660
    %8792 = vmatprep.subr.bf16.mxu0 %v6644
    %8793 = vmatpush2.bf16.msra.mxu0 %v6643
    %8794 = vmatprep.subr.bf16.mxu0 %v6627
    %8795 = vmatpush2.bf16.msra.mxu0 %v6626
    %8796 = vmatprep.subr.bf16.mxu0 %v6610
    %8797 = vmatpush2.bf16.msra.mxu0 %v6609
    %8798 = vmatprep.mubr.bf16.mxu0 %v1166
    %8799 = vmatmul.mubr.bf16.gmra.mxu0 %v1165
    %v8800 = vpop.f32.mrf.mxu0
    %v8801 = vadd.f32 %v8760, %v8800
    %v8802 = vpop.f32.mrf.mxu0
    %v8803 = vadd.f32 %v8762, %v8802
    %v8804 = vpop.f32.mrf.mxu0
    %v8805 = vpop.f32.mrf.mxu0
    %8806 = vdwg.mxu0
    %8807 = vmatprep.subr.bf16.mxu0 %v5779
    %8808 = vmatpush1.bf16.msra.mxu0 %v5778
    %8809 = vmatprep.subr.bf16.mxu0 %v5762
    %8810 = vmatpush1.bf16.msra.mxu0 %v5761
    %8811 = vmatprep.subr.bf16.mxu0 %v5745
    %8812 = vmatpush1.bf16.msra.mxu0 %v5744
    %8813 = vmatprep.subr.bf16.mxu0 %v5728
    %8814 = vmatpush1.bf16.msra.mxu0 %v5727
    %8815 = vmatprep.subr.bf16.mxu0 %v5711
    %8816 = vmatpush1.bf16.msra.mxu0 %v5710
    %8817 = vmatprep.subr.bf16.mxu0 %v5694
    %8818 = vmatpush1.bf16.msra.mxu0 %v5693
    %8819 = vmatprep.subr.bf16.mxu0 %v5677
    %8820 = vmatpush1.bf16.msra.mxu0 %v5676
    %8821 = vmatprep.subr.bf16.mxu0 %v5660
    %8822 = vmatpush1.bf16.msra.mxu0 %v5659
    %8823 = vmatprep.subr.bf16.mxu0 %v5915
    %8824 = vmatpush2.bf16.msra.mxu0 %v5914
    %8825 = vmatprep.subr.bf16.mxu0 %v5898
    %8826 = vmatpush2.bf16.msra.mxu0 %v5897
    %8827 = vmatprep.subr.bf16.mxu0 %v5881
    %8828 = vmatpush2.bf16.msra.mxu0 %v5880
    %8829 = vmatprep.subr.bf16.mxu0 %v5864
    %8830 = vmatpush2.bf16.msra.mxu0 %v5863
    %8831 = vmatprep.subr.bf16.mxu0 %v5847
    %8832 = vmatpush2.bf16.msra.mxu0 %v5846
    %8833 = vmatprep.subr.bf16.mxu0 %v5830
    %8834 = vmatpush2.bf16.msra.mxu0 %v5829
    %8835 = vmatprep.subr.bf16.mxu0 %v5813
    %8836 = vmatpush2.bf16.msra.mxu0 %v5812
    %8837 = vmatprep.subr.bf16.mxu0 %v5796
    %8838 = vmatpush2.bf16.msra.mxu0 %v5795
    %8839 = vmatprep.mubr.bf16.mxu0 %v1160
    %8840 = vmatmul.mubr.bf16.gmra.mxu0 %v1159
    %v8841 = vpop.f32.mrf.mxu0
    %v8842 = vadd.f32 0.0, %v8841
    %v8843 = vpop.f32.mrf.mxu0
    %v8844 = vadd.f32 0.0, %v8843
    %v8845 = vpop.f32.mrf.mxu0
    %v8846 = vpop.f32.mrf.mxu0
    %8847 = vdwg.mxu0
    %8848 = vmatprep.subr.bf16.mxu0 %v6051
    %8849 = vmatpush1.bf16.msra.mxu0 %v6050
    %8850 = vmatprep.subr.bf16.mxu0 %v6034
    %8851 = vmatpush1.bf16.msra.mxu0 %v6033
    %8852 = vmatprep.subr.bf16.mxu0 %v6017
    %8853 = vmatpush1.bf16.msra.mxu0 %v6016
    %8854 = vmatprep.subr.bf16.mxu0 %v6000
    %8855 = vmatpush1.bf16.msra.mxu0 %v5999
    %8856 = vmatprep.subr.bf16.mxu0 %v5983
    %8857 = vmatpush1.bf16.msra.mxu0 %v5982
    %8858 = vmatprep.subr.bf16.mxu0 %v5966
    %8859 = vmatpush1.bf16.msra.mxu0 %v5965
    %8860 = vmatprep.subr.bf16.mxu0 %v5949
    %8861 = vmatpush1.bf16.msra.mxu0 %v5948
    %8862 = vmatprep.subr.bf16.mxu0 %v5932
    %8863 = vmatpush1.bf16.msra.mxu0 %v5931
    %8864 = vmatprep.subr.bf16.mxu0 %v6187
    %8865 = vmatpush2.bf16.msra.mxu0 %v6186
    %8866 = vmatprep.subr.bf16.mxu0 %v6170
    %8867 = vmatpush2.bf16.msra.mxu0 %v6169
    %8868 = vmatprep.subr.bf16.mxu0 %v6153
    %8869 = vmatpush2.bf16.msra.mxu0 %v6152
    %8870 = vmatprep.subr.bf16.mxu0 %v6136
    %8871 = vmatpush2.bf16.msra.mxu0 %v6135
    %8872 = vmatprep.subr.bf16.mxu0 %v6119
    %8873 = vmatpush2.bf16.msra.mxu0 %v6118
    %8874 = vmatprep.subr.bf16.mxu0 %v6102
    %8875 = vmatpush2.bf16.msra.mxu0 %v6101
    %8876 = vmatprep.subr.bf16.mxu0 %v6085
    %8877 = vmatpush2.bf16.msra.mxu0 %v6084
    %8878 = vmatprep.subr.bf16.mxu0 %v6068
    %8879 = vmatpush2.bf16.msra.mxu0 %v6067
    %8880 = vmatprep.mubr.bf16.mxu0 %v1162
    %8881 = vmatmul.mubr.bf16.gmra.mxu0 %v1161
    %v8882 = vpop.f32.mrf.mxu0
    %v8883 = vadd.f32 %v8842, %v8882
    %v8884 = vpop.f32.mrf.mxu0
    %v8885 = vadd.f32 %v8844, %v8884
    %v8886 = vpop.f32.mrf.mxu0
    %v8887 = vpop.f32.mrf.mxu0
    %8888 = vdwg.mxu0
    %8889 = vmatprep.subr.bf16.mxu0 %v6323
    %8890 = vmatpush1.bf16.msra.mxu0 %v6322
    %8891 = vmatprep.subr.bf16.mxu0 %v6306
    %8892 = vmatpush1.bf16.msra.mxu0 %v6305
    %8893 = vmatprep.subr.bf16.mxu0 %v6289
    %8894 = vmatpush1.bf16.msra.mxu0 %v6288
    %8895 = vmatprep.subr.bf16.mxu0 %v6272
    %8896 = vmatpush1.bf16.msra.mxu0 %v6271
    %8897 = vmatprep.subr.bf16.mxu0 %v6255
    %8898 = vmatpush1.bf16.msra.mxu0 %v6254
    %8899 = vmatprep.subr.bf16.mxu0 %v6238
    %8900 = vmatpush1.bf16.msra.mxu0 %v6237
    %8901 = vmatprep.subr.bf16.mxu0 %v6221
    %8902 = vmatpush1.bf16.msra.mxu0 %v6220
    %8903 = vmatprep.subr.bf16.mxu0 %v6204
    %8904 = vmatpush1.bf16.msra.mxu0 %v6203
    %8905 = vmatprep.subr.bf16.mxu0 %v6459
    %8906 = vmatpush2.bf16.msra.mxu0 %v6458
    %8907 = vmatprep.subr.bf16.mxu0 %v6442
    %8908 = vmatpush2.bf16.msra.mxu0 %v6441
    %8909 = vmatprep.subr.bf16.mxu0 %v6425
    %8910 = vmatpush2.bf16.msra.mxu0 %v6424
    %8911 = vmatprep.subr.bf16.mxu0 %v6408
    %8912 = vmatpush2.bf16.msra.mxu0 %v6407
    %8913 = vmatprep.subr.bf16.mxu0 %v6391
    %8914 = vmatpush2.bf16.msra.mxu0 %v6390
    %8915 = vmatprep.subr.bf16.mxu0 %v6374
    %8916 = vmatpush2.bf16.msra.mxu0 %v6373
    %8917 = vmatprep.subr.bf16.mxu0 %v6357
    %8918 = vmatpush2.bf16.msra.mxu0 %v6356
    %8919 = vmatprep.subr.bf16.mxu0 %v6340
    %8920 = vmatpush2.bf16.msra.mxu0 %v6339
    %8921 = vmatprep.mubr.bf16.mxu0 %v1164
    %8922 = vmatmul.mubr.bf16.gmra.mxu0 %v1163
    %v8923 = vpop.f32.mrf.mxu0
    %v8924 = vadd.f32 %v8883, %v8923
    %v8925 = vpop.f32.mrf.mxu0
    %v8926 = vadd.f32 %v8885, %v8925
    %v8927 = vpop.f32.mrf.mxu0
    %v8928 = vpop.f32.mrf.mxu0
    %8929 = vdwg.mxu0
    %8930 = vmatprep.subr.bf16.mxu0 %v6595
    %8931 = vmatpush1.bf16.msra.mxu0 %v6594
    %8932 = vmatprep.subr.bf16.mxu0 %v6578
    %8933 = vmatpush1.bf16.msra.mxu0 %v6577
    %8934 = vmatprep.subr.bf16.mxu0 %v6561
    %8935 = vmatpush1.bf16.msra.mxu0 %v6560
    %8936 = vmatprep.subr.bf16.mxu0 %v6544
    %8937 = vmatpush1.bf16.msra.mxu0 %v6543
    %8938 = vmatprep.subr.bf16.mxu0 %v6527
    %8939 = vmatpush1.bf16.msra.mxu0 %v6526
    %8940 = vmatprep.subr.bf16.mxu0 %v6510
    %8941 = vmatpush1.bf16.msra.mxu0 %v6509
    %8942 = vmatprep.subr.bf16.mxu0 %v6493
    %8943 = vmatpush1.bf16.msra.mxu0 %v6492
    %8944 = vmatprep.subr.bf16.mxu0 %v6476
    %8945 = vmatpush1.bf16.msra.mxu0 %v6475
    %8946 = vmatprep.subr.bf16.mxu0 %v6731
    %8947 = vmatpush2.bf16.msra.mxu0 %v6730
    %8948 = vmatprep.subr.bf16.mxu0 %v6714
    %8949 = vmatpush2.bf16.msra.mxu0 %v6713
    %8950 = vmatprep.subr.bf16.mxu0 %v6697
    %8951 = vmatpush2.bf16.msra.mxu0 %v6696
    %8952 = vmatprep.subr.bf16.mxu0 %v6680
    %8953 = vmatpush2.bf16.msra.mxu0 %v6679
    %8954 = vmatprep.subr.bf16.mxu0 %v6663
    %8955 = vmatpush2.bf16.msra.mxu0 %v6662
    %8956 = vmatprep.subr.bf16.mxu0 %v6646
    %8957 = vmatpush2.bf16.msra.mxu0 %v6645
    %8958 = vmatprep.subr.bf16.mxu0 %v6629
    %8959 = vmatpush2.bf16.msra.mxu0 %v6628
    %8960 = vmatprep.subr.bf16.mxu0 %v6612
    %8961 = vmatpush2.bf16.msra.mxu0 %v6611
    %8962 = vmatprep.mubr.bf16.mxu0 %v1166
    %8963 = vmatmul.mubr.bf16.gmra.mxu0 %v1165
    %v8964 = vpop.f32.mrf.mxu0
    %v8965 = vadd.f32 %v8924, %v8964
    %v8966 = vpop.f32.mrf.mxu0
    %v8967 = vadd.f32 %v8926, %v8966
    %v8968 = vpop.f32.mrf.mxu0
    %v8969 = vpop.f32.mrf.mxu0
    %8970 = vdwg.mxu0
    %8971 = vmatprep.subr.bf16.mxu0 %v5781
    %8972 = vmatpush1.bf16.msra.mxu0 %v5780
    %8973 = vmatprep.subr.bf16.mxu0 %v5764
    %8974 = vmatpush1.bf16.msra.mxu0 %v5763
    %8975 = vmatprep.subr.bf16.mxu0 %v5747
    %8976 = vmatpush1.bf16.msra.mxu0 %v5746
    %8977 = vmatprep.subr.bf16.mxu0 %v5730
    %8978 = vmatpush1.bf16.msra.mxu0 %v5729
    %8979 = vmatprep.subr.bf16.mxu0 %v5713
    %8980 = vmatpush1.bf16.msra.mxu0 %v5712
    %8981 = vmatprep.subr.bf16.mxu0 %v5696
    %8982 = vmatpush1.bf16.msra.mxu0 %v5695
    %8983 = vmatprep.subr.bf16.mxu0 %v5679
    %8984 = vmatpush1.bf16.msra.mxu0 %v5678
    %8985 = vmatprep.subr.bf16.mxu0 %v5662
    %8986 = vmatpush1.bf16.msra.mxu0 %v5661
    %8987 = vmatprep.subr.bf16.mxu0 %v5917
    %8988 = vmatpush2.bf16.msra.mxu0 %v5916
    %8989 = vmatprep.subr.bf16.mxu0 %v5900
    %8990 = vmatpush2.bf16.msra.mxu0 %v5899
    %8991 = vmatprep.subr.bf16.mxu0 %v5883
    %8992 = vmatpush2.bf16.msra.mxu0 %v5882
    %8993 = vmatprep.subr.bf16.mxu0 %v5866
    %8994 = vmatpush2.bf16.msra.mxu0 %v5865
    %8995 = vmatprep.subr.bf16.mxu0 %v5849
    %8996 = vmatpush2.bf16.msra.mxu0 %v5848
    %8997 = vmatprep.subr.bf16.mxu0 %v5832
    %8998 = vmatpush2.bf16.msra.mxu0 %v5831
    %8999 = vmatprep.subr.bf16.mxu0 %v5815
    %9000 = vmatpush2.bf16.msra.mxu0 %v5814
    %9001 = vmatprep.subr.bf16.mxu0 %v5798
    %9002 = vmatpush2.bf16.msra.mxu0 %v5797
    %9003 = vmatprep.mubr.bf16.mxu0 %v1160
    %9004 = vmatmul.mubr.bf16.gmra.mxu0 %v1159
    %v9005 = vpop.f32.mrf.mxu0
    %v9006 = vadd.f32 0.0, %v9005
    %v9007 = vpop.f32.mrf.mxu0
    %v9008 = vadd.f32 0.0, %v9007
    %v9009 = vpop.f32.mrf.mxu0
    %v9010 = vpop.f32.mrf.mxu0
    %9011 = vdwg.mxu0
    %9012 = vmatprep.subr.bf16.mxu0 %v6053
    %9013 = vmatpush1.bf16.msra.mxu0 %v6052
    %9014 = vmatprep.subr.bf16.mxu0 %v6036
    %9015 = vmatpush1.bf16.msra.mxu0 %v6035
    %9016 = vmatprep.subr.bf16.mxu0 %v6019
    %9017 = vmatpush1.bf16.msra.mxu0 %v6018
    %9018 = vmatprep.subr.bf16.mxu0 %v6002
    %9019 = vmatpush1.bf16.msra.mxu0 %v6001
    %9020 = vmatprep.subr.bf16.mxu0 %v5985
    %9021 = vmatpush1.bf16.msra.mxu0 %v5984
    %9022 = vmatprep.subr.bf16.mxu0 %v5968
    %9023 = vmatpush1.bf16.msra.mxu0 %v5967
    %9024 = vmatprep.subr.bf16.mxu0 %v5951
    %9025 = vmatpush1.bf16.msra.mxu0 %v5950
    %9026 = vmatprep.subr.bf16.mxu0 %v5934
    %9027 = vmatpush1.bf16.msra.mxu0 %v5933
    %9028 = vmatprep.subr.bf16.mxu0 %v6189
    %9029 = vmatpush2.bf16.msra.mxu0 %v6188
    %9030 = vmatprep.subr.bf16.mxu0 %v6172
    %9031 = vmatpush2.bf16.msra.mxu0 %v6171
    %9032 = vmatprep.subr.bf16.mxu0 %v6155
    %9033 = vmatpush2.bf16.msra.mxu0 %v6154
    %9034 = vmatprep.subr.bf16.mxu0 %v6138
    %9035 = vmatpush2.bf16.msra.mxu0 %v6137
    %9036 = vmatprep.subr.bf16.mxu0 %v6121
    %9037 = vmatpush2.bf16.msra.mxu0 %v6120
    %9038 = vmatprep.subr.bf16.mxu0 %v6104
    %9039 = vmatpush2.bf16.msra.mxu0 %v6103
    %9040 = vmatprep.subr.bf16.mxu0 %v6087
    %9041 = vmatpush2.bf16.msra.mxu0 %v6086
    %9042 = vmatprep.subr.bf16.mxu0 %v6070
    %9043 = vmatpush2.bf16.msra.mxu0 %v6069
    %9044 = vmatprep.mubr.bf16.mxu0 %v1162
    %9045 = vmatmul.mubr.bf16.gmra.mxu0 %v1161
    %v9046 = vpop.f32.mrf.mxu0
    %v9047 = vadd.f32 %v9006, %v9046
    %v9048 = vpop.f32.mrf.mxu0
    %v9049 = vadd.f32 %v9008, %v9048
    %v9050 = vpop.f32.mrf.mxu0
    %v9051 = vpop.f32.mrf.mxu0
    %9052 = vdwg.mxu0
    %9053 = vmatprep.subr.bf16.mxu0 %v6325
    %9054 = vmatpush1.bf16.msra.mxu0 %v6324
    %9055 = vmatprep.subr.bf16.mxu0 %v6308
    %9056 = vmatpush1.bf16.msra.mxu0 %v6307
    %9057 = vmatprep.subr.bf16.mxu0 %v6291
    %9058 = vmatpush1.bf16.msra.mxu0 %v6290
    %9059 = vmatprep.subr.bf16.mxu0 %v6274
    %9060 = vmatpush1.bf16.msra.mxu0 %v6273
    %9061 = vmatprep.subr.bf16.mxu0 %v6257
    %9062 = vmatpush1.bf16.msra.mxu0 %v6256
    %9063 = vmatprep.subr.bf16.mxu0 %v6240
    %9064 = vmatpush1.bf16.msra.mxu0 %v6239
    %9065 = vmatprep.subr.bf16.mxu0 %v6223
    %9066 = vmatpush1.bf16.msra.mxu0 %v6222
    %9067 = vmatprep.subr.bf16.mxu0 %v6206
    %9068 = vmatpush1.bf16.msra.mxu0 %v6205
    %9069 = vmatprep.subr.bf16.mxu0 %v6461
    %9070 = vmatpush2.bf16.msra.mxu0 %v6460
    %9071 = vmatprep.subr.bf16.mxu0 %v6444
    %9072 = vmatpush2.bf16.msra.mxu0 %v6443
    %9073 = vmatprep.subr.bf16.mxu0 %v6427
    %9074 = vmatpush2.bf16.msra.mxu0 %v6426
    %9075 = vmatprep.subr.bf16.mxu0 %v6410
    %9076 = vmatpush2.bf16.msra.mxu0 %v6409
    %9077 = vmatprep.subr.bf16.mxu0 %v6393
    %9078 = vmatpush2.bf16.msra.mxu0 %v6392
    %9079 = vmatprep.subr.bf16.mxu0 %v6376
    %9080 = vmatpush2.bf16.msra.mxu0 %v6375
    %9081 = vmatprep.subr.bf16.mxu0 %v6359
    %9082 = vmatpush2.bf16.msra.mxu0 %v6358
    %9083 = vmatprep.subr.bf16.mxu0 %v6342
    %9084 = vmatpush2.bf16.msra.mxu0 %v6341
    %9085 = vmatprep.mubr.bf16.mxu0 %v1164
    %9086 = vmatmul.mubr.bf16.gmra.mxu0 %v1163
    %v9087 = vpop.f32.mrf.mxu0
    %v9088 = vadd.f32 %v9047, %v9087
    %v9089 = vpop.f32.mrf.mxu0
    %v9090 = vadd.f32 %v9049, %v9089
    %v9091 = vpop.f32.mrf.mxu0
    %v9092 = vpop.f32.mrf.mxu0
    %9093 = vdwg.mxu0
    %9094 = vmatprep.subr.bf16.mxu0 %v6597
    %9095 = vmatpush1.bf16.msra.mxu0 %v6596
    %9096 = vmatprep.subr.bf16.mxu0 %v6580
    %9097 = vmatpush1.bf16.msra.mxu0 %v6579
    %9098 = vmatprep.subr.bf16.mxu0 %v6563
    %9099 = vmatpush1.bf16.msra.mxu0 %v6562
    %9100 = vmatprep.subr.bf16.mxu0 %v6546
    %9101 = vmatpush1.bf16.msra.mxu0 %v6545
    %9102 = vmatprep.subr.bf16.mxu0 %v6529
    %9103 = vmatpush1.bf16.msra.mxu0 %v6528
    %9104 = vmatprep.subr.bf16.mxu0 %v6512
    %9105 = vmatpush1.bf16.msra.mxu0 %v6511
    %9106 = vmatprep.subr.bf16.mxu0 %v6495
    %9107 = vmatpush1.bf16.msra.mxu0 %v6494
    %9108 = vmatprep.subr.bf16.mxu0 %v6478
    %9109 = vmatpush1.bf16.msra.mxu0 %v6477
    %9110 = vmatprep.subr.bf16.mxu0 %v6733
    %9111 = vmatpush2.bf16.msra.mxu0 %v6732
    %9112 = vmatprep.subr.bf16.mxu0 %v6716
    %9113 = vmatpush2.bf16.msra.mxu0 %v6715
    %9114 = vmatprep.subr.bf16.mxu0 %v6699
    %9115 = vmatpush2.bf16.msra.mxu0 %v6698
    %9116 = vmatprep.subr.bf16.mxu0 %v6682
    %9117 = vmatpush2.bf16.msra.mxu0 %v6681
    %9118 = vmatprep.subr.bf16.mxu0 %v6665
    %9119 = vmatpush2.bf16.msra.mxu0 %v6664
    %9120 = vmatprep.subr.bf16.mxu0 %v6648
    %9121 = vmatpush2.bf16.msra.mxu0 %v6647
    %9122 = vmatprep.subr.bf16.mxu0 %v6631
    %9123 = vmatpush2.bf16.msra.mxu0 %v6630
    %9124 = vmatprep.subr.bf16.mxu0 %v6614
    %9125 = vmatpush2.bf16.msra.mxu0 %v6613
    %9126 = vmatprep.mubr.bf16.mxu0 %v1166
    %9127 = vmatmul.mubr.bf16.gmra.mxu0 %v1165
    %v9128 = vpop.f32.mrf.mxu0
    %v9129 = vadd.f32 %v9088, %v9128
    %v9130 = vpop.f32.mrf.mxu0
    %v9131 = vadd.f32 %v9090, %v9130
    %v9132 = vpop.f32.mrf.mxu0
    %v9133 = vpop.f32.mrf.mxu0
    %9134 = vdwg.mxu0
    %9135 = vmatprep.subr.bf16.mxu0 0
    %9136 = vmatpush1.bf16.msra.mxu0 %v5782
    %9137 = vmatprep.subr.bf16.mxu0 0
    %9138 = vmatpush1.bf16.msra.mxu0 %v5765
    %9139 = vmatprep.subr.bf16.mxu0 0
    %9140 = vmatpush1.bf16.msra.mxu0 %v5748
    %9141 = vmatprep.subr.bf16.mxu0 0
    %9142 = vmatpush1.bf16.msra.mxu0 %v5731
    %9143 = vmatprep.subr.bf16.mxu0 0
    %9144 = vmatpush1.bf16.msra.mxu0 %v5714
    %9145 = vmatprep.subr.bf16.mxu0 0
    %9146 = vmatpush1.bf16.msra.mxu0 %v5697
    %9147 = vmatprep.subr.bf16.mxu0 0
    %9148 = vmatpush1.bf16.msra.mxu0 %v5680
    %9149 = vmatprep.subr.bf16.mxu0 0
    %9150 = vmatpush1.bf16.msra.mxu0 %v5663
    %9151 = vmatprep.subr.bf16.mxu0 0
    %9152 = vmatpush2.bf16.msra.mxu0 %v5918
    %9153 = vmatprep.subr.bf16.mxu0 0
    %9154 = vmatpush2.bf16.msra.mxu0 %v5901
    %9155 = vmatprep.subr.bf16.mxu0 0
    %9156 = vmatpush2.bf16.msra.mxu0 %v5884
    %9157 = vmatprep.subr.bf16.mxu0 0
    %9158 = vmatpush2.bf16.msra.mxu0 %v5867
    %9159 = vmatprep.subr.bf16.mxu0 0
    %9160 = vmatpush2.bf16.msra.mxu0 %v5850
    %9161 = vmatprep.subr.bf16.mxu0 0
    %9162 = vmatpush2.bf16.msra.mxu0 %v5833
    %9163 = vmatprep.subr.bf16.mxu0 0
    %9164 = vmatpush2.bf16.msra.mxu0 %v5816
    %9165 = vmatprep.subr.bf16.mxu0 0
    %9166 = vmatpush2.bf16.msra.mxu0 %v5799
    %9167 = vmatprep.mubr.bf16.mxu0 %v1160
    %9168 = vmatmul.mubr.bf16.gmra.mxu0 %v1159
    %v9169 = vpop.f32.mrf.mxu0
    %v9170 = vadd.f32 0.0, %v9169
    %v9171 = vpop.f32.mrf.mxu0
    %v9172 = vpop.f32.mrf.mxu0
    %v9173 = vpop.f32.mrf.mxu0
    %9174 = vdwg.mxu0
    %9175 = vmatprep.subr.bf16.mxu0 0
    %9176 = vmatpush1.bf16.msra.mxu0 %v6054
    %9177 = vmatprep.subr.bf16.mxu0 0
    %9178 = vmatpush1.bf16.msra.mxu0 %v6037
    %9179 = vmatprep.subr.bf16.mxu0 0
    %9180 = vmatpush1.bf16.msra.mxu0 %v6020
    %9181 = vmatprep.subr.bf16.mxu0 0
    %9182 = vmatpush1.bf16.msra.mxu0 %v6003
    %9183 = vmatprep.subr.bf16.mxu0 0
    %9184 = vmatpush1.bf16.msra.mxu0 %v5986
    %9185 = vmatprep.subr.bf16.mxu0 0
    %9186 = vmatpush1.bf16.msra.mxu0 %v5969
    %9187 = vmatprep.subr.bf16.mxu0 0
    %9188 = vmatpush1.bf16.msra.mxu0 %v5952
    %9189 = vmatprep.subr.bf16.mxu0 0
    %9190 = vmatpush1.bf16.msra.mxu0 %v5935
    %9191 = vmatprep.subr.bf16.mxu0 0
    %9192 = vmatpush2.bf16.msra.mxu0 %v6190
    %9193 = vmatprep.subr.bf16.mxu0 0
    %9194 = vmatpush2.bf16.msra.mxu0 %v6173
    %9195 = vmatprep.subr.bf16.mxu0 0
    %9196 = vmatpush2.bf16.msra.mxu0 %v6156
    %9197 = vmatprep.subr.bf16.mxu0 0
    %9198 = vmatpush2.bf16.msra.mxu0 %v6139
    %9199 = vmatprep.subr.bf16.mxu0 0
    %9200 = vmatpush2.bf16.msra.mxu0 %v6122
    %9201 = vmatprep.subr.bf16.mxu0 0
    %9202 = vmatpush2.bf16.msra.mxu0 %v6105
    %9203 = vmatprep.subr.bf16.mxu0 0
    %9204 = vmatpush2.bf16.msra.mxu0 %v6088
    %9205 = vmatprep.subr.bf16.mxu0 0
    %9206 = vmatpush2.bf16.msra.mxu0 %v6071
    %9207 = vmatprep.mubr.bf16.mxu0 %v1162
    %9208 = vmatmul.mubr.bf16.gmra.mxu0 %v1161
    %v9209 = vpop.f32.mrf.mxu0
    %v9210 = vadd.f32 %v9170, %v9209
    %v9211 = vpop.f32.mrf.mxu0
    %v9212 = vpop.f32.mrf.mxu0
    %v9213 = vpop.f32.mrf.mxu0
    %9214 = vdwg.mxu0
    %9215 = vmatprep.subr.bf16.mxu0 0
    %9216 = vmatpush1.bf16.msra.mxu0 %v6326
    %9217 = vmatprep.subr.bf16.mxu0 0
    %9218 = vmatpush1.bf16.msra.mxu0 %v6309
    %9219 = vmatprep.subr.bf16.mxu0 0
    %9220 = vmatpush1.bf16.msra.mxu0 %v6292
    %9221 = vmatprep.subr.bf16.mxu0 0
    %9222 = vmatpush1.bf16.msra.mxu0 %v6275
    %9223 = vmatprep.subr.bf16.mxu0 0
    %9224 = vmatpush1.bf16.msra.mxu0 %v6258
    %9225 = vmatprep.subr.bf16.mxu0 0
    %9226 = vmatpush1.bf16.msra.mxu0 %v6241
    %9227 = vmatprep.subr.bf16.mxu0 0
    %9228 = vmatpush1.bf16.msra.mxu0 %v6224
    %9229 = vmatprep.subr.bf16.mxu0 0
    %9230 = vmatpush1.bf16.msra.mxu0 %v6207
    %9231 = vmatprep.subr.bf16.mxu0 0
    %9232 = vmatpush2.bf16.msra.mxu0 %v6462
    %9233 = vmatprep.subr.bf16.mxu0 0
    %9234 = vmatpush2.bf16.msra.mxu0 %v6445
    %9235 = vmatprep.subr.bf16.mxu0 0
    %9236 = vmatpush2.bf16.msra.mxu0 %v6428
    %9237 = vmatprep.subr.bf16.mxu0 0
    %9238 = vmatpush2.bf16.msra.mxu0 %v6411
    %9239 = vmatprep.subr.bf16.mxu0 0
    %9240 = vmatpush2.bf16.msra.mxu0 %v6394
    %9241 = vmatprep.subr.bf16.mxu0 0
    %9242 = vmatpush2.bf16.msra.mxu0 %v6377
    %9243 = vmatprep.subr.bf16.mxu0 0
    %9244 = vmatpush2.bf16.msra.mxu0 %v6360
    %9245 = vmatprep.subr.bf16.mxu0 0
    %9246 = vmatpush2.bf16.msra.mxu0 %v6343
    %9247 = vmatprep.mubr.bf16.mxu0 %v1164
    %9248 = vmatmul.mubr.bf16.gmra.mxu0 %v1163
    %v9249 = vpop.f32.mrf.mxu0
    %v9250 = vadd.f32 %v9210, %v9249
    %v9251 = vpop.f32.mrf.mxu0
    %v9252 = vpop.f32.mrf.mxu0
    %v9253 = vpop.f32.mrf.mxu0
    %9254 = vdwg.mxu0
    %9255 = vmatprep.subr.bf16.mxu0 0
    %9256 = vmatpush1.bf16.msra.mxu0 %v6598
    %9257 = vmatprep.subr.bf16.mxu0 0
    %9258 = vmatpush1.bf16.msra.mxu0 %v6581
    %9259 = vmatprep.subr.bf16.mxu0 0
    %9260 = vmatpush1.bf16.msra.mxu0 %v6564
    %9261 = vmatprep.subr.bf16.mxu0 0
    %9262 = vmatpush1.bf16.msra.mxu0 %v6547
    %9263 = vmatprep.subr.bf16.mxu0 0
    %9264 = vmatpush1.bf16.msra.mxu0 %v6530
    %9265 = vmatprep.subr.bf16.mxu0 0
    %9266 = vmatpush1.bf16.msra.mxu0 %v6513
    %9267 = vmatprep.subr.bf16.mxu0 0
    %9268 = vmatpush1.bf16.msra.mxu0 %v6496
    %9269 = vmatprep.subr.bf16.mxu0 0
    %9270 = vmatpush1.bf16.msra.mxu0 %v6479
    %9271 = vmatprep.subr.bf16.mxu0 0
    %9272 = vmatpush2.bf16.msra.mxu0 %v6734
    %9273 = vmatprep.subr.bf16.mxu0 0
    %9274 = vmatpush2.bf16.msra.mxu0 %v6717
    %9275 = vmatprep.subr.bf16.mxu0 0
    %9276 = vmatpush2.bf16.msra.mxu0 %v6700
    %9277 = vmatprep.subr.bf16.mxu0 0
    %9278 = vmatpush2.bf16.msra.mxu0 %v6683
    %9279 = vmatprep.subr.bf16.mxu0 0
    %9280 = vmatpush2.bf16.msra.mxu0 %v6666
    %9281 = vmatprep.subr.bf16.mxu0 0
    %9282 = vmatpush2.bf16.msra.mxu0 %v6649
    %9283 = vmatprep.subr.bf16.mxu0 0
    %9284 = vmatpush2.bf16.msra.mxu0 %v6632
    %9285 = vmatprep.subr.bf16.mxu0 0
    %9286 = vmatpush2.bf16.msra.mxu0 %v6615
    %9287 = vmatprep.mubr.bf16.mxu0 %v1166
    %9288 = vmatmul.mubr.bf16.gmra.mxu0 %v1165
    %v9289 = vpop.f32.mrf.mxu0
    %v9290 = vadd.f32 %v9250, %v9289
    %v9291 = vpop.f32.mrf.mxu0
    %v9292 = vpop.f32.mrf.mxu0
    %v9293 = vpop.f32.mrf.mxu0
    %9294 = vdwg.mxu0
    %9295 = vxpose.xlu0.b32.start [1/16] %v9290, 128
    %9296 = vxpose.xlu0.b32.cont [2/16] 0.0, 128
    %9297 = vxpose.xlu0.b32.cont [3/16] 0.0, 128
    %9298 = vxpose.xlu0.b32.cont [4/16] 0.0, 128
    %9299 = vxpose.xlu0.b32.cont [5/16] 0.0, 128
    %9300 = vxpose.xlu0.b32.cont [6/16] 0.0, 128
    %9301 = vxpose.xlu0.b32.cont [7/16] 0.0, 128
    %9302 = vxpose.xlu0.b32.cont [8/16] 0.0, 128
    %9303 = vxpose.xlu0.b32.cont [9/16] 0.0, 128
    %9304 = vxpose.xlu0.b32.cont [10/16] 0.0, 128
    %9305 = vxpose.xlu0.b32.cont [11/16] 0.0, 128
    %9306 = vxpose.xlu0.b32.cont [12/16] 0.0, 128
    %9307 = vxpose.xlu0.b32.cont [13/16] 0.0, 128
    %9308 = vxpose.xlu0.b32.cont [14/16] 0.0, 128
    %9309 = vxpose.xlu0.b32.cont [15/16] 0.0, 128
    %9310 = vxpose.xlu0.b32.end [16/16] 0.0, 128
    %v9311 = vpop.trf.xlu0
    %v9312 = vpop.trf.xlu0
    %v9313 = vpop.trf.xlu0
    %v9314 = vpop.trf.xlu0
    %v9315 = vpop.trf.xlu0
    %v9316 = vpop.trf.xlu0
    %v9317 = vpop.trf.xlu0
    %v9318 = vpop.trf.xlu0
    %v9319 = vpop.trf.xlu0
    %v9320 = vpop.trf.xlu0
    %v9321 = vpop.trf.xlu0
    %v9322 = vpop.trf.xlu0
    %v9323 = vpop.trf.xlu0
    %v9324 = vpop.trf.xlu0
    %v9325 = vpop.trf.xlu0
    %v9326 = vpop.trf.xlu0
    %9328 = vset.pattern.permute.xlu0 4
    %9329 = vperm.xlu0 %9328, %v9290
    %v9330 = vpop.permute.xlu0 %9329
    %v9332 = vlaneseq
    %v9333 = vshrl.u32 %v9332, 7
    %v9334 = vsub.s32 0, %v9333
    %v9335 = vrot.slane %v9311, %v9334
    %v9336 = vadd.f32 %v9330, %v9335
    %vm9337 = vcmp.gt.f32.partialorder %v9336, 0.0
    %v9338 = vmul.f32 %v9336, 0.2
    %v9339 = vsel %vm9337, %v9336, %v9338
    %v9340 = vsel %vm32, %v9339, -1e+30
    %v9341 = vsel %vm556, %v9340, -inf
    %9342 = vmax.xlane.f32.xlu0 %v9341
    %v9343 = vpop.xlane.xlu0 %9342
    %v9344 = vsub.f32 %v9340, %v9343
    %v9345 = vmul.f32 %v9344, 1.442695
    %v9346 = vpow.pop %v9345
    %v9347 = vsel %vm32, %v9346, 0.0
    %v9348 = vsel %vm556, %v9347, 0.0
    %9349 = vadd.xlane.f32.xlu0 %v9348
    %v9350 = vpop.xlane.xlu0 %9349
    %v9351 = vrcp.pop %v9350
    %v9352 = vmul.f32 %v9347, %v9351
    %v9354 = vsel %vm556, %v9352, 0
    %9356 = vmatprep.subr.mxu0 0.0
    %9357 = vmatpush1.msra.mxu0 0.0
    %9358 = vmatprep.subr.mxu0 0.0
    %9359 = vmatpush1.msra.mxu0 0.0
    %9360 = vmatprep.subr.mxu0 0.0
    %9361 = vmatpush1.msra.mxu0 0.0
    %9362 = vmatprep.subr.mxu0 0.0
    %9363 = vmatpush1.msra.mxu0 0.0
    %9364 = vmatprep.subr.mxu0 0.0
    %9365 = vmatpush1.msra.mxu0 0.0
    %9366 = vmatprep.subr.mxu0 0.0
    %9367 = vmatpush1.msra.mxu0 0.0
    %9368 = vmatprep.subr.mxu0 0.0
    %9369 = vmatpush1.msra.mxu0 0.0
    %9370 = vmatprep.subr.mxu0 0.0
    %9371 = vmatpush1.msra.mxu0 0.0
    %9372 = vmatprep.subr.mxu0 0.0
    %9373 = vmatpush1.msra.mxu0 0.0
    %9374 = vmatprep.subr.mxu0 0.0
    %9375 = vmatpush1.msra.mxu0 0.0
    %9376 = vmatprep.subr.mxu0 0.0
    %9377 = vmatpush1.msra.mxu0 0.0
    %9378 = vmatprep.subr.mxu0 0.0
    %9379 = vmatpush1.msra.mxu0 0.0
    %9380 = vmatprep.subr.mxu0 0.0
    %9381 = vmatpush1.msra.mxu0 0.0
    %9382 = vmatprep.subr.mxu0 0.0
    %9383 = vmatpush1.msra.mxu0 0.0
    %9384 = vmatprep.subr.mxu0 0.0
    %9385 = vmatpush1.msra.mxu0 0.0
    %9386 = vmatprep.subr.mxu0 %v7983
    %9387 = vmatpush1.msra.mxu0 %v7981
    %9388 = vmatprep.subr.mxu0 0.0
    %9389 = vmatpush2.msra.mxu0 0.0
    %9390 = vmatprep.subr.mxu0 0.0
    %9391 = vmatpush2.msra.mxu0 0.0
    %9392 = vmatprep.subr.mxu0 0.0
    %9393 = vmatpush2.msra.mxu0 0.0
    %9394 = vmatprep.subr.mxu0 0.0
    %9395 = vmatpush2.msra.mxu0 0.0
    %9396 = vmatprep.subr.mxu0 0.0
    %9397 = vmatpush2.msra.mxu0 0.0
    %9398 = vmatprep.subr.mxu0 0.0
    %9399 = vmatpush2.msra.mxu0 0.0
    %9400 = vmatprep.subr.mxu0 0.0
    %9401 = vmatpush2.msra.mxu0 0.0
    %9402 = vmatprep.subr.mxu0 0.0
    %9403 = vmatpush2.msra.mxu0 0.0
    %9404 = vmatprep.subr.mxu0 0.0
    %9405 = vmatpush2.msra.mxu0 0.0
    %9406 = vmatprep.subr.mxu0 0.0
    %9407 = vmatpush2.msra.mxu0 0.0
    %9408 = vmatprep.subr.mxu0 0.0
    %9409 = vmatpush2.msra.mxu0 0.0
    %9410 = vmatprep.subr.mxu0 0.0
    %9411 = vmatpush2.msra.mxu0 0.0
    %9412 = vmatprep.subr.mxu0 0.0
    %9413 = vmatpush2.msra.mxu0 0.0
    %9414 = vmatprep.subr.mxu0 0.0
    %9415 = vmatpush2.msra.mxu0 0.0
    %9416 = vmatprep.subr.mxu0 0.0
    %9417 = vmatpush2.msra.mxu0 0.0
    %9418 = vmatprep.subr.mxu0 0.0
    %9419 = vmatpush2.msra.mxu0 0.0
    %9420 = vmatprep.mubr.f32.mxu0 0.0
    %9421 = vmatmul.mubr.f32.gmra.mxu0 %v9354
    %v9422 = vpop.f32.mrf.mxu0
    %v9423 = vadd.f32 0.0, %v9422
    %v9424 = vpop.f32.mrf.mxu0
    %v9425 = vadd.f32 0.0, %v9424
    %9426 = vdwg.mxu0
    %9427 = vst [vmem:[#allocation2] sm:$0xff] %v9423
    %9428 = vst [vmem:[#allocation2 + $0x8] sm:$0xff] %v9425
    %9429 = vrot.lane.b32.xlu0 %v9290, 127
    %v9430 = vpop.permute.xlu0 %9429
    %9432 = vxpose.xlu0.b32.start [1/16] %v9430, 128
    %9433 = vxpose.xlu0.b32.cont [2/16] 0.0, 128
    %9434 = vxpose.xlu0.b32.cont [3/16] 0.0, 128
    %9435 = vxpose.xlu0.b32.cont [4/16] 0.0, 128
    %9436 = vxpose.xlu0.b32.cont [5/16] 0.0, 128
    %9437 = vxpose.xlu0.b32.cont [6/16] 0.0, 128
    %9438 = vxpose.xlu0.b32.cont [7/16] 0.0, 128
    %9439 = vxpose.xlu0.b32.cont [8/16] 0.0, 128
    %9440 = vxpose.xlu0.b32.cont [9/16] 0.0, 128
    %9441 = vxpose.xlu0.b32.cont [10/16] 0.0, 128
    %9442 = vxpose.xlu0.b32.cont [11/16] 0.0, 128
    %9443 = vxpose.xlu0.b32.cont [12/16] 0.0, 128
    %9444 = vxpose.xlu0.b32.cont [13/16] 0.0, 128
    %9445 = vxpose.xlu0.b32.cont [14/16] 0.0, 128
    %9446 = vxpose.xlu0.b32.cont [15/16] 0.0, 128
    %9447 = vxpose.xlu0.b32.end [16/16] 0.0, 128
    %v9448 = vpop.trf.xlu0
    %v9449 = vpop.trf.xlu0
    %v9450 = vpop.trf.xlu0
    %v9451 = vpop.trf.xlu0
    %v9452 = vpop.trf.xlu0
    %v9453 = vpop.trf.xlu0
    %v9454 = vpop.trf.xlu0
    %v9455 = vpop.trf.xlu0
    %v9456 = vpop.trf.xlu0
    %v9457 = vpop.trf.xlu0
    %v9458 = vpop.trf.xlu0
    %v9459 = vpop.trf.xlu0
    %v9460 = vpop.trf.xlu0
    %v9461 = vpop.trf.xlu0
    %v9462 = vpop.trf.xlu0
    %v9463 = vpop.trf.xlu0
    %9464 = vset.pattern.permute.xlu0 5
    %9465 = vperm.xlu0 %9464, %v9290
    %v9466 = vpop.permute.xlu0 %9465
    %v9468 = vlaneseq
    %v9469 = vshrl.u32 %v9468, 7
    %v9470 = vsub.s32 0, %v9469
    %v9471 = vrot.slane %v9448, %v9470
    %v9472 = vadd.f32 %v9466, %v9471
    %vm9473 = vcmp.gt.f32.partialorder %v9472, 0.0
    %v9474 = vmul.f32 %v9472, 0.2
    %v9475 = vsel %vm9473, %v9472, %v9474
    %v9476 = vsel %vm32, %v9475, -1e+30
    %v9477 = vsel %vm556, %v9476, -inf
    %9478 = vmax.xlane.f32.xlu0 %v9477
    %v9479 = vpop.xlane.xlu0 %9478
    %v9480 = vsub.f32 %v9476, %v9479
    %v9481 = vmul.f32 %v9480, 1.442695
    %v9482 = vpow.pop %v9481
    %v9483 = vsel %vm32, %v9482, 0.0
    %v9484 = vsel %vm556, %v9483, 0.0
    %9485 = vadd.xlane.f32.xlu0 %v9484
    %v9486 = vpop.xlane.xlu0 %9485
    %v9487 = vrcp.pop %v9486
    %v9488 = vmul.f32 %v9483, %v9487
    %v9490 = vsel %vm556, %v9488, 0
    %9492 = vmatprep.subr.mxu0 0.0
    %9493 = vmatpush1.msra.mxu0 0.0
    %9494 = vmatprep.subr.mxu0 0.0
    %9495 = vmatpush1.msra.mxu0 0.0
    %9496 = vmatprep.subr.mxu0 0.0
    %9497 = vmatpush1.msra.mxu0 0.0
    %9498 = vmatprep.subr.mxu0 0.0
    %9499 = vmatpush1.msra.mxu0 0.0
    %9500 = vmatprep.subr.mxu0 0.0
    %9501 = vmatpush1.msra.mxu0 0.0
    %9502 = vmatprep.subr.mxu0 0.0
    %9503 = vmatpush1.msra.mxu0 0.0
    %9504 = vmatprep.subr.mxu0 0.0
    %9505 = vmatpush1.msra.mxu0 0.0
    %9506 = vmatprep.subr.mxu0 0.0
    %9507 = vmatpush1.msra.mxu0 0.0
    %9508 = vmatprep.subr.mxu0 0.0
    %9509 = vmatpush1.msra.mxu0 0.0
    %9510 = vmatprep.subr.mxu0 0.0
    %9511 = vmatpush1.msra.mxu0 0.0
    %9512 = vmatprep.subr.mxu0 0.0
    %9513 = vmatpush1.msra.mxu0 0.0
    %9514 = vmatprep.subr.mxu0 0.0
    %9515 = vmatpush1.msra.mxu0 0.0
    %9516 = vmatprep.subr.mxu0 0.0
    %9517 = vmatpush1.msra.mxu0 0.0
    %9518 = vmatprep.subr.mxu0 0.0
    %9519 = vmatpush1.msra.mxu0 0.0
    %9520 = vmatprep.subr.mxu0 0.0
    %9521 = vmatpush1.msra.mxu0 0.0
    %9522 = vmatprep.subr.mxu0 %v8147
    %9523 = vmatpush1.msra.mxu0 %v8145
    %9524 = vmatprep.subr.mxu0 0.0
    %9525 = vmatpush2.msra.mxu0 0.0
    %9526 = vmatprep.subr.mxu0 0.0
    %9527 = vmatpush2.msra.mxu0 0.0
    %9528 = vmatprep.subr.mxu0 0.0
    %9529 = vmatpush2.msra.mxu0 0.0
    %9530 = vmatprep.subr.mxu0 0.0
    %9531 = vmatpush2.msra.mxu0 0.0
    %9532 = vmatprep.subr.mxu0 0.0
    %9533 = vmatpush2.msra.mxu0 0.0
    %9534 = vmatprep.subr.mxu0 0.0
    %9535 = vmatpush2.msra.mxu0 0.0
    %9536 = vmatprep.subr.mxu0 0.0
    %9537 = vmatpush2.msra.mxu0 0.0
    %9538 = vmatprep.subr.mxu0 0.0
    %9539 = vmatpush2.msra.mxu0 0.0
    %9540 = vmatprep.subr.mxu0 0.0
    %9541 = vmatpush2.msra.mxu0 0.0
    %9542 = vmatprep.subr.mxu0 0.0
    %9543 = vmatpush2.msra.mxu0 0.0
    %9544 = vmatprep.subr.mxu0 0.0
    %9545 = vmatpush2.msra.mxu0 0.0
    %9546 = vmatprep.subr.mxu0 0.0
    %9547 = vmatpush2.msra.mxu0 0.0
    %9548 = vmatprep.subr.mxu0 0.0
    %9549 = vmatpush2.msra.mxu0 0.0
    %9550 = vmatprep.subr.mxu0 0.0
    %9551 = vmatpush2.msra.mxu0 0.0
    %9552 = vmatprep.subr.mxu0 0.0
    %9553 = vmatpush2.msra.mxu0 0.0
    %9554 = vmatprep.subr.mxu0 0.0
    %9555 = vmatpush2.msra.mxu0 0.0
    %9556 = vmatprep.mubr.f32.mxu0 0.0
    %9557 = vmatmul.mubr.f32.gmra.mxu0 %v9490
    %v9558 = vpop.f32.mrf.mxu0
    %v9559 = vadd.f32 0.0, %v9558
    %v9560 = vpop.f32.mrf.mxu0
    %v9561 = vadd.f32 0.0, %v9560
    %9562 = vdwg.mxu0
    %9563 = vst [vmem:[#allocation2 + $0x10] sm:$0xff] %v9559
    %9564 = vst [vmem:[#allocation2 + $0x18] sm:$0xff] %v9561
    %9565 = vrot.lane.b32.xlu0 %v9290, 126
    %v9566 = vpop.permute.xlu0 %9565
    %9568 = vxpose.xlu0.b32.start [1/16] %v9566, 128
    %9569 = vxpose.xlu0.b32.cont [2/16] 0.0, 128
    %9570 = vxpose.xlu0.b32.cont [3/16] 0.0, 128
    %9571 = vxpose.xlu0.b32.cont [4/16] 0.0, 128
    %9572 = vxpose.xlu0.b32.cont [5/16] 0.0, 128
    %9573 = vxpose.xlu0.b32.cont [6/16] 0.0, 128
    %9574 = vxpose.xlu0.b32.cont [7/16] 0.0, 128
    %9575 = vxpose.xlu0.b32.cont [8/16] 0.0, 128
    %9576 = vxpose.xlu0.b32.cont [9/16] 0.0, 128
    %9577 = vxpose.xlu0.b32.cont [10/16] 0.0, 128
    %9578 = vxpose.xlu0.b32.cont [11/16] 0.0, 128
    %9579 = vxpose.xlu0.b32.cont [12/16] 0.0, 128
    %9580 = vxpose.xlu0.b32.cont [13/16] 0.0, 128
    %9581 = vxpose.xlu0.b32.cont [14/16] 0.0, 128
    %9582 = vxpose.xlu0.b32.cont [15/16] 0.0, 128
    %9583 = vxpose.xlu0.b32.end [16/16] 0.0, 128
    %v9584 = vpop.trf.xlu0
    %v9585 = vpop.trf.xlu0
    %v9586 = vpop.trf.xlu0
    %v9587 = vpop.trf.xlu0
    %v9588 = vpop.trf.xlu0
    %v9589 = vpop.trf.xlu0
    %v9590 = vpop.trf.xlu0
    %v9591 = vpop.trf.xlu0
    %v9592 = vpop.trf.xlu0
    %v9593 = vpop.trf.xlu0
    %v9594 = vpop.trf.xlu0
    %v9595 = vpop.trf.xlu0
    %v9596 = vpop.trf.xlu0
    %v9597 = vpop.trf.xlu0
    %v9598 = vpop.trf.xlu0
    %v9599 = vpop.trf.xlu0
    %9600 = vset.pattern.permute.xlu0 6
    %9601 = vperm.xlu0 %9600, %v9290
    %v9602 = vpop.permute.xlu0 %9601
    %v9604 = vlaneseq
    %v9605 = vshrl.u32 %v9604, 7
    %v9606 = vsub.s32 0, %v9605
    %v9607 = vrot.slane %v9584, %v9606
    %v9608 = vadd.f32 %v9602, %v9607
    %vm9609 = vcmp.gt.f32.partialorder %v9608, 0.0
    %v9610 = vmul.f32 %v9608, 0.2
    %v9611 = vsel %vm9609, %v9608, %v9610
    %v9612 = vsel %vm32, %v9611, -1e+30
    %v9613 = vsel %vm556, %v9612, -inf
    %9614 = vmax.xlane.f32.xlu0 %v9613
    %v9615 = vpop.xlane.xlu0 %9614
    %v9616 = vsub.f32 %v9612, %v9615
    %v9617 = vmul.f32 %v9616, 1.442695
    %v9618 = vpow.pop %v9617
    %v9619 = vsel %vm32, %v9618, 0.0
    %v9620 = vsel %vm556, %v9619, 0.0
    %9621 = vadd.xlane.f32.xlu0 %v9620
    %v9622 = vpop.xlane.xlu0 %9621
    %v9623 = vrcp.pop %v9622
    %v9624 = vmul.f32 %v9619, %v9623
    %v9626 = vsel %vm556, %v9624, 0
    %9628 = vmatprep.subr.mxu0 0.0
    %9629 = vmatpush1.msra.mxu0 0.0
    %9630 = vmatprep.subr.mxu0 0.0
    %9631 = vmatpush1.msra.mxu0 0.0
    %9632 = vmatprep.subr.mxu0 0.0
    %9633 = vmatpush1.msra.mxu0 0.0
    %9634 = vmatprep.subr.mxu0 0.0
    %9635 = vmatpush1.msra.mxu0 0.0
    %9636 = vmatprep.subr.mxu0 0.0
    %9637 = vmatpush1.msra.mxu0 0.0
    %9638 = vmatprep.subr.mxu0 0.0
    %9639 = vmatpush1.msra.mxu0 0.0
    %9640 = vmatprep.subr.mxu0 0.0
    %9641 = vmatpush1.msra.mxu0 0.0
    %9642 = vmatprep.subr.mxu0 0.0
    %9643 = vmatpush1.msra.mxu0 0.0
    %9644 = vmatprep.subr.mxu0 0.0
    %9645 = vmatpush1.msra.mxu0 0.0
    %9646 = vmatprep.subr.mxu0 0.0
    %9647 = vmatpush1.msra.mxu0 0.0
    %9648 = vmatprep.subr.mxu0 0.0
    %9649 = vmatpush1.msra.mxu0 0.0
    %9650 = vmatprep.subr.mxu0 0.0
    %9651 = vmatpush1.msra.mxu0 0.0
    %9652 = vmatprep.subr.mxu0 0.0
    %9653 = vmatpush1.msra.mxu0 0.0
    %9654 = vmatprep.subr.mxu0 0.0
    %9655 = vmatpush1.msra.mxu0 0.0
    %9656 = vmatprep.subr.mxu0 0.0
    %9657 = vmatpush1.msra.mxu0 0.0
    %9658 = vmatprep.subr.mxu0 %v8311
    %9659 = vmatpush1.msra.mxu0 %v8309
    %9660 = vmatprep.subr.mxu0 0.0
    %9661 = vmatpush2.msra.mxu0 0.0
    %9662 = vmatprep.subr.mxu0 0.0
    %9663 = vmatpush2.msra.mxu0 0.0
    %9664 = vmatprep.subr.mxu0 0.0
    %9665 = vmatpush2.msra.mxu0 0.0
    %9666 = vmatprep.subr.mxu0 0.0
    %9667 = vmatpush2.msra.mxu0 0.0
    %9668 = vmatprep.subr.mxu0 0.0
    %9669 = vmatpush2.msra.mxu0 0.0
    %9670 = vmatprep.subr.mxu0 0.0
    %9671 = vmatpush2.msra.mxu0 0.0
    %9672 = vmatprep.subr.mxu0 0.0
    %9673 = vmatpush2.msra.mxu0 0.0
    %9674 = vmatprep.subr.mxu0 0.0
    %9675 = vmatpush2.msra.mxu0 0.0
    %9676 = vmatprep.subr.mxu0 0.0
    %9677 = vmatpush2.msra.mxu0 0.0
    %9678 = vmatprep.subr.mxu0 0.0
    %9679 = vmatpush2.msra.mxu0 0.0
    %9680 = vmatprep.subr.mxu0 0.0
    %9681 = vmatpush2.msra.mxu0 0.0
    %9682 = vmatprep.subr.mxu0 0.0
    %9683 = vmatpush2.msra.mxu0 0.0
    %9684 = vmatprep.subr.mxu0 0.0
    %9685 = vmatpush2.msra.mxu0 0.0
    %9686 = vmatprep.subr.mxu0 0.0
    %9687 = vmatpush2.msra.mxu0 0.0
    %9688 = vmatprep.subr.mxu0 0.0
    %9689 = vmatpush2.msra.mxu0 0.0
    %9690 = vmatprep.subr.mxu0 0.0
    %9691 = vmatpush2.msra.mxu0 0.0
    %9692 = vmatprep.mubr.f32.mxu0 0.0
    %9693 = vmatmul.mubr.f32.gmra.mxu0 %v9626
    %v9694 = vpop.f32.mrf.mxu0
    %v9695 = vadd.f32 0.0, %v9694
    %v9696 = vpop.f32.mrf.mxu0
    %v9697 = vadd.f32 0.0, %v9696
    %9698 = vdwg.mxu0
    %9699 = vst [vmem:[#allocation2 + $0x20] sm:$0xff] %v9695
    %9700 = vst [vmem:[#allocation2 + $0x28] sm:$0xff] %v9697
    %9701 = vrot.lane.b32.xlu0 %v9290, 125
    %v9702 = vpop.permute.xlu0 %9701
    %9704 = vxpose.xlu0.b32.start [1/16] %v9702, 128
    %9705 = vxpose.xlu0.b32.cont [2/16] 0.0, 128
    %9706 = vxpose.xlu0.b32.cont [3/16] 0.0, 128
    %9707 = vxpose.xlu0.b32.cont [4/16] 0.0, 128
    %9708 = vxpose.xlu0.b32.cont [5/16] 0.0, 128
    %9709 = vxpose.xlu0.b32.cont [6/16] 0.0, 128
    %9710 = vxpose.xlu0.b32.cont [7/16] 0.0, 128
    %9711 = vxpose.xlu0.b32.cont [8/16] 0.0, 128
    %9712 = vxpose.xlu0.b32.cont [9/16] 0.0, 128
    %9713 = vxpose.xlu0.b32.cont [10/16] 0.0, 128
    %9714 = vxpose.xlu0.b32.cont [11/16] 0.0, 128
    %9715 = vxpose.xlu0.b32.cont [12/16] 0.0, 128
    %9716 = vxpose.xlu0.b32.cont [13/16] 0.0, 128
    %9717 = vxpose.xlu0.b32.cont [14/16] 0.0, 128
    %9718 = vxpose.xlu0.b32.cont [15/16] 0.0, 128
    %9719 = vxpose.xlu0.b32.end [16/16] 0.0, 128
    %v9720 = vpop.trf.xlu0
    %v9721 = vpop.trf.xlu0
    %v9722 = vpop.trf.xlu0
    %v9723 = vpop.trf.xlu0
    %v9724 = vpop.trf.xlu0
    %v9725 = vpop.trf.xlu0
    %v9726 = vpop.trf.xlu0
    %v9727 = vpop.trf.xlu0
    %v9728 = vpop.trf.xlu0
    %v9729 = vpop.trf.xlu0
    %v9730 = vpop.trf.xlu0
    %v9731 = vpop.trf.xlu0
    %v9732 = vpop.trf.xlu0
    %v9733 = vpop.trf.xlu0
    %v9734 = vpop.trf.xlu0
    %v9735 = vpop.trf.xlu0
    %9736 = vset.pattern.permute.xlu0 7
    %9737 = vperm.xlu0 %9736, %v9290
    %v9738 = vpop.permute.xlu0 %9737
    %v9740 = vlaneseq
    %v9741 = vshrl.u32 %v9740, 7
    %v9742 = vsub.s32 0, %v9741
    %v9743 = vrot.slane %v9720, %v9742
    %v9744 = vadd.f32 %v9738, %v9743
    %vm9745 = vcmp.gt.f32.partialorder %v9744, 0.0
    %v9746 = vmul.f32 %v9744, 0.2
    %v9747 = vsel %vm9745, %v9744, %v9746
    %v9748 = vsel %vm32, %v9747, -1e+30
    %v9749 = vsel %vm556, %v9748, -inf
    %9750 = vmax.xlane.f32.xlu0 %v9749
    %v9751 = vpop.xlane.xlu0 %9750
    %v9752 = vsub.f32 %v9748, %v9751
    %v9753 = vmul.f32 %v9752, 1.442695
    %v9754 = vpow.pop %v9753
    %v9755 = vsel %vm32, %v9754, 0.0
    %v9756 = vsel %vm556, %v9755, 0.0
    %9757 = vadd.xlane.f32.xlu0 %v9756
    %v9758 = vpop.xlane.xlu0 %9757
    %v9759 = vrcp.pop %v9758
    %v9760 = vmul.f32 %v9755, %v9759
    %v9762 = vsel %vm556, %v9760, 0
    %9764 = vmatprep.subr.mxu0 0.0
    %9765 = vmatpush1.msra.mxu0 0.0
    %9766 = vmatprep.subr.mxu0 0.0
    %9767 = vmatpush1.msra.mxu0 0.0
    %9768 = vmatprep.subr.mxu0 0.0
    %9769 = vmatpush1.msra.mxu0 0.0
    %9770 = vmatprep.subr.mxu0 0.0
    %9771 = vmatpush1.msra.mxu0 0.0
    %9772 = vmatprep.subr.mxu0 0.0
    %9773 = vmatpush1.msra.mxu0 0.0
    %9774 = vmatprep.subr.mxu0 0.0
    %9775 = vmatpush1.msra.mxu0 0.0
    %9776 = vmatprep.subr.mxu0 0.0
    %9777 = vmatpush1.msra.mxu0 0.0
    %9778 = vmatprep.subr.mxu0 0.0
    %9779 = vmatpush1.msra.mxu0 0.0
    %9780 = vmatprep.subr.mxu0 0.0
    %9781 = vmatpush1.msra.mxu0 0.0
    %9782 = vmatprep.subr.mxu0 0.0
    %9783 = vmatpush1.msra.mxu0 0.0
    %9784 = vmatprep.subr.mxu0 0.0
    %9785 = vmatpush1.msra.mxu0 0.0
    %9786 = vmatprep.subr.mxu0 0.0
    %9787 = vmatpush1.msra.mxu0 0.0
    %9788 = vmatprep.subr.mxu0 0.0
    %9789 = vmatpush1.msra.mxu0 0.0
    %9790 = vmatprep.subr.mxu0 0.0
    %9791 = vmatpush1.msra.mxu0 0.0
    %9792 = vmatprep.subr.mxu0 0.0
    %9793 = vmatpush1.msra.mxu0 0.0
    %9794 = vmatprep.subr.mxu0 %v8475
    %9795 = vmatpush1.msra.mxu0 %v8473
    %9796 = vmatprep.subr.mxu0 0.0
    %9797 = vmatpush2.msra.mxu0 0.0
    %9798 = vmatprep.subr.mxu0 0.0
    %9799 = vmatpush2.msra.mxu0 0.0
    %9800 = vmatprep.subr.mxu0 0.0
    %9801 = vmatpush2.msra.mxu0 0.0
    %9802 = vmatprep.subr.mxu0 0.0
    %9803 = vmatpush2.msra.mxu0 0.0
    %9804 = vmatprep.subr.mxu0 0.0
    %9805 = vmatpush2.msra.mxu0 0.0
    %9806 = vmatprep.subr.mxu0 0.0
    %9807 = vmatpush2.msra.mxu0 0.0
    %9808 = vmatprep.subr.mxu0 0.0
    %9809 = vmatpush2.msra.mxu0 0.0
    %9810 = vmatprep.subr.mxu0 0.0
    %9811 = vmatpush2.msra.mxu0 0.0
    %9812 = vmatprep.subr.mxu0 0.0
    %9813 = vmatpush2.msra.mxu0 0.0
    %9814 = vmatprep.subr.mxu0 0.0
    %9815 = vmatpush2.msra.mxu0 0.0
    %9816 = vmatprep.subr.mxu0 0.0
    %9817 = vmatpush2.msra.mxu0 0.0
    %9818 = vmatprep.subr.mxu0 0.0
    %9819 = vmatpush2.msra.mxu0 0.0
    %9820 = vmatprep.subr.mxu0 0.0
    %9821 = vmatpush2.msra.mxu0 0.0
    %9822 = vmatprep.subr.mxu0 0.0
    %9823 = vmatpush2.msra.mxu0 0.0
    %9824 = vmatprep.subr.mxu0 0.0
    %9825 = vmatpush2.msra.mxu0 0.0
    %9826 = vmatprep.subr.mxu0 0.0
    %9827 = vmatpush2.msra.mxu0 0.0
    %9828 = vmatprep.mubr.f32.mxu0 0.0
    %9829 = vmatmul.mubr.f32.gmra.mxu0 %v9762
    %v9830 = vpop.f32.mrf.mxu0
    %v9831 = vadd.f32 0.0, %v9830
    %v9832 = vpop.f32.mrf.mxu0
    %v9833 = vadd.f32 0.0, %v9832
    %9834 = vdwg.mxu0
    %9835 = vst [vmem:[#allocation2 + $0x30] sm:$0xff] %v9831
    %9836 = vst [vmem:[#allocation2 + $0x38] sm:$0xff] %v9833
    %v9837 = vld [vmem:[#allocation2] sm:$0xff]
    %v9838 = vld [vmem:[#allocation2 + $0x8] sm:$0xff]
    %v9839 = vld [vmem:[#allocation2 + $0x10] sm:$0xff]
    %v9840 = vld [vmem:[#allocation2 + $0x18] sm:$0xff]
    %v9841 = vld [vmem:[#allocation2 + $0x20] sm:$0xff]
    %v9842 = vld [vmem:[#allocation2 + $0x28] sm:$0xff]
    %v9843 = vld [vmem:[#allocation2 + $0x30] sm:$0xff]
    %v9844 = vld [vmem:[#allocation2 + $0x38] sm:$0xff]
    %v9845 = vld [vmem:[%s5] sm:$0xff]
    %v9847 = vlaneseq
    %v9848 = vshrl.u32 %v9847, 7
    %v9849 = vsub.s32 0, %v9848
    %v9850 = vrot.slane %v9845, %v9849
    %v9851 = vlaneseq
    %v9852 = vshrl.u32 %v9851, 7
    %v9853 = vsub.s32 1, %v9852
    %v9854 = vrot.slane %v9845, %v9853
    %v9855 = vlaneseq
    %v9856 = vshrl.u32 %v9855, 7
    %v9857 = vsub.s32 2, %v9856
    %v9858 = vrot.slane %v9845, %v9857
    %v9859 = vlaneseq
    %v9860 = vshrl.u32 %v9859, 7
    %v9861 = vsub.s32 3, %v9860
    %v9862 = vrot.slane %v9845, %v9861
    %v9863 = vlaneseq
    %v9864 = vshrl.u32 %v9863, 7
    %v9865 = vsub.s32 4, %v9864
    %v9866 = vrot.slane %v9845, %v9865
    %v9867 = vlaneseq
    %v9868 = vshrl.u32 %v9867, 7
    %v9869 = vsub.s32 5, %v9868
    %v9870 = vrot.slane %v9845, %v9869
    %v9871 = vlaneseq
    %v9872 = vshrl.u32 %v9871, 7
    %v9873 = vsub.s32 6, %v9872
    %v9874 = vrot.slane %v9845, %v9873
    %v9875 = vlaneseq
    %v9876 = vshrl.u32 %v9875, 7
    %v9877 = vsub.s32 7, %v9876
    %v9878 = vrot.slane %v9845, %v9877
    %v9887 = vadd.f32 %v9837, %v9850
    %v9888 = vadd.f32 %v9838, %v9854
    %v9889 = vadd.f32 %v9839, %v9858
    %v9890 = vadd.f32 %v9840, %v9862
    %v9891 = vadd.f32 %v9841, %v9866
    %v9892 = vadd.f32 %v9842, %v9870
    %v9893 = vadd.f32 %v9843, %v9874
    %v9894 = vadd.f32 %v9844, %v9878
    %v9895 = vadd.f32 %v9887, %v8637
    %v9896 = vadd.f32 %v9888, %v8639
    %v9897 = vadd.f32 %v9889, %v8801
    %v9898 = vadd.f32 %v9890, %v8803
    %v9899 = vadd.f32 %v9891, %v8965
    %v9900 = vadd.f32 %v9892, %v8967
    %v9901 = vadd.f32 %v9893, %v9129
    %v9902 = vadd.f32 %v9894, %v9131
    %vm9903 = vcmp.gt.f32.partialorder %v9895, 0.0
    %vm9904 = vcmp.gt.f32.partialorder %v9896, 0.0
    %vm9905 = vcmp.gt.f32.partialorder %v9897, 0.0
    %vm9906 = vcmp.gt.f32.partialorder %v9898, 0.0
    %vm9907 = vcmp.gt.f32.partialorder %v9899, 0.0
    %vm9908 = vcmp.gt.f32.partialorder %v9900, 0.0
    %vm9909 = vcmp.gt.f32.partialorder %v9901, 0.0
    %vm9910 = vcmp.gt.f32.partialorder %v9902, 0.0
    %v9911 = vmul.f32 %v9895, 1.442695
    %v9912 = vpow.pop %v9911
    %v9913 = vmul.f32 %v9896, 1.442695
    %v9914 = vpow.pop %v9913
    %v9915 = vmul.f32 %v9897, 1.442695
    %v9916 = vpow.pop %v9915
    %v9917 = vmul.f32 %v9898, 1.442695
    %v9918 = vpow.pop %v9917
    %v9919 = vmul.f32 %v9899, 1.442695
    %v9920 = vpow.pop %v9919
    %v9921 = vmul.f32 %v9900, 1.442695
    %v9922 = vpow.pop %v9921
    %v9923 = vmul.f32 %v9901, 1.442695
    %v9924 = vpow.pop %v9923
    %v9925 = vmul.f32 %v9902, 1.442695
    %v9926 = vpow.pop %v9925
    %v9927 = vsub.f32 %v9912, 1.0
    %v9928 = vsub.f32 %v9914, 1.0
    %v9929 = vsub.f32 %v9916, 1.0
    %v9930 = vsub.f32 %v9918, 1.0
    %v9931 = vsub.f32 %v9920, 1.0
    %v9932 = vsub.f32 %v9922, 1.0
    %v9933 = vsub.f32 %v9924, 1.0
    %v9934 = vsub.f32 %v9926, 1.0
    %v9935 = vsel %vm9903, %v9895, %v9927
    %v9936 = vsel %vm9904, %v9896, %v9928
    %v9937 = vsel %vm9905, %v9897, %v9929
    %v9938 = vsel %vm9906, %v9898, %v9930
    %v9939 = vsel %vm9907, %v9899, %v9931
    %v9940 = vsel %vm9908, %v9900, %v9932
    %v9941 = vsel %vm9909, %v9901, %v9933
    %v9942 = vsel %vm9910, %v9902, %v9934
    %v9943 = vpack.c.bf16 %v9935, %v9935
    %v9944 = vpack.c.bf16 %v9936, %v9936
    %v9945 = vpack.c.bf16 %v9937, %v9937
    %v9946 = vpack.c.bf16 %v9938, %v9938
    %v9947 = vpack.c.bf16 %v9939, %v9939
    %v9948 = vpack.c.bf16 %v9940, %v9940
    %v9949 = vpack.c.bf16 %v9941, %v9941
    %v9950 = vpack.c.bf16 %v9942, %v9942
    %v9951 = vld [vmem:[%s6] sm:$0xff]
    %v9952 = vld [vmem:[%s6 + $0x8] sm:$0xff]
    %v9953 = vld [vmem:[%s6 + $0x10] sm:$0xff]
    %v9954 = vld [vmem:[%s6 + $0x18] sm:$0xff]
    %v9955 = vld [vmem:[%s6 + $0x20] sm:$0xff]
    %v9956 = vld [vmem:[%s6 + $0x28] sm:$0xff]
    %v9957 = vld [vmem:[%s6 + $0x30] sm:$0xff]
    %v9958 = vld [vmem:[%s6 + $0x38] sm:$0xff]
    %v9959 = vld [vmem:[%s6 + $0x40] sm:$0xff]
    %v9960 = vld [vmem:[%s6 + $0x48] sm:$0xff]
    %v9961 = vld [vmem:[%s6 + $0x50] sm:$0xff]
    %v9962 = vld [vmem:[%s6 + $0x58] sm:$0xff]
    %v9963 = vld [vmem:[%s6 + $0x60] sm:$0xff]
    %v9964 = vld [vmem:[%s6 + $0x68] sm:$0xff]
    %v9965 = vld [vmem:[%s6 + $0x70] sm:$0xff]
    %v9966 = vld [vmem:[%s6 + $0x78] sm:$0xff]
    %v9967 = vld [vmem:[%s6 + $0x80] sm:$0xff]
    %v9968 = vld [vmem:[%s6 + $0x88] sm:$0xff]
    %v9969 = vld [vmem:[%s6 + $0x90] sm:$0xff]
    %v9970 = vld [vmem:[%s6 + $0x98] sm:$0xff]
    %v9971 = vld [vmem:[%s6 + $0xa0] sm:$0xff]
    %v9972 = vld [vmem:[%s6 + $0xa8] sm:$0xff]
    %v9973 = vld [vmem:[%s6 + $0xb0] sm:$0xff]
    %v9974 = vld [vmem:[%s6 + $0xb8] sm:$0xff]
    %v9975 = vld [vmem:[%s6 + $0xc0] sm:$0xff]
    %v9976 = vld [vmem:[%s6 + $0xc8] sm:$0xff]
    %v9977 = vld [vmem:[%s6 + $0xd0] sm:$0xff]
    %v9978 = vld [vmem:[%s6 + $0xd8] sm:$0xff]
    %v9979 = vld [vmem:[%s6 + $0xe0] sm:$0xff]
    %v9980 = vld [vmem:[%s6 + $0xe8] sm:$0xff]
    %v9981 = vld [vmem:[%s6 + $0xf0] sm:$0xff]
    %v9982 = vld [vmem:[%s6 + $0xf8] sm:$0xff]
    %v9983 = vld [vmem:[%s6 + $0x100] sm:$0xff]
    %v9984 = vld [vmem:[%s6 + $0x108] sm:$0xff]
    %v9985 = vld [vmem:[%s6 + $0x110] sm:$0xff]
    %v9986 = vld [vmem:[%s6 + $0x118] sm:$0xff]
    %v9987 = vld [vmem:[%s6 + $0x120] sm:$0xff]
    %v9988 = vld [vmem:[%s6 + $0x128] sm:$0xff]
    %v9989 = vld [vmem:[%s6 + $0x130] sm:$0xff]
    %v9990 = vld [vmem:[%s6 + $0x138] sm:$0xff]
    %v9991 = vld [vmem:[%s6 + $0x140] sm:$0xff]
    %v9992 = vld [vmem:[%s6 + $0x148] sm:$0xff]
    %v9993 = vld [vmem:[%s6 + $0x150] sm:$0xff]
    %v9994 = vld [vmem:[%s6 + $0x158] sm:$0xff]
    %v9995 = vld [vmem:[%s6 + $0x160] sm:$0xff]
    %v9996 = vld [vmem:[%s6 + $0x168] sm:$0xff]
    %v9997 = vld [vmem:[%s6 + $0x170] sm:$0xff]
    %v9998 = vld [vmem:[%s6 + $0x178] sm:$0xff]
    %v9999 = vld [vmem:[%s6 + $0x180] sm:$0xff]
    %v10000 = vld [vmem:[%s6 + $0x188] sm:$0xff]
    %v10001 = vld [vmem:[%s6 + $0x190] sm:$0xff]
    %v10002 = vld [vmem:[%s6 + $0x198] sm:$0xff]
    %v10003 = vld [vmem:[%s6 + $0x1a0] sm:$0xff]
    %v10004 = vld [vmem:[%s6 + $0x1a8] sm:$0xff]
    %v10005 = vld [vmem:[%s6 + $0x1b0] sm:$0xff]
    %v10006 = vld [vmem:[%s6 + $0x1b8] sm:$0xff]
    %v10007 = vld [vmem:[%s6 + $0x1c0] sm:$0xff]
    %v10008 = vld [vmem:[%s6 + $0x1c8] sm:$0xff]
    %v10009 = vld [vmem:[%s6 + $0x1d0] sm:$0xff]
    %v10010 = vld [vmem:[%s6 + $0x1d8] sm:$0xff]
    %v10011 = vld [vmem:[%s6 + $0x1e0] sm:$0xff]
    %v10012 = vld [vmem:[%s6 + $0x1e8] sm:$0xff]
    %v10013 = vld [vmem:[%s6 + $0x1f0] sm:$0xff]
    %v10014 = vld [vmem:[%s6 + $0x1f8] sm:$0xff]
    %v10015 = vld [vmem:[%s6 + $0x200] sm:$0xff]
    %v10016 = vld [vmem:[%s6 + $0x208] sm:$0xff]
    %v10017 = vld [vmem:[%s6 + $0x210] sm:$0xff]
    %v10018 = vld [vmem:[%s6 + $0x218] sm:$0xff]
    %v10019 = vld [vmem:[%s6 + $0x220] sm:$0xff]
    %v10020 = vld [vmem:[%s6 + $0x228] sm:$0xff]
    %v10021 = vld [vmem:[%s6 + $0x230] sm:$0xff]
    %v10022 = vld [vmem:[%s6 + $0x238] sm:$0xff]
    %v10023 = vld [vmem:[%s6 + $0x240] sm:$0xff]
    %v10024 = vld [vmem:[%s6 + $0x248] sm:$0xff]
    %v10025 = vld [vmem:[%s6 + $0x250] sm:$0xff]
    %v10026 = vld [vmem:[%s6 + $0x258] sm:$0xff]
    %v10027 = vld [vmem:[%s6 + $0x260] sm:$0xff]
    %v10028 = vld [vmem:[%s6 + $0x268] sm:$0xff]
    %v10029 = vld [vmem:[%s6 + $0x270] sm:$0xff]
    %v10030 = vld [vmem:[%s6 + $0x278] sm:$0xff]
    %v10031 = vld [vmem:[%s6 + $0x280] sm:$0xff]
    %v10032 = vld [vmem:[%s6 + $0x288] sm:$0xff]
    %v10033 = vld [vmem:[%s6 + $0x290] sm:$0xff]
    %v10034 = vld [vmem:[%s6 + $0x298] sm:$0xff]
    %v10035 = vld [vmem:[%s6 + $0x2a0] sm:$0xff]
    %v10036 = vld [vmem:[%s6 + $0x2a8] sm:$0xff]
    %v10037 = vld [vmem:[%s6 + $0x2b0] sm:$0xff]
    %v10038 = vld [vmem:[%s6 + $0x2b8] sm:$0xff]
    %v10039 = vld [vmem:[%s6 + $0x2c0] sm:$0xff]
    %v10040 = vld [vmem:[%s6 + $0x2c8] sm:$0xff]
    %v10041 = vld [vmem:[%s6 + $0x2d0] sm:$0xff]
    %v10042 = vld [vmem:[%s6 + $0x2d8] sm:$0xff]
    %v10043 = vld [vmem:[%s6 + $0x2e0] sm:$0xff]
    %v10044 = vld [vmem:[%s6 + $0x2e8] sm:$0xff]
    %v10045 = vld [vmem:[%s6 + $0x2f0] sm:$0xff]
    %v10046 = vld [vmem:[%s6 + $0x2f8] sm:$0xff]
    %v10047 = vld [vmem:[%s6 + $0x300] sm:$0xff]
    %v10048 = vld [vmem:[%s6 + $0x308] sm:$0xff]
    %v10049 = vld [vmem:[%s6 + $0x310] sm:$0xff]
    %v10050 = vld [vmem:[%s6 + $0x318] sm:$0xff]
    %v10051 = vld [vmem:[%s6 + $0x320] sm:$0xff]
    %v10052 = vld [vmem:[%s6 + $0x328] sm:$0xff]
    %v10053 = vld [vmem:[%s6 + $0x330] sm:$0xff]
    %v10054 = vld [vmem:[%s6 + $0x338] sm:$0xff]
    %v10055 = vld [vmem:[%s6 + $0x340] sm:$0xff]
    %v10056 = vld [vmem:[%s6 + $0x348] sm:$0xff]
    %v10057 = vld [vmem:[%s6 + $0x350] sm:$0xff]
    %v10058 = vld [vmem:[%s6 + $0x358] sm:$0xff]
    %v10059 = vld [vmem:[%s6 + $0x360] sm:$0xff]
    %v10060 = vld [vmem:[%s6 + $0x368] sm:$0xff]
    %v10061 = vld [vmem:[%s6 + $0x370] sm:$0xff]
    %v10062 = vld [vmem:[%s6 + $0x378] sm:$0xff]
    %v10063 = vld [vmem:[%s6 + $0x380] sm:$0xff]
    %v10064 = vld [vmem:[%s6 + $0x388] sm:$0xff]
    %v10065 = vld [vmem:[%s6 + $0x390] sm:$0xff]
    %v10066 = vld [vmem:[%s6 + $0x398] sm:$0xff]
    %v10067 = vld [vmem:[%s6 + $0x3a0] sm:$0xff]
    %v10068 = vld [vmem:[%s6 + $0x3a8] sm:$0xff]
    %v10069 = vld [vmem:[%s6 + $0x3b0] sm:$0xff]
    %v10070 = vld [vmem:[%s6 + $0x3b8] sm:$0xff]
    %v10071 = vld [vmem:[%s6 + $0x3c0] sm:$0xff]
    %v10072 = vld [vmem:[%s6 + $0x3c8] sm:$0xff]
    %v10073 = vld [vmem:[%s6 + $0x3d0] sm:$0xff]
    %v10074 = vld [vmem:[%s6 + $0x3d8] sm:$0xff]
    %v10075 = vld [vmem:[%s6 + $0x3e0] sm:$0xff]
    %v10076 = vld [vmem:[%s6 + $0x3e8] sm:$0xff]
    %v10077 = vld [vmem:[%s6 + $0x3f0] sm:$0xff]
    %v10078 = vld [vmem:[%s6 + $0x3f8] sm:$0xff]
    %v10079 = vld [vmem:[%s6 + $0x400] sm:$0xff]
    %v10080 = vld [vmem:[%s6 + $0x408] sm:$0xff]
    %v10081 = vld [vmem:[%s6 + $0x410] sm:$0xff]
    %v10082 = vld [vmem:[%s6 + $0x418] sm:$0xff]
    %v10083 = vld [vmem:[%s6 + $0x420] sm:$0xff]
    %v10084 = vld [vmem:[%s6 + $0x428] sm:$0xff]
    %v10085 = vld [vmem:[%s6 + $0x430] sm:$0xff]
    %v10086 = vld [vmem:[%s6 + $0x438] sm:$0xff]
    %v10087 = vld [vmem:[%s6 + $0x440] sm:$0xff]
    %v10088 = vld [vmem:[%s6 + $0x448] sm:$0xff]
    %v10089 = vld [vmem:[%s6 + $0x450] sm:$0xff]
    %v10090 = vld [vmem:[%s6 + $0x458] sm:$0xff]
    %v10091 = vld [vmem:[%s6 + $0x460] sm:$0xff]
    %v10092 = vld [vmem:[%s6 + $0x468] sm:$0xff]
    %v10093 = vld [vmem:[%s6 + $0x470] sm:$0xff]
    %v10094 = vld [vmem:[%s6 + $0x478] sm:$0xff]
    %v10095 = vld [vmem:[%s6 + $0x480] sm:$0xff]
    %v10096 = vld [vmem:[%s6 + $0x488] sm:$0xff]
    %v10097 = vld [vmem:[%s6 + $0x490] sm:$0xff]
    %v10098 = vld [vmem:[%s6 + $0x498] sm:$0xff]
    %v10099 = vld [vmem:[%s6 + $0x4a0] sm:$0xff]
    %v10100 = vld [vmem:[%s6 + $0x4a8] sm:$0xff]
    %v10101 = vld [vmem:[%s6 + $0x4b0] sm:$0xff]
    %v10102 = vld [vmem:[%s6 + $0x4b8] sm:$0xff]
    %v10103 = vld [vmem:[%s6 + $0x4c0] sm:$0xff]
    %v10104 = vld [vmem:[%s6 + $0x4c8] sm:$0xff]
    %v10105 = vld [vmem:[%s6 + $0x4d0] sm:$0xff]
    %v10106 = vld [vmem:[%s6 + $0x4d8] sm:$0xff]
    %v10107 = vld [vmem:[%s6 + $0x4e0] sm:$0xff]
    %v10108 = vld [vmem:[%s6 + $0x4e8] sm:$0xff]
    %v10109 = vld [vmem:[%s6 + $0x4f0] sm:$0xff]
    %v10110 = vld [vmem:[%s6 + $0x4f8] sm:$0xff]
    %v10111 = vld [vmem:[%s6 + $0x500] sm:$0xff]
    %v10112 = vld [vmem:[%s6 + $0x508] sm:$0xff]
    %v10113 = vld [vmem:[%s6 + $0x510] sm:$0xff]
    %v10114 = vld [vmem:[%s6 + $0x518] sm:$0xff]
    %v10115 = vld [vmem:[%s6 + $0x520] sm:$0xff]
    %v10116 = vld [vmem:[%s6 + $0x528] sm:$0xff]
    %v10117 = vld [vmem:[%s6 + $0x530] sm:$0xff]
    %v10118 = vld [vmem:[%s6 + $0x538] sm:$0xff]
    %v10119 = vld [vmem:[%s6 + $0x540] sm:$0xff]
    %v10120 = vld [vmem:[%s6 + $0x548] sm:$0xff]
    %v10121 = vld [vmem:[%s6 + $0x550] sm:$0xff]
    %v10122 = vld [vmem:[%s6 + $0x558] sm:$0xff]
    %v10123 = vld [vmem:[%s6 + $0x560] sm:$0xff]
    %v10124 = vld [vmem:[%s6 + $0x568] sm:$0xff]
    %v10125 = vld [vmem:[%s6 + $0x570] sm:$0xff]
    %v10126 = vld [vmem:[%s6 + $0x578] sm:$0xff]
    %v10127 = vld [vmem:[%s6 + $0x580] sm:$0xff]
    %v10128 = vld [vmem:[%s6 + $0x588] sm:$0xff]
    %v10129 = vld [vmem:[%s6 + $0x590] sm:$0xff]
    %v10130 = vld [vmem:[%s6 + $0x598] sm:$0xff]
    %v10131 = vld [vmem:[%s6 + $0x5a0] sm:$0xff]
    %v10132 = vld [vmem:[%s6 + $0x5a8] sm:$0xff]
    %v10133 = vld [vmem:[%s6 + $0x5b0] sm:$0xff]
    %v10134 = vld [vmem:[%s6 + $0x5b8] sm:$0xff]
    %v10135 = vld [vmem:[%s6 + $0x5c0] sm:$0xff]
    %v10136 = vld [vmem:[%s6 + $0x5c8] sm:$0xff]
    %v10137 = vld [vmem:[%s6 + $0x5d0] sm:$0xff]
    %v10138 = vld [vmem:[%s6 + $0x5d8] sm:$0xff]
    %v10139 = vld [vmem:[%s6 + $0x5e0] sm:$0xff]
    %v10140 = vld [vmem:[%s6 + $0x5e8] sm:$0xff]
    %v10141 = vld [vmem:[%s6 + $0x5f0] sm:$0xff]
    %v10142 = vld [vmem:[%s6 + $0x5f8] sm:$0xff]
    %v10143 = vld [vmem:[%s6 + $0x600] sm:$0xff]
    %v10144 = vld [vmem:[%s6 + $0x608] sm:$0xff]
    %v10145 = vld [vmem:[%s6 + $0x610] sm:$0xff]
    %v10146 = vld [vmem:[%s6 + $0x618] sm:$0xff]
    %v10147 = vld [vmem:[%s6 + $0x620] sm:$0xff]
    %v10148 = vld [vmem:[%s6 + $0x628] sm:$0xff]
    %v10149 = vld [vmem:[%s6 + $0x630] sm:$0xff]
    %v10150 = vld [vmem:[%s6 + $0x638] sm:$0xff]
    %v10151 = vld [vmem:[%s6 + $0x640] sm:$0xff]
    %v10152 = vld [vmem:[%s6 + $0x648] sm:$0xff]
    %v10153 = vld [vmem:[%s6 + $0x650] sm:$0xff]
    %v10154 = vld [vmem:[%s6 + $0x658] sm:$0xff]
    %v10155 = vld [vmem:[%s6 + $0x660] sm:$0xff]
    %v10156 = vld [vmem:[%s6 + $0x668] sm:$0xff]
    %v10157 = vld [vmem:[%s6 + $0x670] sm:$0xff]
    %v10158 = vld [vmem:[%s6 + $0x678] sm:$0xff]
    %v10159 = vld [vmem:[%s6 + $0x680] sm:$0xff]
    %v10160 = vld [vmem:[%s6 + $0x688] sm:$0xff]
    %v10161 = vld [vmem:[%s6 + $0x690] sm:$0xff]
    %v10162 = vld [vmem:[%s6 + $0x698] sm:$0xff]
    %v10163 = vld [vmem:[%s6 + $0x6a0] sm:$0xff]
    %v10164 = vld [vmem:[%s6 + $0x6a8] sm:$0xff]
    %v10165 = vld [vmem:[%s6 + $0x6b0] sm:$0xff]
    %v10166 = vld [vmem:[%s6 + $0x6b8] sm:$0xff]
    %v10167 = vld [vmem:[%s6 + $0x6c0] sm:$0xff]
    %v10168 = vld [vmem:[%s6 + $0x6c8] sm:$0xff]
    %v10169 = vld [vmem:[%s6 + $0x6d0] sm:$0xff]
    %v10170 = vld [vmem:[%s6 + $0x6d8] sm:$0xff]
    %v10171 = vld [vmem:[%s6 + $0x6e0] sm:$0xff]
    %v10172 = vld [vmem:[%s6 + $0x6e8] sm:$0xff]
    %v10173 = vld [vmem:[%s6 + $0x6f0] sm:$0xff]
    %v10174 = vld [vmem:[%s6 + $0x6f8] sm:$0xff]
    %v10175 = vld [vmem:[%s6 + $0x700] sm:$0xff]
    %v10176 = vld [vmem:[%s6 + $0x708] sm:$0xff]
    %v10177 = vld [vmem:[%s6 + $0x710] sm:$0xff]
    %v10178 = vld [vmem:[%s6 + $0x718] sm:$0xff]
    %v10179 = vld [vmem:[%s6 + $0x720] sm:$0xff]
    %v10180 = vld [vmem:[%s6 + $0x728] sm:$0xff]
    %v10181 = vld [vmem:[%s6 + $0x730] sm:$0xff]
    %v10182 = vld [vmem:[%s6 + $0x738] sm:$0xff]
    %v10183 = vld [vmem:[%s6 + $0x740] sm:$0xff]
    %v10184 = vld [vmem:[%s6 + $0x748] sm:$0xff]
    %v10185 = vld [vmem:[%s6 + $0x750] sm:$0xff]
    %v10186 = vld [vmem:[%s6 + $0x758] sm:$0xff]
    %v10187 = vld [vmem:[%s6 + $0x760] sm:$0xff]
    %v10188 = vld [vmem:[%s6 + $0x768] sm:$0xff]
    %v10189 = vld [vmem:[%s6 + $0x770] sm:$0xff]
    %v10190 = vld [vmem:[%s6 + $0x778] sm:$0xff]
    %v10191 = vld [vmem:[%s6 + $0x780] sm:$0xff]
    %v10192 = vld [vmem:[%s6 + $0x788] sm:$0xff]
    %v10193 = vld [vmem:[%s6 + $0x790] sm:$0xff]
    %v10194 = vld [vmem:[%s6 + $0x798] sm:$0xff]
    %v10195 = vld [vmem:[%s6 + $0x7a0] sm:$0xff]
    %v10196 = vld [vmem:[%s6 + $0x7a8] sm:$0xff]
    %v10197 = vld [vmem:[%s6 + $0x7b0] sm:$0xff]
    %v10198 = vld [vmem:[%s6 + $0x7b8] sm:$0xff]
    %v10199 = vld [vmem:[%s6 + $0x7c0] sm:$0xff]
    %v10200 = vld [vmem:[%s6 + $0x7c8] sm:$0xff]
    %v10201 = vld [vmem:[%s6 + $0x7d0] sm:$0xff]
    %v10202 = vld [vmem:[%s6 + $0x7d8] sm:$0xff]
    %v10203 = vld [vmem:[%s6 + $0x7e0] sm:$0xff]
    %v10204 = vld [vmem:[%s6 + $0x7e8] sm:$0xff]
    %v10205 = vld [vmem:[%s6 + $0x7f0] sm:$0xff]
    %v10206 = vld [vmem:[%s6 + $0x7f8] sm:$0xff]
    %v10463 = vunpack.c.l.b16 %v9951
    %v10464 = vunpack.c.h.b16 %v9951
    %v10465 = vunpack.c.l.b16 %v9952
    %v10466 = vunpack.c.h.b16 %v9952
    %v10467 = vunpack.c.l.b16 %v9953
    %v10468 = vunpack.c.h.b16 %v9953
    %v10469 = vunpack.c.l.b16 %v9954
    %v10470 = vunpack.c.h.b16 %v9954
    %v10471 = vunpack.c.l.b16 %v9955
    %v10472 = vunpack.c.h.b16 %v9955
    %v10473 = vunpack.c.l.b16 %v9956
    %v10474 = vunpack.c.h.b16 %v9956
    %v10475 = vunpack.c.l.b16 %v9957
    %v10476 = vunpack.c.h.b16 %v9957
    %v10477 = vunpack.c.l.b16 %v9958
    %v10478 = vunpack.c.h.b16 %v9958
    %v10479 = vunpack.c.l.b16 %v9959
    %v10480 = vunpack.c.h.b16 %v9959
    %v10481 = vunpack.c.l.b16 %v9960
    %v10482 = vunpack.c.h.b16 %v9960
    %v10483 = vunpack.c.l.b16 %v9961
    %v10484 = vunpack.c.h.b16 %v9961
    %v10485 = vunpack.c.l.b16 %v9962
    %v10486 = vunpack.c.h.b16 %v9962
    %v10487 = vunpack.c.l.b16 %v9963
    %v10488 = vunpack.c.h.b16 %v9963
    %v10489 = vunpack.c.l.b16 %v9964
    %v10490 = vunpack.c.h.b16 %v9964
    %v10491 = vunpack.c.l.b16 %v9965
    %v10492 = vunpack.c.h.b16 %v9965
    %v10493 = vunpack.c.l.b16 %v9966
    %v10494 = vunpack.c.h.b16 %v9966
    %v10495 = vunpack.c.l.b16 %v9967
    %v10496 = vunpack.c.h.b16 %v9967
    %v10497 = vunpack.c.l.b16 %v9968
    %v10498 = vunpack.c.h.b16 %v9968
    %v10499 = vunpack.c.l.b16 %v9969
    %v10500 = vunpack.c.h.b16 %v9969
    %v10501 = vunpack.c.l.b16 %v9970
    %v10502 = vunpack.c.h.b16 %v9970
    %v10503 = vunpack.c.l.b16 %v9971
    %v10504 = vunpack.c.h.b16 %v9971
    %v10505 = vunpack.c.l.b16 %v9972
    %v10506 = vunpack.c.h.b16 %v9972
    %v10507 = vunpack.c.l.b16 %v9973
    %v10508 = vunpack.c.h.b16 %v9973
    %v10509 = vunpack.c.l.b16 %v9974
    %v10510 = vunpack.c.h.b16 %v9974
    %v10511 = vunpack.c.l.b16 %v9975
    %v10512 = vunpack.c.h.b16 %v9975
    %v10513 = vunpack.c.l.b16 %v9976
    %v10514 = vunpack.c.h.b16 %v9976
    %v10515 = vunpack.c.l.b16 %v9977
    %v10516 = vunpack.c.h.b16 %v9977
    %v10517 = vunpack.c.l.b16 %v9978
    %v10518 = vunpack.c.h.b16 %v9978
    %v10519 = vunpack.c.l.b16 %v9979
    %v10520 = vunpack.c.h.b16 %v9979
    %v10521 = vunpack.c.l.b16 %v9980
    %v10522 = vunpack.c.h.b16 %v9980
    %v10523 = vunpack.c.l.b16 %v9981
    %v10524 = vunpack.c.h.b16 %v9981
    %v10525 = vunpack.c.l.b16 %v9982
    %v10526 = vunpack.c.h.b16 %v9982
    %v10527 = vunpack.c.l.b16 %v9983
    %v10528 = vunpack.c.h.b16 %v9983
    %v10529 = vunpack.c.l.b16 %v9984
    %v10530 = vunpack.c.h.b16 %v9984
    %v10531 = vunpack.c.l.b16 %v9985
    %v10532 = vunpack.c.h.b16 %v9985
    %v10533 = vunpack.c.l.b16 %v9986
    %v10534 = vunpack.c.h.b16 %v9986
    %v10535 = vunpack.c.l.b16 %v9987
    %v10536 = vunpack.c.h.b16 %v9987
    %v10537 = vunpack.c.l.b16 %v9988
    %v10538 = vunpack.c.h.b16 %v9988
    %v10539 = vunpack.c.l.b16 %v9989
    %v10540 = vunpack.c.h.b16 %v9989
    %v10541 = vunpack.c.l.b16 %v9990
    %v10542 = vunpack.c.h.b16 %v9990
    %v10543 = vunpack.c.l.b16 %v9991
    %v10544 = vunpack.c.h.b16 %v9991
    %v10545 = vunpack.c.l.b16 %v9992
    %v10546 = vunpack.c.h.b16 %v9992
    %v10547 = vunpack.c.l.b16 %v9993
    %v10548 = vunpack.c.h.b16 %v9993
    %v10549 = vunpack.c.l.b16 %v9994
    %v10550 = vunpack.c.h.b16 %v9994
    %v10551 = vunpack.c.l.b16 %v9995
    %v10552 = vunpack.c.h.b16 %v9995
    %v10553 = vunpack.c.l.b16 %v9996
    %v10554 = vunpack.c.h.b16 %v9996
    %v10555 = vunpack.c.l.b16 %v9997
    %v10556 = vunpack.c.h.b16 %v9997
    %v10557 = vunpack.c.l.b16 %v9998
    %v10558 = vunpack.c.h.b16 %v9998
    %v10559 = vunpack.c.l.b16 %v9999
    %v10560 = vunpack.c.h.b16 %v9999
    %v10561 = vunpack.c.l.b16 %v10000
    %v10562 = vunpack.c.h.b16 %v10000
    %v10563 = vunpack.c.l.b16 %v10001
    %v10564 = vunpack.c.h.b16 %v10001
    %v10565 = vunpack.c.l.b16 %v10002
    %v10566 = vunpack.c.h.b16 %v10002
    %v10567 = vunpack.c.l.b16 %v10003
    %v10568 = vunpack.c.h.b16 %v10003
    %v10569 = vunpack.c.l.b16 %v10004
    %v10570 = vunpack.c.h.b16 %v10004
    %v10571 = vunpack.c.l.b16 %v10005
    %v10572 = vunpack.c.h.b16 %v10005
    %v10573 = vunpack.c.l.b16 %v10006
    %v10574 = vunpack.c.h.b16 %v10006
    %v10575 = vunpack.c.l.b16 %v10007
    %v10576 = vunpack.c.h.b16 %v10007
    %v10577 = vunpack.c.l.b16 %v10008
    %v10578 = vunpack.c.h.b16 %v10008
    %v10579 = vunpack.c.l.b16 %v10009
    %v10580 = vunpack.c.h.b16 %v10009
    %v10581 = vunpack.c.l.b16 %v10010
    %v10582 = vunpack.c.h.b16 %v10010
    %v10583 = vunpack.c.l.b16 %v10011
    %v10584 = vunpack.c.h.b16 %v10011
    %v10585 = vunpack.c.l.b16 %v10012
    %v10586 = vunpack.c.h.b16 %v10012
    %v10587 = vunpack.c.l.b16 %v10013
    %v10588 = vunpack.c.h.b16 %v10013
    %v10589 = vunpack.c.l.b16 %v10014
    %v10590 = vunpack.c.h.b16 %v10014
    %v10591 = vunpack.c.l.b16 %v10015
    %v10592 = vunpack.c.h.b16 %v10015
    %v10593 = vunpack.c.l.b16 %v10016
    %v10594 = vunpack.c.h.b16 %v10016
    %v10595 = vunpack.c.l.b16 %v10017
    %v10596 = vunpack.c.h.b16 %v10017
    %v10597 = vunpack.c.l.b16 %v10018
    %v10598 = vunpack.c.h.b16 %v10018
    %v10599 = vunpack.c.l.b16 %v10019
    %v10600 = vunpack.c.h.b16 %v10019
    %v10601 = vunpack.c.l.b16 %v10020
    %v10602 = vunpack.c.h.b16 %v10020
    %v10603 = vunpack.c.l.b16 %v10021
    %v10604 = vunpack.c.h.b16 %v10021
    %v10605 = vunpack.c.l.b16 %v10022
    %v10606 = vunpack.c.h.b16 %v10022
    %v10607 = vunpack.c.l.b16 %v10023
    %v10608 = vunpack.c.h.b16 %v10023
    %v10609 = vunpack.c.l.b16 %v10024
    %v10610 = vunpack.c.h.b16 %v10024
    %v10611 = vunpack.c.l.b16 %v10025
    %v10612 = vunpack.c.h.b16 %v10025
    %v10613 = vunpack.c.l.b16 %v10026
    %v10614 = vunpack.c.h.b16 %v10026
    %v10615 = vunpack.c.l.b16 %v10027
    %v10616 = vunpack.c.h.b16 %v10027
    %v10617 = vunpack.c.l.b16 %v10028
    %v10618 = vunpack.c.h.b16 %v10028
    %v10619 = vunpack.c.l.b16 %v10029
    %v10620 = vunpack.c.h.b16 %v10029
    %v10621 = vunpack.c.l.b16 %v10030
    %v10622 = vunpack.c.h.b16 %v10030
    %v10623 = vunpack.c.l.b16 %v10031
    %v10624 = vunpack.c.h.b16 %v10031
    %v10625 = vunpack.c.l.b16 %v10032
    %v10626 = vunpack.c.h.b16 %v10032
    %v10627 = vunpack.c.l.b16 %v10033
    %v10628 = vunpack.c.h.b16 %v10033
    %v10629 = vunpack.c.l.b16 %v10034
    %v10630 = vunpack.c.h.b16 %v10034
    %v10631 = vunpack.c.l.b16 %v10035
    %v10632 = vunpack.c.h.b16 %v10035
    %v10633 = vunpack.c.l.b16 %v10036
    %v10634 = vunpack.c.h.b16 %v10036
    %v10635 = vunpack.c.l.b16 %v10037
    %v10636 = vunpack.c.h.b16 %v10037
    %v10637 = vunpack.c.l.b16 %v10038
    %v10638 = vunpack.c.h.b16 %v10038
    %v10639 = vunpack.c.l.b16 %v10039
    %v10640 = vunpack.c.h.b16 %v10039
    %v10641 = vunpack.c.l.b16 %v10040
    %v10642 = vunpack.c.h.b16 %v10040
    %v10643 = vunpack.c.l.b16 %v10041
    %v10644 = vunpack.c.h.b16 %v10041
    %v10645 = vunpack.c.l.b16 %v10042
    %v10646 = vunpack.c.h.b16 %v10042
    %v10647 = vunpack.c.l.b16 %v10043
    %v10648 = vunpack.c.h.b16 %v10043
    %v10649 = vunpack.c.l.b16 %v10044
    %v10650 = vunpack.c.h.b16 %v10044
    %v10651 = vunpack.c.l.b16 %v10045
    %v10652 = vunpack.c.h.b16 %v10045
    %v10653 = vunpack.c.l.b16 %v10046
    %v10654 = vunpack.c.h.b16 %v10046
    %v10655 = vunpack.c.l.b16 %v10047
    %v10656 = vunpack.c.h.b16 %v10047
    %v10657 = vunpack.c.l.b16 %v10048
    %v10658 = vunpack.c.h.b16 %v10048
    %v10659 = vunpack.c.l.b16 %v10049
    %v10660 = vunpack.c.h.b16 %v10049
    %v10661 = vunpack.c.l.b16 %v10050
    %v10662 = vunpack.c.h.b16 %v10050
    %v10663 = vunpack.c.l.b16 %v10051
    %v10664 = vunpack.c.h.b16 %v10051
    %v10665 = vunpack.c.l.b16 %v10052
    %v10666 = vunpack.c.h.b16 %v10052
    %v10667 = vunpack.c.l.b16 %v10053
    %v10668 = vunpack.c.h.b16 %v10053
    %v10669 = vunpack.c.l.b16 %v10054
    %v10670 = vunpack.c.h.b16 %v10054
    %v10671 = vunpack.c.l.b16 %v10055
    %v10672 = vunpack.c.h.b16 %v10055
    %v10673 = vunpack.c.l.b16 %v10056
    %v10674 = vunpack.c.h.b16 %v10056
    %v10675 = vunpack.c.l.b16 %v10057
    %v10676 = vunpack.c.h.b16 %v10057
    %v10677 = vunpack.c.l.b16 %v10058
    %v10678 = vunpack.c.h.b16 %v10058
    %v10679 = vunpack.c.l.b16 %v10059
    %v10680 = vunpack.c.h.b16 %v10059
    %v10681 = vunpack.c.l.b16 %v10060
    %v10682 = vunpack.c.h.b16 %v10060
    %v10683 = vunpack.c.l.b16 %v10061
    %v10684 = vunpack.c.h.b16 %v10061
    %v10685 = vunpack.c.l.b16 %v10062
    %v10686 = vunpack.c.h.b16 %v10062
    %v10687 = vunpack.c.l.b16 %v10063
    %v10688 = vunpack.c.h.b16 %v10063
    %v10689 = vunpack.c.l.b16 %v10064
    %v10690 = vunpack.c.h.b16 %v10064
    %v10691 = vunpack.c.l.b16 %v10065
    %v10692 = vunpack.c.h.b16 %v10065
    %v10693 = vunpack.c.l.b16 %v10066
    %v10694 = vunpack.c.h.b16 %v10066
    %v10695 = vunpack.c.l.b16 %v10067
    %v10696 = vunpack.c.h.b16 %v10067
    %v10697 = vunpack.c.l.b16 %v10068
    %v10698 = vunpack.c.h.b16 %v10068
    %v10699 = vunpack.c.l.b16 %v10069
    %v10700 = vunpack.c.h.b16 %v10069
    %v10701 = vunpack.c.l.b16 %v10070
    %v10702 = vunpack.c.h.b16 %v10070
    %v10703 = vunpack.c.l.b16 %v10071
    %v10704 = vunpack.c.h.b16 %v10071
    %v10705 = vunpack.c.l.b16 %v10072
    %v10706 = vunpack.c.h.b16 %v10072
    %v10707 = vunpack.c.l.b16 %v10073
    %v10708 = vunpack.c.h.b16 %v10073
    %v10709 = vunpack.c.l.b16 %v10074
    %v10710 = vunpack.c.h.b16 %v10074
    %v10711 = vunpack.c.l.b16 %v10075
    %v10712 = vunpack.c.h.b16 %v10075
    %v10713 = vunpack.c.l.b16 %v10076
    %v10714 = vunpack.c.h.b16 %v10076
    %v10715 = vunpack.c.l.b16 %v10077
    %v10716 = vunpack.c.h.b16 %v10077
    %v10717 = vunpack.c.l.b16 %v10078
    %v10718 = vunpack.c.h.b16 %v10078
    %v10719 = vunpack.c.l.b16 %v10079
    %v10720 = vunpack.c.h.b16 %v10079
    %v10721 = vunpack.c.l.b16 %v10080
    %v10722 = vunpack.c.h.b16 %v10080
    %v10723 = vunpack.c.l.b16 %v10081
    %v10724 = vunpack.c.h.b16 %v10081
    %v10725 = vunpack.c.l.b16 %v10082
    %v10726 = vunpack.c.h.b16 %v10082
    %v10727 = vunpack.c.l.b16 %v10083
    %v10728 = vunpack.c.h.b16 %v10083
    %v10729 = vunpack.c.l.b16 %v10084
    %v10730 = vunpack.c.h.b16 %v10084
    %v10731 = vunpack.c.l.b16 %v10085
    %v10732 = vunpack.c.h.b16 %v10085
    %v10733 = vunpack.c.l.b16 %v10086
    %v10734 = vunpack.c.h.b16 %v10086
    %v10735 = vunpack.c.l.b16 %v10087
    %v10736 = vunpack.c.h.b16 %v10087
    %v10737 = vunpack.c.l.b16 %v10088
    %v10738 = vunpack.c.h.b16 %v10088
    %v10739 = vunpack.c.l.b16 %v10089
    %v10740 = vunpack.c.h.b16 %v10089
    %v10741 = vunpack.c.l.b16 %v10090
    %v10742 = vunpack.c.h.b16 %v10090
    %v10743 = vunpack.c.l.b16 %v10091
    %v10744 = vunpack.c.h.b16 %v10091
    %v10745 = vunpack.c.l.b16 %v10092
    %v10746 = vunpack.c.h.b16 %v10092
    %v10747 = vunpack.c.l.b16 %v10093
    %v10748 = vunpack.c.h.b16 %v10093
    %v10749 = vunpack.c.l.b16 %v10094
    %v10750 = vunpack.c.h.b16 %v10094
    %v10751 = vunpack.c.l.b16 %v10095
    %v10752 = vunpack.c.h.b16 %v10095
    %v10753 = vunpack.c.l.b16 %v10096
    %v10754 = vunpack.c.h.b16 %v10096
    %v10755 = vunpack.c.l.b16 %v10097
    %v10756 = vunpack.c.h.b16 %v10097
    %v10757 = vunpack.c.l.b16 %v10098
    %v10758 = vunpack.c.h.b16 %v10098
    %v10759 = vunpack.c.l.b16 %v10099
    %v10760 = vunpack.c.h.b16 %v10099
    %v10761 = vunpack.c.l.b16 %v10100
    %v10762 = vunpack.c.h.b16 %v10100
    %v10763 = vunpack.c.l.b16 %v10101
    %v10764 = vunpack.c.h.b16 %v10101
    %v10765 = vunpack.c.l.b16 %v10102
    %v10766 = vunpack.c.h.b16 %v10102
    %v10767 = vunpack.c.l.b16 %v10103
    %v10768 = vunpack.c.h.b16 %v10103
    %v10769 = vunpack.c.l.b16 %v10104
    %v10770 = vunpack.c.h.b16 %v10104
    %v10771 = vunpack.c.l.b16 %v10105
    %v10772 = vunpack.c.h.b16 %v10105
    %v10773 = vunpack.c.l.b16 %v10106
    %v10774 = vunpack.c.h.b16 %v10106
    %v10775 = vunpack.c.l.b16 %v10107
    %v10776 = vunpack.c.h.b16 %v10107
    %v10777 = vunpack.c.l.b16 %v10108
    %v10778 = vunpack.c.h.b16 %v10108
    %v10779 = vunpack.c.l.b16 %v10109
    %v10780 = vunpack.c.h.b16 %v10109
    %v10781 = vunpack.c.l.b16 %v10110
    %v10782 = vunpack.c.h.b16 %v10110
    %v10783 = vunpack.c.l.b16 %v10111
    %v10784 = vunpack.c.h.b16 %v10111
    %v10785 = vunpack.c.l.b16 %v10112
    %v10786 = vunpack.c.h.b16 %v10112
    %v10787 = vunpack.c.l.b16 %v10113
    %v10788 = vunpack.c.h.b16 %v10113
    %v10789 = vunpack.c.l.b16 %v10114
    %v10790 = vunpack.c.h.b16 %v10114
    %v10791 = vunpack.c.l.b16 %v10115
    %v10792 = vunpack.c.h.b16 %v10115
    %v10793 = vunpack.c.l.b16 %v10116
    %v10794 = vunpack.c.h.b16 %v10116
    %v10795 = vunpack.c.l.b16 %v10117
    %v10796 = vunpack.c.h.b16 %v10117
    %v10797 = vunpack.c.l.b16 %v10118
    %v10798 = vunpack.c.h.b16 %v10118
    %v10799 = vunpack.c.l.b16 %v10119
    %v10800 = vunpack.c.h.b16 %v10119
    %v10801 = vunpack.c.l.b16 %v10120
    %v10802 = vunpack.c.h.b16 %v10120
    %v10803 = vunpack.c.l.b16 %v10121
    %v10804 = vunpack.c.h.b16 %v10121
    %v10805 = vunpack.c.l.b16 %v10122
    %v10806 = vunpack.c.h.b16 %v10122
    %v10807 = vunpack.c.l.b16 %v10123
    %v10808 = vunpack.c.h.b16 %v10123
    %v10809 = vunpack.c.l.b16 %v10124
    %v10810 = vunpack.c.h.b16 %v10124
    %v10811 = vunpack.c.l.b16 %v10125
    %v10812 = vunpack.c.h.b16 %v10125
    %v10813 = vunpack.c.l.b16 %v10126
    %v10814 = vunpack.c.h.b16 %v10126
    %v10815 = vunpack.c.l.b16 %v10127
    %v10816 = vunpack.c.h.b16 %v10127
    %v10817 = vunpack.c.l.b16 %v10128
    %v10818 = vunpack.c.h.b16 %v10128
    %v10819 = vunpack.c.l.b16 %v10129
    %v10820 = vunpack.c.h.b16 %v10129
    %v10821 = vunpack.c.l.b16 %v10130
    %v10822 = vunpack.c.h.b16 %v10130
    %v10823 = vunpack.c.l.b16 %v10131
    %v10824 = vunpack.c.h.b16 %v10131
    %v10825 = vunpack.c.l.b16 %v10132
    %v10826 = vunpack.c.h.b16 %v10132
    %v10827 = vunpack.c.l.b16 %v10133
    %v10828 = vunpack.c.h.b16 %v10133
    %v10829 = vunpack.c.l.b16 %v10134
    %v10830 = vunpack.c.h.b16 %v10134
    %v10831 = vunpack.c.l.b16 %v10135
    %v10832 = vunpack.c.h.b16 %v10135
    %v10833 = vunpack.c.l.b16 %v10136
    %v10834 = vunpack.c.h.b16 %v10136
    %v10835 = vunpack.c.l.b16 %v10137
    %v10836 = vunpack.c.h.b16 %v10137
    %v10837 = vunpack.c.l.b16 %v10138
    %v10838 = vunpack.c.h.b16 %v10138
    %v10839 = vunpack.c.l.b16 %v10139
    %v10840 = vunpack.c.h.b16 %v10139
    %v10841 = vunpack.c.l.b16 %v10140
    %v10842 = vunpack.c.h.b16 %v10140
    %v10843 = vunpack.c.l.b16 %v10141
    %v10844 = vunpack.c.h.b16 %v10141
    %v10845 = vunpack.c.l.b16 %v10142
    %v10846 = vunpack.c.h.b16 %v10142
    %v10847 = vunpack.c.l.b16 %v10143
    %v10848 = vunpack.c.h.b16 %v10143
    %v10849 = vunpack.c.l.b16 %v10144
    %v10850 = vunpack.c.h.b16 %v10144
    %v10851 = vunpack.c.l.b16 %v10145
    %v10852 = vunpack.c.h.b16 %v10145
    %v10853 = vunpack.c.l.b16 %v10146
    %v10854 = vunpack.c.h.b16 %v10146
    %v10855 = vunpack.c.l.b16 %v10147
    %v10856 = vunpack.c.h.b16 %v10147
    %v10857 = vunpack.c.l.b16 %v10148
    %v10858 = vunpack.c.h.b16 %v10148
    %v10859 = vunpack.c.l.b16 %v10149
    %v10860 = vunpack.c.h.b16 %v10149
    %v10861 = vunpack.c.l.b16 %v10150
    %v10862 = vunpack.c.h.b16 %v10150
    %v10863 = vunpack.c.l.b16 %v10151
    %v10864 = vunpack.c.h.b16 %v10151
    %v10865 = vunpack.c.l.b16 %v10152
    %v10866 = vunpack.c.h.b16 %v10152
    %v10867 = vunpack.c.l.b16 %v10153
    %v10868 = vunpack.c.h.b16 %v10153
    %v10869 = vunpack.c.l.b16 %v10154
    %v10870 = vunpack.c.h.b16 %v10154
    %v10871 = vunpack.c.l.b16 %v10155
    %v10872 = vunpack.c.h.b16 %v10155
    %v10873 = vunpack.c.l.b16 %v10156
    %v10874 = vunpack.c.h.b16 %v10156
    %v10875 = vunpack.c.l.b16 %v10157
    %v10876 = vunpack.c.h.b16 %v10157
    %v10877 = vunpack.c.l.b16 %v10158
    %v10878 = vunpack.c.h.b16 %v10158
    %v10879 = vunpack.c.l.b16 %v10159
    %v10880 = vunpack.c.h.b16 %v10159
    %v10881 = vunpack.c.l.b16 %v10160
    %v10882 = vunpack.c.h.b16 %v10160
    %v10883 = vunpack.c.l.b16 %v10161
    %v10884 = vunpack.c.h.b16 %v10161
    %v10885 = vunpack.c.l.b16 %v10162
    %v10886 = vunpack.c.h.b16 %v10162
    %v10887 = vunpack.c.l.b16 %v10163
    %v10888 = vunpack.c.h.b16 %v10163
    %v10889 = vunpack.c.l.b16 %v10164
    %v10890 = vunpack.c.h.b16 %v10164
    %v10891 = vunpack.c.l.b16 %v10165
    %v10892 = vunpack.c.h.b16 %v10165
    %v10893 = vunpack.c.l.b16 %v10166
    %v10894 = vunpack.c.h.b16 %v10166
    %v10895 = vunpack.c.l.b16 %v10167
    %v10896 = vunpack.c.h.b16 %v10167
    %v10897 = vunpack.c.l.b16 %v10168
    %v10898 = vunpack.c.h.b16 %v10168
    %v10899 = vunpack.c.l.b16 %v10169
    %v10900 = vunpack.c.h.b16 %v10169
    %v10901 = vunpack.c.l.b16 %v10170
    %v10902 = vunpack.c.h.b16 %v10170
    %v10903 = vunpack.c.l.b16 %v10171
    %v10904 = vunpack.c.h.b16 %v10171
    %v10905 = vunpack.c.l.b16 %v10172
    %v10906 = vunpack.c.h.b16 %v10172
    %v10907 = vunpack.c.l.b16 %v10173
    %v10908 = vunpack.c.h.b16 %v10173
    %v10909 = vunpack.c.l.b16 %v10174
    %v10910 = vunpack.c.h.b16 %v10174
    %v10911 = vunpack.c.l.b16 %v10175
    %v10912 = vunpack.c.h.b16 %v10175
    %v10913 = vunpack.c.l.b16 %v10176
    %v10914 = vunpack.c.h.b16 %v10176
    %v10915 = vunpack.c.l.b16 %v10177
    %v10916 = vunpack.c.h.b16 %v10177
    %v10917 = vunpack.c.l.b16 %v10178
    %v10918 = vunpack.c.h.b16 %v10178
    %v10919 = vunpack.c.l.b16 %v10179
    %v10920 = vunpack.c.h.b16 %v10179
    %v10921 = vunpack.c.l.b16 %v10180
    %v10922 = vunpack.c.h.b16 %v10180
    %v10923 = vunpack.c.l.b16 %v10181
    %v10924 = vunpack.c.h.b16 %v10181
    %v10925 = vunpack.c.l.b16 %v10182
    %v10926 = vunpack.c.h.b16 %v10182
    %v10927 = vunpack.c.l.b16 %v10183
    %v10928 = vunpack.c.h.b16 %v10183
    %v10929 = vunpack.c.l.b16 %v10184
    %v10930 = vunpack.c.h.b16 %v10184
    %v10931 = vunpack.c.l.b16 %v10185
    %v10932 = vunpack.c.h.b16 %v10185
    %v10933 = vunpack.c.l.b16 %v10186
    %v10934 = vunpack.c.h.b16 %v10186
    %v10935 = vunpack.c.l.b16 %v10187
    %v10936 = vunpack.c.h.b16 %v10187
    %v10937 = vunpack.c.l.b16 %v10188
    %v10938 = vunpack.c.h.b16 %v10188
    %v10939 = vunpack.c.l.b16 %v10189
    %v10940 = vunpack.c.h.b16 %v10189
    %v10941 = vunpack.c.l.b16 %v10190
    %v10942 = vunpack.c.h.b16 %v10190
    %v10943 = vunpack.c.l.b16 %v10191
    %v10944 = vunpack.c.h.b16 %v10191
    %v10945 = vunpack.c.l.b16 %v10192
    %v10946 = vunpack.c.h.b16 %v10192
    %v10947 = vunpack.c.l.b16 %v10193
    %v10948 = vunpack.c.h.b16 %v10193
    %v10949 = vunpack.c.l.b16 %v10194
    %v10950 = vunpack.c.h.b16 %v10194
    %v10951 = vunpack.c.l.b16 %v10195
    %v10952 = vunpack.c.h.b16 %v10195
    %v10953 = vunpack.c.l.b16 %v10196
    %v10954 = vunpack.c.h.b16 %v10196
    %v10955 = vunpack.c.l.b16 %v10197
    %v10956 = vunpack.c.h.b16 %v10197
    %v10957 = vunpack.c.l.b16 %v10198
    %v10958 = vunpack.c.h.b16 %v10198
    %v10959 = vunpack.c.l.b16 %v10199
    %v10960 = vunpack.c.h.b16 %v10199
    %v10961 = vunpack.c.l.b16 %v10200
    %v10962 = vunpack.c.h.b16 %v10200
    %v10963 = vunpack.c.l.b16 %v10201
    %v10964 = vunpack.c.h.b16 %v10201
    %v10965 = vunpack.c.l.b16 %v10202
    %v10966 = vunpack.c.h.b16 %v10202
    %v10967 = vunpack.c.l.b16 %v10203
    %v10968 = vunpack.c.h.b16 %v10203
    %v10969 = vunpack.c.l.b16 %v10204
    %v10970 = vunpack.c.h.b16 %v10204
    %v10971 = vunpack.c.l.b16 %v10205
    %v10972 = vunpack.c.h.b16 %v10205
    %v10973 = vunpack.c.l.b16 %v10206
    %v10974 = vunpack.c.h.b16 %v10206
    %v10975 = vpack.c.b16 %v10467, %v10463
    %v10976 = vpack.c.b16 %v10468, %v10464
    %v10977 = vpack.c.b16 %v10469, %v10465
    %v10978 = vpack.c.b16 %v10470, %v10466
    %v10979 = vpack.c.b16 %v10475, %v10471
    %v10980 = vpack.c.b16 %v10476, %v10472
    %v10981 = vpack.c.b16 %v10477, %v10473
    %v10982 = vpack.c.b16 %v10478, %v10474
    %v10983 = vpack.c.b16 %v10483, %v10479
    %v10984 = vpack.c.b16 %v10484, %v10480
    %v10985 = vpack.c.b16 %v10485, %v10481
    %v10986 = vpack.c.b16 %v10486, %v10482
    %v10987 = vpack.c.b16 %v10491, %v10487
    %v10988 = vpack.c.b16 %v10492, %v10488
    %v10989 = vpack.c.b16 %v10493, %v10489
    %v10990 = vpack.c.b16 %v10494, %v10490
    %v10991 = vpack.c.b16 %v10499, %v10495
    %v10992 = vpack.c.b16 %v10500, %v10496
    %v10993 = vpack.c.b16 %v10501, %v10497
    %v10994 = vpack.c.b16 %v10502, %v10498
    %v10995 = vpack.c.b16 %v10507, %v10503
    %v10996 = vpack.c.b16 %v10508, %v10504
    %v10997 = vpack.c.b16 %v10509, %v10505
    %v10998 = vpack.c.b16 %v10510, %v10506
    %v10999 = vpack.c.b16 %v10515, %v10511
    %v11000 = vpack.c.b16 %v10516, %v10512
    %v11001 = vpack.c.b16 %v10517, %v10513
    %v11002 = vpack.c.b16 %v10518, %v10514
    %v11003 = vpack.c.b16 %v10523, %v10519
    %v11004 = vpack.c.b16 %v10524, %v10520
    %v11005 = vpack.c.b16 %v10525, %v10521
    %v11006 = vpack.c.b16 %v10526, %v10522
    %v11007 = vpack.c.b16 %v10531, %v10527
    %v11008 = vpack.c.b16 %v10532, %v10528
    %v11009 = vpack.c.b16 %v10533, %v10529
    %v11010 = vpack.c.b16 %v10534, %v10530
    %v11011 = vpack.c.b16 %v10539, %v10535
    %v11012 = vpack.c.b16 %v10540, %v10536
    %v11013 = vpack.c.b16 %v10541, %v10537
    %v11014 = vpack.c.b16 %v10542, %v10538
    %v11015 = vpack.c.b16 %v10547, %v10543
    %v11016 = vpack.c.b16 %v10548, %v10544
    %v11017 = vpack.c.b16 %v10549, %v10545
    %v11018 = vpack.c.b16 %v10550, %v10546
    %v11019 = vpack.c.b16 %v10555, %v10551
    %v11020 = vpack.c.b16 %v10556, %v10552
    %v11021 = vpack.c.b16 %v10557, %v10553
    %v11022 = vpack.c.b16 %v10558, %v10554
    %v11023 = vpack.c.b16 %v10563, %v10559
    %v11024 = vpack.c.b16 %v10564, %v10560
    %v11025 = vpack.c.b16 %v10565, %v10561
    %v11026 = vpack.c.b16 %v10566, %v10562
    %v11027 = vpack.c.b16 %v10571, %v10567
    %v11028 = vpack.c.b16 %v10572, %v10568
    %v11029 = vpack.c.b16 %v10573, %v10569
    %v11030 = vpack.c.b16 %v10574, %v10570
    %v11031 = vpack.c.b16 %v10579, %v10575
    %v11032 = vpack.c.b16 %v10580, %v10576
    %v11033 = vpack.c.b16 %v10581, %v10577
    %v11034 = vpack.c.b16 %v10582, %v10578
    %v11035 = vpack.c.b16 %v10587, %v10583
    %v11036 = vpack.c.b16 %v10588, %v10584
    %v11037 = vpack.c.b16 %v10589, %v10585
    %v11038 = vpack.c.b16 %v10590, %v10586
    %v11039 = vpack.c.b16 %v10595, %v10591
    %v11040 = vpack.c.b16 %v10596, %v10592
    %v11041 = vpack.c.b16 %v10597, %v10593
    %v11042 = vpack.c.b16 %v10598, %v10594
    %v11043 = vpack.c.b16 %v10603, %v10599
    %v11044 = vpack.c.b16 %v10604, %v10600
    %v11045 = vpack.c.b16 %v10605, %v10601
    %v11046 = vpack.c.b16 %v10606, %v10602
    %v11047 = vpack.c.b16 %v10611, %v10607
    %v11048 = vpack.c.b16 %v10612, %v10608
    %v11049 = vpack.c.b16 %v10613, %v10609
    %v11050 = vpack.c.b16 %v10614, %v10610
    %v11051 = vpack.c.b16 %v10619, %v10615
    %v11052 = vpack.c.b16 %v10620, %v10616
    %v11053 = vpack.c.b16 %v10621, %v10617
    %v11054 = vpack.c.b16 %v10622, %v10618
    %v11055 = vpack.c.b16 %v10627, %v10623
    %v11056 = vpack.c.b16 %v10628, %v10624
    %v11057 = vpack.c.b16 %v10629, %v10625
    %v11058 = vpack.c.b16 %v10630, %v10626
    %v11059 = vpack.c.b16 %v10635, %v10631
    %v11060 = vpack.c.b16 %v10636, %v10632
    %v11061 = vpack.c.b16 %v10637, %v10633
    %v11062 = vpack.c.b16 %v10638, %v10634
    %v11063 = vpack.c.b16 %v10643, %v10639
    %v11064 = vpack.c.b16 %v10644, %v10640
    %v11065 = vpack.c.b16 %v10645, %v10641
    %v11066 = vpack.c.b16 %v10646, %v10642
    %v11067 = vpack.c.b16 %v10651, %v10647
    %v11068 = vpack.c.b16 %v10652, %v10648
    %v11069 = vpack.c.b16 %v10653, %v10649
    %v11070 = vpack.c.b16 %v10654, %v10650
    %v11071 = vpack.c.b16 %v10659, %v10655
    %v11072 = vpack.c.b16 %v10660, %v10656
    %v11073 = vpack.c.b16 %v10661, %v10657
    %v11074 = vpack.c.b16 %v10662, %v10658
    %v11075 = vpack.c.b16 %v10667, %v10663
    %v11076 = vpack.c.b16 %v10668, %v10664
    %v11077 = vpack.c.b16 %v10669, %v10665
    %v11078 = vpack.c.b16 %v10670, %v10666
    %v11079 = vpack.c.b16 %v10675, %v10671
    %v11080 = vpack.c.b16 %v10676, %v10672
    %v11081 = vpack.c.b16 %v10677, %v10673
    %v11082 = vpack.c.b16 %v10678, %v10674
    %v11083 = vpack.c.b16 %v10683, %v10679
    %v11084 = vpack.c.b16 %v10684, %v10680
    %v11085 = vpack.c.b16 %v10685, %v10681
    %v11086 = vpack.c.b16 %v10686, %v10682
    %v11087 = vpack.c.b16 %v10691, %v10687
    %v11088 = vpack.c.b16 %v10692, %v10688
    %v11089 = vpack.c.b16 %v10693, %v10689
    %v11090 = vpack.c.b16 %v10694, %v10690
    %v11091 = vpack.c.b16 %v10699, %v10695
    %v11092 = vpack.c.b16 %v10700, %v10696
    %v11093 = vpack.c.b16 %v10701, %v10697
    %v11094 = vpack.c.b16 %v10702, %v10698
    %v11095 = vpack.c.b16 %v10707, %v10703
    %v11096 = vpack.c.b16 %v10708, %v10704
    %v11097 = vpack.c.b16 %v10709, %v10705
    %v11098 = vpack.c.b16 %v10710, %v10706
    %v11099 = vpack.c.b16 %v10715, %v10711
    %v11100 = vpack.c.b16 %v10716, %v10712
    %v11101 = vpack.c.b16 %v10717, %v10713
    %v11102 = vpack.c.b16 %v10718, %v10714
    %v11103 = vpack.c.b16 %v10723, %v10719
    %v11104 = vpack.c.b16 %v10724, %v10720
    %v11105 = vpack.c.b16 %v10725, %v10721
    %v11106 = vpack.c.b16 %v10726, %v10722
    %v11107 = vpack.c.b16 %v10731, %v10727
    %v11108 = vpack.c.b16 %v10732, %v10728
    %v11109 = vpack.c.b16 %v10733, %v10729
    %v11110 = vpack.c.b16 %v10734, %v10730
    %v11111 = vpack.c.b16 %v10739, %v10735
    %v11112 = vpack.c.b16 %v10740, %v10736
    %v11113 = vpack.c.b16 %v10741, %v10737
    %v11114 = vpack.c.b16 %v10742, %v10738
    %v11115 = vpack.c.b16 %v10747, %v10743
    %v11116 = vpack.c.b16 %v10748, %v10744
    %v11117 = vpack.c.b16 %v10749, %v10745
    %v11118 = vpack.c.b16 %v10750, %v10746
    %v11119 = vpack.c.b16 %v10755, %v10751
    %v11120 = vpack.c.b16 %v10756, %v10752
    %v11121 = vpack.c.b16 %v10757, %v10753
    %v11122 = vpack.c.b16 %v10758, %v10754
    %v11123 = vpack.c.b16 %v10763, %v10759
    %v11124 = vpack.c.b16 %v10764, %v10760
    %v11125 = vpack.c.b16 %v10765, %v10761
    %v11126 = vpack.c.b16 %v10766, %v10762
    %v11127 = vpack.c.b16 %v10771, %v10767
    %v11128 = vpack.c.b16 %v10772, %v10768
    %v11129 = vpack.c.b16 %v10773, %v10769
    %v11130 = vpack.c.b16 %v10774, %v10770
    %v11131 = vpack.c.b16 %v10779, %v10775
    %v11132 = vpack.c.b16 %v10780, %v10776
    %v11133 = vpack.c.b16 %v10781, %v10777
    %v11134 = vpack.c.b16 %v10782, %v10778
    %v11135 = vpack.c.b16 %v10787, %v10783
    %v11136 = vpack.c.b16 %v10788, %v10784
    %v11137 = vpack.c.b16 %v10789, %v10785
    %v11138 = vpack.c.b16 %v10790, %v10786
    %v11139 = vpack.c.b16 %v10795, %v10791
    %v11140 = vpack.c.b16 %v10796, %v10792
    %v11141 = vpack.c.b16 %v10797, %v10793
    %v11142 = vpack.c.b16 %v10798, %v10794
    %v11143 = vpack.c.b16 %v10803, %v10799
    %v11144 = vpack.c.b16 %v10804, %v10800
    %v11145 = vpack.c.b16 %v10805, %v10801
    %v11146 = vpack.c.b16 %v10806, %v10802
    %v11147 = vpack.c.b16 %v10811, %v10807
    %v11148 = vpack.c.b16 %v10812, %v10808
    %v11149 = vpack.c.b16 %v10813, %v10809
    %v11150 = vpack.c.b16 %v10814, %v10810
    %v11151 = vpack.c.b16 %v10819, %v10815
    %v11152 = vpack.c.b16 %v10820, %v10816
    %v11153 = vpack.c.b16 %v10821, %v10817
    %v11154 = vpack.c.b16 %v10822, %v10818
    %v11155 = vpack.c.b16 %v10827, %v10823
    %v11156 = vpack.c.b16 %v10828, %v10824
    %v11157 = vpack.c.b16 %v10829, %v10825
    %v11158 = vpack.c.b16 %v10830, %v10826
    %v11159 = vpack.c.b16 %v10835, %v10831
    %v11160 = vpack.c.b16 %v10836, %v10832
    %v11161 = vpack.c.b16 %v10837, %v10833
    %v11162 = vpack.c.b16 %v10838, %v10834
    %v11163 = vpack.c.b16 %v10843, %v10839
    %v11164 = vpack.c.b16 %v10844, %v10840
    %v11165 = vpack.c.b16 %v10845, %v10841
    %v11166 = vpack.c.b16 %v10846, %v10842
    %v11167 = vpack.c.b16 %v10851, %v10847
    %v11168 = vpack.c.b16 %v10852, %v10848
    %v11169 = vpack.c.b16 %v10853, %v10849
    %v11170 = vpack.c.b16 %v10854, %v10850
    %v11171 = vpack.c.b16 %v10859, %v10855
    %v11172 = vpack.c.b16 %v10860, %v10856
    %v11173 = vpack.c.b16 %v10861, %v10857
    %v11174 = vpack.c.b16 %v10862, %v10858
    %v11175 = vpack.c.b16 %v10867, %v10863
    %v11176 = vpack.c.b16 %v10868, %v10864
    %v11177 = vpack.c.b16 %v10869, %v10865
    %v11178 = vpack.c.b16 %v10870, %v10866
    %v11179 = vpack.c.b16 %v10875, %v10871
    %v11180 = vpack.c.b16 %v10876, %v10872
    %v11181 = vpack.c.b16 %v10877, %v10873
    %v11182 = vpack.c.b16 %v10878, %v10874
    %v11183 = vpack.c.b16 %v10883, %v10879
    %v11184 = vpack.c.b16 %v10884, %v10880
    %v11185 = vpack.c.b16 %v10885, %v10881
    %v11186 = vpack.c.b16 %v10886, %v10882
    %v11187 = vpack.c.b16 %v10891, %v10887
    %v11188 = vpack.c.b16 %v10892, %v10888
    %v11189 = vpack.c.b16 %v10893, %v10889
    %v11190 = vpack.c.b16 %v10894, %v10890
    %v11191 = vpack.c.b16 %v10899, %v10895
    %v11192 = vpack.c.b16 %v10900, %v10896
    %v11193 = vpack.c.b16 %v10901, %v10897
    %v11194 = vpack.c.b16 %v10902, %v10898
    %v11195 = vpack.c.b16 %v10907, %v10903
    %v11196 = vpack.c.b16 %v10908, %v10904
    %v11197 = vpack.c.b16 %v10909, %v10905
    %v11198 = vpack.c.b16 %v10910, %v10906
    %v11199 = vpack.c.b16 %v10915, %v10911
    %v11200 = vpack.c.b16 %v10916, %v10912
    %v11201 = vpack.c.b16 %v10917, %v10913
    %v11202 = vpack.c.b16 %v10918, %v10914
    %v11203 = vpack.c.b16 %v10923, %v10919
    %v11204 = vpack.c.b16 %v10924, %v10920
    %v11205 = vpack.c.b16 %v10925, %v10921
    %v11206 = vpack.c.b16 %v10926, %v10922
    %v11207 = vpack.c.b16 %v10931, %v10927
    %v11208 = vpack.c.b16 %v10932, %v10928
    %v11209 = vpack.c.b16 %v10933, %v10929
    %v11210 = vpack.c.b16 %v10934, %v10930
    %v11211 = vpack.c.b16 %v10939, %v10935
    %v11212 = vpack.c.b16 %v10940, %v10936
    %v11213 = vpack.c.b16 %v10941, %v10937
    %v11214 = vpack.c.b16 %v10942, %v10938
    %v11215 = vpack.c.b16 %v10947, %v10943
    %v11216 = vpack.c.b16 %v10948, %v10944
    %v11217 = vpack.c.b16 %v10949, %v10945
    %v11218 = vpack.c.b16 %v10950, %v10946
    %v11219 = vpack.c.b16 %v10955, %v10951
    %v11220 = vpack.c.b16 %v10956, %v10952
    %v11221 = vpack.c.b16 %v10957, %v10953
    %v11222 = vpack.c.b16 %v10958, %v10954
    %v11223 = vpack.c.b16 %v10963, %v10959
    %v11224 = vpack.c.b16 %v10964, %v10960
    %v11225 = vpack.c.b16 %v10965, %v10961
    %v11226 = vpack.c.b16 %v10966, %v10962
    %v11227 = vpack.c.b16 %v10971, %v10967
    %v11228 = vpack.c.b16 %v10972, %v10968
    %v11229 = vpack.c.b16 %v10973, %v10969
    %v11230 = vpack.c.b16 %v10974, %v10970
    %11487 = vmatprep.subr.bf16.mxu0 %v11004
    %11488 = vmatpush1.bf16.msra.mxu0 %v11003
    %11489 = vmatprep.subr.bf16.mxu0 %v11000
    %11490 = vmatpush1.bf16.msra.mxu0 %v10999
    %11491 = vmatprep.subr.bf16.mxu0 %v10996
    %11492 = vmatpush1.bf16.msra.mxu0 %v10995
    %11493 = vmatprep.subr.bf16.mxu0 %v10992
    %11494 = vmatpush1.bf16.msra.mxu0 %v10991
    %11495 = vmatprep.subr.bf16.mxu0 %v10988
    %11496 = vmatpush1.bf16.msra.mxu0 %v10987
    %11497 = vmatprep.subr.bf16.mxu0 %v10984
    %11498 = vmatpush1.bf16.msra.mxu0 %v10983
    %11499 = vmatprep.subr.bf16.mxu0 %v10980
    %11500 = vmatpush1.bf16.msra.mxu0 %v10979
    %11501 = vmatprep.subr.bf16.mxu0 %v10976
    %11502 = vmatpush1.bf16.msra.mxu0 %v10975
    %11503 = vmatprep.subr.bf16.mxu0 %v11036
    %11504 = vmatpush2.bf16.msra.mxu0 %v11035
    %11505 = vmatprep.subr.bf16.mxu0 %v11032
    %11506 = vmatpush2.bf16.msra.mxu0 %v11031
    %11507 = vmatprep.subr.bf16.mxu0 %v11028
    %11508 = vmatpush2.bf16.msra.mxu0 %v11027
    %11509 = vmatprep.subr.bf16.mxu0 %v11024
    %11510 = vmatpush2.bf16.msra.mxu0 %v11023
    %11511 = vmatprep.subr.bf16.mxu0 %v11020
    %11512 = vmatpush2.bf16.msra.mxu0 %v11019
    %11513 = vmatprep.subr.bf16.mxu0 %v11016
    %11514 = vmatpush2.bf16.msra.mxu0 %v11015
    %11515 = vmatprep.subr.bf16.mxu0 %v11012
    %11516 = vmatpush2.bf16.msra.mxu0 %v11011
    %11517 = vmatprep.subr.bf16.mxu0 %v11008
    %11518 = vmatpush2.bf16.msra.mxu0 %v11007
    %11519 = vmatprep.mubr.bf16.mxu0 %v9944
    %11520 = vmatmul.mubr.bf16.gmra.mxu0 %v9943
    %v11521 = vpop.f32.mrf.mxu0
    %v11522 = vadd.f32 0.0, %v11521
    %v11523 = vpop.f32.mrf.mxu0
    %v11524 = vadd.f32 0.0, %v11523
    %v11525 = vpop.f32.mrf.mxu0
    %v11526 = vpop.f32.mrf.mxu0
    %11527 = vdwg.mxu0
    %11528 = vmatprep.subr.bf16.mxu0 %v11068
    %11529 = vmatpush1.bf16.msra.mxu0 %v11067
    %11530 = vmatprep.subr.bf16.mxu0 %v11064
    %11531 = vmatpush1.bf16.msra.mxu0 %v11063
    %11532 = vmatprep.subr.bf16.mxu0 %v11060
    %11533 = vmatpush1.bf16.msra.mxu0 %v11059
    %11534 = vmatprep.subr.bf16.mxu0 %v11056
    %11535 = vmatpush1.bf16.msra.mxu0 %v11055
    %11536 = vmatprep.subr.bf16.mxu0 %v11052
    %11537 = vmatpush1.bf16.msra.mxu0 %v11051
    %11538 = vmatprep.subr.bf16.mxu0 %v11048
    %11539 = vmatpush1.bf16.msra.mxu0 %v11047
    %11540 = vmatprep.subr.bf16.mxu0 %v11044
    %11541 = vmatpush1.bf16.msra.mxu0 %v11043
    %11542 = vmatprep.subr.bf16.mxu0 %v11040
    %11543 = vmatpush1.bf16.msra.mxu0 %v11039
    %11544 = vmatprep.subr.bf16.mxu0 %v11100
    %11545 = vmatpush2.bf16.msra.mxu0 %v11099
    %11546 = vmatprep.subr.bf16.mxu0 %v11096
    %11547 = vmatpush2.bf16.msra.mxu0 %v11095
    %11548 = vmatprep.subr.bf16.mxu0 %v11092
    %11549 = vmatpush2.bf16.msra.mxu0 %v11091
    %11550 = vmatprep.subr.bf16.mxu0 %v11088
    %11551 = vmatpush2.bf16.msra.mxu0 %v11087
    %11552 = vmatprep.subr.bf16.mxu0 %v11084
    %11553 = vmatpush2.bf16.msra.mxu0 %v11083
    %11554 = vmatprep.subr.bf16.mxu0 %v11080
    %11555 = vmatpush2.bf16.msra.mxu0 %v11079
    %11556 = vmatprep.subr.bf16.mxu0 %v11076
    %11557 = vmatpush2.bf16.msra.mxu0 %v11075
    %11558 = vmatprep.subr.bf16.mxu0 %v11072
    %11559 = vmatpush2.bf16.msra.mxu0 %v11071
    %11560 = vmatprep.mubr.bf16.mxu0 %v9946
    %11561 = vmatmul.mubr.bf16.gmra.mxu0 %v9945
    %v11562 = vpop.f32.mrf.mxu0
    %v11563 = vadd.f32 %v11522, %v11562
    %v11564 = vpop.f32.mrf.mxu0
    %v11565 = vadd.f32 %v11524, %v11564
    %v11566 = vpop.f32.mrf.mxu0
    %v11567 = vpop.f32.mrf.mxu0
    %11568 = vdwg.mxu0
    %11569 = vmatprep.subr.bf16.mxu0 %v11132
    %11570 = vmatpush1.bf16.msra.mxu0 %v11131
    %11571 = vmatprep.subr.bf16.mxu0 %v11128
    %11572 = vmatpush1.bf16.msra.mxu0 %v11127
    %11573 = vmatprep.subr.bf16.mxu0 %v11124
    %11574 = vmatpush1.bf16.msra.mxu0 %v11123
    %11575 = vmatprep.subr.bf16.mxu0 %v11120
    %11576 = vmatpush1.bf16.msra.mxu0 %v11119
    %11577 = vmatprep.subr.bf16.mxu0 %v11116
    %11578 = vmatpush1.bf16.msra.mxu0 %v11115
    %11579 = vmatprep.subr.bf16.mxu0 %v11112
    %11580 = vmatpush1.bf16.msra.mxu0 %v11111
    %11581 = vmatprep.subr.bf16.mxu0 %v11108
    %11582 = vmatpush1.bf16.msra.mxu0 %v11107
    %11583 = vmatprep.subr.bf16.mxu0 %v11104
    %11584 = vmatpush1.bf16.msra.mxu0 %v11103
    %11585 = vmatprep.subr.bf16.mxu0 %v11164
    %11586 = vmatpush2.bf16.msra.mxu0 %v11163
    %11587 = vmatprep.subr.bf16.mxu0 %v11160
    %11588 = vmatpush2.bf16.msra.mxu0 %v11159
    %11589 = vmatprep.subr.bf16.mxu0 %v11156
    %11590 = vmatpush2.bf16.msra.mxu0 %v11155
    %11591 = vmatprep.subr.bf16.mxu0 %v11152
    %11592 = vmatpush2.bf16.msra.mxu0 %v11151
    %11593 = vmatprep.subr.bf16.mxu0 %v11148
    %11594 = vmatpush2.bf16.msra.mxu0 %v11147
    %11595 = vmatprep.subr.bf16.mxu0 %v11144
    %11596 = vmatpush2.bf16.msra.mxu0 %v11143
    %11597 = vmatprep.subr.bf16.mxu0 %v11140
    %11598 = vmatpush2.bf16.msra.mxu0 %v11139
    %11599 = vmatprep.subr.bf16.mxu0 %v11136
    %11600 = vmatpush2.bf16.msra.mxu0 %v11135
    %11601 = vmatprep.mubr.bf16.mxu0 %v9948
    %11602 = vmatmul.mubr.bf16.gmra.mxu0 %v9947
    %v11603 = vpop.f32.mrf.mxu0
    %v11604 = vadd.f32 %v11563, %v11603
    %v11605 = vpop.f32.mrf.mxu0
    %v11606 = vadd.f32 %v11565, %v11605
    %v11607 = vpop.f32.mrf.mxu0
    %v11608 = vpop.f32.mrf.mxu0
    %11609 = vdwg.mxu0
    %11610 = vmatprep.subr.bf16.mxu0 %v11196
    %11611 = vmatpush1.bf16.msra.mxu0 %v11195
    %11612 = vmatprep.subr.bf16.mxu0 %v11192
    %11613 = vmatpush1.bf16.msra.mxu0 %v11191
    %11614 = vmatprep.subr.bf16.mxu0 %v11188
    %11615 = vmatpush1.bf16.msra.mxu0 %v11187
    %11616 = vmatprep.subr.bf16.mxu0 %v11184
    %11617 = vmatpush1.bf16.msra.mxu0 %v11183
    %11618 = vmatprep.subr.bf16.mxu0 %v11180
    %11619 = vmatpush1.bf16.msra.mxu0 %v11179
    %11620 = vmatprep.subr.bf16.mxu0 %v11176
    %11621 = vmatpush1.bf16.msra.mxu0 %v11175
    %11622 = vmatprep.subr.bf16.mxu0 %v11172
    %11623 = vmatpush1.bf16.msra.mxu0 %v11171
    %11624 = vmatprep.subr.bf16.mxu0 %v11168
    %11625 = vmatpush1.bf16.msra.mxu0 %v11167
    %11626 = vmatprep.subr.bf16.mxu0 %v11228
    %11627 = vmatpush2.bf16.msra.mxu0 %v11227
    %11628 = vmatprep.subr.bf16.mxu0 %v11224
    %11629 = vmatpush2.bf16.msra.mxu0 %v11223
    %11630 = vmatprep.subr.bf16.mxu0 %v11220
    %11631 = vmatpush2.bf16.msra.mxu0 %v11219
    %11632 = vmatprep.subr.bf16.mxu0 %v11216
    %11633 = vmatpush2.bf16.msra.mxu0 %v11215
    %11634 = vmatprep.subr.bf16.mxu0 %v11212
    %11635 = vmatpush2.bf16.msra.mxu0 %v11211
    %11636 = vmatprep.subr.bf16.mxu0 %v11208
    %11637 = vmatpush2.bf16.msra.mxu0 %v11207
    %11638 = vmatprep.subr.bf16.mxu0 %v11204
    %11639 = vmatpush2.bf16.msra.mxu0 %v11203
    %11640 = vmatprep.subr.bf16.mxu0 %v11200
    %11641 = vmatpush2.bf16.msra.mxu0 %v11199
    %11642 = vmatprep.mubr.bf16.mxu0 %v9950
    %11643 = vmatmul.mubr.bf16.gmra.mxu0 %v9949
    %v11644 = vpop.f32.mrf.mxu0
    %v11645 = vadd.f32 %v11604, %v11644
    %v11646 = vpop.f32.mrf.mxu0
    %v11647 = vadd.f32 %v11606, %v11646
    %v11648 = vpop.f32.mrf.mxu0
    %v11649 = vpop.f32.mrf.mxu0
    %11650 = vdwg.mxu0
    %11651 = vmatprep.subr.bf16.mxu0 %v11006
    %11652 = vmatpush1.bf16.msra.mxu0 %v11005
    %11653 = vmatprep.subr.bf16.mxu0 %v11002
    %11654 = vmatpush1.bf16.msra.mxu0 %v11001
    %11655 = vmatprep.subr.bf16.mxu0 %v10998
    %11656 = vmatpush1.bf16.msra.mxu0 %v10997
    %11657 = vmatprep.subr.bf16.mxu0 %v10994
    %11658 = vmatpush1.bf16.msra.mxu0 %v10993
    %11659 = vmatprep.subr.bf16.mxu0 %v10990
    %11660 = vmatpush1.bf16.msra.mxu0 %v10989
    %11661 = vmatprep.subr.bf16.mxu0 %v10986
    %11662 = vmatpush1.bf16.msra.mxu0 %v10985
    %11663 = vmatprep.subr.bf16.mxu0 %v10982
    %11664 = vmatpush1.bf16.msra.mxu0 %v10981
    %11665 = vmatprep.subr.bf16.mxu0 %v10978
    %11666 = vmatpush1.bf16.msra.mxu0 %v10977
    %11667 = vmatprep.subr.bf16.mxu0 %v11038
    %11668 = vmatpush2.bf16.msra.mxu0 %v11037
    %11669 = vmatprep.subr.bf16.mxu0 %v11034
    %11670 = vmatpush2.bf16.msra.mxu0 %v11033
    %11671 = vmatprep.subr.bf16.mxu0 %v11030
    %11672 = vmatpush2.bf16.msra.mxu0 %v11029
    %11673 = vmatprep.subr.bf16.mxu0 %v11026
    %11674 = vmatpush2.bf16.msra.mxu0 %v11025
    %11675 = vmatprep.subr.bf16.mxu0 %v11022
    %11676 = vmatpush2.bf16.msra.mxu0 %v11021
    %11677 = vmatprep.subr.bf16.mxu0 %v11018
    %11678 = vmatpush2.bf16.msra.mxu0 %v11017
    %11679 = vmatprep.subr.bf16.mxu0 %v11014
    %11680 = vmatpush2.bf16.msra.mxu0 %v11013
    %11681 = vmatprep.subr.bf16.mxu0 %v11010
    %11682 = vmatpush2.bf16.msra.mxu0 %v11009
    %11683 = vmatprep.mubr.bf16.mxu0 %v9944
    %11684 = vmatmul.mubr.bf16.gmra.mxu0 %v9943
    %v11685 = vpop.f32.mrf.mxu0
    %v11686 = vadd.f32 0.0, %v11685
    %v11687 = vpop.f32.mrf.mxu0
    %v11688 = vadd.f32 0.0, %v11687
    %v11689 = vpop.f32.mrf.mxu0
    %v11690 = vpop.f32.mrf.mxu0
    %11691 = vdwg.mxu0
    %11692 = vmatprep.subr.bf16.mxu0 %v11070
    %11693 = vmatpush1.bf16.msra.mxu0 %v11069
    %11694 = vmatprep.subr.bf16.mxu0 %v11066
    %11695 = vmatpush1.bf16.msra.mxu0 %v11065
    %11696 = vmatprep.subr.bf16.mxu0 %v11062
    %11697 = vmatpush1.bf16.msra.mxu0 %v11061
    %11698 = vmatprep.subr.bf16.mxu0 %v11058
    %11699 = vmatpush1.bf16.msra.mxu0 %v11057
    %11700 = vmatprep.subr.bf16.mxu0 %v11054
    %11701 = vmatpush1.bf16.msra.mxu0 %v11053
    %11702 = vmatprep.subr.bf16.mxu0 %v11050
    %11703 = vmatpush1.bf16.msra.mxu0 %v11049
    %11704 = vmatprep.subr.bf16.mxu0 %v11046
    %11705 = vmatpush1.bf16.msra.mxu0 %v11045
    %11706 = vmatprep.subr.bf16.mxu0 %v11042
    %11707 = vmatpush1.bf16.msra.mxu0 %v11041
    %11708 = vmatprep.subr.bf16.mxu0 %v11102
    %11709 = vmatpush2.bf16.msra.mxu0 %v11101
    %11710 = vmatprep.subr.bf16.mxu0 %v11098
    %11711 = vmatpush2.bf16.msra.mxu0 %v11097
    %11712 = vmatprep.subr.bf16.mxu0 %v11094
    %11713 = vmatpush2.bf16.msra.mxu0 %v11093
    %11714 = vmatprep.subr.bf16.mxu0 %v11090
    %11715 = vmatpush2.bf16.msra.mxu0 %v11089
    %11716 = vmatprep.subr.bf16.mxu0 %v11086
    %11717 = vmatpush2.bf16.msra.mxu0 %v11085
    %11718 = vmatprep.subr.bf16.mxu0 %v11082
    %11719 = vmatpush2.bf16.msra.mxu0 %v11081
    %11720 = vmatprep.subr.bf16.mxu0 %v11078
    %11721 = vmatpush2.bf16.msra.mxu0 %v11077
    %11722 = vmatprep.subr.bf16.mxu0 %v11074
    %11723 = vmatpush2.bf16.msra.mxu0 %v11073
    %11724 = vmatprep.mubr.bf16.mxu0 %v9946
    %11725 = vmatmul.mubr.bf16.gmra.mxu0 %v9945
    %v11726 = vpop.f32.mrf.mxu0
    %v11727 = vadd.f32 %v11686, %v11726
    %v11728 = vpop.f32.mrf.mxu0
    %v11729 = vadd.f32 %v11688, %v11728
    %v11730 = vpop.f32.mrf.mxu0
    %v11731 = vpop.f32.mrf.mxu0
    %11732 = vdwg.mxu0
    %11733 = vmatprep.subr.bf16.mxu0 %v11134
    %11734 = vmatpush1.bf16.msra.mxu0 %v11133
    %11735 = vmatprep.subr.bf16.mxu0 %v11130
    %11736 = vmatpush1.bf16.msra.mxu0 %v11129
    %11737 = vmatprep.subr.bf16.mxu0 %v11126
    %11738 = vmatpush1.bf16.msra.mxu0 %v11125
    %11739 = vmatprep.subr.bf16.mxu0 %v11122
    %11740 = vmatpush1.bf16.msra.mxu0 %v11121
    %11741 = vmatprep.subr.bf16.mxu0 %v11118
    %11742 = vmatpush1.bf16.msra.mxu0 %v11117
    %11743 = vmatprep.subr.bf16.mxu0 %v11114
    %11744 = vmatpush1.bf16.msra.mxu0 %v11113
    %11745 = vmatprep.subr.bf16.mxu0 %v11110
    %11746 = vmatpush1.bf16.msra.mxu0 %v11109
    %11747 = vmatprep.subr.bf16.mxu0 %v11106
    %11748 = vmatpush1.bf16.msra.mxu0 %v11105
    %11749 = vmatprep.subr.bf16.mxu0 %v11166
    %11750 = vmatpush2.bf16.msra.mxu0 %v11165
    %11751 = vmatprep.subr.bf16.mxu0 %v11162
    %11752 = vmatpush2.bf16.msra.mxu0 %v11161
    %11753 = vmatprep.subr.bf16.mxu0 %v11158
    %11754 = vmatpush2.bf16.msra.mxu0 %v11157
    %11755 = vmatprep.subr.bf16.mxu0 %v11154
    %11756 = vmatpush2.bf16.msra.mxu0 %v11153
    %11757 = vmatprep.subr.bf16.mxu0 %v11150
    %11758 = vmatpush2.bf16.msra.mxu0 %v11149
    %11759 = vmatprep.subr.bf16.mxu0 %v11146
    %11760 = vmatpush2.bf16.msra.mxu0 %v11145
    %11761 = vmatprep.subr.bf16.mxu0 %v11142
    %11762 = vmatpush2.bf16.msra.mxu0 %v11141
    %11763 = vmatprep.subr.bf16.mxu0 %v11138
    %11764 = vmatpush2.bf16.msra.mxu0 %v11137
    %11765 = vmatprep.mubr.bf16.mxu0 %v9948
    %11766 = vmatmul.mubr.bf16.gmra.mxu0 %v9947
    %v11767 = vpop.f32.mrf.mxu0
    %v11768 = vadd.f32 %v11727, %v11767
    %v11769 = vpop.f32.mrf.mxu0
    %v11770 = vadd.f32 %v11729, %v11769
    %v11771 = vpop.f32.mrf.mxu0
    %v11772 = vpop.f32.mrf.mxu0
    %11773 = vdwg.mxu0
    %11774 = vmatprep.subr.bf16.mxu0 %v11198
    %11775 = vmatpush1.bf16.msra.mxu0 %v11197
    %11776 = vmatprep.subr.bf16.mxu0 %v11194
    %11777 = vmatpush1.bf16.msra.mxu0 %v11193
    %11778 = vmatprep.subr.bf16.mxu0 %v11190
    %11779 = vmatpush1.bf16.msra.mxu0 %v11189
    %11780 = vmatprep.subr.bf16.mxu0 %v11186
    %11781 = vmatpush1.bf16.msra.mxu0 %v11185
    %11782 = vmatprep.subr.bf16.mxu0 %v11182
    %11783 = vmatpush1.bf16.msra.mxu0 %v11181
    %11784 = vmatprep.subr.bf16.mxu0 %v11178
    %11785 = vmatpush1.bf16.msra.mxu0 %v11177
    %11786 = vmatprep.subr.bf16.mxu0 %v11174
    %11787 = vmatpush1.bf16.msra.mxu0 %v11173
    %11788 = vmatprep.subr.bf16.mxu0 %v11170
    %11789 = vmatpush1.bf16.msra.mxu0 %v11169
    %11790 = vmatprep.subr.bf16.mxu0 %v11230
    %11791 = vmatpush2.bf16.msra.mxu0 %v11229
    %11792 = vmatprep.subr.bf16.mxu0 %v11226
    %11793 = vmatpush2.bf16.msra.mxu0 %v11225
    %11794 = vmatprep.subr.bf16.mxu0 %v11222
    %11795 = vmatpush2.bf16.msra.mxu0 %v11221
    %11796 = vmatprep.subr.bf16.mxu0 %v11218
    %11797 = vmatpush2.bf16.msra.mxu0 %v11217
    %11798 = vmatprep.subr.bf16.mxu0 %v11214
    %11799 = vmatpush2.bf16.msra.mxu0 %v11213
    %11800 = vmatprep.subr.bf16.mxu0 %v11210
    %11801 = vmatpush2.bf16.msra.mxu0 %v11209
    %11802 = vmatprep.subr.bf16.mxu0 %v11206
    %11803 = vmatpush2.bf16.msra.mxu0 %v11205
    %11804 = vmatprep.subr.bf16.mxu0 %v11202
    %11805 = vmatpush2.bf16.msra.mxu0 %v11201
    %11806 = vmatprep.mubr.bf16.mxu0 %v9950
    %11807 = vmatmul.mubr.bf16.gmra.mxu0 %v9949
    %v11808 = vpop.f32.mrf.mxu0
    %v11809 = vadd.f32 %v11768, %v11808
    %v11810 = vpop.f32.mrf.mxu0
    %v11811 = vadd.f32 %v11770, %v11810
    %v11812 = vpop.f32.mrf.mxu0
    %v11813 = vpop.f32.mrf.mxu0
    %11814 = vdwg.mxu0
    %11816 = vrot.lane.b32.xlu0 %v11811, 64
    %v11817 = vpop.permute.xlu0 %11816
    %11819 = vxpose.xlu0.b32.start [1/16] %v11817, 128
    %11820 = vxpose.xlu0.b32.cont [2/16] 0.0, 128
    %11821 = vxpose.xlu0.b32.cont [3/16] 0.0, 128
    %11822 = vxpose.xlu0.b32.cont [4/16] 0.0, 128
    %11823 = vxpose.xlu0.b32.cont [5/16] 0.0, 128
    %11824 = vxpose.xlu0.b32.cont [6/16] 0.0, 128
    %11825 = vxpose.xlu0.b32.cont [7/16] 0.0, 128
    %11826 = vxpose.xlu0.b32.cont [8/16] 0.0, 128
    %11827 = vxpose.xlu0.b32.cont [9/16] 0.0, 128
    %11828 = vxpose.xlu0.b32.cont [10/16] 0.0, 128
    %11829 = vxpose.xlu0.b32.cont [11/16] 0.0, 128
    %11830 = vxpose.xlu0.b32.cont [12/16] 0.0, 128
    %11831 = vxpose.xlu0.b32.cont [13/16] 0.0, 128
    %11832 = vxpose.xlu0.b32.cont [14/16] 0.0, 128
    %11833 = vxpose.xlu0.b32.cont [15/16] 0.0, 128
    %11834 = vxpose.xlu0.b32.end [16/16] 0.0, 128
    %v11835 = vpop.trf.xlu0
    %v11836 = vpop.trf.xlu0
    %v11837 = vpop.trf.xlu0
    %v11838 = vpop.trf.xlu0
    %v11839 = vpop.trf.xlu0
    %v11840 = vpop.trf.xlu0
    %v11841 = vpop.trf.xlu0
    %v11842 = vpop.trf.xlu0
    %v11843 = vpop.trf.xlu0
    %v11844 = vpop.trf.xlu0
    %v11845 = vpop.trf.xlu0
    %v11846 = vpop.trf.xlu0
    %v11847 = vpop.trf.xlu0
    %v11848 = vpop.trf.xlu0
    %v11849 = vpop.trf.xlu0
    %v11850 = vpop.trf.xlu0
    %11851 = vset.pattern.permute.xlu0 70
    %11852 = vperm.xlu0 %11851, %v11811
    %v11853 = vpop.permute.xlu0 %11852
    %v11855 = vlaneseq
    %v11856 = vshrl.u32 %v11855, 7
    %v11857 = vsub.s32 0, %v11856
    %v11858 = vrot.slane %v11835, %v11857
    %v11859 = vadd.f32 %v11853, %v11858
    %vm11860 = vcmp.gt.f32.partialorder %v11859, 0.0
    %v11861 = vmul.f32 %v11859, 0.2
    %v11862 = vsel %vm11860, %v11859, %v11861
    %v11863 = vsel %vm32, %v11862, -1e+30
    %v11864 = vsel %vm556, %v11863, -inf
    %11865 = vmax.xlane.f32.xlu0 %v11864
    %v11866 = vpop.xlane.xlu0 %11865
    %v11867 = vsub.f32 %v11863, %v11866
    %v11868 = vmul.f32 %v11867, 1.442695
    %v11869 = vpow.pop %v11868
    %v11870 = vsel %vm32, %v11869, 0.0
    %v11871 = vsel %vm556, %v11870, 0.0
    %11872 = vadd.xlane.f32.xlu0 %v11871
    %v11873 = vpop.xlane.xlu0 %11872
    %v11874 = vrcp.pop %v11873
    %v11875 = vmul.f32 %v11870, %v11874
    %11876 = vrot.lane.b32.xlu0 %v11811, 63
    %v11877 = vpop.permute.xlu0 %11876
    %11879 = vxpose.xlu0.b32.start [1/16] %v11877, 128
    %11880 = vxpose.xlu0.b32.cont [2/16] 0.0, 128
    %11881 = vxpose.xlu0.b32.cont [3/16] 0.0, 128
    %11882 = vxpose.xlu0.b32.cont [4/16] 0.0, 128
    %11883 = vxpose.xlu0.b32.cont [5/16] 0.0, 128
    %11884 = vxpose.xlu0.b32.cont [6/16] 0.0, 128
    %11885 = vxpose.xlu0.b32.cont [7/16] 0.0, 128
    %11886 = vxpose.xlu0.b32.cont [8/16] 0.0, 128
    %11887 = vxpose.xlu0.b32.cont [9/16] 0.0, 128
    %11888 = vxpose.xlu0.b32.cont [10/16] 0.0, 128
    %11889 = vxpose.xlu0.b32.cont [11/16] 0.0, 128
    %11890 = vxpose.xlu0.b32.cont [12/16] 0.0, 128
    %11891 = vxpose.xlu0.b32.cont [13/16] 0.0, 128
    %11892 = vxpose.xlu0.b32.cont [14/16] 0.0, 128
    %11893 = vxpose.xlu0.b32.cont [15/16] 0.0, 128
    %11894 = vxpose.xlu0.b32.end [16/16] 0.0, 128
    %v11895 = vpop.trf.xlu0
    %v11896 = vpop.trf.xlu0
    %v11897 = vpop.trf.xlu0
    %v11898 = vpop.trf.xlu0
    %v11899 = vpop.trf.xlu0
    %v11900 = vpop.trf.xlu0
    %v11901 = vpop.trf.xlu0
    %v11902 = vpop.trf.xlu0
    %v11903 = vpop.trf.xlu0
    %v11904 = vpop.trf.xlu0
    %v11905 = vpop.trf.xlu0
    %v11906 = vpop.trf.xlu0
    %v11907 = vpop.trf.xlu0
    %v11908 = vpop.trf.xlu0
    %v11909 = vpop.trf.xlu0
    %v11910 = vpop.trf.xlu0
    %11911 = vset.pattern.permute.xlu0 71
    %11912 = vperm.xlu0 %11911, %v11811
    %v11913 = vpop.permute.xlu0 %11912
    %v11915 = vlaneseq
    %v11916 = vshrl.u32 %v11915, 7
    %v11917 = vsub.s32 0, %v11916
    %v11918 = vrot.slane %v11895, %v11917
    %v11919 = vadd.f32 %v11913, %v11918
    %vm11920 = vcmp.gt.f32.partialorder %v11919, 0.0
    %v11921 = vmul.f32 %v11919, 0.2
    %v11922 = vsel %vm11920, %v11919, %v11921
    %v11923 = vsel %vm32, %v11922, -1e+30
    %v11924 = vsel %vm556, %v11923, -inf
    %11925 = vmax.xlane.f32.xlu0 %v11924
    %v11926 = vpop.xlane.xlu0 %11925
    %v11927 = vsub.f32 %v11923, %v11926
    %v11928 = vmul.f32 %v11927, 1.442695
    %v11929 = vpow.pop %v11928
    %v11930 = vsel %vm32, %v11929, 0.0
    %v11931 = vsel %vm556, %v11930, 0.0
    %11932 = vadd.xlane.f32.xlu0 %v11931
    %v11933 = vpop.xlane.xlu0 %11932
    %v11934 = vrcp.pop %v11933
    %v11935 = vmul.f32 %v11930, %v11934
    %11937 = vrot.lane.b32.xlu0 %v11645, 64
    %v11938 = vpop.permute.xlu0 %11937
    %v11941 = vsel %vm556, %v11935, 0
    %11943 = vmatprep.subr.mxu0 0.0
    %11944 = vmatpush1.msra.mxu0 0.0
    %11945 = vmatprep.subr.mxu0 0.0
    %11946 = vmatpush1.msra.mxu0 0.0
    %11947 = vmatprep.subr.mxu0 0.0
    %11948 = vmatpush1.msra.mxu0 0.0
    %11949 = vmatprep.subr.mxu0 0.0
    %11950 = vmatpush1.msra.mxu0 0.0
    %11951 = vmatprep.subr.mxu0 0.0
    %11952 = vmatpush1.msra.mxu0 0.0
    %11953 = vmatprep.subr.mxu0 0.0
    %11954 = vmatpush1.msra.mxu0 0.0
    %11955 = vmatprep.subr.mxu0 0.0
    %11956 = vmatpush1.msra.mxu0 0.0
    %11957 = vmatprep.subr.mxu0 0.0
    %11958 = vmatpush1.msra.mxu0 0.0
    %11959 = vmatprep.subr.mxu0 0.0
    %11960 = vmatpush1.msra.mxu0 0.0
    %11961 = vmatprep.subr.mxu0 0.0
    %11962 = vmatpush1.msra.mxu0 0.0
    %11963 = vmatprep.subr.mxu0 0.0
    %11964 = vmatpush1.msra.mxu0 0.0
    %11965 = vmatprep.subr.mxu0 0.0
    %11966 = vmatpush1.msra.mxu0 0.0
    %11967 = vmatprep.subr.mxu0 0.0
    %11968 = vmatpush1.msra.mxu0 0.0
    %11969 = vmatprep.subr.mxu0 0.0
    %11970 = vmatpush1.msra.mxu0 0.0
    %11971 = vmatprep.subr.mxu0 0.0
    %11972 = vmatpush1.msra.mxu0 0.0
    %11973 = vmatprep.subr.mxu0 0.0
    %11974 = vmatpush1.msra.mxu0 %v11938
    %11975 = vmatprep.subr.mxu0 0.0
    %11976 = vmatpush2.msra.mxu0 0.0
    %11977 = vmatprep.subr.mxu0 0.0
    %11978 = vmatpush2.msra.mxu0 0.0
    %11979 = vmatprep.subr.mxu0 0.0
    %11980 = vmatpush2.msra.mxu0 0.0
    %11981 = vmatprep.subr.mxu0 0.0
    %11982 = vmatpush2.msra.mxu0 0.0
    %11983 = vmatprep.subr.mxu0 0.0
    %11984 = vmatpush2.msra.mxu0 0.0
    %11985 = vmatprep.subr.mxu0 0.0
    %11986 = vmatpush2.msra.mxu0 0.0
    %11987 = vmatprep.subr.mxu0 0.0
    %11988 = vmatpush2.msra.mxu0 0.0
    %11989 = vmatprep.subr.mxu0 0.0
    %11990 = vmatpush2.msra.mxu0 0.0
    %11991 = vmatprep.subr.mxu0 0.0
    %11992 = vmatpush2.msra.mxu0 0.0
    %11993 = vmatprep.subr.mxu0 0.0
    %11994 = vmatpush2.msra.mxu0 0.0
    %11995 = vmatprep.subr.mxu0 0.0
    %11996 = vmatpush2.msra.mxu0 0.0
    %11997 = vmatprep.subr.mxu0 0.0
    %11998 = vmatpush2.msra.mxu0 0.0
    %11999 = vmatprep.subr.mxu0 0.0
    %12000 = vmatpush2.msra.mxu0 0.0
    %12001 = vmatprep.subr.mxu0 0.0
    %12002 = vmatpush2.msra.mxu0 0.0
    %12003 = vmatprep.subr.mxu0 0.0
    %12004 = vmatpush2.msra.mxu0 0.0
    %12005 = vmatprep.subr.mxu0 0.0
    %12006 = vmatpush2.msra.mxu0 0.0
    %12007 = vmatprep.mubr.f32.mxu0 0.0
    %12008 = vmatmul.mubr.f32.gmra.mxu0 %v11941
    %v12009 = vpop.f32.mrf.mxu0
    %v12010 = vadd.f32 0.0, %v12009
    %v12011 = vpop.f32.mrf.mxu0
    %12012 = vdwg.mxu0
    %v12014 = vsel %vm556, %v11875, 0
    %12016 = vmatprep.subr.mxu0 0.0
    %12017 = vmatpush1.msra.mxu0 0.0
    %12018 = vmatprep.subr.mxu0 0.0
    %12019 = vmatpush1.msra.mxu0 0.0
    %12020 = vmatprep.subr.mxu0 0.0
    %12021 = vmatpush1.msra.mxu0 0.0
    %12022 = vmatprep.subr.mxu0 0.0
    %12023 = vmatpush1.msra.mxu0 0.0
    %12024 = vmatprep.subr.mxu0 0.0
    %12025 = vmatpush1.msra.mxu0 0.0
    %12026 = vmatprep.subr.mxu0 0.0
    %12027 = vmatpush1.msra.mxu0 0.0
    %12028 = vmatprep.subr.mxu0 0.0
    %12029 = vmatpush1.msra.mxu0 0.0
    %12030 = vmatprep.subr.mxu0 0.0
    %12031 = vmatpush1.msra.mxu0 0.0
    %12032 = vmatprep.subr.mxu0 0.0
    %12033 = vmatpush1.msra.mxu0 0.0
    %12034 = vmatprep.subr.mxu0 0.0
    %12035 = vmatpush1.msra.mxu0 0.0
    %12036 = vmatprep.subr.mxu0 0.0
    %12037 = vmatpush1.msra.mxu0 0.0
    %12038 = vmatprep.subr.mxu0 0.0
    %12039 = vmatpush1.msra.mxu0 0.0
    %12040 = vmatprep.subr.mxu0 0.0
    %12041 = vmatpush1.msra.mxu0 0.0
    %12042 = vmatprep.subr.mxu0 0.0
    %12043 = vmatpush1.msra.mxu0 0.0
    %12044 = vmatprep.subr.mxu0 0.0
    %12045 = vmatpush1.msra.mxu0 0.0
    %12046 = vmatprep.subr.mxu0 0.0
    %12047 = vmatpush1.msra.mxu0 %v11645
    %12048 = vmatprep.subr.mxu0 0.0
    %12049 = vmatpush2.msra.mxu0 0.0
    %12050 = vmatprep.subr.mxu0 0.0
    %12051 = vmatpush2.msra.mxu0 0.0
    %12052 = vmatprep.subr.mxu0 0.0
    %12053 = vmatpush2.msra.mxu0 0.0
    %12054 = vmatprep.subr.mxu0 0.0
    %12055 = vmatpush2.msra.mxu0 0.0
    %12056 = vmatprep.subr.mxu0 0.0
    %12057 = vmatpush2.msra.mxu0 0.0
    %12058 = vmatprep.subr.mxu0 0.0
    %12059 = vmatpush2.msra.mxu0 0.0
    %12060 = vmatprep.subr.mxu0 0.0
    %12061 = vmatpush2.msra.mxu0 0.0
    %12062 = vmatprep.subr.mxu0 0.0
    %12063 = vmatpush2.msra.mxu0 0.0
    %12064 = vmatprep.subr.mxu0 0.0
    %12065 = vmatpush2.msra.mxu0 0.0
    %12066 = vmatprep.subr.mxu0 0.0
    %12067 = vmatpush2.msra.mxu0 0.0
    %12068 = vmatprep.subr.mxu0 0.0
    %12069 = vmatpush2.msra.mxu0 0.0
    %12070 = vmatprep.subr.mxu0 0.0
    %12071 = vmatpush2.msra.mxu0 0.0
    %12072 = vmatprep.subr.mxu0 0.0
    %12073 = vmatpush2.msra.mxu0 0.0
    %12074 = vmatprep.subr.mxu0 0.0
    %12075 = vmatpush2.msra.mxu0 0.0
    %12076 = vmatprep.subr.mxu0 0.0
    %12077 = vmatpush2.msra.mxu0 0.0
    %12078 = vmatprep.subr.mxu0 0.0
    %12079 = vmatpush2.msra.mxu0 0.0
    %12080 = vmatprep.mubr.f32.mxu0 0.0
    %12081 = vmatmul.mubr.f32.gmra.mxu0 %v12014
    %v12082 = vpop.f32.mrf.mxu0
    %v12083 = vadd.f32 %v12010, %v12082
    %v12084 = vpop.f32.mrf.mxu0
    %12085 = vdwg.mxu0
    %12086 = vrot.lane.b32.xlu0 %v11811, 62
    %v12087 = vpop.permute.xlu0 %12086
    %12089 = vxpose.xlu0.b32.start [1/16] %v12087, 128
    %12090 = vxpose.xlu0.b32.cont [2/16] 0.0, 128
    %12091 = vxpose.xlu0.b32.cont [3/16] 0.0, 128
    %12092 = vxpose.xlu0.b32.cont [4/16] 0.0, 128
    %12093 = vxpose.xlu0.b32.cont [5/16] 0.0, 128
    %12094 = vxpose.xlu0.b32.cont [6/16] 0.0, 128
    %12095 = vxpose.xlu0.b32.cont [7/16] 0.0, 128
    %12096 = vxpose.xlu0.b32.cont [8/16] 0.0, 128
    %12097 = vxpose.xlu0.b32.cont [9/16] 0.0, 128
    %12098 = vxpose.xlu0.b32.cont [10/16] 0.0, 128
    %12099 = vxpose.xlu0.b32.cont [11/16] 0.0, 128
    %12100 = vxpose.xlu0.b32.cont [12/16] 0.0, 128
    %12101 = vxpose.xlu0.b32.cont [13/16] 0.0, 128
    %12102 = vxpose.xlu0.b32.cont [14/16] 0.0, 128
    %12103 = vxpose.xlu0.b32.cont [15/16] 0.0, 128
    %12104 = vxpose.xlu0.b32.end [16/16] 0.0, 128
    %v12105 = vpop.trf.xlu0
    %v12106 = vpop.trf.xlu0
    %v12107 = vpop.trf.xlu0
    %v12108 = vpop.trf.xlu0
    %v12109 = vpop.trf.xlu0
    %v12110 = vpop.trf.xlu0
    %v12111 = vpop.trf.xlu0
    %v12112 = vpop.trf.xlu0
    %v12113 = vpop.trf.xlu0
    %v12114 = vpop.trf.xlu0
    %v12115 = vpop.trf.xlu0
    %v12116 = vpop.trf.xlu0
    %v12117 = vpop.trf.xlu0
    %v12118 = vpop.trf.xlu0
    %v12119 = vpop.trf.xlu0
    %v12120 = vpop.trf.xlu0
    %12121 = vset.pattern.permute.xlu0 72
    %12122 = vperm.xlu0 %12121, %v11811
    %v12123 = vpop.permute.xlu0 %12122
    %v12125 = vlaneseq
    %v12126 = vshrl.u32 %v12125, 7
    %v12127 = vsub.s32 0, %v12126
    %v12128 = vrot.slane %v12105, %v12127
    %v12129 = vadd.f32 %v12123, %v12128
    %vm12130 = vcmp.gt.f32.partialorder %v12129, 0.0
    %v12131 = vmul.f32 %v12129, 0.2
    %v12132 = vsel %vm12130, %v12129, %v12131
    %v12133 = vsel %vm32, %v12132, -1e+30
    %v12134 = vsel %vm556, %v12133, -inf
    %12135 = vmax.xlane.f32.xlu0 %v12134
    %v12136 = vpop.xlane.xlu0 %12135
    %v12137 = vsub.f32 %v12133, %v12136
    %v12138 = vmul.f32 %v12137, 1.442695
    %v12139 = vpow.pop %v12138
    %v12140 = vsel %vm32, %v12139, 0.0
    %v12141 = vsel %vm556, %v12140, 0.0
    %12142 = vadd.xlane.f32.xlu0 %v12141
    %v12143 = vpop.xlane.xlu0 %12142
    %v12144 = vrcp.pop %v12143
    %v12145 = vmul.f32 %v12140, %v12144
    %v12147 = vsel %vm556, %v12145, 0
    %12149 = vmatprep.subr.mxu0 0.0
    %12150 = vmatpush1.msra.mxu0 0.0
    %12151 = vmatprep.subr.mxu0 0.0
    %12152 = vmatpush1.msra.mxu0 0.0
    %12153 = vmatprep.subr.mxu0 0.0
    %12154 = vmatpush1.msra.mxu0 0.0
    %12155 = vmatprep.subr.mxu0 0.0
    %12156 = vmatpush1.msra.mxu0 0.0
    %12157 = vmatprep.subr.mxu0 0.0
    %12158 = vmatpush1.msra.mxu0 0.0
    %12159 = vmatprep.subr.mxu0 0.0
    %12160 = vmatpush1.msra.mxu0 0.0
    %12161 = vmatprep.subr.mxu0 0.0
    %12162 = vmatpush1.msra.mxu0 0.0
    %12163 = vmatprep.subr.mxu0 0.0
    %12164 = vmatpush1.msra.mxu0 0.0
    %12165 = vmatprep.subr.mxu0 0.0
    %12166 = vmatpush1.msra.mxu0 0.0
    %12167 = vmatprep.subr.mxu0 0.0
    %12168 = vmatpush1.msra.mxu0 0.0
    %12169 = vmatprep.subr.mxu0 0.0
    %12170 = vmatpush1.msra.mxu0 0.0
    %12171 = vmatprep.subr.mxu0 0.0
    %12172 = vmatpush1.msra.mxu0 0.0
    %12173 = vmatprep.subr.mxu0 0.0
    %12174 = vmatpush1.msra.mxu0 0.0
    %12175 = vmatprep.subr.mxu0 0.0
    %12176 = vmatpush1.msra.mxu0 0.0
    %12177 = vmatprep.subr.mxu0 0.0
    %12178 = vmatpush1.msra.mxu0 0.0
    %12179 = vmatprep.subr.mxu0 0.0
    %12180 = vmatpush1.msra.mxu0 %v11647
    %12181 = vmatprep.subr.mxu0 0.0
    %12182 = vmatpush2.msra.mxu0 0.0
    %12183 = vmatprep.subr.mxu0 0.0
    %12184 = vmatpush2.msra.mxu0 0.0
    %12185 = vmatprep.subr.mxu0 0.0
    %12186 = vmatpush2.msra.mxu0 0.0
    %12187 = vmatprep.subr.mxu0 0.0
    %12188 = vmatpush2.msra.mxu0 0.0
    %12189 = vmatprep.subr.mxu0 0.0
    %12190 = vmatpush2.msra.mxu0 0.0
    %12191 = vmatprep.subr.mxu0 0.0
    %12192 = vmatpush2.msra.mxu0 0.0
    %12193 = vmatprep.subr.mxu0 0.0
    %12194 = vmatpush2.msra.mxu0 0.0
    %12195 = vmatprep.subr.mxu0 0.0
    %12196 = vmatpush2.msra.mxu0 0.0
    %12197 = vmatprep.subr.mxu0 0.0
    %12198 = vmatpush2.msra.mxu0 0.0
    %12199 = vmatprep.subr.mxu0 0.0
    %12200 = vmatpush2.msra.mxu0 0.0
    %12201 = vmatprep.subr.mxu0 0.0
    %12202 = vmatpush2.msra.mxu0 0.0
    %12203 = vmatprep.subr.mxu0 0.0
    %12204 = vmatpush2.msra.mxu0 0.0
    %12205 = vmatprep.subr.mxu0 0.0
    %12206 = vmatpush2.msra.mxu0 0.0
    %12207 = vmatprep.subr.mxu0 0.0
    %12208 = vmatpush2.msra.mxu0 0.0
    %12209 = vmatprep.subr.mxu0 0.0
    %12210 = vmatpush2.msra.mxu0 0.0
    %12211 = vmatprep.subr.mxu0 0.0
    %12212 = vmatpush2.msra.mxu0 0.0
    %12213 = vmatprep.mubr.f32.mxu0 0.0
    %12214 = vmatmul.mubr.f32.gmra.mxu0 %v12147
    %v12215 = vpop.f32.mrf.mxu0
    %v12216 = vadd.f32 0.0, %v12215
    %v12217 = vpop.f32.mrf.mxu0
    %12218 = vdwg.mxu0
    %v12219 = vadd.f32 %v12083, %v12216
    %12220 = vrot.lane.b32.xlu0 %v11811, 61
    %v12221 = vpop.permute.xlu0 %12220
    %12223 = vxpose.xlu0.b32.start [1/16] %v12221, 128
    %12224 = vxpose.xlu0.b32.cont [2/16] 0.0, 128
    %12225 = vxpose.xlu0.b32.cont [3/16] 0.0, 128
    %12226 = vxpose.xlu0.b32.cont [4/16] 0.0, 128
    %12227 = vxpose.xlu0.b32.cont [5/16] 0.0, 128
    %12228 = vxpose.xlu0.b32.cont [6/16] 0.0, 128
    %12229 = vxpose.xlu0.b32.cont [7/16] 0.0, 128
    %12230 = vxpose.xlu0.b32.cont [8/16] 0.0, 128
    %12231 = vxpose.xlu0.b32.cont [9/16] 0.0, 128
    %12232 = vxpose.xlu0.b32.cont [10/16] 0.0, 128
    %12233 = vxpose.xlu0.b32.cont [11/16] 0.0, 128
    %12234 = vxpose.xlu0.b32.cont [12/16] 0.0, 128
    %12235 = vxpose.xlu0.b32.cont [13/16] 0.0, 128
    %12236 = vxpose.xlu0.b32.cont [14/16] 0.0, 128
    %12237 = vxpose.xlu0.b32.cont [15/16] 0.0, 128
    %12238 = vxpose.xlu0.b32.end [16/16] 0.0, 128
    %v12239 = vpop.trf.xlu0
    %v12240 = vpop.trf.xlu0
    %v12241 = vpop.trf.xlu0
    %v12242 = vpop.trf.xlu0
    %v12243 = vpop.trf.xlu0
    %v12244 = vpop.trf.xlu0
    %v12245 = vpop.trf.xlu0
    %v12246 = vpop.trf.xlu0
    %v12247 = vpop.trf.xlu0
    %v12248 = vpop.trf.xlu0
    %v12249 = vpop.trf.xlu0
    %v12250 = vpop.trf.xlu0
    %v12251 = vpop.trf.xlu0
    %v12252 = vpop.trf.xlu0
    %v12253 = vpop.trf.xlu0
    %v12254 = vpop.trf.xlu0
    %12255 = vset.pattern.permute.xlu0 73
    %12256 = vperm.xlu0 %12255, %v11811
    %v12257 = vpop.permute.xlu0 %12256
    %v12259 = vlaneseq
    %v12260 = vshrl.u32 %v12259, 7
    %v12261 = vsub.s32 0, %v12260
    %v12262 = vrot.slane %v12239, %v12261
    %v12263 = vadd.f32 %v12257, %v12262
    %vm12264 = vcmp.gt.f32.partialorder %v12263, 0.0
    %v12265 = vmul.f32 %v12263, 0.2
    %v12266 = vsel %vm12264, %v12263, %v12265
    %v12267 = vsel %vm32, %v12266, -1e+30
    %v12268 = vsel %vm556, %v12267, -inf
    %12269 = vmax.xlane.f32.xlu0 %v12268
    %v12270 = vpop.xlane.xlu0 %12269
    %v12271 = vsub.f32 %v12267, %v12270
    %v12272 = vmul.f32 %v12271, 1.442695
    %v12273 = vpow.pop %v12272
    %v12274 = vsel %vm32, %v12273, 0.0
    %v12275 = vsel %vm556, %v12274, 0.0
    %12276 = vadd.xlane.f32.xlu0 %v12275
    %v12277 = vpop.xlane.xlu0 %12276
    %v12278 = vrcp.pop %v12277
    %v12279 = vmul.f32 %v12274, %v12278
    %12281 = vrot.lane.b32.xlu0 %v11647, 64
    %v12282 = vpop.permute.xlu0 %12281
    %v12285 = vsel %vm556, %v12279, 0
    %12287 = vmatprep.subr.mxu0 0.0
    %12288 = vmatpush1.msra.mxu0 0.0
    %12289 = vmatprep.subr.mxu0 0.0
    %12290 = vmatpush1.msra.mxu0 0.0
    %12291 = vmatprep.subr.mxu0 0.0
    %12292 = vmatpush1.msra.mxu0 0.0
    %12293 = vmatprep.subr.mxu0 0.0
    %12294 = vmatpush1.msra.mxu0 0.0
    %12295 = vmatprep.subr.mxu0 0.0
    %12296 = vmatpush1.msra.mxu0 0.0
    %12297 = vmatprep.subr.mxu0 0.0
    %12298 = vmatpush1.msra.mxu0 0.0
    %12299 = vmatprep.subr.mxu0 0.0
    %12300 = vmatpush1.msra.mxu0 0.0
    %12301 = vmatprep.subr.mxu0 0.0
    %12302 = vmatpush1.msra.mxu0 0.0
    %12303 = vmatprep.subr.mxu0 0.0
    %12304 = vmatpush1.msra.mxu0 0.0
    %12305 = vmatprep.subr.mxu0 0.0
    %12306 = vmatpush1.msra.mxu0 0.0
    %12307 = vmatprep.subr.mxu0 0.0
    %12308 = vmatpush1.msra.mxu0 0.0
    %12309 = vmatprep.subr.mxu0 0.0
    %12310 = vmatpush1.msra.mxu0 0.0
    %12311 = vmatprep.subr.mxu0 0.0
    %12312 = vmatpush1.msra.mxu0 0.0
    %12313 = vmatprep.subr.mxu0 0.0
    %12314 = vmatpush1.msra.mxu0 0.0
    %12315 = vmatprep.subr.mxu0 0.0
    %12316 = vmatpush1.msra.mxu0 0.0
    %12317 = vmatprep.subr.mxu0 0.0
    %12318 = vmatpush1.msra.mxu0 %v12282
    %12319 = vmatprep.subr.mxu0 0.0
    %12320 = vmatpush2.msra.mxu0 0.0
    %12321 = vmatprep.subr.mxu0 0.0
    %12322 = vmatpush2.msra.mxu0 0.0
    %12323 = vmatprep.subr.mxu0 0.0
    %12324 = vmatpush2.msra.mxu0 0.0
    %12325 = vmatprep.subr.mxu0 0.0
    %12326 = vmatpush2.msra.mxu0 0.0
    %12327 = vmatprep.subr.mxu0 0.0
    %12328 = vmatpush2.msra.mxu0 0.0
    %12329 = vmatprep.subr.mxu0 0.0
    %12330 = vmatpush2.msra.mxu0 0.0
    %12331 = vmatprep.subr.mxu0 0.0
    %12332 = vmatpush2.msra.mxu0 0.0
    %12333 = vmatprep.subr.mxu0 0.0
    %12334 = vmatpush2.msra.mxu0 0.0
    %12335 = vmatprep.subr.mxu0 0.0
    %12336 = vmatpush2.msra.mxu0 0.0
    %12337 = vmatprep.subr.mxu0 0.0
    %12338 = vmatpush2.msra.mxu0 0.0
    %12339 = vmatprep.subr.mxu0 0.0
    %12340 = vmatpush2.msra.mxu0 0.0
    %12341 = vmatprep.subr.mxu0 0.0
    %12342 = vmatpush2.msra.mxu0 0.0
    %12343 = vmatprep.subr.mxu0 0.0
    %12344 = vmatpush2.msra.mxu0 0.0
    %12345 = vmatprep.subr.mxu0 0.0
    %12346 = vmatpush2.msra.mxu0 0.0
    %12347 = vmatprep.subr.mxu0 0.0
    %12348 = vmatpush2.msra.mxu0 0.0
    %12349 = vmatprep.subr.mxu0 0.0
    %12350 = vmatpush2.msra.mxu0 0.0
    %12351 = vmatprep.mubr.f32.mxu0 0.0
    %12352 = vmatmul.mubr.f32.gmra.mxu0 %v12285
    %v12353 = vpop.f32.mrf.mxu0
    %v12354 = vadd.f32 0.0, %v12353
    %v12355 = vpop.f32.mrf.mxu0
    %12356 = vdwg.mxu0
    %v12357 = vadd.f32 %v12219, %v12354
    %12358 = vrot.lane.b32.xlu0 %v11811, 60
    %v12359 = vpop.permute.xlu0 %12358
    %12361 = vxpose.xlu0.b32.start [1/16] %v12359, 128
    %12362 = vxpose.xlu0.b32.cont [2/16] 0.0, 128
    %12363 = vxpose.xlu0.b32.cont [3/16] 0.0, 128
    %12364 = vxpose.xlu0.b32.cont [4/16] 0.0, 128
    %12365 = vxpose.xlu0.b32.cont [5/16] 0.0, 128
    %12366 = vxpose.xlu0.b32.cont [6/16] 0.0, 128
    %12367 = vxpose.xlu0.b32.cont [7/16] 0.0, 128
    %12368 = vxpose.xlu0.b32.cont [8/16] 0.0, 128
    %12369 = vxpose.xlu0.b32.cont [9/16] 0.0, 128
    %12370 = vxpose.xlu0.b32.cont [10/16] 0.0, 128
    %12371 = vxpose.xlu0.b32.cont [11/16] 0.0, 128
    %12372 = vxpose.xlu0.b32.cont [12/16] 0.0, 128
    %12373 = vxpose.xlu0.b32.cont [13/16] 0.0, 128
    %12374 = vxpose.xlu0.b32.cont [14/16] 0.0, 128
    %12375 = vxpose.xlu0.b32.cont [15/16] 0.0, 128
    %12376 = vxpose.xlu0.b32.end [16/16] 0.0, 128
    %v12377 = vpop.trf.xlu0
    %v12378 = vpop.trf.xlu0
    %v12379 = vpop.trf.xlu0
    %v12380 = vpop.trf.xlu0
    %v12381 = vpop.trf.xlu0
    %v12382 = vpop.trf.xlu0
    %v12383 = vpop.trf.xlu0
    %v12384 = vpop.trf.xlu0
    %v12385 = vpop.trf.xlu0
    %v12386 = vpop.trf.xlu0
    %v12387 = vpop.trf.xlu0
    %v12388 = vpop.trf.xlu0
    %v12389 = vpop.trf.xlu0
    %v12390 = vpop.trf.xlu0
    %v12391 = vpop.trf.xlu0
    %v12392 = vpop.trf.xlu0
    %12393 = vset.pattern.permute.xlu0 74
    %12394 = vperm.xlu0 %12393, %v11811
    %v12395 = vpop.permute.xlu0 %12394
    %v12397 = vlaneseq
    %v12398 = vshrl.u32 %v12397, 7
    %v12399 = vsub.s32 0, %v12398
    %v12400 = vrot.slane %v12377, %v12399
    %v12401 = vadd.f32 %v12395, %v12400
    %vm12402 = vcmp.gt.f32.partialorder %v12401, 0.0
    %v12403 = vmul.f32 %v12401, 0.2
    %v12404 = vsel %vm12402, %v12401, %v12403
    %v12405 = vsel %vm32, %v12404, -1e+30
    %v12406 = vsel %vm556, %v12405, -inf
    %12407 = vmax.xlane.f32.xlu0 %v12406
    %v12408 = vpop.xlane.xlu0 %12407
    %v12409 = vsub.f32 %v12405, %v12408
    %v12410 = vmul.f32 %v12409, 1.442695
    %v12411 = vpow.pop %v12410
    %v12412 = vsel %vm32, %v12411, 0.0
    %v12413 = vsel %vm556, %v12412, 0.0
    %12414 = vadd.xlane.f32.xlu0 %v12413
    %v12415 = vpop.xlane.xlu0 %12414
    %v12416 = vrcp.pop %v12415
    %v12417 = vmul.f32 %v12412, %v12416
    %v12419 = vsel %vm556, %v12417, 0
    %12421 = vmatprep.subr.mxu0 0.0
    %12422 = vmatpush1.msra.mxu0 0.0
    %12423 = vmatprep.subr.mxu0 0.0
    %12424 = vmatpush1.msra.mxu0 0.0
    %12425 = vmatprep.subr.mxu0 0.0
    %12426 = vmatpush1.msra.mxu0 0.0
    %12427 = vmatprep.subr.mxu0 0.0
    %12428 = vmatpush1.msra.mxu0 0.0
    %12429 = vmatprep.subr.mxu0 0.0
    %12430 = vmatpush1.msra.mxu0 0.0
    %12431 = vmatprep.subr.mxu0 0.0
    %12432 = vmatpush1.msra.mxu0 0.0
    %12433 = vmatprep.subr.mxu0 0.0
    %12434 = vmatpush1.msra.mxu0 0.0
    %12435 = vmatprep.subr.mxu0 0.0
    %12436 = vmatpush1.msra.mxu0 0.0
    %12437 = vmatprep.subr.mxu0 0.0
    %12438 = vmatpush1.msra.mxu0 0.0
    %12439 = vmatprep.subr.mxu0 0.0
    %12440 = vmatpush1.msra.mxu0 0.0
    %12441 = vmatprep.subr.mxu0 0.0
    %12442 = vmatpush1.msra.mxu0 0.0
    %12443 = vmatprep.subr.mxu0 0.0
    %12444 = vmatpush1.msra.mxu0 0.0
    %12445 = vmatprep.subr.mxu0 0.0
    %12446 = vmatpush1.msra.mxu0 0.0
    %12447 = vmatprep.subr.mxu0 0.0
    %12448 = vmatpush1.msra.mxu0 0.0
    %12449 = vmatprep.subr.mxu0 0.0
    %12450 = vmatpush1.msra.mxu0 0.0
    %12451 = vmatprep.subr.mxu0 0.0
    %12452 = vmatpush1.msra.mxu0 %v11809
    %12453 = vmatprep.subr.mxu0 0.0
    %12454 = vmatpush2.msra.mxu0 0.0
    %12455 = vmatprep.subr.mxu0 0.0
    %12456 = vmatpush2.msra.mxu0 0.0
    %12457 = vmatprep.subr.mxu0 0.0
    %12458 = vmatpush2.msra.mxu0 0.0
    %12459 = vmatprep.subr.mxu0 0.0
    %12460 = vmatpush2.msra.mxu0 0.0
    %12461 = vmatprep.subr.mxu0 0.0
    %12462 = vmatpush2.msra.mxu0 0.0
    %12463 = vmatprep.subr.mxu0 0.0
    %12464 = vmatpush2.msra.mxu0 0.0
    %12465 = vmatprep.subr.mxu0 0.0
    %12466 = vmatpush2.msra.mxu0 0.0
    %12467 = vmatprep.subr.mxu0 0.0
    %12468 = vmatpush2.msra.mxu0 0.0
    %12469 = vmatprep.subr.mxu0 0.0
    %12470 = vmatpush2.msra.mxu0 0.0
    %12471 = vmatprep.subr.mxu0 0.0
    %12472 = vmatpush2.msra.mxu0 0.0
    %12473 = vmatprep.subr.mxu0 0.0
    %12474 = vmatpush2.msra.mxu0 0.0
    %12475 = vmatprep.subr.mxu0 0.0
    %12476 = vmatpush2.msra.mxu0 0.0
    %12477 = vmatprep.subr.mxu0 0.0
    %12478 = vmatpush2.msra.mxu0 0.0
    %12479 = vmatprep.subr.mxu0 0.0
    %12480 = vmatpush2.msra.mxu0 0.0
    %12481 = vmatprep.subr.mxu0 0.0
    %12482 = vmatpush2.msra.mxu0 0.0
    %12483 = vmatprep.subr.mxu0 0.0
    %12484 = vmatpush2.msra.mxu0 0.0
    %12485 = vmatprep.mubr.f32.mxu0 0.0
    %12486 = vmatmul.mubr.f32.gmra.mxu0 %v12419
    %v12487 = vpop.f32.mrf.mxu0
    %v12488 = vadd.f32 0.0, %v12487
    %v12489 = vpop.f32.mrf.mxu0
    %12490 = vdwg.mxu0
    %v12491 = vadd.f32 %v12357, %v12488
    %12492 = vrot.lane.b32.xlu0 %v11811, 59
    %v12493 = vpop.permute.xlu0 %12492
    %12495 = vxpose.xlu0.b32.start [1/16] %v12493, 128
    %12496 = vxpose.xlu0.b32.cont [2/16] 0.0, 128
    %12497 = vxpose.xlu0.b32.cont [3/16] 0.0, 128
    %12498 = vxpose.xlu0.b32.cont [4/16] 0.0, 128
    %12499 = vxpose.xlu0.b32.cont [5/16] 0.0, 128
    %12500 = vxpose.xlu0.b32.cont [6/16] 0.0, 128
    %12501 = vxpose.xlu0.b32.cont [7/16] 0.0, 128
    %12502 = vxpose.xlu0.b32.cont [8/16] 0.0, 128
    %12503 = vxpose.xlu0.b32.cont [9/16] 0.0, 128
    %12504 = vxpose.xlu0.b32.cont [10/16] 0.0, 128
    %12505 = vxpose.xlu0.b32.cont [11/16] 0.0, 128
    %12506 = vxpose.xlu0.b32.cont [12/16] 0.0, 128
    %12507 = vxpose.xlu0.b32.cont [13/16] 0.0, 128
    %12508 = vxpose.xlu0.b32.cont [14/16] 0.0, 128
    %12509 = vxpose.xlu0.b32.cont [15/16] 0.0, 128
    %12510 = vxpose.xlu0.b32.end [16/16] 0.0, 128
    %v12511 = vpop.trf.xlu0
    %v12512 = vpop.trf.xlu0
    %v12513 = vpop.trf.xlu0
    %v12514 = vpop.trf.xlu0
    %v12515 = vpop.trf.xlu0
    %v12516 = vpop.trf.xlu0
    %v12517 = vpop.trf.xlu0
    %v12518 = vpop.trf.xlu0
    %v12519 = vpop.trf.xlu0
    %v12520 = vpop.trf.xlu0
    %v12521 = vpop.trf.xlu0
    %v12522 = vpop.trf.xlu0
    %v12523 = vpop.trf.xlu0
    %v12524 = vpop.trf.xlu0
    %v12525 = vpop.trf.xlu0
    %v12526 = vpop.trf.xlu0
    %12527 = vset.pattern.permute.xlu0 75
    %12528 = vperm.xlu0 %12527, %v11811
    %v12529 = vpop.permute.xlu0 %12528
    %v12531 = vlaneseq
    %v12532 = vshrl.u32 %v12531, 7
    %v12533 = vsub.s32 0, %v12532
    %v12534 = vrot.slane %v12511, %v12533
    %v12535 = vadd.f32 %v12529, %v12534
    %vm12536 = vcmp.gt.f32.partialorder %v12535, 0.0
    %v12537 = vmul.f32 %v12535, 0.2
    %v12538 = vsel %vm12536, %v12535, %v12537
    %v12539 = vsel %vm32, %v12538, -1e+30
    %v12540 = vsel %vm556, %v12539, -inf
    %12541 = vmax.xlane.f32.xlu0 %v12540
    %v12542 = vpop.xlane.xlu0 %12541
    %v12543 = vsub.f32 %v12539, %v12542
    %v12544 = vmul.f32 %v12543, 1.442695
    %v12545 = vpow.pop %v12544
    %v12546 = vsel %vm32, %v12545, 0.0
    %v12547 = vsel %vm556, %v12546, 0.0
    %12548 = vadd.xlane.f32.xlu0 %v12547
    %v12549 = vpop.xlane.xlu0 %12548
    %v12550 = vrcp.pop %v12549
    %v12551 = vmul.f32 %v12546, %v12550
    %12553 = vrot.lane.b32.xlu0 %v11809, 64
    %v12554 = vpop.permute.xlu0 %12553
    %v12557 = vsel %vm556, %v12551, 0
    %12559 = vmatprep.subr.mxu0 0.0
    %12560 = vmatpush1.msra.mxu0 0.0
    %12561 = vmatprep.subr.mxu0 0.0
    %12562 = vmatpush1.msra.mxu0 0.0
    %12563 = vmatprep.subr.mxu0 0.0
    %12564 = vmatpush1.msra.mxu0 0.0
    %12565 = vmatprep.subr.mxu0 0.0
    %12566 = vmatpush1.msra.mxu0 0.0
    %12567 = vmatprep.subr.mxu0 0.0
    %12568 = vmatpush1.msra.mxu0 0.0
    %12569 = vmatprep.subr.mxu0 0.0
    %12570 = vmatpush1.msra.mxu0 0.0
    %12571 = vmatprep.subr.mxu0 0.0
    %12572 = vmatpush1.msra.mxu0 0.0
    %12573 = vmatprep.subr.mxu0 0.0
    %12574 = vmatpush1.msra.mxu0 0.0
    %12575 = vmatprep.subr.mxu0 0.0
    %12576 = vmatpush1.msra.mxu0 0.0
    %12577 = vmatprep.subr.mxu0 0.0
    %12578 = vmatpush1.msra.mxu0 0.0
    %12579 = vmatprep.subr.mxu0 0.0
    %12580 = vmatpush1.msra.mxu0 0.0
    %12581 = vmatprep.subr.mxu0 0.0
    %12582 = vmatpush1.msra.mxu0 0.0
    %12583 = vmatprep.subr.mxu0 0.0
    %12584 = vmatpush1.msra.mxu0 0.0
    %12585 = vmatprep.subr.mxu0 0.0
    %12586 = vmatpush1.msra.mxu0 0.0
    %12587 = vmatprep.subr.mxu0 0.0
    %12588 = vmatpush1.msra.mxu0 0.0
    %12589 = vmatprep.subr.mxu0 0.0
    %12590 = vmatpush1.msra.mxu0 %v12554
    %12591 = vmatprep.subr.mxu0 0.0
    %12592 = vmatpush2.msra.mxu0 0.0
    %12593 = vmatprep.subr.mxu0 0.0
    %12594 = vmatpush2.msra.mxu0 0.0
    %12595 = vmatprep.subr.mxu0 0.0
    %12596 = vmatpush2.msra.mxu0 0.0
    %12597 = vmatprep.subr.mxu0 0.0
    %12598 = vmatpush2.msra.mxu0 0.0
    %12599 = vmatprep.subr.mxu0 0.0
    %12600 = vmatpush2.msra.mxu0 0.0
    %12601 = vmatprep.subr.mxu0 0.0
    %12602 = vmatpush2.msra.mxu0 0.0
    %12603 = vmatprep.subr.mxu0 0.0
    %12604 = vmatpush2.msra.mxu0 0.0
    %12605 = vmatprep.subr.mxu0 0.0
    %12606 = vmatpush2.msra.mxu0 0.0
    %12607 = vmatprep.subr.mxu0 0.0
    %12608 = vmatpush2.msra.mxu0 0.0
    %12609 = vmatprep.subr.mxu0 0.0
    %12610 = vmatpush2.msra.mxu0 0.0
    %12611 = vmatprep.subr.mxu0 0.0
    %12612 = vmatpush2.msra.mxu0 0.0
    %12613 = vmatprep.subr.mxu0 0.0
    %12614 = vmatpush2.msra.mxu0 0.0
    %12615 = vmatprep.subr.mxu0 0.0
    %12616 = vmatpush2.msra.mxu0 0.0
    %12617 = vmatprep.subr.mxu0 0.0
    %12618 = vmatpush2.msra.mxu0 0.0
    %12619 = vmatprep.subr.mxu0 0.0
    %12620 = vmatpush2.msra.mxu0 0.0
    %12621 = vmatprep.subr.mxu0 0.0
    %12622 = vmatpush2.msra.mxu0 0.0
    %12623 = vmatprep.mubr.f32.mxu0 0.0
    %12624 = vmatmul.mubr.f32.gmra.mxu0 %v12557
    %v12625 = vpop.f32.mrf.mxu0
    %v12626 = vadd.f32 0.0, %v12625
    %v12627 = vpop.f32.mrf.mxu0
    %12628 = vdwg.mxu0
    %v12629 = vadd.f32 %v12491, %v12626
    %v12630 = vmul.f32 %v12629, 0.16666667
    %v12631 = vld [vmem:[%s7] sm:$0x1]
    %v12633 = vlaneseq
    %v12634 = vshrl.u32 %v12633, 7
    %v12635 = vsub.s32 0, %v12634
    %v12636 = vrot.slane %v12631, %v12635
    %v12638 = vadd.f32 %v12630, %v12636
    %v12639 = vadd.f32 %v12638, %v11811
    %vm12640 = vcmask 523264
    %12641 = vst.msk [vmem:[#allocation3] sm:$0xff] %vm12640, %v12639
    // Predicated region
    $region34: #{tpu_custom_call.1} parent=1 // pred_check
      _
    $region35: #{tpu_custom_call.1} parent=1 // pred_check_branch
      %12643 = sbr.rel (0) target = $region37
    $region36: #{tpu_custom_call.1} parent=1 // pred_region
      %s12645 = ssub.s32 128, 128
      %12646 = vsyncadd [#allocation4], %s12645
      %s12648 = sshll.u32 [#allocation3], 4
      %s12649 = int_to_ptr.vmem [resolvable:$true] %s12648
      %12651 = dma.vmem_to_hbm [thread:$0]  %s12649, 128, %s8, [#allocation4]
    $region37: #{tpu_custom_call.1} parent=1 // pred_fallthru
      _
    // Predicated region
    $region38: #{tpu_custom_call.1} parent=1 // pred_check
      _
    $region39: #{tpu_custom_call.1} parent=1 // pred_check_branch
      %12653 = sbr.rel (0) target = $region41
    $region40: #{tpu_custom_call.1} parent=1 // pred_region
      %12654 = dma.done [#allocation4], 128
    $region41: #{tpu_custom_call.1} parent=1 // pred_fallthru
      _
    %12655 = vsyncpa [#allocation4], 1

</llo_original>
